<compile_context>
chip_gen: v6e
topology: v6e:2x2x1
jax: 0.10.0
libtpu: 0.0.40
codegen_flags: <defaults>
</compile_context>

<pallas_src>
import functools

import jax
import jax.numpy as jnp
from jax.experimental import pallas as pl
from jax.experimental.pallas import tpu as pltpu

_NEG = -1.0e30                 # effective -inf for bf16 max-pool padding/masking
_MIN_C = 128                   # minimum physical channel width (lane-dense)
_VMEM_LIMIT = 32 * 1024 * 1024


# --------------------------------------------------------------------------- #
# helpers
# --------------------------------------------------------------------------- #
def _pick_tile(dim, candidates):
    for c in candidates:
        if dim % c == 0:
            return c
    return dim


def _pick_tk(K):
    # Keep the whole K resident (single accumulation pass) whenever it fits.
    if K <= 2304:
        return K
    for c in (2304, 2048, 1536, 1280, 1152, 1024, 768, 640, 512, 384, 256, 128):
        if K % c == 0:
            return c
    return K


# --------------------------------------------------------------------------- #
# Kernel 1: tiled matmul with fused BN-affine / ReLU / residual epilogue
# --------------------------------------------------------------------------- #
def _mm_bn_kernel(a_ref, w_ref, scale_ref, shift_ref, o_ref, acc_ref, *, act):
    @pl.when(pl.program_id(2) == 0)
    def _():
        acc_ref[...] = jnp.zeros_like(acc_ref)

    acc_ref[...] += jnp.dot(a_ref[...], w_ref[...],
                            preferred_element_type=jnp.float32)

    @pl.when(pl.program_id(2) == pl.num_programs(2) - 1)
    def _():
        out = acc_ref[...] * scale_ref[...] + shift_ref[...]
        if act == "relu":
            out = jnp.maximum(out, 0.0)
        o_ref[...] = out.astype(o_ref.dtype)


def _mm_bn_res_kernel(a_ref, w_ref, scale_ref, shift_ref, res_ref, o_ref,
                      acc_ref, *, act):
    @pl.when(pl.program_id(2) == 0)
    def _():
        acc_ref[...] = jnp.zeros_like(acc_ref)

    acc_ref[...] += jnp.dot(a_ref[...], w_ref[...],
                            preferred_element_type=jnp.float32)

    @pl.when(pl.program_id(2) == pl.num_programs(2) - 1)
    def _():
        out = (acc_ref[...] * scale_ref[...] + shift_ref[...]
               + res_ref[...].astype(jnp.float32))
        if act == "relu":
            out = jnp.maximum(out, 0.0)
        o_ref[...] = out.astype(o_ref.dtype)


def matmul_bn(a, w, scale, shift, *, act="none", residual=None,
              out_dtype=jnp.bfloat16):
    """out = act((a @ w) * scale + shift [+ residual]); bf16 MXU, f32 accum."""
    M, K = a.shape
    K2, N = w.shape
    assert K == K2
    assert N % 128 == 0, f"Cout {N} must be lane-dense (multiple of 128)"
    a = a.astype(jnp.bfloat16)
    w = w.astype(jnp.bfloat16)
    scale = scale.reshape(1, N).astype(jnp.float32)
    shift = shift.reshape(1, N).astype(jnp.float32)
    if residual is not None:
        residual = residual.astype(jnp.bfloat16)

    # Pad M so bf16 A-tiles never drop below the (16, 128) minimum tile.
    Mp0 = max(16, ((M + 15) // 16) * 16)
    tm = max(c for c in (256, 128, 64, 32, 16) if c <= Mp0)
    Mp = ((Mp0 + tm - 1) // tm) * tm
    if Mp != M:
        a = jnp.pad(a, ((0, Mp - M), (0, 0)))
        if residual is not None:
            residual = jnp.pad(residual, ((0, Mp - M), (0, 0)))

    tn = _pick_tile(N, (512, 256, 128))
    if Mp // tm == 1 and N // tn == 1 and N >= 256:
        tn = N // 2        # keep >=2 parallel blocks so v7x's 2nd core has work
    tk = _pick_tk(K)       # full K for every ResNet 1x1 conv -> single MXU pass
    grid = (Mp // tm, N // tn, K // tk)

    in_specs = [
        pl.BlockSpec((tm, tk), lambda i, j, k: (i, k)),
        pl.BlockSpec((tk, tn), lambda i, j, k: (k, j)),
        pl.BlockSpec((1, tn), lambda i, j, k: (0, j)),
        pl.BlockSpec((1, tn), lambda i, j, k: (0, j)),
    ]
    operands = [a, w, scale, shift]
    if residual is not None:
        in_specs.append(pl.BlockSpec((tm, tn), lambda i, j, k: (i, j)))
        operands.append(residual)
        kernel = functools.partial(_mm_bn_res_kernel, act=act)
    else:
        kernel = functools.partial(_mm_bn_kernel, act=act)

    out = pl.pallas_call(
        kernel,
        out_shape=jax.ShapeDtypeStruct((Mp, N), out_dtype),
        grid_spec=pltpu.PrefetchScalarGridSpec(
            num_scalar_prefetch=0,
            grid=grid,
            in_specs=in_specs,
            out_specs=pl.BlockSpec((tm, tn), lambda i, j, k: (i, j)),
            scratch_shapes=[pltpu.VMEM((tm, tn), jnp.float32)],
        ),
        compiler_params=pltpu.CompilerParams(
            dimension_semantics=("parallel", "parallel", "arbitrary"),
            vmem_limit_bytes=_VMEM_LIMIT),
    )(*operands)
    return out[:M] if Mp != M else out


# --------------------------------------------------------------------------- #
# Kernel 2: fused 3x3 stride-1 conv (+BN +ReLU) -- in-kernel im2col, one dot
#   The activation is flattened to (T=H*W, C) and zero-padded with P=W+1 rows
#   on each side.  Tap (kh,kw) is a pure row shift of d=(kh-1)*W+(kw-1); H
#   overflow lands in the zero padding and W wrap-around is killed by
#   source-side column masks.  The two masked source copies are computed once
#   per tile (hoisted), the 9 taps are concatenated along K, and a single
#   jnp.dot against the (9*Cin, tn) weight does one MXU accumulation pass.
# --------------------------------------------------------------------------- #
def _conv3x3_s1_kernel(xp_ref, ml_ref, mr_ref, w_ref, scale_ref, shift_ref,
                       o_ref, *, W, P, tT, act):
    win = tT + 2 * P
    t0 = pl.program_id(1) * tT
    if tT % 8 == 0:
        t0 = pl.multiple_of(t0, 8)
    xw = xp_ref[0, pl.ds(t0, win), :]            # (win, Cin) bf16 window
    xl = xw * ml_ref[pl.ds(t0, win), :]          # masked copy for kw = -1 taps
    xr = xw * mr_ref[pl.ds(t0, win), :]          # masked copy for kw = +1 taps
    taps = []
    for kh in range(3):
        base = P + (kh - 1) * W                  # row shift of tap (kh, kw=0)
        taps.append(xl[base - 1:base - 1 + tT, :])
        taps.append(xw[base:base + tT, :])
        taps.append(xr[base + 1:base + 1 + tT, :])
    patches = jnp.concatenate(taps, axis=1)      # (tT, 9*Cin) im2col tile
    out = jnp.dot(patches, w_ref[...], preferred_element_type=jnp.float32)
    out = out * scale_ref[...] + shift_ref[...]
    if act == "relu":
        out = jnp.maximum(out, 0.0)
    o_ref[0] = out.astype(o_ref.dtype)


def conv3x3_bn_s1(x, w, scale, shift, *, act="relu"):
    """x: (N,H,W,Cin) NHWC, w: (3,3,Cin,Cout), stride 1, pad 1."""
    N, H, W, Cin = x.shape
    Cout = w.shape[3]
    T = H * W
    P = W + 1
    Tp = T + 2 * P
    xp = jnp.pad(x.reshape(N, T, Cin).astype(jnp.bfloat16),
                 ((0, 0), (P, P), (0, 0)))
    w = w.astype(jnp.bfloat16).reshape(9 * Cin, Cout)
    scale = scale.reshape(1, Cout).astype(jnp.float32)
    shift = shift.reshape(1, Cout).astype(jnp.float32)

    # Source-side width-wrap masks, indexed by padded flattened source row.
    col = (jnp.arange(Tp, dtype=jnp.int32) - P) % W
    mask_l = (col != W - 1).astype(jnp.bfloat16).reshape(Tp, 1)   # kw = -1 taps
    mask_r = (col != 0).astype(jnp.bfloat16).reshape(Tp, 1)       # kw = +1 taps

    tn = _pick_tile(Cout, (256, 128))
    tT = _pick_tile(T, (512, 256, 128, 64, 32, 16, 8))
    grid = (N, T // tT, Cout // tn)

    out = pl.pallas_call(
        functools.partial(_conv3x3_s1_kernel, W=W, P=P, tT=tT, act=act),
        out_shape=jax.ShapeDtypeStruct((N, T, Cout), jnp.bfloat16),
        grid_spec=pltpu.PrefetchScalarGridSpec(
            num_scalar_prefetch=0,
            grid=grid,
            in_specs=[
                pl.BlockSpec((1, Tp, Cin), lambda n, t, j: (n, 0, 0)),
                pl.BlockSpec((Tp, 1), lambda n, t, j: (0, 0)),
                pl.BlockSpec((Tp, 1), lambda n, t, j: (0, 0)),
                pl.BlockSpec((9 * Cin, tn), lambda n, t, j: (0, j)),
                pl.BlockSpec((1, tn), lambda n, t, j: (0, j)),
                pl.BlockSpec((1, tn), lambda n, t, j: (0, j)),
            ],
            out_specs=pl.BlockSpec((1, tT, tn), lambda n, t, j: (n, t, j)),
        ),
        compiler_params=pltpu.CompilerParams(
            dimension_semantics=("parallel", "parallel", "parallel"),
            vmem_limit_bytes=_VMEM_LIMIT),
    )(xp, mask_l, mask_r, w, scale, shift)
    return out.reshape(N, H, W, Cout)


# --------------------------------------------------------------------------- #
# Kernel 3: 3x3 / stride 2 / pad 1 max-pool (stem), hoisted masks
# --------------------------------------------------------------------------- #
def _maxpool3x3_s1_kernel(xp_ref, ml_ref, mr_ref, o_ref, *, W, P):
    T = o_ref.shape[1]
    x = xp_ref[0]                                 # (Tp, C)
    xl = x + ml_ref[...]                          # invalid left-tap cols -> -inf
    xr = x + mr_ref[...]                          # invalid right-tap cols -> -inf
    m = None
    for kh in range(3):
        base = P + (kh - 1) * W
        for src, off in ((xl, -1), (x, 0), (xr, 1)):
            tap = src[base + off:base + off + T, :]
            m = tap if m is None else jnp.maximum(m, tap)
    o_ref[0] = m.astype(o_ref.dtype)


def maxpool3x3_s2_p1(x):
    """3x3/s2/p1 max-pool == stride-1 SAME 3x3 pool followed by 2x2 subsample."""
    N, H, W, C = x.shape
    T = H * W
    P = W + 1
    Tp = T + 2 * P
    xp = jnp.pad(x.reshape(N, T, C), ((0, 0), (P, P), (0, 0)),
                 constant_values=_NEG)
    col = (jnp.arange(Tp, dtype=jnp.int32) - P) % W
    mask_l = jnp.where(col != W - 1, 0.0, _NEG).astype(x.dtype).reshape(Tp, 1)
    mask_r = jnp.where(col != 0, 0.0, _NEG).astype(x.dtype).reshape(Tp, 1)

    out = pl.pallas_call(
        functools.partial(_maxpool3x3_s1_kernel, W=W, P=P),
        out_shape=jax.ShapeDtypeStruct((N, T, C), x.dtype),
        grid_spec=pltpu.PrefetchScalarGridSpec(
            num_scalar_prefetch=0,
            grid=(N,),
            in_specs=[
                pl.BlockSpec((1, Tp, C), lambda n: (n, 0, 0)),
                pl.BlockSpec((Tp, 1), lambda n: (0, 0)),
                pl.BlockSpec((Tp, 1), lambda n: (0, 0)),
            ],
            out_specs=pl.BlockSpec((1, T, C), lambda n: (n, 0, 0)),
        ),
        compiler_params=pltpu.CompilerParams(dimension_semantics=("parallel",)),
    )(xp, mask_l, mask_r)
    # TODO(synk): fold the 2x2 subsample into the kernel's output BlockSpec.
    return out.reshape(N, H, W, C)[:, ::2, ::2, :]


# --------------------------------------------------------------------------- #
# Kernel 4: global adaptive pooling (avg / max) to (N, C)
# --------------------------------------------------------------------------- #
def _gap_kernel(x_ref, o_ref, *, op):
    x = x_ref[...].astype(jnp.float32)
    if op == "avg":
        o_ref[...] = jnp.mean(x, axis=1)
    else:
        o_ref[...] = jnp.max(x, axis=1)


def global_pool(x, op):
    N, H, W, C = x.shape
    tc = _pick_tile(C, (512, 256, 128))
    return pl.pallas_call(
        functools.partial(_gap_kernel, op=op),
        out_shape=jax.ShapeDtypeStruct((N, C), jnp.float32),
        grid_spec=pltpu.PrefetchScalarGridSpec(
            num_scalar_prefetch=0,
            grid=(C // tc,),
            in_specs=[pl.BlockSpec((N, H * W, tc), lambda j: (0, 0, j))],
            out_specs=pl.BlockSpec((N, tc), lambda j: (0, j)),
        ),
        compiler_params=pltpu.CompilerParams(dimension_semantics=("parallel",)),
    )(x.reshape(N, H * W, C))


# --------------------------------------------------------------------------- #
# plain-JAX glue: 1x1 conv wrapper + im2col (stem 7x7 and the 3 stride-2 3x3s)
# --------------------------------------------------------------------------- #
def conv1x1_bn(x, w, scale, shift, *, stride=1, act="none", residual=None):
    if stride != 1:
        x = x[:, ::stride, ::stride, :]
    N, H, W, Cin = x.shape
    Cout = w.shape[1]
    res2d = None if residual is None else residual.reshape(N * H * W, Cout)
    out = matmul_bn(x.reshape(N * H * W, Cin), w, scale, shift,
                    act=act, residual=res2d)
    return out.reshape(N, H, W, Cout)


def _im2col(x, ksize, stride, pad):
    N, H, W, C = x.shape
    OH = (H + 2 * pad - ksize) // stride + 1
    OW = (W + 2 * pad - ksize) // stride + 1
    xp = jnp.pad(x, ((0, 0), (pad, pad), (pad, pad), (0, 0)))
    cols = []
    for kh in range(ksize):
        for kw in range(ksize):
            cols.append(xp[:, kh:kh + stride * OH:stride,
                           kw:kw + stride * OW:stride, :])
    a = jnp.stack(cols, axis=3)                       # (N, OH, OW, K*K, C)
    return a.reshape(N * OH * OW, ksize * ksize * C), OH, OW


# --------------------------------------------------------------------------- #
# jitted network pieces (shape-cached: 50 blocks -> 8 unique traces)
# --------------------------------------------------------------------------- #
@jax.jit
def _stem_forward(x_nchw, conv1_w, bn1_scale, bn1_shift):
    x = jnp.transpose(x_nchw, (0, 2, 3, 1)).astype(jnp.bfloat16)   # NCHW->NHWC
    N = x.shape[0]
    cout = conv1_w.shape[1]                               # 128 physical
    patches, OH, OW = _im2col(x, 7, 2, 3)                 # K = 7*7*3 = 147
    Kp = conv1_w.shape[0]                                 # padded to 160
    patches = jnp.pad(patches, ((0, 0), (0, Kp - patches.shape[1])))
    out = matmul_bn(patches, conv1_w, bn1_scale, bn1_shift, act="relu")
    out = out.reshape(N, OH, OW, cout)
    return maxpool3x3_s2_p1(out)


@functools.partial(jax.jit, static_argnames=("stride",))
def _bottleneck_forward(x, blk, stride):
    # conv1 1x1 -> bn -> relu
    h = conv1x1_bn(x, blk["w1"], blk["s1"], blk["b1"], act="relu")
    # conv2 3x3 (carries the stride, ResNet v1.5) -> bn -> relu
    if stride == 1:
        h = conv3x3_bn_s1(h, blk["w2"], blk["s2"], blk["b2"], act="relu")
    else:
        N, _, _, Cm = h.shape
        Cout2 = blk["w2"].shape[3]
        patches, OH, OW = _im2col(h, 3, stride, 1)
        h = matmul_bn(patches, blk["w2"].reshape(9 * Cm, Cout2),
                      blk["s2"], blk["b2"], act="relu")
        h = h.reshape(N, OH, OW, Cout2)
    # identity / downsample branch
    if "wd" in blk:
        identity = conv1x1_bn(x, blk["wd"], blk["sd"], blk["bd"],
                              stride=stride, act="none")
    else:
        identity = x
    # conv3 1x1 -> bn, residual add + relu fused into the matmul epilogue
    return conv1x1_bn(h, blk["w3"], blk["s3"], blk["b3"],
                      act="relu", residual=identity)


# --------------------------------------------------------------------------- #
# parameters (deterministic synthetic init; shapes of torchvision resnet152,
# 64-channel dims padded to a physical 128 for lane-dense stores)
# --------------------------------------------------------------------------- #
RESNET152_LAYERS = (3, 8, 36, 3)
PLANES = (64, 128, 256, 512)
EXPANSION = 4


def _phys(c):
    return max(c, _MIN_C)


def _bn_fold(key, c, c_phys=None, eps=1e-5):
    gamma = 1.0 + 0.02 * jax.random.normal(key, (c,), jnp.float32)
    beta = jnp.zeros((c,), jnp.float32)
    running_mean = jnp.zeros((c,), jnp.float32)
    running_var = jnp.ones((c,), jnp.float32)
    scale = gamma / jnp.sqrt(running_var + eps)
    shift = beta - running_mean * scale
    c_phys = c_phys or c
    if c_phys > c:                      # padded channels: scale=shift=0 -> relu(0)=0
        scale = jnp.pad(scale, (0, c_phys - c))
        shift = jnp.pad(shift, (0, c_phys - c))
    return scale, shift


def init_params(key, model_stride=2):
    keys = iter(jax.random.split(key, 512))

    def conv_w(cin, cout, k, cin_p=None, cout_p=None):
        std = (2.0 / (k * k * cin)) ** 0.5               # kaiming fan_in
        w = jax.random.normal(next(keys), (k, k, cin, cout), jnp.float32) * std
        cin_p = cin_p or cin
        cout_p = cout_p or cout
        w = jnp.pad(w, ((0, 0), (0, 0), (0, cin_p - cin), (0, cout_p - cout)))
        return w.astype(jnp.bfloat16)

    params = {}
    # stem 7x7 conv as an im2col weight matrix: K 147 -> 160, Cout 64 -> 128.
    w = conv_w(3, 64, 7, cout_p=_MIN_C).reshape(7 * 7 * 3, _MIN_C)
    params["conv1_w"] = jnp.pad(w, ((0, 160 - w.shape[0]), (0, 0)))
    params["bn1"] = _bn_fold(next(keys), 64, _MIN_C)

    blocks = []
    in_c = 64
    for stage, (nblk, planes) in enumerate(zip(RESNET152_LAYERS, PLANES)):
        out_c = planes * EXPANSION
        for b in range(nblk):
            stride = 2 if (stage > 0 and b == 0) else 1
            if stage == 3 and b == 0 and model_stride == 1:
                stride = 1                                # ft_net stride=1 variant
            blk = {
                "w1": conv_w(in_c, planes, 1, _phys(in_c), _phys(planes)
                             ).reshape(_phys(in_c), _phys(planes)),
                "w2": conv_w(planes, planes, 3, _phys(planes), _phys(planes)),
                "w3": conv_w(planes, out_c, 1, _phys(planes), _phys(out_c)
                             ).reshape(_phys(planes), _phys(out_c)),
            }
            blk["s1"], blk["b1"] = _bn_fold(next(keys), planes, _phys(planes))
            blk["s2"], blk["b2"] = _bn_fold(next(keys), planes, _phys(planes))
            blk["s3"], blk["b3"] = _bn_fold(next(keys), out_c, _phys(out_c))
            if b == 0:
                blk["wd"] = conv_w(in_c, out_c, 1, _phys(in_c), _phys(out_c)
                                   ).reshape(_phys(in_c), _phys(out_c))
                blk["sd"], blk["bd"] = _bn_fold(next(keys), out_c, _phys(out_c))
            blocks.append((blk, stride))
            in_c = out_c
    params["blocks"] = blocks
    return params


# --------------------------------------------------------------------------- #
# forward (= ft_net_resnet152.forward, default pool='avg', inference mode)
# --------------------------------------------------------------------------- #
def ft_net_resnet152_forward(params, x_nchw, pool="avg"):
    x = _stem_forward(x_nchw, params["conv1_w"],
                      params["bn1"][0], params["bn1"][1])
    for blk, stride in params["blocks"]:
        x = _bottleneck_forward(x, blk, stride=stride)
    if pool == "avg":
        return global_pool(x, "avg")
    if pool == "max":
        return global_pool(x, "max")
    if pool == "avg+max":
        return jnp.concatenate([global_pool(x, "avg"), global_pool(x, "max")],
                               axis=1)
    raise ValueError(f"unknown pool mode: {pool}")


# --------------------------------------------------------------------------- #
if __name__ == "__main__":
    key = jax.random.PRNGKey(0)
    k_param, k_x = jax.random.split(key)

    params = init_params(k_param)                     # default stride=2, pool='avg'
    x = jax.random.normal(k_x, (2, 3, 64, 64), jnp.float32)   # small NCHW image

    feat = ft_net_resnet152_forward(params, x, pool="avg")
    feat = jax.block_until_ready(feat)

    assert feat.shape == (2, 2048), feat.shape        # resnet152 feature width
    assert bool(jnp.all(jnp.isfinite(feat)))
    print("KERNEL_OK")
</pallas_src>

<mosaic_0001>
module attributes {stable_mosaic.version = 11 : i64} {
  func.func @_mm_bn_kernel(%arg0: i32, %arg1: i32, %arg2: i32, %arg3: memref<256x160xbf16, #tpu.memory_space<vmem>>, %arg4: memref<160x128xbf16, #tpu.memory_space<vmem>>, %arg5: memref<1x128xf32, #tpu.memory_space<vmem>>, %arg6: memref<1x128xf32, #tpu.memory_space<vmem>>, %arg7: memref<256x128xbf16, #tpu.memory_space<vmem>>, %arg8: memref<256x128xf32, #tpu.memory_space<vmem>>) attributes {dimension_semantics = [#tpu.dimension_semantics<parallel>, #tpu.dimension_semantics<parallel>, #tpu.dimension_semantics<arbitrary>], iteration_bounds = array<i64: 8, 1, 1>, scalar_prefetch = 0 : i64, scratch_operands = 1 : i64, tpu.core_type = #tpu.core_type<tc>, window_params = [{transform_indices = @transform_0, window_bounds = array<i64: 256, 160>}, {transform_indices = @transform_1, window_bounds = array<i64: 160, 128>}, {transform_indices = @transform_2, window_bounds = array<i64: 1, 128>}, {transform_indices = @transform_3, window_bounds = array<i64: 1, 128>}, {transform_indices = @transform_4, window_bounds = array<i64: 256, 128>}]} {
    %c0_i32 = arith.constant 0 : i32
    %0 = arith.cmpi eq, %arg2, %c0_i32 : i32
    %1 = arith.extui %0 : i1 to i32
    %c0_i32_0 = arith.constant 0 : i32
    %2 = arith.cmpi ne, %1, %c0_i32_0 : i32
    scf.if %2 {
      %cst_10 = arith.constant 0.000000e+00 : f32
      %12 = vector.broadcast %cst_10 : f32 to vector<256x128xf32>
      %c0_11 = arith.constant 0 : index
      %c0_12 = arith.constant 0 : index
      %13 = vector.load %arg8[%c0_11, %c0_12] : memref<256x128xf32, #tpu.memory_space<vmem>>, vector<256x128xf32>
      tpu.vector_store %arg8[%c0_11, %c0_12], %12 {strides = array<i32>} : memref<256x128xf32, #tpu.memory_space<vmem>>, vector<256x128xf32>,
    } else {
    }
    %c0 = arith.constant 0 : index
    %c0_1 = arith.constant 0 : index
    %3 = vector.load %arg8[%c0, %c0_1] : memref<256x128xf32, #tpu.memory_space<vmem>>, vector<256x128xf32>
    %c0_2 = arith.constant 0 : index
    %c0_3 = arith.constant 0 : index
    %4 = vector.load %arg3[%c0_2, %c0_3] : memref<256x160xbf16, #tpu.memory_space<vmem>>, vector<256x160xbf16>
    %c0_4 = arith.constant 0 : index
    %c0_5 = arith.constant 0 : index
    %5 = vector.load %arg4[%c0_4, %c0_5] : memref<160x128xbf16, #tpu.memory_space<vmem>>, vector<160x128xbf16>
    %cst = arith.constant dense<0.000000e+00> : vector<256x128xf32>
    %6 = tpu.matmul %4, %5, %cst {dimension_numbers = #tpu.dot_dimension_numbers<[1], [0], [0], [1], [0, 0, 1, 1], [], []>} : vector<256x160xbf16>, vector<160x128xbf16>, vector<256x128xf32> -> vector<256x128xf32>
    %7 = arith.addf %3, %6 : vector<256x128xf32>
    %c0_6 = arith.constant 0 : index
    %c0_7 = arith.constant 0 : index
    %8 = vector.load %arg8[%c0_6, %c0_7] : memref<256x128xf32, #tpu.memory_space<vmem>>, vector<256x128xf32>
    tpu.vector_store %arg8[%c0_6, %c0_7], %7 {strides = array<i32>} : memref<256x128xf32, #tpu.memory_space<vmem>>, vector<256x128xf32>,
    %c0_i32_8 = arith.constant 0 : i32
    %9 = arith.cmpi eq, %arg2, %c0_i32_8 : i32
    %10 = arith.extui %9 : i1 to i32
    %c0_i32_9 = arith.constant 0 : i32
    %11 = arith.cmpi ne, %10, %c0_i32_9 : i32
    scf.if %11 {
      %c0_10 = arith.constant 0 : index
      %c0_11 = arith.constant 0 : index
      %12 = vector.load %arg8[%c0_10, %c0_11] : memref<256x128xf32, #tpu.memory_space<vmem>>, vector<256x128xf32>
      %c0_12 = arith.constant 0 : index
      %c0_13 = arith.constant 0 : index
      %13 = vector.load %arg5[%c0_12, %c0_13] : memref<1x128xf32, #tpu.memory_space<vmem>>, vector<1x128xf32>
      %14 = vector.broadcast %13 : vector<1x128xf32> to vector<256x128xf32>
      %15 = arith.mulf %12, %14 : vector<256x128xf32>
      %c0_14 = arith.constant 0 : index
      %c0_15 = arith.constant 0 : index
      %16 = vector.load %arg6[%c0_14, %c0_15] : memref<1x128xf32, #tpu.memory_space<vmem>>, vector<1x128xf32>
      %17 = vector.broadcast %16 : vector<1x128xf32> to vector<256x128xf32>
      %18 = arith.addf %15, %17 : vector<256x128xf32>
      %cst_16 = arith.constant 0.000000e+00 : f32
      %19 = vector.broadcast %cst_16 : f32 to vector<256x128xf32>
      %20 = arith.maximumf %18, %19 : vector<256x128xf32>
      %21 = arith.truncf %20 : vector<256x128xf32> to vector<256x128xbf16>
      %c0_17 = arith.constant 0 : index
      %c0_18 = arith.constant 0 : index
      %22 = vector.load %arg7[%c0_17, %c0_18] : memref<256x128xbf16, #tpu.memory_space<vmem>>, vector<256x128xbf16>
      tpu.vector_store %arg7[%c0_17, %c0_18], %21 {strides = array<i32>} : memref<256x128xbf16, #tpu.memory_space<vmem>>, vector<256x128xbf16>,
    } else {
    }
    return
  }
  func.func @transform_0(%arg0: i32, %arg1: i32, %arg2: i32) -> (i32, i32) {
    %c0_i32 = arith.constant 0 : i32
    return %arg0, %arg2 : i32, i32
  }
  func.func @transform_1(%arg0: i32, %arg1: i32, %arg2: i32) -> (i32, i32) {
    %c0_i32 = arith.constant 0 : i32
    return %arg2, %arg1 : i32, i32
  }
  func.func @transform_2(%arg0: i32, %arg1: i32, %arg2: i32) -> (i32, i32) {
    %c0_i32 = arith.constant 0 : i32
    %c0_i32_0 = arith.constant 0 : i32
    return %c0_i32, %arg1 : i32, i32
  }
  func.func @transform_3(%arg0: i32, %arg1: i32, %arg2: i32) -> (i32, i32) {
    %c0_i32 = arith.constant 0 : i32
    %c0_i32_0 = arith.constant 0 : i32
    return %c0_i32, %arg1 : i32, i32
  }
  func.func @transform_4(%arg0: i32, %arg1: i32, %arg2: i32) -> (i32, i32) {
    %c0_i32 = arith.constant 0 : i32
    return %arg0, %arg1 : i32, i32
  }
}

module attributes {stable_mosaic.version = 11 : i64} {
  func.func @_maxpool3x3_s1_kernel(%arg0: i32, %arg1: memref<1x1090x128xbf16, #tpu.memory_space<vmem>>, %arg2: memref<1090x1xbf16, #tpu.memory_space<vmem>>, %arg3: memref<1090x1xbf16, #tpu.memory_space<vmem>>, %arg4: memref<1x1024x128xbf16, #tpu.memory_space<vmem>>) attributes {dimension_semantics = [#tpu.dimension_semantics<parallel>], iteration_bounds = array<i64: 2>, scalar_prefetch = 0 : i64, scratch_operands = 0 : i64, tpu.core_type = #tpu.core_type<tc>, window_params = [{transform_indices = @transform_0, window_bounds = array<i64: 1, 1090, 128>}, {pipeline_mode = #tpu.pipeline_mode<synchronous>, transform_indices = @transform_1, window_bounds = array<i64: 1090, 1>}, {pipeline_mode = #tpu.pipeline_mode<synchronous>, transform_indices = @transform_2, window_bounds = array<i64: 1090, 1>}, {transform_indices = @transform_3, window_bounds = array<i64: 1, 1024, 128>}]} {
    %c0 = arith.constant 0 : index
    %c0_0 = arith.constant 0 : index
    %c0_1 = arith.constant 0 : index
    %0 = vector.load %arg1[%c0, %c0_0, %c0_1] : memref<1x1090x128xbf16, #tpu.memory_space<vmem>>, vector<1x1090x128xbf16>
    %1 = vector.shape_cast %0 : vector<1x1090x128xbf16> to vector<1090x128xbf16>
    %c0_2 = arith.constant 0 : index
    %c0_3 = arith.constant 0 : index
    %2 = vector.load %arg2[%c0_2, %c0_3] : memref<1090x1xbf16, #tpu.memory_space<vmem>>, vector<1090x1xbf16>
    %3 = vector.broadcast %2 : vector<1090x1xbf16> to vector<1090x128xbf16>
    %4 = arith.addf %1, %3 : vector<1090x128xbf16>
    %c0_4 = arith.constant 0 : index
    %c0_5 = arith.constant 0 : index
    %5 = vector.load %arg3[%c0_4, %c0_5] : memref<1090x1xbf16, #tpu.memory_space<vmem>>, vector<1090x1xbf16>
    %6 = vector.broadcast %5 : vector<1090x1xbf16> to vector<1090x128xbf16>
    %7 = arith.addf %1, %6 : vector<1090x128xbf16>
    %8 = vector.extract_strided_slice %4 {offsets = [0, 0], sizes = [1024, 128], strides = [1, 1]} : vector<1090x128xbf16> to vector<1024x128xbf16>
    %9 = vector.extract_strided_slice %1 {offsets = [1, 0], sizes = [1024, 128], strides = [1, 1]} : vector<1090x128xbf16> to vector<1024x128xbf16>
    %10 = arith.maximumf %8, %9 : vector<1024x128xbf16>
    %11 = vector.extract_strided_slice %7 {offsets = [2, 0], sizes = [1024, 128], strides = [1, 1]} : vector<1090x128xbf16> to vector<1024x128xbf16>
    %12 = arith.maximumf %10, %11 : vector<1024x128xbf16>
    %13 = vector.extract_strided_slice %4 {offsets = [32, 0], sizes = [1024, 128], strides = [1, 1]} : vector<1090x128xbf16> to vector<1024x128xbf16>
    %14 = arith.maximumf %12, %13 : vector<1024x128xbf16>
    %15 = vector.extract_strided_slice %1 {offsets = [33, 0], sizes = [1024, 128], strides = [1, 1]} : vector<1090x128xbf16> to vector<1024x128xbf16>
    %16 = arith.maximumf %14, %15 : vector<1024x128xbf16>
    %17 = vector.extract_strided_slice %7 {offsets = [34, 0], sizes = [1024, 128], strides = [1, 1]} : vector<1090x128xbf16> to vector<1024x128xbf16>
    %18 = arith.maximumf %16, %17 : vector<1024x128xbf16>
    %19 = vector.extract_strided_slice %4 {offsets = [64, 0], sizes = [1024, 128], strides = [1, 1]} : vector<1090x128xbf16> to vector<1024x128xbf16>
    %20 = arith.maximumf %18, %19 : vector<1024x128xbf16>
    %21 = vector.extract_strided_slice %1 {offsets = [65, 0], sizes = [1024, 128], strides = [1, 1]} : vector<1090x128xbf16> to vector<1024x128xbf16>
    %22 = arith.maximumf %20, %21 : vector<1024x128xbf16>
    %23 = vector.extract_strided_slice %7 {offsets = [66, 0], sizes = [1024, 128], strides = [1, 1]} : vector<1090x128xbf16> to vector<1024x128xbf16>
    %24 = arith.maximumf %22, %23 : vector<1024x128xbf16>
    %c0_6 = arith.constant 0 : index
    %c0_7 = arith.constant 0 : index
    %c0_8 = arith.constant 0 : index
    %25 = vector.load %arg4[%c0_6, %c0_7, %c0_8] : memref<1x1024x128xbf16, #tpu.memory_space<vmem>>, vector<1x1024x128xbf16>
    %26 = vector.shape_cast %25 : vector<1x1024x128xbf16> to vector<1024x128xbf16>
    %27 = vector.shape_cast %24 : vector<1024x128xbf16> to vector<1x1024x128xbf16>
    tpu.vector_store %arg4[%c0_6, %c0_7, %c0_8], %27 {strides = array<i32>} : memref<1x1024x128xbf16, #tpu.memory_space<vmem>>, vector<1x1024x128xbf16>,
    return
  }
  func.func @transform_0(%arg0: i32) -> (i32, i32, i32) {
    %c0_i32 = arith.constant 0 : i32
    %c0_i32_0 = arith.constant 0 : i32
    %c0_i32_1 = arith.constant 0 : i32
    return %arg0, %c0_i32, %c0_i32_0 : i32, i32, i32
  }
  func.func @transform_1(%arg0: i32) -> (i32, i32) {
    %c0_i32 = arith.constant 0 : i32
    %c0_i32_0 = arith.constant 0 : i32
    %c0_i32_1 = arith.constant 0 : i32
    return %c0_i32, %c0_i32_0 : i32, i32
  }
  func.func @transform_2(%arg0: i32) -> (i32, i32) {
    %c0_i32 = arith.constant 0 : i32
    %c0_i32_0 = arith.constant 0 : i32
    %c0_i32_1 = arith.constant 0 : i32
    return %c0_i32, %c0_i32_0 : i32, i32
  }
  func.func @transform_3(%arg0: i32) -> (i32, i32, i32) {
    %c0_i32 = arith.constant 0 : i32
    %c0_i32_0 = arith.constant 0 : i32
    %c0_i32_1 = arith.constant 0 : i32
    return %arg0, %c0_i32, %c0_i32_0 : i32, i32, i32
  }
}

</mosaic_0001>

<llo_original>
// kernel: _stem_forward.2
$region0: #{_stem_forward.2}
  #allocation0 [shape = 'u32[]', space=smem, size = 0x4, offset = 0x4, fixed_abs, tag = 'smem constant byte address 0x4 - core index']
  #allocation1 [shape = 'u32[144,128]{1,0:T(1,128)}', space=vmem, size = 0x12000, scoped, tag = 'internal scratch']
  #allocation2 [shape = 'f32[256,128]{1,0:T(8,128)}', space=vmem, size = 0x20000, scoped, tag = 'scratch operand']
  %s0 = inlined_call_operand.vmem [shape: bf16[2048,160], index: 0, kind: input, shape index: {}]
  %s1 = inlined_call_operand.vmem [shape: bf16[160,128], index: 1, kind: input, shape index: {}]
  %s2 = inlined_call_operand.vmem [shape: f32[1,128], index: 2, kind: input, shape index: {}]
  %s3 = inlined_call_operand.vmem [shape: f32[1,128], index: 3, kind: input, shape index: {}]
  %s4 = inlined_call_operand.vmem [shape: bf16[2048,128], index: 4, kind: output, shape index: {}]
  %s5 = sld [smem:[#allocation0]]
  $region57: #{_stem_forward.2} parent=0
    _
  %s7 = ssub.s32 1, %s5
  %s8 = scalar_select 0, %s7, %s5
  loop: start=0, step=1, limit=10
  $region2: #{_stem_forward.2} parent=0 // loop_pre_header
    _
  $region3: #{_stem_forward.2} parent=0 // loop_header
    %s10 = sphi 0, %s14
    %p11 = scmp.ge.s32.totalorder %s10, 10
    %s17 = sphi 0, %s36
    %s18 = sphi 0, %s32
    %s19 = sphi 0, %s28
    %s20 = sphi 0, %s17
    %s21 = sphi 0, %s18
    %s22 = sphi 0, %s19
    %s23 = sphi 0, %s20
    %s24 = sphi 0, %s21
    %s25 = sphi 0, %s22
    %s41 = sphi 0, %s43
    %s44 = sphi 0, %s41
    %s45 = sphi 0, %s44
    %s61 = sphi 0, %s45
    %s69 = sphi 0, %s71
    %s72 = sphi 0, %s69
    %s73 = sphi 0, %s72
    %s89 = sphi 0, %s73
    %s95 = sphi 0, %s97
    %s98 = sphi 0, %s95
    %s99 = sphi 0, %s98
    %s115 = sphi 0, %s99
    %s121 = sphi 0, %s123
    %s124 = sphi 0, %s121
    %s125 = sphi 0, %s124
    %s141 = sphi 0, %s125
    %s149 = sphi 0, %s151
    %s152 = sphi 0, %s149
    %s153 = sphi 0, %s152
    %s169 = sphi 0, %s153
  $region4: #{_stem_forward.2} parent=0 // loop_header_branch
    %13 = sbr.rel (%p11) target = $region8
  $region5: #{_stem_forward.2} parent=0 // loop_body
    %s15 = ssub.s32 %s10, 1
    %s16 = ssub.s32 %s10, 2
    %s26 = sadd.s32 1, %s19
    %p27 = scmp.ge.s32.totalorder %s26, 1
    %s28 = scalar_select %p27, 0, %s26
    %s29 = sadd.s32 1, %s18
    %s30 = scalar_select %p27, %s29, %s18
    %p31 = scmp.ge.s32.totalorder %s30, 1
    %s32 = scalar_select %p31, 0, %s30
    %s33 = sadd.s32 1, %s17
    %s34 = scalar_select %p31, %s33, %s17
    %p35 = scmp.ge.s32.totalorder %s34, 8
    %s36 = scalar_select %p35, 0, %s34
    %s37 = ssub.s32 %s17, %s36
    %s38 = ssub.s32 %s19, %s28
    %s39 = sor.u32 %s37, %s38
    %p40 = scmp.eq.s32.totalorder %s39, 0
    %s42 = sadd.s32 %s41, 1
    %s43 = scalar_select %p40, %s41, %s42
    %p46 = pneg %p40
    %p47 = scmp.eq.s32.totalorder %s10, 7
    %p48 = por %p46, %p47
    %p49 = scmp.ne.s32.totalorder %s41, %s44
    %p50 = scmp.eq.s32.totalorder %s10, 0
    %p51 = por %p49, %p50
    %p52 = scmp.ne.s32.totalorder %s41, %s44
    %p53 = scmp.eq.s32.totalorder %s15, 7
    %p54 = por %p52, %p53
    %p55 = scmp.ne.s32.totalorder %s44, %s45
    %p56 = scmp.eq.s32.totalorder %s15, 0
    %p57 = por %p55, %p56
    %p58 = scmp.ne.s32.totalorder %s44, %s45
    %p59 = scmp.eq.s32.totalorder %s16, 7
    %p60 = por %p58, %p59
    %p62 = scmp.ne.s32.totalorder %s45, %s61
    %p63 = scmp.eq.s32.totalorder %s16, 0
    %p64 = por %p62, %p63
    %s65 = ssub.s32 %s19, %s28
    %s66 = ssub.s32 %s18, %s32
    %s67 = sor.u32 %s65, %s66
    %p68 = scmp.eq.s32.totalorder %s67, 0
    %s70 = sadd.s32 %s69, 1
    %s71 = scalar_select %p68, %s69, %s70
    %p74 = pneg %p68
    %p75 = scmp.eq.s32.totalorder %s10, 7
    %p76 = por %p74, %p75
    %p77 = scmp.ne.s32.totalorder %s69, %s72
    %p78 = scmp.eq.s32.totalorder %s10, 0
    %p79 = por %p77, %p78
    %p80 = scmp.ne.s32.totalorder %s69, %s72
    %p81 = scmp.eq.s32.totalorder %s15, 7
    %p82 = por %p80, %p81
    %p83 = scmp.ne.s32.totalorder %s72, %s73
    %p84 = scmp.eq.s32.totalorder %s15, 0
    %p85 = por %p83, %p84
    %p86 = scmp.ne.s32.totalorder %s72, %s73
    %p87 = scmp.eq.s32.totalorder %s16, 7
    %p88 = por %p86, %p87
    %p90 = scmp.ne.s32.totalorder %s73, %s89
    %p91 = scmp.eq.s32.totalorder %s16, 0
    %p92 = por %p90, %p91
    %s93 = ssub.s32 %s18, %s32
    %p94 = scmp.eq.s32.totalorder %s93, 0
    %s96 = sadd.s32 %s95, 1
    %s97 = scalar_select %p94, %s95, %s96
    %p100 = pneg %p94
    %p101 = scmp.eq.s32.totalorder %s10, 7
    %p102 = por %p100, %p101
    %p103 = scmp.ne.s32.totalorder %s95, %s98
    %p104 = scmp.eq.s32.totalorder %s10, 0
    %p105 = por %p103, %p104
    %p106 = scmp.ne.s32.totalorder %s95, %s98
    %p107 = scmp.eq.s32.totalorder %s15, 7
    %p108 = por %p106, %p107
    %p109 = scmp.ne.s32.totalorder %s98, %s99
    %p110 = scmp.eq.s32.totalorder %s15, 0
    %p111 = por %p109, %p110
    %p112 = scmp.ne.s32.totalorder %s98, %s99
    %p113 = scmp.eq.s32.totalorder %s16, 7
    %p114 = por %p112, %p113
    %p116 = scmp.ne.s32.totalorder %s99, %s115
    %p117 = scmp.eq.s32.totalorder %s16, 0
    %p118 = por %p116, %p117
    %s119 = ssub.s32 %s18, %s32
    %p120 = scmp.eq.s32.totalorder %s119, 0
    %s122 = sadd.s32 %s121, 1
    %s123 = scalar_select %p120, %s121, %s122
    %p126 = pneg %p120
    %p127 = scmp.eq.s32.totalorder %s10, 7
    %p128 = por %p126, %p127
    %p129 = scmp.ne.s32.totalorder %s121, %s124
    %p130 = scmp.eq.s32.totalorder %s10, 0
    %p131 = por %p129, %p130
    %p132 = scmp.ne.s32.totalorder %s121, %s124
    %p133 = scmp.eq.s32.totalorder %s15, 7
    %p134 = por %p132, %p133
    %p135 = scmp.ne.s32.totalorder %s124, %s125
    %p136 = scmp.eq.s32.totalorder %s15, 0
    %p137 = por %p135, %p136
    %p138 = scmp.ne.s32.totalorder %s124, %s125
    %p139 = scmp.eq.s32.totalorder %s16, 7
    %p140 = por %p138, %p139
    %p142 = scmp.ne.s32.totalorder %s125, %s141
    %p143 = scmp.eq.s32.totalorder %s16, 0
    %p144 = por %p142, %p143
    %s145 = ssub.s32 %s17, %s36
    %s146 = ssub.s32 %s18, %s32
    %s147 = sor.u32 %s145, %s146
    %p148 = scmp.eq.s32.totalorder %s147, 0
    %s150 = sadd.s32 %s149, 1
    %s151 = scalar_select %p148, %s149, %s150
    %p154 = pneg %p148
    %p155 = scmp.eq.s32.totalorder %s10, 7
    %p156 = por %p154, %p155
    %p157 = scmp.ne.s32.totalorder %s149, %s152
    %p158 = scmp.eq.s32.totalorder %s10, 0
    %p159 = por %p157, %p158
    %p160 = scmp.ne.s32.totalorder %s149, %s152
    %p161 = scmp.eq.s32.totalorder %s15, 7
    %p162 = por %p160, %p161
    %p163 = scmp.ne.s32.totalorder %s152, %s153
    %p164 = scmp.eq.s32.totalorder %s15, 0
    %p165 = por %p163, %p164
    %p166 = scmp.ne.s32.totalorder %s152, %s153
    %p167 = scmp.eq.s32.totalorder %s16, 7
    %p168 = por %p166, %p167
    %p170 = scmp.ne.s32.totalorder %s153, %s169
    %p171 = scmp.eq.s32.totalorder %s16, 0
    %p172 = por %p170, %p171
    %p173 = scmp.le.s32.totalorder 1, %s10
    %p174 = scmp.lt.s32.totalorder %s10, 9
    %p175 = pnand %p173, %p174
    %p176 = pneg %p175
    // Predicated region
    $region9: #{_stem_forward.2} parent=5 // pred_check
      _
    $region10: #{_stem_forward.2} parent=5 // pred_check_branch
      %178 = sbr.rel (%p175) target = $region12
    $region11: #{_stem_forward.2} parent=5 // pred_region
      %s179 = ssub.s32 %s10, 1
      // Predicated region
      $region13: #{_stem_forward.2} parent=11 // pred_check
        %p180 = pneg %p85
      $region14: #{_stem_forward.2} parent=11 // pred_check_branch
        %182 = sbr.rel (%p180) target = $region16
      $region15: #{_stem_forward.2} parent=11 // pred_region
        %s183 = smul.u32 20, %s22
        %p184 = scmp.lt.s32.totalorder %s183, 19
        %s185 = scalar_select %p184, %s183, 19
        %p186 = scmp.lt.s32.totalorder %s21, 0
        %s187 = scalar_select %p186, %s21, 0
        %s188 = sadd.s32 %s187, %s185
        %s189 = smul.addr %s188, 4
        %s190 = scalar_lea.vmem %s1, %s189
        %s191 = smul.u32 20, %s22
      $region16: #{_stem_forward.2} parent=11 // pred_fallthru
        _
      // Predicated region
      $region17: #{_stem_forward.2} parent=11 // pred_check
        %p192 = pneg %p111
      $region18: #{_stem_forward.2} parent=11 // pred_check_branch
        %194 = sbr.rel (%p192) target = $region20
      $region19: #{_stem_forward.2} parent=11 // pred_region
        %p195 = scmp.lt.s32.totalorder %s21, 0
        %s196 = scalar_select %p195, %s21, 0
        %s197 = scalar_lea.vmem %s2, %s196
      $region20: #{_stem_forward.2} parent=11 // pred_fallthru
        _
      // Predicated region
      $region21: #{_stem_forward.2} parent=11 // pred_check
        %p198 = pneg %p137
      $region22: #{_stem_forward.2} parent=11 // pred_check_branch
        %200 = sbr.rel (%p198) target = $region24
      $region23: #{_stem_forward.2} parent=11 // pred_region
        %p201 = scmp.lt.s32.totalorder %s21, 0
        %s202 = scalar_select %p201, %s21, 0
        %s203 = scalar_lea.vmem %s3, %s202
      $region24: #{_stem_forward.2} parent=11 // pred_fallthru
        _
    $region12: #{_stem_forward.2} parent=5 // pred_fallthru
      _
    %p204 = scmp.lt.s32.totalorder %s10, 8
    // Predicated region
    $region25: #{_stem_forward.2} parent=5 // pred_check
      %p205 = pneg %p204
    $region26: #{_stem_forward.2} parent=5 // pred_check_branch
      %207 = sbr.rel (%p205) target = $region28
    $region27: #{_stem_forward.2} parent=5 // pred_region
      // Predicated region
      $region29: #{_stem_forward.2} parent=27 // pred_check
        %p208 = pneg %p51
      $region30: #{_stem_forward.2} parent=27 // pred_check_branch
        %210 = sbr.rel (%p208) target = $region32
      $region31: #{_stem_forward.2} parent=27 // pred_region
        %s211 = smul.u32 32, %s17
        %s212 = smul.u32 2, %s19
        %p213 = scmp.lt.s32.totalorder %s211, 255
        %s214 = scalar_select %p213, %s211, 255
        %p215 = scmp.lt.s32.totalorder %s212, 1
        %s216 = scalar_select %p215, %s212, 1
        %s217 = smul.addr %s214, 2
        %s218 = sadd.s32 %s216, %s217
        %s219 = smul.addr %s218, 4
        %s220 = scalar_lea.vmem %s0, %s219
        %s221 = smul.u32 32, %s17
        %s222 = smul.u32 2, %s19
      $region32: #{_stem_forward.2} parent=27 // pred_fallthru
        _
    $region28: #{_stem_forward.2} parent=5 // pred_fallthru
      _
    %p223 = scmp.le.s32.totalorder 1, %s10
    %p224 = scmp.lt.s32.totalorder %s10, 9
    %p225 = pnand %p223, %p224
    %p226 = pneg %p225
    // Predicated region
    $region33: #{_stem_forward.2} parent=5 // pred_check
      _
    $region34: #{_stem_forward.2} parent=5 // pred_check_branch
      %228 = sbr.rel (%p225) target = $region36
    $region35: #{_stem_forward.2} parent=5 // pred_region
      %s229 = ssub.s32 %s10, 1
      %s230 = smul.u32 32, %s20
      %s231 = smul.u32 2, %s22
      %p232 = scmp.lt.s32.totalorder %s230, 255
      %s233 = scalar_select %p232, %s230, 255
      %p234 = scmp.lt.s32.totalorder %s231, 1
      %s235 = scalar_select %p234, %s231, 1
      %s236 = smul.addr %s233, 2
      %s237 = sadd.s32 %s235, %s236
      %s238 = smul.addr %s237, 4
      %s239 = scalar_lea.vmem %s0, %s238
      %p240 = pneg %p57
      %p241 = pneg %p54
      %s242 = smul.u32 20, %s22
      %p243 = scmp.lt.s32.totalorder %s242, 19
      %s244 = scalar_select %p243, %s242, 19
      %p245 = scmp.lt.s32.totalorder %s21, 0
      %s246 = scalar_select %p245, %s21, 0
      %s247 = sadd.s32 %s246, %s244
      %s248 = smul.addr %s247, 4
      %s249 = scalar_lea.vmem %s1, %s248
      %p250 = pneg %p85
      %p251 = pneg %p82
      %p252 = scmp.lt.s32.totalorder %s21, 0
      %s253 = scalar_select %p252, %s21, 0
      %s254 = scalar_lea.vmem %s2, %s253
      %p255 = pneg %p111
      %p256 = pneg %p108
      %p257 = scmp.lt.s32.totalorder %s21, 0
      %s258 = scalar_select %p257, %s21, 0
      %s259 = scalar_lea.vmem %s3, %s258
      %p260 = pneg %p137
      %p261 = pneg %p134
      %p262 = pneg %p165
      %p263 = pneg %p162
      %s264 = smul.u32 32, %s20
      %p265 = scmp.lt.s32.totalorder %s264, 255
      %s266 = scalar_select %p265, %s264, 255
      %p267 = scmp.lt.s32.totalorder %s21, 0
      %s268 = scalar_select %p267, %s21, 0
      %s269 = sadd.s32 %s268, %s266
      %s270 = smul.addr %s269, 4
      %s271 = scalar_lea.vmem %s4, %s270
      %s272 = smul.u32 32, %s20
      %s273 = smul.u32 2, %s22
      %p274 = scmp.lt.s32.totalorder %s272, 255
      %s275 = scalar_select %p274, %s272, 255
      %p276 = scmp.lt.s32.totalorder %s273, 1
      %s277 = scalar_select %p276, %s273, 1
      %s278 = smul.addr %s275, 2
      %s279 = sadd.s32 %s277, %s278
      %s280 = smul.addr %s279, 4
      %s281 = scalar_lea.vmem %s0, %s280
      %s282 = smul.u32 32, %s20
      %s283 = smul.u32 2, %s22
      %s284 = smul.u32 20, %s22
      %p285 = scmp.lt.s32.totalorder %s284, 19
      %s286 = scalar_select %p285, %s284, 19
      %p287 = scmp.lt.s32.totalorder %s21, 0
      %s288 = scalar_select %p287, %s21, 0
      %s289 = sadd.s32 %s288, %s286
      %s290 = smul.addr %s289, 4
      %s291 = scalar_lea.vmem %s1, %s290
      %s292 = smul.u32 20, %s22
      %p293 = scmp.lt.s32.totalorder %s21, 0
      %s294 = scalar_select %p293, %s21, 0
      %s295 = scalar_lea.vmem %s2, %s294
      %p296 = scmp.lt.s32.totalorder %s21, 0
      %s297 = scalar_select %p296, %s21, 0
      %s298 = scalar_lea.vmem %s3, %s297
      %s299 = smul.u32 32, %s20
      %p300 = scmp.lt.s32.totalorder %s299, 255
      %s301 = scalar_select %p300, %s299, 255
      %p302 = scmp.lt.s32.totalorder %s21, 0
      %s303 = scalar_select %p302, %s21, 0
      %s304 = sadd.s32 %s303, %s301
      %s305 = smul.addr %s304, 4
      %s306 = scalar_lea.vmem %s4, %s305
      %s307 = smul.u32 32, %s20
      %p309 = scmp.eq.s32.totalorder %s22, 0
      // Predicated region
      $region37: #{_stem_forward.2} parent=35 // pred_check
        %p310 = pneg %p309
      $region38: #{_stem_forward.2} parent=35 // pred_check_branch
        %312 = sbr.rel (%p310) target = $region40
      $region39: #{_stem_forward.2} parent=35 // pred_region
        %313 = vst [vmem:[#allocation2] sm:$0xff] 0.0
        %314 = vst [vmem:[#allocation2 + $0x8] sm:$0xff] 0.0
        %315 = vst [vmem:[#allocation2 + $0x10] sm:$0xff] 0.0
        %316 = vst [vmem:[#allocation2 + $0x18] sm:$0xff] 0.0
        %317 = vst [vmem:[#allocation2 + $0x20] sm:$0xff] 0.0
        %318 = vst [vmem:[#allocation2 + $0x28] sm:$0xff] 0.0
        %319 = vst [vmem:[#allocation2 + $0x30] sm:$0xff] 0.0
        %320 = vst [vmem:[#allocation2 + $0x38] sm:$0xff] 0.0
        %321 = vst [vmem:[#allocation2 + $0x40] sm:$0xff] 0.0
        %322 = vst [vmem:[#allocation2 + $0x48] sm:$0xff] 0.0
        %323 = vst [vmem:[#allocation2 + $0x50] sm:$0xff] 0.0
        %324 = vst [vmem:[#allocation2 + $0x58] sm:$0xff] 0.0
        %325 = vst [vmem:[#allocation2 + $0x60] sm:$0xff] 0.0
        %326 = vst [vmem:[#allocation2 + $0x68] sm:$0xff] 0.0
        %327 = vst [vmem:[#allocation2 + $0x70] sm:$0xff] 0.0
        %328 = vst [vmem:[#allocation2 + $0x78] sm:$0xff] 0.0
        %329 = vst [vmem:[#allocation2 + $0x80] sm:$0xff] 0.0
        %330 = vst [vmem:[#allocation2 + $0x88] sm:$0xff] 0.0
        %331 = vst [vmem:[#allocation2 + $0x90] sm:$0xff] 0.0
        %332 = vst [vmem:[#allocation2 + $0x98] sm:$0xff] 0.0
        %333 = vst [vmem:[#allocation2 + $0xa0] sm:$0xff] 0.0
        %334 = vst [vmem:[#allocation2 + $0xa8] sm:$0xff] 0.0
        %335 = vst [vmem:[#allocation2 + $0xb0] sm:$0xff] 0.0
        %336 = vst [vmem:[#allocation2 + $0xb8] sm:$0xff] 0.0
        %337 = vst [vmem:[#allocation2 + $0xc0] sm:$0xff] 0.0
        %338 = vst [vmem:[#allocation2 + $0xc8] sm:$0xff] 0.0
        %339 = vst [vmem:[#allocation2 + $0xd0] sm:$0xff] 0.0
        %340 = vst [vmem:[#allocation2 + $0xd8] sm:$0xff] 0.0
        %341 = vst [vmem:[#allocation2 + $0xe0] sm:$0xff] 0.0
        %342 = vst [vmem:[#allocation2 + $0xe8] sm:$0xff] 0.0
        %343 = vst [vmem:[#allocation2 + $0xf0] sm:$0xff] 0.0
        %344 = vst [vmem:[#allocation2 + $0xf8] sm:$0xff] 0.0
      $region40: #{_stem_forward.2} parent=35 // pred_fallthru
        _
      %v345 = vld [vmem:[#allocation2] sm:$0xff]
      %v346 = vld [vmem:[#allocation2 + $0x8] sm:$0xff]
      %v347 = vld [vmem:[#allocation2 + $0x10] sm:$0xff]
      %v348 = vld [vmem:[#allocation2 + $0x18] sm:$0xff]
      %v349 = vld [vmem:[#allocation2 + $0x20] sm:$0xff]
      %v350 = vld [vmem:[#allocation2 + $0x28] sm:$0xff]
      %v351 = vld [vmem:[#allocation2 + $0x30] sm:$0xff]
      %v352 = vld [vmem:[#allocation2 + $0x38] sm:$0xff]
      %v353 = vld [vmem:[#allocation2 + $0x40] sm:$0xff]
      %v354 = vld [vmem:[#allocation2 + $0x48] sm:$0xff]
      %v355 = vld [vmem:[#allocation2 + $0x50] sm:$0xff]
      %v356 = vld [vmem:[#allocation2 + $0x58] sm:$0xff]
      %v357 = vld [vmem:[#allocation2 + $0x60] sm:$0xff]
      %v358 = vld [vmem:[#allocation2 + $0x68] sm:$0xff]
      %v359 = vld [vmem:[#allocation2 + $0x70] sm:$0xff]
      %v360 = vld [vmem:[#allocation2 + $0x78] sm:$0xff]
      %v361 = vld [vmem:[#allocation2 + $0x80] sm:$0xff]
      %v362 = vld [vmem:[#allocation2 + $0x88] sm:$0xff]
      %v363 = vld [vmem:[#allocation2 + $0x90] sm:$0xff]
      %v364 = vld [vmem:[#allocation2 + $0x98] sm:$0xff]
      %v365 = vld [vmem:[#allocation2 + $0xa0] sm:$0xff]
      %v366 = vld [vmem:[#allocation2 + $0xa8] sm:$0xff]
      %v367 = vld [vmem:[#allocation2 + $0xb0] sm:$0xff]
      %v368 = vld [vmem:[#allocation2 + $0xb8] sm:$0xff]
      %v369 = vld [vmem:[#allocation2 + $0xc0] sm:$0xff]
      %v370 = vld [vmem:[#allocation2 + $0xc8] sm:$0xff]
      %v371 = vld [vmem:[#allocation2 + $0xd0] sm:$0xff]
      %v372 = vld [vmem:[#allocation2 + $0xd8] sm:$0xff]
      %v373 = vld [vmem:[#allocation2 + $0xe0] sm:$0xff]
      %v374 = vld [vmem:[#allocation2 + $0xe8] sm:$0xff]
      %v375 = vld [vmem:[#allocation2 + $0xf0] sm:$0xff]
      %v376 = vld [vmem:[#allocation2 + $0xf8] sm:$0xff]
      %v377 = vld [vmem:[%s281] sm:$0xff]
      %v378 = vld [vmem:[%s281 + $0x8] sm:$0xff]
      %v379 = vld [vmem:[%s281 + $0x10] sm:$0xff]
      %v380 = vld [vmem:[%s281 + $0x18] sm:$0xff]
      %v381 = vld [vmem:[%s281 + $0x20] sm:$0xff]
      %v382 = vld [vmem:[%s281 + $0x28] sm:$0xff]
      %v383 = vld [vmem:[%s281 + $0x30] sm:$0xff]
      %v384 = vld [vmem:[%s281 + $0x38] sm:$0xff]
      %v385 = vld [vmem:[%s281 + $0x40] sm:$0xff]
      %v386 = vld [vmem:[%s281 + $0x48] sm:$0xff]
      %v387 = vld [vmem:[%s281 + $0x50] sm:$0xff]
      %v388 = vld [vmem:[%s281 + $0x58] sm:$0xff]
      %v389 = vld [vmem:[%s281 + $0x60] sm:$0xff]
      %v390 = vld [vmem:[%s281 + $0x68] sm:$0xff]
      %v391 = vld [vmem:[%s281 + $0x70] sm:$0xff]
      %v392 = vld [vmem:[%s281 + $0x78] sm:$0xff]
      %v393 = vld [vmem:[%s281 + $0x80] sm:$0xff]
      %v394 = vld [vmem:[%s281 + $0x88] sm:$0xff]
      %v395 = vld [vmem:[%s281 + $0x90] sm:$0xff]
      %v396 = vld [vmem:[%s281 + $0x98] sm:$0xff]
      %v397 = vld [vmem:[%s281 + $0xa0] sm:$0xff]
      %v398 = vld [vmem:[%s281 + $0xa8] sm:$0xff]
      %v399 = vld [vmem:[%s281 + $0xb0] sm:$0xff]
      %v400 = vld [vmem:[%s281 + $0xb8] sm:$0xff]
      %v401 = vld [vmem:[%s281 + $0xc0] sm:$0xff]
      %v402 = vld [vmem:[%s281 + $0xc8] sm:$0xff]
      %v403 = vld [vmem:[%s281 + $0xd0] sm:$0xff]
      %v404 = vld [vmem:[%s281 + $0xd8] sm:$0xff]
      %v405 = vld [vmem:[%s281 + $0xe0] sm:$0xff]
      %v406 = vld [vmem:[%s281 + $0xe8] sm:$0xff]
      %v407 = vld [vmem:[%s281 + $0xf0] sm:$0xff]
      %v408 = vld [vmem:[%s281 + $0xf8] sm:$0xff]
      %v409 = vld [vmem:[%s291] sm:$0xf]
      %v410 = vld [vmem:[%s291 + $0x4] sm:$0xf]
      %v411 = vld [vmem:[%s291 + $0x8] sm:$0xf]
      %v412 = vld [vmem:[%s291 + $0xc] sm:$0xf]
      %v413 = vld [vmem:[%s291 + $0x10] sm:$0xf]
      %v414 = vld [vmem:[%s291 + $0x14] sm:$0xf]
      %v415 = vld [vmem:[%s291 + $0x18] sm:$0xf]
      %v416 = vld [vmem:[%s291 + $0x1c] sm:$0xf]
      %v417 = vld [vmem:[%s291 + $0x20] sm:$0xf]
      %v418 = vld [vmem:[%s291 + $0x24] sm:$0xf]
      %v419 = vld [vmem:[%s291 + $0x28] sm:$0xf]
      %v420 = vld [vmem:[%s291 + $0x2c] sm:$0xf]
      %v421 = vld [vmem:[%s291 + $0x30] sm:$0xf]
      %v422 = vld [vmem:[%s291 + $0x34] sm:$0xf]
      %v423 = vld [vmem:[%s291 + $0x38] sm:$0xf]
      %v424 = vld [vmem:[%s291 + $0x3c] sm:$0xf]
      %v425 = vld [vmem:[%s291 + $0x40] sm:$0xf]
      %v426 = vld [vmem:[%s291 + $0x44] sm:$0xf]
      %v427 = vld [vmem:[%s291 + $0x48] sm:$0xf]
      %v428 = vld [vmem:[%s291 + $0x4c] sm:$0xf]
      %v461 = vunpack.c.l.b16 %v377
      %v462 = vunpack.c.h.b16 %v377
      %v463 = vunpack.c.l.b16 %v378
      %v464 = vunpack.c.h.b16 %v378
      %v465 = vunpack.c.l.b16 %v379
      %v466 = vunpack.c.h.b16 %v379
      %v467 = vunpack.c.l.b16 %v380
      %v468 = vunpack.c.h.b16 %v380
      %v469 = vunpack.c.l.b16 %v381
      %v470 = vunpack.c.h.b16 %v381
      %v471 = vunpack.c.l.b16 %v382
      %v472 = vunpack.c.h.b16 %v382
      %v473 = vunpack.c.l.b16 %v383
      %v474 = vunpack.c.h.b16 %v383
      %v475 = vunpack.c.l.b16 %v384
      %v476 = vunpack.c.h.b16 %v384
      %v477 = vunpack.c.l.b16 %v385
      %v478 = vunpack.c.h.b16 %v385
      %v479 = vunpack.c.l.b16 %v386
      %v480 = vunpack.c.h.b16 %v386
      %v481 = vunpack.c.l.b16 %v387
      %v482 = vunpack.c.h.b16 %v387
      %v483 = vunpack.c.l.b16 %v388
      %v484 = vunpack.c.h.b16 %v388
      %v485 = vunpack.c.l.b16 %v389
      %v486 = vunpack.c.h.b16 %v389
      %v487 = vunpack.c.l.b16 %v390
      %v488 = vunpack.c.h.b16 %v390
      %v489 = vunpack.c.l.b16 %v391
      %v490 = vunpack.c.h.b16 %v391
      %v491 = vunpack.c.l.b16 %v392
      %v492 = vunpack.c.h.b16 %v392
      %v493 = vunpack.c.l.b16 %v393
      %v494 = vunpack.c.h.b16 %v393
      %v495 = vunpack.c.l.b16 %v394
      %v496 = vunpack.c.h.b16 %v394
      %v497 = vunpack.c.l.b16 %v395
      %v498 = vunpack.c.h.b16 %v395
      %v499 = vunpack.c.l.b16 %v396
      %v500 = vunpack.c.h.b16 %v396
      %v501 = vunpack.c.l.b16 %v397
      %v502 = vunpack.c.h.b16 %v397
      %v503 = vunpack.c.l.b16 %v398
      %v504 = vunpack.c.h.b16 %v398
      %v505 = vunpack.c.l.b16 %v399
      %v506 = vunpack.c.h.b16 %v399
      %v507 = vunpack.c.l.b16 %v400
      %v508 = vunpack.c.h.b16 %v400
      %v509 = vunpack.c.l.b16 %v401
      %v510 = vunpack.c.h.b16 %v401
      %v511 = vunpack.c.l.b16 %v402
      %v512 = vunpack.c.h.b16 %v402
      %v513 = vunpack.c.l.b16 %v403
      %v514 = vunpack.c.h.b16 %v403
      %v515 = vunpack.c.l.b16 %v404
      %v516 = vunpack.c.h.b16 %v404
      %v517 = vunpack.c.l.b16 %v405
      %v518 = vunpack.c.h.b16 %v405
      %v519 = vunpack.c.l.b16 %v406
      %v520 = vunpack.c.h.b16 %v406
      %v521 = vunpack.c.l.b16 %v407
      %v522 = vunpack.c.h.b16 %v407
      %v523 = vunpack.c.l.b16 %v408
      %v524 = vunpack.c.h.b16 %v408
      %v525 = vpack.c.b16 %v463, %v461
      %v526 = vpack.c.b16 %v464, %v462
      %v527 = vpack.c.b16 %v467, %v465
      %v528 = vpack.c.b16 %v468, %v466
      %v529 = vpack.c.b16 %v471, %v469
      %v530 = vpack.c.b16 %v472, %v470
      %v531 = vpack.c.b16 %v475, %v473
      %v532 = vpack.c.b16 %v476, %v474
      %v533 = vpack.c.b16 %v479, %v477
      %v534 = vpack.c.b16 %v480, %v478
      %v535 = vpack.c.b16 %v483, %v481
      %v536 = vpack.c.b16 %v484, %v482
      %v537 = vpack.c.b16 %v487, %v485
      %v538 = vpack.c.b16 %v488, %v486
      %v539 = vpack.c.b16 %v491, %v489
      %v540 = vpack.c.b16 %v492, %v490
      %v541 = vpack.c.b16 %v495, %v493
      %v542 = vpack.c.b16 %v496, %v494
      %v543 = vpack.c.b16 %v499, %v497
      %v544 = vpack.c.b16 %v500, %v498
      %v545 = vpack.c.b16 %v503, %v501
      %v546 = vpack.c.b16 %v504, %v502
      %v547 = vpack.c.b16 %v507, %v505
      %v548 = vpack.c.b16 %v508, %v506
      %v549 = vpack.c.b16 %v511, %v509
      %v550 = vpack.c.b16 %v512, %v510
      %v551 = vpack.c.b16 %v515, %v513
      %v552 = vpack.c.b16 %v516, %v514
      %v553 = vpack.c.b16 %v519, %v517
      %v554 = vpack.c.b16 %v520, %v518
      %v555 = vpack.c.b16 %v523, %v521
      %v556 = vpack.c.b16 %v524, %v522
      %v593 = vunpack.c.l.b16 %v409
      %v594 = vunpack.c.l.b16 %v410
      %v595 = vunpack.c.l.b16 %v411
      %v596 = vunpack.c.l.b16 %v412
      %v597 = vunpack.c.l.b16 %v413
      %v598 = vunpack.c.l.b16 %v414
      %v599 = vunpack.c.l.b16 %v415
      %v600 = vunpack.c.l.b16 %v416
      %v601 = vunpack.c.l.b16 %v417
      %v602 = vunpack.c.l.b16 %v418
      %v603 = vunpack.c.l.b16 %v419
      %v604 = vunpack.c.l.b16 %v420
      %v605 = vunpack.c.l.b16 %v421
      %v606 = vunpack.c.l.b16 %v422
      %v607 = vunpack.c.l.b16 %v423
      %v608 = vunpack.c.l.b16 %v424
      %v609 = vunpack.c.l.b16 %v425
      %v610 = vunpack.c.l.b16 %v426
      %v611 = vunpack.c.l.b16 %v427
      %v612 = vunpack.c.l.b16 %v428
      %v613 = vpack.c.b16 %v594, %v593
      %v614 = vpack.c.b16 %v596, %v595
      %v615 = vpack.c.b16 %v598, %v597
      %v616 = vpack.c.b16 %v600, %v599
      %v617 = vpack.c.b16 %v602, %v601
      %v618 = vpack.c.b16 %v604, %v603
      %v619 = vpack.c.b16 %v606, %v605
      %v620 = vpack.c.b16 %v608, %v607
      %v621 = vpack.c.b16 %v610, %v609
      %v622 = vpack.c.b16 %v612, %v611
      %vm633 = vcmask 261120
      %v635 = vsel %vm633, %v526, 0
      %v638 = vsel %vm633, %v528, 0
      %v641 = vsel %vm633, %v530, 0
      %v644 = vsel %vm633, %v532, 0
      %v647 = vsel %vm633, %v534, 0
      %v650 = vsel %vm633, %v536, 0
      %v653 = vsel %vm633, %v538, 0
      %v656 = vsel %vm633, %v540, 0
      %v659 = vsel %vm633, %v542, 0
      %v662 = vsel %vm633, %v544, 0
      %v665 = vsel %vm633, %v546, 0
      %v668 = vsel %vm633, %v548, 0
      %v671 = vsel %vm633, %v550, 0
      %v674 = vsel %vm633, %v552, 0
      %v677 = vsel %vm633, %v554, 0
      %v680 = vsel %vm633, %v556, 0
      %682 = vmatprep.subr.bf16.mxu0 0
      %683 = vmatpush1.bf16.msra.mxu0 %v620
      %684 = vmatprep.subr.bf16.mxu0 0
      %685 = vmatpush1.bf16.msra.mxu0 %v619
      %686 = vmatprep.subr.bf16.mxu0 0
      %687 = vmatpush1.bf16.msra.mxu0 %v618
      %688 = vmatprep.subr.bf16.mxu0 0
      %689 = vmatpush1.bf16.msra.mxu0 %v617
      %690 = vmatprep.subr.bf16.mxu0 0
      %691 = vmatpush1.bf16.msra.mxu0 %v616
      %692 = vmatprep.subr.bf16.mxu0 0
      %693 = vmatpush1.bf16.msra.mxu0 %v615
      %694 = vmatprep.subr.bf16.mxu0 0
      %695 = vmatpush1.bf16.msra.mxu0 %v614
      %696 = vmatprep.subr.bf16.mxu0 0
      %697 = vmatpush1.bf16.msra.mxu0 %v613
      %698 = vmatprep.subr.bf16.mxu0 0
      %699 = vmatpush2.bf16.msra.mxu0 0
      %700 = vmatprep.subr.bf16.mxu0 0
      %701 = vmatpush2.bf16.msra.mxu0 0
      %702 = vmatprep.subr.bf16.mxu0 0
      %703 = vmatpush2.bf16.msra.mxu0 0
      %704 = vmatprep.subr.bf16.mxu0 0
      %705 = vmatpush2.bf16.msra.mxu0 0
      %706 = vmatprep.subr.bf16.mxu0 0
      %707 = vmatpush2.bf16.msra.mxu0 0
      %708 = vmatprep.subr.bf16.mxu0 0
      %709 = vmatpush2.bf16.msra.mxu0 0
      %710 = vmatprep.subr.bf16.mxu0 0
      %711 = vmatpush2.bf16.msra.mxu0 %v622
      %712 = vmatprep.subr.bf16.mxu0 0
      %713 = vmatpush2.bf16.msra.mxu0 %v621
      %714 = vmatprep.mubr.bf16.mxu0 %v635
      %715 = vmatmul.mubr.bf16.gmra.mxu0 %v525
      %v716 = vpop.f32.mrf.mxu0
      %v717 = vadd.f32 0.0, %v716
      %v718 = vpop.f32.mrf.mxu0
      %v719 = vpop.f32.mrf.mxu0
      %v720 = vadd.f32 0.0, %v719
      %v721 = vpop.f32.mrf.mxu0
      %722 = vmatprep.mubr.bf16.mxu0 %v638
      %723 = vmatmul.mubr.bf16.gmra.mxu0 %v527
      %v724 = vpop.f32.mrf.mxu0
      %v725 = vadd.f32 0.0, %v724
      %v726 = vpop.f32.mrf.mxu0
      %v727 = vpop.f32.mrf.mxu0
      %v728 = vadd.f32 0.0, %v727
      %v729 = vpop.f32.mrf.mxu0
      %730 = vmatprep.mubr.bf16.mxu0 %v641
      %731 = vmatmul.mubr.bf16.gmra.mxu0 %v529
      %v732 = vpop.f32.mrf.mxu0
      %v733 = vadd.f32 0.0, %v732
      %v734 = vpop.f32.mrf.mxu0
      %v735 = vpop.f32.mrf.mxu0
      %v736 = vadd.f32 0.0, %v735
      %v737 = vpop.f32.mrf.mxu0
      %738 = vmatprep.mubr.bf16.mxu0 %v644
      %739 = vmatmul.mubr.bf16.gmra.mxu0 %v531
      %v740 = vpop.f32.mrf.mxu0
      %v741 = vadd.f32 0.0, %v740
      %v742 = vpop.f32.mrf.mxu0
      %v743 = vpop.f32.mrf.mxu0
      %v744 = vadd.f32 0.0, %v743
      %v745 = vpop.f32.mrf.mxu0
      %746 = vmatprep.mubr.bf16.mxu0 %v647
      %747 = vmatmul.mubr.bf16.gmra.mxu0 %v533
      %v748 = vpop.f32.mrf.mxu0
      %v749 = vadd.f32 0.0, %v748
      %v750 = vpop.f32.mrf.mxu0
      %v751 = vpop.f32.mrf.mxu0
      %v752 = vadd.f32 0.0, %v751
      %v753 = vpop.f32.mrf.mxu0
      %754 = vmatprep.mubr.bf16.mxu0 %v650
      %755 = vmatmul.mubr.bf16.gmra.mxu0 %v535
      %v756 = vpop.f32.mrf.mxu0
      %v757 = vadd.f32 0.0, %v756
      %v758 = vpop.f32.mrf.mxu0
      %v759 = vpop.f32.mrf.mxu0
      %v760 = vadd.f32 0.0, %v759
      %v761 = vpop.f32.mrf.mxu0
      %762 = vmatprep.mubr.bf16.mxu0 %v653
      %763 = vmatmul.mubr.bf16.gmra.mxu0 %v537
      %v764 = vpop.f32.mrf.mxu0
      %v765 = vadd.f32 0.0, %v764
      %v766 = vpop.f32.mrf.mxu0
      %v767 = vpop.f32.mrf.mxu0
      %v768 = vadd.f32 0.0, %v767
      %v769 = vpop.f32.mrf.mxu0
      %770 = vmatprep.mubr.bf16.mxu0 %v656
      %771 = vmatmul.mubr.bf16.gmra.mxu0 %v539
      %v772 = vpop.f32.mrf.mxu0
      %v773 = vadd.f32 0.0, %v772
      %v774 = vpop.f32.mrf.mxu0
      %v775 = vpop.f32.mrf.mxu0
      %v776 = vadd.f32 0.0, %v775
      %v777 = vpop.f32.mrf.mxu0
      %778 = vmatprep.mubr.bf16.mxu0 %v659
      %779 = vmatmul.mubr.bf16.gmra.mxu0 %v541
      %v780 = vpop.f32.mrf.mxu0
      %v781 = vadd.f32 0.0, %v780
      %v782 = vpop.f32.mrf.mxu0
      %v783 = vpop.f32.mrf.mxu0
      %v784 = vadd.f32 0.0, %v783
      %v785 = vpop.f32.mrf.mxu0
      %786 = vmatprep.mubr.bf16.mxu0 %v662
      %787 = vmatmul.mubr.bf16.gmra.mxu0 %v543
      %v788 = vpop.f32.mrf.mxu0
      %v789 = vadd.f32 0.0, %v788
      %v790 = vpop.f32.mrf.mxu0
      %v791 = vpop.f32.mrf.mxu0
      %v792 = vadd.f32 0.0, %v791
      %v793 = vpop.f32.mrf.mxu0
      %794 = vmatprep.mubr.bf16.mxu0 %v665
      %795 = vmatmul.mubr.bf16.gmra.mxu0 %v545
      %v796 = vpop.f32.mrf.mxu0
      %v797 = vadd.f32 0.0, %v796
      %v798 = vpop.f32.mrf.mxu0
      %v799 = vpop.f32.mrf.mxu0
      %v800 = vadd.f32 0.0, %v799
      %v801 = vpop.f32.mrf.mxu0
      %802 = vmatprep.mubr.bf16.mxu0 %v668
      %803 = vmatmul.mubr.bf16.gmra.mxu0 %v547
      %v804 = vpop.f32.mrf.mxu0
      %v805 = vadd.f32 0.0, %v804
      %v806 = vpop.f32.mrf.mxu0
      %v807 = vpop.f32.mrf.mxu0
      %v808 = vadd.f32 0.0, %v807
      %v809 = vpop.f32.mrf.mxu0
      %810 = vmatprep.mubr.bf16.mxu0 %v671
      %811 = vmatmul.mubr.bf16.gmra.mxu0 %v549
      %v812 = vpop.f32.mrf.mxu0
      %v813 = vadd.f32 0.0, %v812
      %v814 = vpop.f32.mrf.mxu0
      %v815 = vpop.f32.mrf.mxu0
      %v816 = vadd.f32 0.0, %v815
      %v817 = vpop.f32.mrf.mxu0
      %818 = vmatprep.mubr.bf16.mxu0 %v674
      %819 = vmatmul.mubr.bf16.gmra.mxu0 %v551
      %v820 = vpop.f32.mrf.mxu0
      %v821 = vadd.f32 0.0, %v820
      %v822 = vpop.f32.mrf.mxu0
      %v823 = vpop.f32.mrf.mxu0
      %v824 = vadd.f32 0.0, %v823
      %v825 = vpop.f32.mrf.mxu0
      %826 = vmatprep.mubr.bf16.mxu0 %v677
      %827 = vmatmul.mubr.bf16.gmra.mxu0 %v553
      %v828 = vpop.f32.mrf.mxu0
      %v829 = vadd.f32 0.0, %v828
      %v830 = vpop.f32.mrf.mxu0
      %v831 = vpop.f32.mrf.mxu0
      %v832 = vadd.f32 0.0, %v831
      %v833 = vpop.f32.mrf.mxu0
      %834 = vmatprep.mubr.bf16.mxu0 %v680
      %835 = vmatmul.mubr.bf16.gmra.mxu0 %v555
      %v836 = vpop.f32.mrf.mxu0
      %v837 = vadd.f32 0.0, %v836
      %v838 = vpop.f32.mrf.mxu0
      %v839 = vpop.f32.mrf.mxu0
      %v840 = vadd.f32 0.0, %v839
      %v841 = vpop.f32.mrf.mxu0
      %842 = vdwg.mxu0
      %v843 = vadd.f32 %v345, %v717
      %v844 = vadd.f32 %v346, %v720
      %v845 = vadd.f32 %v347, %v725
      %v846 = vadd.f32 %v348, %v728
      %v847 = vadd.f32 %v349, %v733
      %v848 = vadd.f32 %v350, %v736
      %v849 = vadd.f32 %v351, %v741
      %v850 = vadd.f32 %v352, %v744
      %v851 = vadd.f32 %v353, %v749
      %v852 = vadd.f32 %v354, %v752
      %v853 = vadd.f32 %v355, %v757
      %v854 = vadd.f32 %v356, %v760
      %v855 = vadd.f32 %v357, %v765
      %v856 = vadd.f32 %v358, %v768
      %v857 = vadd.f32 %v359, %v773
      %v858 = vadd.f32 %v360, %v776
      %v859 = vadd.f32 %v361, %v781
      %v860 = vadd.f32 %v362, %v784
      %v861 = vadd.f32 %v363, %v789
      %v862 = vadd.f32 %v364, %v792
      %v863 = vadd.f32 %v365, %v797
      %v864 = vadd.f32 %v366, %v800
      %v865 = vadd.f32 %v367, %v805
      %v866 = vadd.f32 %v368, %v808
      %v867 = vadd.f32 %v369, %v813
      %v868 = vadd.f32 %v370, %v816
      %v869 = vadd.f32 %v371, %v821
      %v870 = vadd.f32 %v372, %v824
      %v871 = vadd.f32 %v373, %v829
      %v872 = vadd.f32 %v374, %v832
      %v873 = vadd.f32 %v375, %v837
      %v874 = vadd.f32 %v376, %v840
      %875 = vst [vmem:[#allocation2] sm:$0xff] %v843
      %876 = vst [vmem:[#allocation2 + $0x8] sm:$0xff] %v844
      %877 = vst [vmem:[#allocation2 + $0x10] sm:$0xff] %v845
      %878 = vst [vmem:[#allocation2 + $0x18] sm:$0xff] %v846
      %879 = vst [vmem:[#allocation2 + $0x20] sm:$0xff] %v847
      %880 = vst [vmem:[#allocation2 + $0x28] sm:$0xff] %v848
      %881 = vst [vmem:[#allocation2 + $0x30] sm:$0xff] %v849
      %882 = vst [vmem:[#allocation2 + $0x38] sm:$0xff] %v850
      %883 = vst [vmem:[#allocation2 + $0x40] sm:$0xff] %v851
      %884 = vst [vmem:[#allocation2 + $0x48] sm:$0xff] %v852
      %885 = vst [vmem:[#allocation2 + $0x50] sm:$0xff] %v853
      %886 = vst [vmem:[#allocation2 + $0x58] sm:$0xff] %v854
      %887 = vst [vmem:[#allocation2 + $0x60] sm:$0xff] %v855
      %888 = vst [vmem:[#allocation2 + $0x68] sm:$0xff] %v856
      %889 = vst [vmem:[#allocation2 + $0x70] sm:$0xff] %v857
      %890 = vst [vmem:[#allocation2 + $0x78] sm:$0xff] %v858
      %891 = vst [vmem:[#allocation2 + $0x80] sm:$0xff] %v859
      %892 = vst [vmem:[#allocation2 + $0x88] sm:$0xff] %v860
      %893 = vst [vmem:[#allocation2 + $0x90] sm:$0xff] %v861
      %894 = vst [vmem:[#allocation2 + $0x98] sm:$0xff] %v862
      %895 = vst [vmem:[#allocation2 + $0xa0] sm:$0xff] %v863
      %896 = vst [vmem:[#allocation2 + $0xa8] sm:$0xff] %v864
      %897 = vst [vmem:[#allocation2 + $0xb0] sm:$0xff] %v865
      %898 = vst [vmem:[#allocation2 + $0xb8] sm:$0xff] %v866
      %899 = vst [vmem:[#allocation2 + $0xc0] sm:$0xff] %v867
      %900 = vst [vmem:[#allocation2 + $0xc8] sm:$0xff] %v868
      %901 = vst [vmem:[#allocation2 + $0xd0] sm:$0xff] %v869
      %902 = vst [vmem:[#allocation2 + $0xd8] sm:$0xff] %v870
      %903 = vst [vmem:[#allocation2 + $0xe0] sm:$0xff] %v871
      %904 = vst [vmem:[#allocation2 + $0xe8] sm:$0xff] %v872
      %905 = vst [vmem:[#allocation2 + $0xf0] sm:$0xff] %v873
      %906 = vst [vmem:[#allocation2 + $0xf8] sm:$0xff] %v874
      // Predicated region
      $region41: #{_stem_forward.2} parent=35 // pred_check
        %p907 = pneg %p309
      $region42: #{_stem_forward.2} parent=35 // pred_check_branch
        %909 = sbr.rel (%p907) target = $region44
      $region43: #{_stem_forward.2} parent=35 // pred_region
        %v910 = vld [vmem:[#allocation2] sm:$0xff]
        %v911 = vld [vmem:[#allocation2 + $0x8] sm:$0xff]
        %v912 = vld [vmem:[#allocation2 + $0x10] sm:$0xff]
        %v913 = vld [vmem:[#allocation2 + $0x18] sm:$0xff]
        %v914 = vld [vmem:[#allocation2 + $0x20] sm:$0xff]
        %v915 = vld [vmem:[#allocation2 + $0x28] sm:$0xff]
        %v916 = vld [vmem:[#allocation2 + $0x30] sm:$0xff]
        %v917 = vld [vmem:[#allocation2 + $0x38] sm:$0xff]
        %v918 = vld [vmem:[#allocation2 + $0x40] sm:$0xff]
        %v919 = vld [vmem:[#allocation2 + $0x48] sm:$0xff]
        %v920 = vld [vmem:[#allocation2 + $0x50] sm:$0xff]
        %v921 = vld [vmem:[#allocation2 + $0x58] sm:$0xff]
        %v922 = vld [vmem:[#allocation2 + $0x60] sm:$0xff]
        %v923 = vld [vmem:[#allocation2 + $0x68] sm:$0xff]
        %v924 = vld [vmem:[#allocation2 + $0x70] sm:$0xff]
        %v925 = vld [vmem:[#allocation2 + $0x78] sm:$0xff]
        %v926 = vld [vmem:[#allocation2 + $0x80] sm:$0xff]
        %v927 = vld [vmem:[#allocation2 + $0x88] sm:$0xff]
        %v928 = vld [vmem:[#allocation2 + $0x90] sm:$0xff]
        %v929 = vld [vmem:[#allocation2 + $0x98] sm:$0xff]
        %v930 = vld [vmem:[#allocation2 + $0xa0] sm:$0xff]
        %v931 = vld [vmem:[#allocation2 + $0xa8] sm:$0xff]
        %v932 = vld [vmem:[#allocation2 + $0xb0] sm:$0xff]
        %v933 = vld [vmem:[#allocation2 + $0xb8] sm:$0xff]
        %v934 = vld [vmem:[#allocation2 + $0xc0] sm:$0xff]
        %v935 = vld [vmem:[#allocation2 + $0xc8] sm:$0xff]
        %v936 = vld [vmem:[#allocation2 + $0xd0] sm:$0xff]
        %v937 = vld [vmem:[#allocation2 + $0xd8] sm:$0xff]
        %v938 = vld [vmem:[#allocation2 + $0xe0] sm:$0xff]
        %v939 = vld [vmem:[#allocation2 + $0xe8] sm:$0xff]
        %v940 = vld [vmem:[#allocation2 + $0xf0] sm:$0xff]
        %v941 = vld [vmem:[#allocation2 + $0xf8] sm:$0xff]
        %v942 = vld [vmem:[%s295] sm:$0x1]
        %v944 = vlaneseq
        %v945 = vshrl.u32 %v944, 7
        %v946 = vsub.s32 0, %v945
        %v947 = vrot.slane %v942, %v946
        %v949 = vmul.f32 %v910, %v947
        %v950 = vmul.f32 %v911, %v947
        %v951 = vmul.f32 %v912, %v947
        %v952 = vmul.f32 %v913, %v947
        %v953 = vmul.f32 %v914, %v947
        %v954 = vmul.f32 %v915, %v947
        %v955 = vmul.f32 %v916, %v947
        %v956 = vmul.f32 %v917, %v947
        %v957 = vmul.f32 %v918, %v947
        %v958 = vmul.f32 %v919, %v947
        %v959 = vmul.f32 %v920, %v947
        %v960 = vmul.f32 %v921, %v947
        %v961 = vmul.f32 %v922, %v947
        %v962 = vmul.f32 %v923, %v947
        %v963 = vmul.f32 %v924, %v947
        %v964 = vmul.f32 %v925, %v947
        %v965 = vmul.f32 %v926, %v947
        %v966 = vmul.f32 %v927, %v947
        %v967 = vmul.f32 %v928, %v947
        %v968 = vmul.f32 %v929, %v947
        %v969 = vmul.f32 %v930, %v947
        %v970 = vmul.f32 %v931, %v947
        %v971 = vmul.f32 %v932, %v947
        %v972 = vmul.f32 %v933, %v947
        %v973 = vmul.f32 %v934, %v947
        %v974 = vmul.f32 %v935, %v947
        %v975 = vmul.f32 %v936, %v947
        %v976 = vmul.f32 %v937, %v947
        %v977 = vmul.f32 %v938, %v947
        %v978 = vmul.f32 %v939, %v947
        %v979 = vmul.f32 %v940, %v947
        %v980 = vmul.f32 %v941, %v947
        %v981 = vld [vmem:[%s298] sm:$0x1]
        %v983 = vlaneseq
        %v984 = vshrl.u32 %v983, 7
        %v985 = vsub.s32 0, %v984
        %v986 = vrot.slane %v981, %v985
        %v988 = vadd.f32 %v949, %v986
        %v989 = vadd.f32 %v950, %v986
        %v990 = vadd.f32 %v951, %v986
        %v991 = vadd.f32 %v952, %v986
        %v992 = vadd.f32 %v953, %v986
        %v993 = vadd.f32 %v954, %v986
        %v994 = vadd.f32 %v955, %v986
        %v995 = vadd.f32 %v956, %v986
        %v996 = vadd.f32 %v957, %v986
        %v997 = vadd.f32 %v958, %v986
        %v998 = vadd.f32 %v959, %v986
        %v999 = vadd.f32 %v960, %v986
        %v1000 = vadd.f32 %v961, %v986
        %v1001 = vadd.f32 %v962, %v986
        %v1002 = vadd.f32 %v963, %v986
        %v1003 = vadd.f32 %v964, %v986
        %v1004 = vadd.f32 %v965, %v986
        %v1005 = vadd.f32 %v966, %v986
        %v1006 = vadd.f32 %v967, %v986
        %v1007 = vadd.f32 %v968, %v986
        %v1008 = vadd.f32 %v969, %v986
        %v1009 = vadd.f32 %v970, %v986
        %v1010 = vadd.f32 %v971, %v986
        %v1011 = vadd.f32 %v972, %v986
        %v1012 = vadd.f32 %v973, %v986
        %v1013 = vadd.f32 %v974, %v986
        %v1014 = vadd.f32 %v975, %v986
        %v1015 = vadd.f32 %v976, %v986
        %v1016 = vadd.f32 %v977, %v986
        %v1017 = vadd.f32 %v978, %v986
        %v1018 = vadd.f32 %v979, %v986
        %v1019 = vadd.f32 %v980, %v986
        %v1020 = vmax.f32 %v988, 0.0
        %v1021 = vmax.f32 %v989, 0.0
        %v1022 = vmax.f32 %v990, 0.0
        %v1023 = vmax.f32 %v991, 0.0
        %v1024 = vmax.f32 %v992, 0.0
        %v1025 = vmax.f32 %v993, 0.0
        %v1026 = vmax.f32 %v994, 0.0
        %v1027 = vmax.f32 %v995, 0.0
        %v1028 = vmax.f32 %v996, 0.0
        %v1029 = vmax.f32 %v997, 0.0
        %v1030 = vmax.f32 %v998, 0.0
        %v1031 = vmax.f32 %v999, 0.0
        %v1032 = vmax.f32 %v1000, 0.0
        %v1033 = vmax.f32 %v1001, 0.0
        %v1034 = vmax.f32 %v1002, 0.0
        %v1035 = vmax.f32 %v1003, 0.0
        %v1036 = vmax.f32 %v1004, 0.0
        %v1037 = vmax.f32 %v1005, 0.0
        %v1038 = vmax.f32 %v1006, 0.0
        %v1039 = vmax.f32 %v1007, 0.0
        %v1040 = vmax.f32 %v1008, 0.0
        %v1041 = vmax.f32 %v1009, 0.0
        %v1042 = vmax.f32 %v1010, 0.0
        %v1043 = vmax.f32 %v1011, 0.0
        %v1044 = vmax.f32 %v1012, 0.0
        %v1045 = vmax.f32 %v1013, 0.0
        %v1046 = vmax.f32 %v1014, 0.0
        %v1047 = vmax.f32 %v1015, 0.0
        %v1048 = vmax.f32 %v1016, 0.0
        %v1049 = vmax.f32 %v1017, 0.0
        %v1050 = vmax.f32 %v1018, 0.0
        %v1051 = vmax.f32 %v1019, 0.0
        %v1052 = vpack.c.bf16 %v1021, %v1020
        %v1053 = vpack.c.bf16 %v1023, %v1022
        %v1054 = vpack.c.bf16 %v1025, %v1024
        %v1055 = vpack.c.bf16 %v1027, %v1026
        %v1056 = vpack.c.bf16 %v1029, %v1028
        %v1057 = vpack.c.bf16 %v1031, %v1030
        %v1058 = vpack.c.bf16 %v1033, %v1032
        %v1059 = vpack.c.bf16 %v1035, %v1034
        %v1060 = vpack.c.bf16 %v1037, %v1036
        %v1061 = vpack.c.bf16 %v1039, %v1038
        %v1062 = vpack.c.bf16 %v1041, %v1040
        %v1063 = vpack.c.bf16 %v1043, %v1042
        %v1064 = vpack.c.bf16 %v1045, %v1044
        %v1065 = vpack.c.bf16 %v1047, %v1046
        %v1066 = vpack.c.bf16 %v1049, %v1048
        %v1067 = vpack.c.bf16 %v1051, %v1050
        %v1084 = vunpack.c.l.b16 %v1052
        %v1085 = vunpack.c.h.b16 %v1052
        %v1086 = vunpack.c.l.b16 %v1053
        %v1087 = vunpack.c.h.b16 %v1053
        %v1088 = vunpack.c.l.b16 %v1054
        %v1089 = vunpack.c.h.b16 %v1054
        %v1090 = vunpack.c.l.b16 %v1055
        %v1091 = vunpack.c.h.b16 %v1055
        %v1092 = vunpack.c.l.b16 %v1056
        %v1093 = vunpack.c.h.b16 %v1056
        %v1094 = vunpack.c.l.b16 %v1057
        %v1095 = vunpack.c.h.b16 %v1057
        %v1096 = vunpack.c.l.b16 %v1058
        %v1097 = vunpack.c.h.b16 %v1058
        %v1098 = vunpack.c.l.b16 %v1059
        %v1099 = vunpack.c.h.b16 %v1059
        %v1100 = vunpack.c.l.b16 %v1060
        %v1101 = vunpack.c.h.b16 %v1060
        %v1102 = vunpack.c.l.b16 %v1061
        %v1103 = vunpack.c.h.b16 %v1061
        %v1104 = vunpack.c.l.b16 %v1062
        %v1105 = vunpack.c.h.b16 %v1062
        %v1106 = vunpack.c.l.b16 %v1063
        %v1107 = vunpack.c.h.b16 %v1063
        %v1108 = vunpack.c.l.b16 %v1064
        %v1109 = vunpack.c.h.b16 %v1064
        %v1110 = vunpack.c.l.b16 %v1065
        %v1111 = vunpack.c.h.b16 %v1065
        %v1112 = vunpack.c.l.b16 %v1066
        %v1113 = vunpack.c.h.b16 %v1066
        %v1114 = vunpack.c.l.b16 %v1067
        %v1115 = vunpack.c.h.b16 %v1067
        %v1116 = vpack.c.b16 %v1084, %v1084
        %v1117 = vpack.c.b16 %v1085, %v1085
        %v1118 = vpack.c.b16 %v1086, %v1086
        %v1119 = vpack.c.b16 %v1087, %v1087
        %v1120 = vpack.c.b16 %v1088, %v1088
        %v1121 = vpack.c.b16 %v1089, %v1089
        %v1122 = vpack.c.b16 %v1090, %v1090
        %v1123 = vpack.c.b16 %v1091, %v1091
        %v1124 = vpack.c.b16 %v1092, %v1092
        %v1125 = vpack.c.b16 %v1093, %v1093
        %v1126 = vpack.c.b16 %v1094, %v1094
        %v1127 = vpack.c.b16 %v1095, %v1095
        %v1128 = vpack.c.b16 %v1096, %v1096
        %v1129 = vpack.c.b16 %v1097, %v1097
        %v1130 = vpack.c.b16 %v1098, %v1098
        %v1131 = vpack.c.b16 %v1099, %v1099
        %v1132 = vpack.c.b16 %v1100, %v1100
        %v1133 = vpack.c.b16 %v1101, %v1101
        %v1134 = vpack.c.b16 %v1102, %v1102
        %v1135 = vpack.c.b16 %v1103, %v1103
        %v1136 = vpack.c.b16 %v1104, %v1104
        %v1137 = vpack.c.b16 %v1105, %v1105
        %v1138 = vpack.c.b16 %v1106, %v1106
        %v1139 = vpack.c.b16 %v1107, %v1107
        %v1140 = vpack.c.b16 %v1108, %v1108
        %v1141 = vpack.c.b16 %v1109, %v1109
        %v1142 = vpack.c.b16 %v1110, %v1110
        %v1143 = vpack.c.b16 %v1111, %v1111
        %v1144 = vpack.c.b16 %v1112, %v1112
        %v1145 = vpack.c.b16 %v1113, %v1113
        %v1146 = vpack.c.b16 %v1114, %v1114
        %v1147 = vpack.c.b16 %v1115, %v1115
        %1180 = vst [vmem:[%s306] sm:$0xf] %v1116
        %1181 = vst [vmem:[%s306 + $0x4] sm:$0xf] %v1117
        %1182 = vst [vmem:[%s306 + $0x8] sm:$0xf] %v1118
        %1183 = vst [vmem:[%s306 + $0xc] sm:$0xf] %v1119
        %1184 = vst [vmem:[%s306 + $0x10] sm:$0xf] %v1120
        %1185 = vst [vmem:[%s306 + $0x14] sm:$0xf] %v1121
        %1186 = vst [vmem:[%s306 + $0x18] sm:$0xf] %v1122
        %1187 = vst [vmem:[%s306 + $0x1c] sm:$0xf] %v1123
        %1188 = vst [vmem:[%s306 + $0x20] sm:$0xf] %v1124
        %1189 = vst [vmem:[%s306 + $0x24] sm:$0xf] %v1125
        %1190 = vst [vmem:[%s306 + $0x28] sm:$0xf] %v1126
        %1191 = vst [vmem:[%s306 + $0x2c] sm:$0xf] %v1127
        %1192 = vst [vmem:[%s306 + $0x30] sm:$0xf] %v1128
        %1193 = vst [vmem:[%s306 + $0x34] sm:$0xf] %v1129
        %1194 = vst [vmem:[%s306 + $0x38] sm:$0xf] %v1130
        %1195 = vst [vmem:[%s306 + $0x3c] sm:$0xf] %v1131
        %1196 = vst [vmem:[%s306 + $0x40] sm:$0xf] %v1132
        %1197 = vst [vmem:[%s306 + $0x44] sm:$0xf] %v1133
        %1198 = vst [vmem:[%s306 + $0x48] sm:$0xf] %v1134
        %1199 = vst [vmem:[%s306 + $0x4c] sm:$0xf] %v1135
        %1200 = vst [vmem:[%s306 + $0x50] sm:$0xf] %v1136
        %1201 = vst [vmem:[%s306 + $0x54] sm:$0xf] %v1137
        %1202 = vst [vmem:[%s306 + $0x58] sm:$0xf] %v1138
        %1203 = vst [vmem:[%s306 + $0x5c] sm:$0xf] %v1139
        %1204 = vst [vmem:[%s306 + $0x60] sm:$0xf] %v1140
        %1205 = vst [vmem:[%s306 + $0x64] sm:$0xf] %v1141
        %1206 = vst [vmem:[%s306 + $0x68] sm:$0xf] %v1142
        %1207 = vst [vmem:[%s306 + $0x6c] sm:$0xf] %v1143
        %1208 = vst [vmem:[%s306 + $0x70] sm:$0xf] %v1144
        %1209 = vst [vmem:[%s306 + $0x74] sm:$0xf] %v1145
        %1210 = vst [vmem:[%s306 + $0x78] sm:$0xf] %v1146
        %1211 = vst [vmem:[%s306 + $0x7c] sm:$0xf] %v1147
      $region44: #{_stem_forward.2} parent=35 // pred_fallthru
        _
      %s1212 = smul.u32 32, %s20
      %p1213 = scmp.lt.s32.totalorder %s1212, 255
      %s1214 = scalar_select %p1213, %s1212, 255
      %p1215 = scmp.lt.s32.totalorder %s21, 0
      %s1216 = scalar_select %p1215, %s21, 0
      %s1217 = sadd.s32 %s1216, %s1214
      %s1218 = smul.addr %s1217, 4
      %s1219 = scalar_lea.vmem %s4, %s1218
      // Predicated region
      $region45: #{_stem_forward.2} parent=35 // pred_check
        %p1220 = pneg %p162
      $region46: #{_stem_forward.2} parent=35 // pred_check_branch
        %1222 = sbr.rel (%p1220) target = $region48
      $region47: #{_stem_forward.2} parent=35 // pred_region
        %s1223 = smul.u32 32, %s20
      $region48: #{_stem_forward.2} parent=35 // pred_fallthru
        _
    $region36: #{_stem_forward.2} parent=5 // pred_fallthru
      _
    %p1224 = scmp.le.s32.totalorder 2, %s10
    // Predicated region
    $region49: #{_stem_forward.2} parent=5 // pred_check
      %p1225 = pneg %p1224
    $region50: #{_stem_forward.2} parent=5 // pred_check_branch
      %1227 = sbr.rel (%p1225) target = $region52
    $region51: #{_stem_forward.2} parent=5 // pred_region
      %s1228 = ssub.s32 %s10, 2
      // Predicated region
      $region53: #{_stem_forward.2} parent=51 // pred_check
        %p1229 = pneg %p168
      $region54: #{_stem_forward.2} parent=51 // pred_check_branch
        %1231 = sbr.rel (%p1229) target = $region56
      $region55: #{_stem_forward.2} parent=51 // pred_region
        %s1232 = smul.u32 32, %s23
        %p1233 = scmp.lt.s32.totalorder %s1232, 255
        %s1234 = scalar_select %p1233, %s1232, 255
        %p1235 = scmp.lt.s32.totalorder %s24, 0
        %s1236 = scalar_select %p1235, %s24, 0
        %s1237 = sadd.s32 %s1236, %s1234
        %s1238 = smul.addr %s1237, 4
        %s1239 = scalar_lea.vmem %s4, %s1238
      $region56: #{_stem_forward.2} parent=51 // pred_fallthru
        _
    $region52: #{_stem_forward.2} parent=5 // pred_fallthru
      _
  $region6: #{_stem_forward.2} parent=0 // loop_footer
    %s14 = sadd.s32 1, %s10
  $region7: #{_stem_forward.2} parent=0 // loop_footer_branch
    %9 = sbr.rel target = $region3
  $region8: #{_stem_forward.2} parent=0 // loop_exit
    _

// kernel: _stem_forward.3
$region0: #{_stem_forward.3}
  #allocation0 [shape = 'u32[]', space=smem, size = 0x4, offset = 0x4, fixed_abs, tag = 'smem constant byte address 0x4 - core index']
  #allocation1 [shape = 'u32[144,128]{1,0:T(1,128)}', space=vmem, size = 0x12000, scoped, tag = 'internal scratch']
  %s0 = inlined_call_operand.vmem [shape: bf16[2,1090,128], index: 0, kind: input, shape index: {}]
  %s1 = inlined_call_operand.vmem [shape: bf16[1090,1], index: 1, kind: input, shape index: {}]
  %s2 = inlined_call_operand.vmem [shape: bf16[1090,1], index: 2, kind: input, shape index: {}]
  %s3 = inlined_call_operand.vmem [shape: bf16[2,1024,128], index: 3, kind: output, shape index: {}]
  %s4 = sld [smem:[#allocation0]]
  $region45: #{_stem_forward.3} parent=0
    _
  %s6 = ssub.s32 1, %s4
  %s7 = scalar_select 0, %s6, %s4
  loop: start=0, step=1, limit=4
  $region2: #{_stem_forward.3} parent=0 // loop_pre_header
    _
  $region3: #{_stem_forward.3} parent=0 // loop_header
    %s9 = sphi 0, %s13
    %p10 = scmp.ge.s32.totalorder %s9, 4
    %s19 = sphi 0, %s21
    %s22 = sphi 0, %s19
    %s23 = sphi 0, %s22
    %s39 = sphi 0, %s23
    %s43 = sphi 0, %s43
    %s45 = sphi 0, %s43
    %s46 = sphi 0, %s45
    %s60 = sphi 0, %s46
    %s64 = sphi 0, %s64
    %s66 = sphi 0, %s64
    %s67 = sphi 0, %s66
    %s81 = sphi 0, %s67
    %s87 = sphi 0, %s89
    %s90 = sphi 0, %s87
    %s91 = sphi 0, %s90
    %s107 = sphi 0, %s91
  $region4: #{_stem_forward.3} parent=0 // loop_header_branch
    %12 = sbr.rel (%p10) target = $region8
  $region5: #{_stem_forward.3} parent=0 // loop_body
    %s14 = ssub.s32 %s9, 1
    %s15 = ssub.s32 %s9, 2
    %s16 = sadd.s32 %s9, 1
    %s17 = ssub.s32 %s9, %s16
    %p18 = scmp.eq.s32.totalorder %s17, 0
    %s20 = sadd.s32 %s19, 1
    %s21 = scalar_select %p18, %s19, %s20
    %p24 = pneg %p18
    %p25 = scmp.eq.s32.totalorder %s9, 1
    %p26 = por %p24, %p25
    %p27 = scmp.ne.s32.totalorder %s19, %s22
    %p28 = scmp.eq.s32.totalorder %s9, 0
    %p29 = por %p27, %p28
    %p30 = scmp.ne.s32.totalorder %s19, %s22
    %p31 = scmp.eq.s32.totalorder %s14, 1
    %p32 = por %p30, %p31
    %p33 = scmp.ne.s32.totalorder %s22, %s23
    %p34 = scmp.eq.s32.totalorder %s14, 0
    %p35 = por %p33, %p34
    %p36 = scmp.ne.s32.totalorder %s22, %s23
    %p37 = scmp.eq.s32.totalorder %s15, 1
    %p38 = por %p36, %p37
    %p40 = scmp.ne.s32.totalorder %s23, %s39
    %p41 = scmp.eq.s32.totalorder %s15, 0
    %p42 = por %p40, %p41
    %s44 = sadd.s32 %s43, 1
    %p47 = scmp.eq.s32.totalorder %s9, 1
    %p48 = scmp.ne.s32.totalorder %s43, %s45
    %p49 = scmp.eq.s32.totalorder %s9, 0
    %p50 = por %p48, %p49
    %p51 = scmp.ne.s32.totalorder %s43, %s45
    %p52 = scmp.eq.s32.totalorder %s14, 1
    %p53 = por %p51, %p52
    %p54 = scmp.ne.s32.totalorder %s45, %s46
    %p55 = scmp.eq.s32.totalorder %s14, 0
    %p56 = por %p54, %p55
    %p57 = scmp.ne.s32.totalorder %s45, %s46
    %p58 = scmp.eq.s32.totalorder %s15, 1
    %p59 = por %p57, %p58
    %p61 = scmp.ne.s32.totalorder %s46, %s60
    %p62 = scmp.eq.s32.totalorder %s15, 0
    %p63 = por %p61, %p62
    %s65 = sadd.s32 %s64, 1
    %p68 = scmp.eq.s32.totalorder %s9, 1
    %p69 = scmp.ne.s32.totalorder %s64, %s66
    %p70 = scmp.eq.s32.totalorder %s9, 0
    %p71 = por %p69, %p70
    %p72 = scmp.ne.s32.totalorder %s64, %s66
    %p73 = scmp.eq.s32.totalorder %s14, 1
    %p74 = por %p72, %p73
    %p75 = scmp.ne.s32.totalorder %s66, %s67
    %p76 = scmp.eq.s32.totalorder %s14, 0
    %p77 = por %p75, %p76
    %p78 = scmp.ne.s32.totalorder %s66, %s67
    %p79 = scmp.eq.s32.totalorder %s15, 1
    %p80 = por %p78, %p79
    %p82 = scmp.ne.s32.totalorder %s67, %s81
    %p83 = scmp.eq.s32.totalorder %s15, 0
    %p84 = por %p82, %p83
    %s85 = ssub.s32 %s9, %s16
    %p86 = scmp.eq.s32.totalorder %s85, 0
    %s88 = sadd.s32 %s87, 1
    %s89 = scalar_select %p86, %s87, %s88
    %p92 = pneg %p86
    %p93 = scmp.eq.s32.totalorder %s9, 1
    %p94 = por %p92, %p93
    %p95 = scmp.ne.s32.totalorder %s87, %s90
    %p96 = scmp.eq.s32.totalorder %s9, 0
    %p97 = por %p95, %p96
    %p98 = scmp.ne.s32.totalorder %s87, %s90
    %p99 = scmp.eq.s32.totalorder %s14, 1
    %p100 = por %p98, %p99
    %p101 = scmp.ne.s32.totalorder %s90, %s91
    %p102 = scmp.eq.s32.totalorder %s14, 0
    %p103 = por %p101, %p102
    %p104 = scmp.ne.s32.totalorder %s90, %s91
    %p105 = scmp.eq.s32.totalorder %s15, 1
    %p106 = por %p104, %p105
    %p108 = scmp.ne.s32.totalorder %s91, %s107
    %p109 = scmp.eq.s32.totalorder %s15, 0
    %p110 = por %p108, %p109
    %p111 = scmp.le.s32.totalorder 1, %s9
    %p112 = scmp.lt.s32.totalorder %s9, 3
    %p113 = pnand %p111, %p112
    %p114 = pneg %p113
    // Predicated region
    $region9: #{_stem_forward.3} parent=5 // pred_check
      _
    $region10: #{_stem_forward.3} parent=5 // pred_check_branch
      %116 = sbr.rel (%p113) target = $region12
    $region11: #{_stem_forward.3} parent=5 // pred_region
      %s117 = ssub.s32 %s9, 1
      // Predicated region
      $region13: #{_stem_forward.3} parent=11 // pred_check
        %p118 = pneg %p56
      $region14: #{_stem_forward.3} parent=11 // pred_check_branch
        %120 = sbr.rel (%p118) target = $region16
      $region15: #{_stem_forward.3} parent=11 // pred_region
        _
      $region16: #{_stem_forward.3} parent=11 // pred_fallthru
        _
      // Predicated region
      $region17: #{_stem_forward.3} parent=11 // pred_check
        %p121 = pneg %p77
      $region18: #{_stem_forward.3} parent=11 // pred_check_branch
        %123 = sbr.rel (%p121) target = $region20
      $region19: #{_stem_forward.3} parent=11 // pred_region
        _
      $region20: #{_stem_forward.3} parent=11 // pred_fallthru
        _
    $region12: #{_stem_forward.3} parent=5 // pred_fallthru
      _
    %p124 = scmp.lt.s32.totalorder %s9, 2
    // Predicated region
    $region21: #{_stem_forward.3} parent=5 // pred_check
      %p125 = pneg %p124
    $region22: #{_stem_forward.3} parent=5 // pred_check_branch
      %127 = sbr.rel (%p125) target = $region24
    $region23: #{_stem_forward.3} parent=5 // pred_region
      // Predicated region
      $region25: #{_stem_forward.3} parent=23 // pred_check
        %p128 = pneg %p29
      $region26: #{_stem_forward.3} parent=23 // pred_check_branch
        %130 = sbr.rel (%p128) target = $region28
      $region27: #{_stem_forward.3} parent=23 // pred_region
        %p131 = scmp.lt.s32.totalorder %s9, 1
        %s132 = scalar_select %p131, %s9, 1
        %s133 = smul.addr %s132, 137
        %s134 = smul.addr %s133, 4
        %s135 = scalar_lea.vmem %s0, %s134
      $region28: #{_stem_forward.3} parent=23 // pred_fallthru
        _
    $region24: #{_stem_forward.3} parent=5 // pred_fallthru
      _
    %p136 = scmp.le.s32.totalorder 1, %s9
    %p137 = scmp.lt.s32.totalorder %s9, 3
    %p138 = pnand %p136, %p137
    %p139 = pneg %p138
    // Predicated region
    $region29: #{_stem_forward.3} parent=5 // pred_check
      _
    $region30: #{_stem_forward.3} parent=5 // pred_check_branch
      %141 = sbr.rel (%p138) target = $region32
    $region31: #{_stem_forward.3} parent=5 // pred_region
      %s142 = ssub.s32 %s9, 1
      %p143 = scmp.lt.s32.totalorder %s14, 1
      %s144 = scalar_select %p143, %s14, 1
      %s145 = smul.addr %s144, 137
      %s146 = smul.addr %s145, 4
      %s147 = scalar_lea.vmem %s0, %s146
      %p148 = pneg %p35
      %p149 = pneg %p32
      %p150 = pneg %p56
      %p151 = pneg %p53
      %p152 = pneg %p77
      %p153 = pneg %p74
      %p154 = pneg %p103
      %p155 = pneg %p100
      %p156 = scmp.lt.s32.totalorder %s14, 1
      %s157 = scalar_select %p156, %s14, 1
      %s158 = smul.addr %s157, 128
      %s159 = smul.addr %s158, 4
      %s160 = scalar_lea.vmem %s3, %s159
      %p161 = scmp.lt.s32.totalorder %s14, 1
      %s162 = scalar_select %p161, %s14, 1
      %s163 = smul.addr %s162, 137
      %s164 = smul.addr %s163, 4
      %s165 = scalar_lea.vmem %s0, %s164
      %p166 = scmp.lt.s32.totalorder %s14, 1
      %s167 = scalar_select %p166, %s14, 1
      %s168 = smul.addr %s167, 128
      %s169 = smul.addr %s168, 4
      %s170 = scalar_lea.vmem %s3, %s169
      %v171 = vld [vmem:[%s165] sm:$0xf]
      %v172 = vld [vmem:[%s165 + $0x4] sm:$0xf]
      %v173 = vld [vmem:[%s165 + $0x8] sm:$0xf]
      %v174 = vld [vmem:[%s165 + $0xc] sm:$0xf]
      %v175 = vld [vmem:[%s165 + $0x10] sm:$0xf]
      %v176 = vld [vmem:[%s165 + $0x14] sm:$0xf]
      %v177 = vld [vmem:[%s165 + $0x18] sm:$0xf]
      %v178 = vld [vmem:[%s165 + $0x1c] sm:$0xf]
      %v179 = vld [vmem:[%s165 + $0x20] sm:$0xf]
      %v180 = vld [vmem:[%s165 + $0x24] sm:$0xf]
      %v181 = vld [vmem:[%s165 + $0x28] sm:$0xf]
      %v182 = vld [vmem:[%s165 + $0x2c] sm:$0xf]
      %v183 = vld [vmem:[%s165 + $0x30] sm:$0xf]
      %v184 = vld [vmem:[%s165 + $0x34] sm:$0xf]
      %v185 = vld [vmem:[%s165 + $0x38] sm:$0xf]
      %v186 = vld [vmem:[%s165 + $0x3c] sm:$0xf]
      %v187 = vld [vmem:[%s165 + $0x40] sm:$0xf]
      %v188 = vld [vmem:[%s165 + $0x44] sm:$0xf]
      %v189 = vld [vmem:[%s165 + $0x48] sm:$0xf]
      %v190 = vld [vmem:[%s165 + $0x4c] sm:$0xf]
      %v191 = vld [vmem:[%s165 + $0x50] sm:$0xf]
      %v192 = vld [vmem:[%s165 + $0x54] sm:$0xf]
      %v193 = vld [vmem:[%s165 + $0x58] sm:$0xf]
      %v194 = vld [vmem:[%s165 + $0x5c] sm:$0xf]
      %v195 = vld [vmem:[%s165 + $0x60] sm:$0xf]
      %v196 = vld [vmem:[%s165 + $0x64] sm:$0xf]
      %v197 = vld [vmem:[%s165 + $0x68] sm:$0xf]
      %v198 = vld [vmem:[%s165 + $0x6c] sm:$0xf]
      %v199 = vld [vmem:[%s165 + $0x70] sm:$0xf]
      %v200 = vld [vmem:[%s165 + $0x74] sm:$0xf]
      %v201 = vld [vmem:[%s165 + $0x78] sm:$0xf]
      %v202 = vld [vmem:[%s165 + $0x7c] sm:$0xf]
      %v203 = vld [vmem:[%s165 + $0x80] sm:$0xf]
      %v204 = vld [vmem:[%s165 + $0x84] sm:$0xf]
      %v205 = vld [vmem:[%s165 + $0x88] sm:$0xf]
      %v206 = vld [vmem:[%s165 + $0x8c] sm:$0xf]
      %v207 = vld [vmem:[%s165 + $0x90] sm:$0xf]
      %v208 = vld [vmem:[%s165 + $0x94] sm:$0xf]
      %v209 = vld [vmem:[%s165 + $0x98] sm:$0xf]
      %v210 = vld [vmem:[%s165 + $0x9c] sm:$0xf]
      %v211 = vld [vmem:[%s165 + $0xa0] sm:$0xf]
      %v212 = vld [vmem:[%s165 + $0xa4] sm:$0xf]
      %v213 = vld [vmem:[%s165 + $0xa8] sm:$0xf]
      %v214 = vld [vmem:[%s165 + $0xac] sm:$0xf]
      %v215 = vld [vmem:[%s165 + $0xb0] sm:$0xf]
      %v216 = vld [vmem:[%s165 + $0xb4] sm:$0xf]
      %v217 = vld [vmem:[%s165 + $0xb8] sm:$0xf]
      %v218 = vld [vmem:[%s165 + $0xbc] sm:$0xf]
      %v219 = vld [vmem:[%s165 + $0xc0] sm:$0xf]
      %v220 = vld [vmem:[%s165 + $0xc4] sm:$0xf]
      %v221 = vld [vmem:[%s165 + $0xc8] sm:$0xf]
      %v222 = vld [vmem:[%s165 + $0xcc] sm:$0xf]
      %v223 = vld [vmem:[%s165 + $0xd0] sm:$0xf]
      %v224 = vld [vmem:[%s165 + $0xd4] sm:$0xf]
      %v225 = vld [vmem:[%s165 + $0xd8] sm:$0xf]
      %v226 = vld [vmem:[%s165 + $0xdc] sm:$0xf]
      %v227 = vld [vmem:[%s165 + $0xe0] sm:$0xf]
      %v228 = vld [vmem:[%s165 + $0xe4] sm:$0xf]
      %v229 = vld [vmem:[%s165 + $0xe8] sm:$0xf]
      %v230 = vld [vmem:[%s165 + $0xec] sm:$0xf]
      %v231 = vld [vmem:[%s165 + $0xf0] sm:$0xf]
      %v232 = vld [vmem:[%s165 + $0xf4] sm:$0xf]
      %v233 = vld [vmem:[%s165 + $0xf8] sm:$0xf]
      %v234 = vld [vmem:[%s165 + $0xfc] sm:$0xf]
      %v235 = vld [vmem:[%s165 + $0x100] sm:$0xf]
      %v236 = vld [vmem:[%s165 + $0x104] sm:$0xf]
      %v237 = vld [vmem:[%s165 + $0x108] sm:$0xf]
      %v238 = vld [vmem:[%s165 + $0x10c] sm:$0xf]
      %v239 = vld [vmem:[%s165 + $0x110] sm:$0xf]
      %v240 = vld [vmem:[%s165 + $0x114] sm:$0xf]
      %v241 = vld [vmem:[%s165 + $0x118] sm:$0xf]
      %v242 = vld [vmem:[%s165 + $0x11c] sm:$0xf]
      %v243 = vld [vmem:[%s165 + $0x120] sm:$0xf]
      %v244 = vld [vmem:[%s165 + $0x124] sm:$0xf]
      %v245 = vld [vmem:[%s165 + $0x128] sm:$0xf]
      %v246 = vld [vmem:[%s165 + $0x12c] sm:$0xf]
      %v247 = vld [vmem:[%s165 + $0x130] sm:$0xf]
      %v248 = vld [vmem:[%s165 + $0x134] sm:$0xf]
      %v249 = vld [vmem:[%s165 + $0x138] sm:$0xf]
      %v250 = vld [vmem:[%s165 + $0x13c] sm:$0xf]
      %v251 = vld [vmem:[%s165 + $0x140] sm:$0xf]
      %v252 = vld [vmem:[%s165 + $0x144] sm:$0xf]
      %v253 = vld [vmem:[%s165 + $0x148] sm:$0xf]
      %v254 = vld [vmem:[%s165 + $0x14c] sm:$0xf]
      %v255 = vld [vmem:[%s165 + $0x150] sm:$0xf]
      %v256 = vld [vmem:[%s165 + $0x154] sm:$0xf]
      %v257 = vld [vmem:[%s165 + $0x158] sm:$0xf]
      %v258 = vld [vmem:[%s165 + $0x15c] sm:$0xf]
      %v259 = vld [vmem:[%s165 + $0x160] sm:$0xf]
      %v260 = vld [vmem:[%s165 + $0x164] sm:$0xf]
      %v261 = vld [vmem:[%s165 + $0x168] sm:$0xf]
      %v262 = vld [vmem:[%s165 + $0x16c] sm:$0xf]
      %v263 = vld [vmem:[%s165 + $0x170] sm:$0xf]
      %v264 = vld [vmem:[%s165 + $0x174] sm:$0xf]
      %v265 = vld [vmem:[%s165 + $0x178] sm:$0xf]
      %v266 = vld [vmem:[%s165 + $0x17c] sm:$0xf]
      %v267 = vld [vmem:[%s165 + $0x180] sm:$0xf]
      %v268 = vld [vmem:[%s165 + $0x184] sm:$0xf]
      %v269 = vld [vmem:[%s165 + $0x188] sm:$0xf]
      %v270 = vld [vmem:[%s165 + $0x18c] sm:$0xf]
      %v271 = vld [vmem:[%s165 + $0x190] sm:$0xf]
      %v272 = vld [vmem:[%s165 + $0x194] sm:$0xf]
      %v273 = vld [vmem:[%s165 + $0x198] sm:$0xf]
      %v274 = vld [vmem:[%s165 + $0x19c] sm:$0xf]
      %v275 = vld [vmem:[%s165 + $0x1a0] sm:$0xf]
      %v276 = vld [vmem:[%s165 + $0x1a4] sm:$0xf]
      %v277 = vld [vmem:[%s165 + $0x1a8] sm:$0xf]
      %v278 = vld [vmem:[%s165 + $0x1ac] sm:$0xf]
      %v279 = vld [vmem:[%s165 + $0x1b0] sm:$0xf]
      %v280 = vld [vmem:[%s165 + $0x1b4] sm:$0xf]
      %v281 = vld [vmem:[%s165 + $0x1b8] sm:$0xf]
      %v282 = vld [vmem:[%s165 + $0x1bc] sm:$0xf]
      %v283 = vld [vmem:[%s165 + $0x1c0] sm:$0xf]
      %v284 = vld [vmem:[%s165 + $0x1c4] sm:$0xf]
      %v285 = vld [vmem:[%s165 + $0x1c8] sm:$0xf]
      %v286 = vld [vmem:[%s165 + $0x1cc] sm:$0xf]
      %v287 = vld [vmem:[%s165 + $0x1d0] sm:$0xf]
      %v288 = vld [vmem:[%s165 + $0x1d4] sm:$0xf]
      %v289 = vld [vmem:[%s165 + $0x1d8] sm:$0xf]
      %v290 = vld [vmem:[%s165 + $0x1dc] sm:$0xf]
      %v291 = vld [vmem:[%s165 + $0x1e0] sm:$0xf]
      %v292 = vld [vmem:[%s165 + $0x1e4] sm:$0xf]
      %v293 = vld [vmem:[%s165 + $0x1e8] sm:$0xf]
      %v294 = vld [vmem:[%s165 + $0x1ec] sm:$0xf]
      %v295 = vld [vmem:[%s165 + $0x1f0] sm:$0xf]
      %v296 = vld [vmem:[%s165 + $0x1f4] sm:$0xf]
      %v297 = vld [vmem:[%s165 + $0x1f8] sm:$0xf]
      %v298 = vld [vmem:[%s165 + $0x1fc] sm:$0xf]
      %v299 = vld [vmem:[%s165 + $0x200] sm:$0xf]
      %v300 = vld [vmem:[%s165 + $0x204] sm:$0xf]
      %v301 = vld [vmem:[%s165 + $0x208] sm:$0xf]
      %v302 = vld [vmem:[%s165 + $0x20c] sm:$0xf]
      %v303 = vld [vmem:[%s165 + $0x210] sm:$0xf]
      %v304 = vld [vmem:[%s165 + $0x214] sm:$0xf]
      %v305 = vld [vmem:[%s165 + $0x218] sm:$0xf]
      %v306 = vld [vmem:[%s165 + $0x21c] sm:$0xf]
      %v307 = vld [vmem:[%s165 + $0x220] sm:$0x1]
      %v308 = vld [vmem:[%s1] sm:$0xf]
      %v309 = vld [vmem:[%s1 + $0x4] sm:$0xf]
      %v310 = vld [vmem:[%s1 + $0x8] sm:$0xf]
      %v311 = vld [vmem:[%s1 + $0xc] sm:$0xf]
      %v312 = vld [vmem:[%s1 + $0x10] sm:$0xf]
      %v313 = vld [vmem:[%s1 + $0x14] sm:$0xf]
      %v314 = vld [vmem:[%s1 + $0x18] sm:$0xf]
      %v315 = vld [vmem:[%s1 + $0x1c] sm:$0xf]
      %v316 = vld [vmem:[%s1 + $0x20] sm:$0xf]
      %v317 = vld [vmem:[%s1 + $0x24] sm:$0xf]
      %v318 = vld [vmem:[%s1 + $0x28] sm:$0xf]
      %v319 = vld [vmem:[%s1 + $0x2c] sm:$0xf]
      %v320 = vld [vmem:[%s1 + $0x30] sm:$0xf]
      %v321 = vld [vmem:[%s1 + $0x34] sm:$0xf]
      %v322 = vld [vmem:[%s1 + $0x38] sm:$0xf]
      %v323 = vld [vmem:[%s1 + $0x3c] sm:$0xf]
      %v324 = vld [vmem:[%s1 + $0x40] sm:$0xf]
      %v325 = vld [vmem:[%s1 + $0x44] sm:$0xf]
      %v326 = vld [vmem:[%s1 + $0x48] sm:$0xf]
      %v327 = vld [vmem:[%s1 + $0x4c] sm:$0xf]
      %v328 = vld [vmem:[%s1 + $0x50] sm:$0xf]
      %v329 = vld [vmem:[%s1 + $0x54] sm:$0xf]
      %v330 = vld [vmem:[%s1 + $0x58] sm:$0xf]
      %v331 = vld [vmem:[%s1 + $0x5c] sm:$0xf]
      %v332 = vld [vmem:[%s1 + $0x60] sm:$0xf]
      %v333 = vld [vmem:[%s1 + $0x64] sm:$0xf]
      %v334 = vld [vmem:[%s1 + $0x68] sm:$0xf]
      %v335 = vld [vmem:[%s1 + $0x6c] sm:$0xf]
      %v336 = vld [vmem:[%s1 + $0x70] sm:$0xf]
      %v337 = vld [vmem:[%s1 + $0x74] sm:$0xf]
      %v338 = vld [vmem:[%s1 + $0x78] sm:$0xf]
      %v339 = vld [vmem:[%s1 + $0x7c] sm:$0xf]
      %v340 = vld [vmem:[%s1 + $0x80] sm:$0xf]
      %v341 = vld [vmem:[%s1 + $0x84] sm:$0xf]
      %v342 = vld [vmem:[%s1 + $0x88] sm:$0xf]
      %v343 = vld [vmem:[%s1 + $0x8c] sm:$0xf]
      %v344 = vld [vmem:[%s1 + $0x90] sm:$0xf]
      %v345 = vld [vmem:[%s1 + $0x94] sm:$0xf]
      %v346 = vld [vmem:[%s1 + $0x98] sm:$0xf]
      %v347 = vld [vmem:[%s1 + $0x9c] sm:$0xf]
      %v348 = vld [vmem:[%s1 + $0xa0] sm:$0xf]
      %v349 = vld [vmem:[%s1 + $0xa4] sm:$0xf]
      %v350 = vld [vmem:[%s1 + $0xa8] sm:$0xf]
      %v351 = vld [vmem:[%s1 + $0xac] sm:$0xf]
      %v352 = vld [vmem:[%s1 + $0xb0] sm:$0xf]
      %v353 = vld [vmem:[%s1 + $0xb4] sm:$0xf]
      %v354 = vld [vmem:[%s1 + $0xb8] sm:$0xf]
      %v355 = vld [vmem:[%s1 + $0xbc] sm:$0xf]
      %v356 = vld [vmem:[%s1 + $0xc0] sm:$0xf]
      %v357 = vld [vmem:[%s1 + $0xc4] sm:$0xf]
      %v358 = vld [vmem:[%s1 + $0xc8] sm:$0xf]
      %v359 = vld [vmem:[%s1 + $0xcc] sm:$0xf]
      %v360 = vld [vmem:[%s1 + $0xd0] sm:$0xf]
      %v361 = vld [vmem:[%s1 + $0xd4] sm:$0xf]
      %v362 = vld [vmem:[%s1 + $0xd8] sm:$0xf]
      %v363 = vld [vmem:[%s1 + $0xdc] sm:$0xf]
      %v364 = vld [vmem:[%s1 + $0xe0] sm:$0xf]
      %v365 = vld [vmem:[%s1 + $0xe4] sm:$0xf]
      %v366 = vld [vmem:[%s1 + $0xe8] sm:$0xf]
      %v367 = vld [vmem:[%s1 + $0xec] sm:$0xf]
      %v368 = vld [vmem:[%s1 + $0xf0] sm:$0xf]
      %v369 = vld [vmem:[%s1 + $0xf4] sm:$0xf]
      %v370 = vld [vmem:[%s1 + $0xf8] sm:$0xf]
      %v371 = vld [vmem:[%s1 + $0xfc] sm:$0xf]
      %v372 = vld [vmem:[%s1 + $0x100] sm:$0xf]
      %v373 = vld [vmem:[%s1 + $0x104] sm:$0xf]
      %v374 = vld [vmem:[%s1 + $0x108] sm:$0xf]
      %v375 = vld [vmem:[%s1 + $0x10c] sm:$0xf]
      %v376 = vld [vmem:[%s1 + $0x110] sm:$0xf]
      %v377 = vld [vmem:[%s1 + $0x114] sm:$0xf]
      %v378 = vld [vmem:[%s1 + $0x118] sm:$0xf]
      %v379 = vld [vmem:[%s1 + $0x11c] sm:$0xf]
      %v380 = vld [vmem:[%s1 + $0x120] sm:$0xf]
      %v381 = vld [vmem:[%s1 + $0x124] sm:$0xf]
      %v382 = vld [vmem:[%s1 + $0x128] sm:$0xf]
      %v383 = vld [vmem:[%s1 + $0x12c] sm:$0xf]
      %v384 = vld [vmem:[%s1 + $0x130] sm:$0xf]
      %v385 = vld [vmem:[%s1 + $0x134] sm:$0xf]
      %v386 = vld [vmem:[%s1 + $0x138] sm:$0xf]
      %v387 = vld [vmem:[%s1 + $0x13c] sm:$0xf]
      %v388 = vld [vmem:[%s1 + $0x140] sm:$0xf]
      %v389 = vld [vmem:[%s1 + $0x144] sm:$0xf]
      %v390 = vld [vmem:[%s1 + $0x148] sm:$0xf]
      %v391 = vld [vmem:[%s1 + $0x14c] sm:$0xf]
      %v392 = vld [vmem:[%s1 + $0x150] sm:$0xf]
      %v393 = vld [vmem:[%s1 + $0x154] sm:$0xf]
      %v394 = vld [vmem:[%s1 + $0x158] sm:$0xf]
      %v395 = vld [vmem:[%s1 + $0x15c] sm:$0xf]
      %v396 = vld [vmem:[%s1 + $0x160] sm:$0xf]
      %v397 = vld [vmem:[%s1 + $0x164] sm:$0xf]
      %v398 = vld [vmem:[%s1 + $0x168] sm:$0xf]
      %v399 = vld [vmem:[%s1 + $0x16c] sm:$0xf]
      %v400 = vld [vmem:[%s1 + $0x170] sm:$0xf]
      %v401 = vld [vmem:[%s1 + $0x174] sm:$0xf]
      %v402 = vld [vmem:[%s1 + $0x178] sm:$0xf]
      %v403 = vld [vmem:[%s1 + $0x17c] sm:$0xf]
      %v404 = vld [vmem:[%s1 + $0x180] sm:$0xf]
      %v405 = vld [vmem:[%s1 + $0x184] sm:$0xf]
      %v406 = vld [vmem:[%s1 + $0x188] sm:$0xf]
      %v407 = vld [vmem:[%s1 + $0x18c] sm:$0xf]
      %v408 = vld [vmem:[%s1 + $0x190] sm:$0xf]
      %v409 = vld [vmem:[%s1 + $0x194] sm:$0xf]
      %v410 = vld [vmem:[%s1 + $0x198] sm:$0xf]
      %v411 = vld [vmem:[%s1 + $0x19c] sm:$0xf]
      %v412 = vld [vmem:[%s1 + $0x1a0] sm:$0xf]
      %v413 = vld [vmem:[%s1 + $0x1a4] sm:$0xf]
      %v414 = vld [vmem:[%s1 + $0x1a8] sm:$0xf]
      %v415 = vld [vmem:[%s1 + $0x1ac] sm:$0xf]
      %v416 = vld [vmem:[%s1 + $0x1b0] sm:$0xf]
      %v417 = vld [vmem:[%s1 + $0x1b4] sm:$0xf]
      %v418 = vld [vmem:[%s1 + $0x1b8] sm:$0xf]
      %v419 = vld [vmem:[%s1 + $0x1bc] sm:$0xf]
      %v420 = vld [vmem:[%s1 + $0x1c0] sm:$0xf]
      %v421 = vld [vmem:[%s1 + $0x1c4] sm:$0xf]
      %v422 = vld [vmem:[%s1 + $0x1c8] sm:$0xf]
      %v423 = vld [vmem:[%s1 + $0x1cc] sm:$0xf]
      %v424 = vld [vmem:[%s1 + $0x1d0] sm:$0xf]
      %v425 = vld [vmem:[%s1 + $0x1d4] sm:$0xf]
      %v426 = vld [vmem:[%s1 + $0x1d8] sm:$0xf]
      %v427 = vld [vmem:[%s1 + $0x1dc] sm:$0xf]
      %v428 = vld [vmem:[%s1 + $0x1e0] sm:$0xf]
      %v429 = vld [vmem:[%s1 + $0x1e4] sm:$0xf]
      %v430 = vld [vmem:[%s1 + $0x1e8] sm:$0xf]
      %v431 = vld [vmem:[%s1 + $0x1ec] sm:$0xf]
      %v432 = vld [vmem:[%s1 + $0x1f0] sm:$0xf]
      %v433 = vld [vmem:[%s1 + $0x1f4] sm:$0xf]
      %v434 = vld [vmem:[%s1 + $0x1f8] sm:$0xf]
      %v435 = vld [vmem:[%s1 + $0x1fc] sm:$0xf]
      %v436 = vld [vmem:[%s1 + $0x200] sm:$0xf]
      %v437 = vld [vmem:[%s1 + $0x204] sm:$0xf]
      %v438 = vld [vmem:[%s1 + $0x208] sm:$0xf]
      %v439 = vld [vmem:[%s1 + $0x20c] sm:$0xf]
      %v440 = vld [vmem:[%s1 + $0x210] sm:$0xf]
      %v441 = vld [vmem:[%s1 + $0x214] sm:$0xf]
      %v442 = vld [vmem:[%s1 + $0x218] sm:$0xf]
      %v443 = vld [vmem:[%s1 + $0x21c] sm:$0xf]
      %445 = vset.pattern.permute.xlu0 0
      %446 = vperm.xlu0 %445, %v308
      %v447 = vpop.permute.xlu0 %446
      %v450 = vunpack.c.l.s4 839922192
      %v451 = vunpack.c.0.s8 %v450
      %v452 = vlaneseq
      %v453 = vshrl.u32 %v452, 7
      %v454 = vsub.s32 %v451, %v453
      %v455 = vrot.slane %v447, %v454
      %457 = vset.pattern.permute.xlu0 0
      %458 = vperm.xlu0 %457, %v309
      %v459 = vpop.permute.xlu0 %458
      %v462 = vunpack.c.l.s4 839922192
      %v463 = vunpack.c.0.s8 %v462
      %v464 = vlaneseq
      %v465 = vshrl.u32 %v464, 7
      %v466 = vsub.s32 %v463, %v465
      %v467 = vrot.slane %v459, %v466
      %469 = vset.pattern.permute.xlu0 0
      %470 = vperm.xlu0 %469, %v310
      %v471 = vpop.permute.xlu0 %470
      %v474 = vunpack.c.l.s4 839922192
      %v475 = vunpack.c.0.s8 %v474
      %v476 = vlaneseq
      %v477 = vshrl.u32 %v476, 7
      %v478 = vsub.s32 %v475, %v477
      %v479 = vrot.slane %v471, %v478
      %481 = vset.pattern.permute.xlu0 0
      %482 = vperm.xlu0 %481, %v311
      %v483 = vpop.permute.xlu0 %482
      %v486 = vunpack.c.l.s4 839922192
      %v487 = vunpack.c.0.s8 %v486
      %v488 = vlaneseq
      %v489 = vshrl.u32 %v488, 7
      %v490 = vsub.s32 %v487, %v489
      %v491 = vrot.slane %v483, %v490
      %493 = vset.pattern.permute.xlu0 0
      %494 = vperm.xlu0 %493, %v312
      %v495 = vpop.permute.xlu0 %494
      %v498 = vunpack.c.l.s4 839922192
      %v499 = vunpack.c.0.s8 %v498
      %v500 = vlaneseq
      %v501 = vshrl.u32 %v500, 7
      %v502 = vsub.s32 %v499, %v501
      %v503 = vrot.slane %v495, %v502
      %505 = vset.pattern.permute.xlu0 0
      %506 = vperm.xlu0 %505, %v313
      %v507 = vpop.permute.xlu0 %506
      %v510 = vunpack.c.l.s4 839922192
      %v511 = vunpack.c.0.s8 %v510
      %v512 = vlaneseq
      %v513 = vshrl.u32 %v512, 7
      %v514 = vsub.s32 %v511, %v513
      %v515 = vrot.slane %v507, %v514
      %517 = vset.pattern.permute.xlu0 0
      %518 = vperm.xlu0 %517, %v314
      %v519 = vpop.permute.xlu0 %518
      %v522 = vunpack.c.l.s4 839922192
      %v523 = vunpack.c.0.s8 %v522
      %v524 = vlaneseq
      %v525 = vshrl.u32 %v524, 7
      %v526 = vsub.s32 %v523, %v525
      %v527 = vrot.slane %v519, %v526
      %529 = vset.pattern.permute.xlu0 0
      %530 = vperm.xlu0 %529, %v315
      %v531 = vpop.permute.xlu0 %530
      %v534 = vunpack.c.l.s4 839922192
      %v535 = vunpack.c.0.s8 %v534
      %v536 = vlaneseq
      %v537 = vshrl.u32 %v536, 7
      %v538 = vsub.s32 %v535, %v537
      %v539 = vrot.slane %v531, %v538
      %541 = vset.pattern.permute.xlu0 0
      %542 = vperm.xlu0 %541, %v316
      %v543 = vpop.permute.xlu0 %542
      %v546 = vunpack.c.l.s4 839922192
      %v547 = vunpack.c.0.s8 %v546
      %v548 = vlaneseq
      %v549 = vshrl.u32 %v548, 7
      %v550 = vsub.s32 %v547, %v549
      %v551 = vrot.slane %v543, %v550
      %553 = vset.pattern.permute.xlu0 0
      %554 = vperm.xlu0 %553, %v317
      %v555 = vpop.permute.xlu0 %554
      %v558 = vunpack.c.l.s4 839922192
      %v559 = vunpack.c.0.s8 %v558
      %v560 = vlaneseq
      %v561 = vshrl.u32 %v560, 7
      %v562 = vsub.s32 %v559, %v561
      %v563 = vrot.slane %v555, %v562
      %565 = vset.pattern.permute.xlu0 0
      %566 = vperm.xlu0 %565, %v318
      %v567 = vpop.permute.xlu0 %566
      %v570 = vunpack.c.l.s4 839922192
      %v571 = vunpack.c.0.s8 %v570
      %v572 = vlaneseq
      %v573 = vshrl.u32 %v572, 7
      %v574 = vsub.s32 %v571, %v573
      %v575 = vrot.slane %v567, %v574
      %577 = vset.pattern.permute.xlu0 0
      %578 = vperm.xlu0 %577, %v319
      %v579 = vpop.permute.xlu0 %578
      %v582 = vunpack.c.l.s4 839922192
      %v583 = vunpack.c.0.s8 %v582
      %v584 = vlaneseq
      %v585 = vshrl.u32 %v584, 7
      %v586 = vsub.s32 %v583, %v585
      %v587 = vrot.slane %v579, %v586
      %589 = vset.pattern.permute.xlu0 0
      %590 = vperm.xlu0 %589, %v320
      %v591 = vpop.permute.xlu0 %590
      %v594 = vunpack.c.l.s4 839922192
      %v595 = vunpack.c.0.s8 %v594
      %v596 = vlaneseq
      %v597 = vshrl.u32 %v596, 7
      %v598 = vsub.s32 %v595, %v597
      %v599 = vrot.slane %v591, %v598
      %601 = vset.pattern.permute.xlu0 0
      %602 = vperm.xlu0 %601, %v321
      %v603 = vpop.permute.xlu0 %602
      %v606 = vunpack.c.l.s4 839922192
      %v607 = vunpack.c.0.s8 %v606
      %v608 = vlaneseq
      %v609 = vshrl.u32 %v608, 7
      %v610 = vsub.s32 %v607, %v609
      %v611 = vrot.slane %v603, %v610
      %613 = vset.pattern.permute.xlu0 0
      %614 = vperm.xlu0 %613, %v322
      %v615 = vpop.permute.xlu0 %614
      %v618 = vunpack.c.l.s4 839922192
      %v619 = vunpack.c.0.s8 %v618
      %v620 = vlaneseq
      %v621 = vshrl.u32 %v620, 7
      %v622 = vsub.s32 %v619, %v621
      %v623 = vrot.slane %v615, %v622
      %625 = vset.pattern.permute.xlu0 0
      %626 = vperm.xlu0 %625, %v323
      %v627 = vpop.permute.xlu0 %626
      %v630 = vunpack.c.l.s4 839922192
      %v631 = vunpack.c.0.s8 %v630
      %v632 = vlaneseq
      %v633 = vshrl.u32 %v632, 7
      %v634 = vsub.s32 %v631, %v633
      %v635 = vrot.slane %v627, %v634
      %637 = vset.pattern.permute.xlu0 0
      %638 = vperm.xlu0 %637, %v324
      %v639 = vpop.permute.xlu0 %638
      %v642 = vunpack.c.l.s4 839922192
      %v643 = vunpack.c.0.s8 %v642
      %v644 = vlaneseq
      %v645 = vshrl.u32 %v644, 7
      %v646 = vsub.s32 %v643, %v645
      %v647 = vrot.slane %v639, %v646
      %649 = vset.pattern.permute.xlu0 0
      %650 = vperm.xlu0 %649, %v325
      %v651 = vpop.permute.xlu0 %650
      %v654 = vunpack.c.l.s4 839922192
      %v655 = vunpack.c.0.s8 %v654
      %v656 = vlaneseq
      %v657 = vshrl.u32 %v656, 7
      %v658 = vsub.s32 %v655, %v657
      %v659 = vrot.slane %v651, %v658
      %661 = vset.pattern.permute.xlu0 0
      %662 = vperm.xlu0 %661, %v326
      %v663 = vpop.permute.xlu0 %662
      %v666 = vunpack.c.l.s4 839922192
      %v667 = vunpack.c.0.s8 %v666
      %v668 = vlaneseq
      %v669 = vshrl.u32 %v668, 7
      %v670 = vsub.s32 %v667, %v669
      %v671 = vrot.slane %v663, %v670
      %673 = vset.pattern.permute.xlu0 0
      %674 = vperm.xlu0 %673, %v327
      %v675 = vpop.permute.xlu0 %674
      %v678 = vunpack.c.l.s4 839922192
      %v679 = vunpack.c.0.s8 %v678
      %v680 = vlaneseq
      %v681 = vshrl.u32 %v680, 7
      %v682 = vsub.s32 %v679, %v681
      %v683 = vrot.slane %v675, %v682
      %685 = vset.pattern.permute.xlu0 0
      %686 = vperm.xlu0 %685, %v328
      %v687 = vpop.permute.xlu0 %686
      %v690 = vunpack.c.l.s4 839922192
      %v691 = vunpack.c.0.s8 %v690
      %v692 = vlaneseq
      %v693 = vshrl.u32 %v692, 7
      %v694 = vsub.s32 %v691, %v693
      %v695 = vrot.slane %v687, %v694
      %697 = vset.pattern.permute.xlu0 0
      %698 = vperm.xlu0 %697, %v329
      %v699 = vpop.permute.xlu0 %698
      %v702 = vunpack.c.l.s4 839922192
      %v703 = vunpack.c.0.s8 %v702
      %v704 = vlaneseq
      %v705 = vshrl.u32 %v704, 7
      %v706 = vsub.s32 %v703, %v705
      %v707 = vrot.slane %v699, %v706
      %709 = vset.pattern.permute.xlu0 0
      %710 = vperm.xlu0 %709, %v330
      %v711 = vpop.permute.xlu0 %710
      %v714 = vunpack.c.l.s4 839922192
      %v715 = vunpack.c.0.s8 %v714
      %v716 = vlaneseq
      %v717 = vshrl.u32 %v716, 7
      %v718 = vsub.s32 %v715, %v717
      %v719 = vrot.slane %v711, %v718
      %721 = vset.pattern.permute.xlu0 0
      %722 = vperm.xlu0 %721, %v331
      %v723 = vpop.permute.xlu0 %722
      %v726 = vunpack.c.l.s4 839922192
      %v727 = vunpack.c.0.s8 %v726
      %v728 = vlaneseq
      %v729 = vshrl.u32 %v728, 7
      %v730 = vsub.s32 %v727, %v729
      %v731 = vrot.slane %v723, %v730
      %733 = vset.pattern.permute.xlu0 0
      %734 = vperm.xlu0 %733, %v332
      %v735 = vpop.permute.xlu0 %734
      %v738 = vunpack.c.l.s4 839922192
      %v739 = vunpack.c.0.s8 %v738
      %v740 = vlaneseq
      %v741 = vshrl.u32 %v740, 7
      %v742 = vsub.s32 %v739, %v741
      %v743 = vrot.slane %v735, %v742
      %745 = vset.pattern.permute.xlu0 0
      %746 = vperm.xlu0 %745, %v333
      %v747 = vpop.permute.xlu0 %746
      %v750 = vunpack.c.l.s4 839922192
      %v751 = vunpack.c.0.s8 %v750
      %v752 = vlaneseq
      %v753 = vshrl.u32 %v752, 7
      %v754 = vsub.s32 %v751, %v753
      %v755 = vrot.slane %v747, %v754
      %757 = vset.pattern.permute.xlu0 0
      %758 = vperm.xlu0 %757, %v334
      %v759 = vpop.permute.xlu0 %758
      %v762 = vunpack.c.l.s4 839922192
      %v763 = vunpack.c.0.s8 %v762
      %v764 = vlaneseq
      %v765 = vshrl.u32 %v764, 7
      %v766 = vsub.s32 %v763, %v765
      %v767 = vrot.slane %v759, %v766
      %769 = vset.pattern.permute.xlu0 0
      %770 = vperm.xlu0 %769, %v335
      %v771 = vpop.permute.xlu0 %770
      %v774 = vunpack.c.l.s4 839922192
      %v775 = vunpack.c.0.s8 %v774
      %v776 = vlaneseq
      %v777 = vshrl.u32 %v776, 7
      %v778 = vsub.s32 %v775, %v777
      %v779 = vrot.slane %v771, %v778
      %781 = vset.pattern.permute.xlu0 0
      %782 = vperm.xlu0 %781, %v336
      %v783 = vpop.permute.xlu0 %782
      %v786 = vunpack.c.l.s4 839922192
      %v787 = vunpack.c.0.s8 %v786
      %v788 = vlaneseq
      %v789 = vshrl.u32 %v788, 7
      %v790 = vsub.s32 %v787, %v789
      %v791 = vrot.slane %v783, %v790
      %793 = vset.pattern.permute.xlu0 0
      %794 = vperm.xlu0 %793, %v337
      %v795 = vpop.permute.xlu0 %794
      %v798 = vunpack.c.l.s4 839922192
      %v799 = vunpack.c.0.s8 %v798
      %v800 = vlaneseq
      %v801 = vshrl.u32 %v800, 7
      %v802 = vsub.s32 %v799, %v801
      %v803 = vrot.slane %v795, %v802
      %805 = vset.pattern.permute.xlu0 0
      %806 = vperm.xlu0 %805, %v338
      %v807 = vpop.permute.xlu0 %806
      %v810 = vunpack.c.l.s4 839922192
      %v811 = vunpack.c.0.s8 %v810
      %v812 = vlaneseq
      %v813 = vshrl.u32 %v812, 7
      %v814 = vsub.s32 %v811, %v813
      %v815 = vrot.slane %v807, %v814
      %817 = vset.pattern.permute.xlu0 0
      %818 = vperm.xlu0 %817, %v339
      %v819 = vpop.permute.xlu0 %818
      %v822 = vunpack.c.l.s4 839922192
      %v823 = vunpack.c.0.s8 %v822
      %v824 = vlaneseq
      %v825 = vshrl.u32 %v824, 7
      %v826 = vsub.s32 %v823, %v825
      %v827 = vrot.slane %v819, %v826
      %829 = vset.pattern.permute.xlu0 0
      %830 = vperm.xlu0 %829, %v340
      %v831 = vpop.permute.xlu0 %830
      %v834 = vunpack.c.l.s4 839922192
      %v835 = vunpack.c.0.s8 %v834
      %v836 = vlaneseq
      %v837 = vshrl.u32 %v836, 7
      %v838 = vsub.s32 %v835, %v837
      %v839 = vrot.slane %v831, %v838
      %841 = vset.pattern.permute.xlu0 0
      %842 = vperm.xlu0 %841, %v341
      %v843 = vpop.permute.xlu0 %842
      %v846 = vunpack.c.l.s4 839922192
      %v847 = vunpack.c.0.s8 %v846
      %v848 = vlaneseq
      %v849 = vshrl.u32 %v848, 7
      %v850 = vsub.s32 %v847, %v849
      %v851 = vrot.slane %v843, %v850
      %853 = vset.pattern.permute.xlu0 0
      %854 = vperm.xlu0 %853, %v342
      %v855 = vpop.permute.xlu0 %854
      %v858 = vunpack.c.l.s4 839922192
      %v859 = vunpack.c.0.s8 %v858
      %v860 = vlaneseq
      %v861 = vshrl.u32 %v860, 7
      %v862 = vsub.s32 %v859, %v861
      %v863 = vrot.slane %v855, %v862
      %865 = vset.pattern.permute.xlu0 0
      %866 = vperm.xlu0 %865, %v343
      %v867 = vpop.permute.xlu0 %866
      %v870 = vunpack.c.l.s4 839922192
      %v871 = vunpack.c.0.s8 %v870
      %v872 = vlaneseq
      %v873 = vshrl.u32 %v872, 7
      %v874 = vsub.s32 %v871, %v873
      %v875 = vrot.slane %v867, %v874
      %877 = vset.pattern.permute.xlu0 0
      %878 = vperm.xlu0 %877, %v344
      %v879 = vpop.permute.xlu0 %878
      %v882 = vunpack.c.l.s4 839922192
      %v883 = vunpack.c.0.s8 %v882
      %v884 = vlaneseq
      %v885 = vshrl.u32 %v884, 7
      %v886 = vsub.s32 %v883, %v885
      %v887 = vrot.slane %v879, %v886
      %889 = vset.pattern.permute.xlu0 0
      %890 = vperm.xlu0 %889, %v345
      %v891 = vpop.permute.xlu0 %890
      %v894 = vunpack.c.l.s4 839922192
      %v895 = vunpack.c.0.s8 %v894
      %v896 = vlaneseq
      %v897 = vshrl.u32 %v896, 7
      %v898 = vsub.s32 %v895, %v897
      %v899 = vrot.slane %v891, %v898
      %901 = vset.pattern.permute.xlu0 0
      %902 = vperm.xlu0 %901, %v346
      %v903 = vpop.permute.xlu0 %902
      %v906 = vunpack.c.l.s4 839922192
      %v907 = vunpack.c.0.s8 %v906
      %v908 = vlaneseq
      %v909 = vshrl.u32 %v908, 7
      %v910 = vsub.s32 %v907, %v909
      %v911 = vrot.slane %v903, %v910
      %913 = vset.pattern.permute.xlu0 0
      %914 = vperm.xlu0 %913, %v347
      %v915 = vpop.permute.xlu0 %914
      %v918 = vunpack.c.l.s4 839922192
      %v919 = vunpack.c.0.s8 %v918
      %v920 = vlaneseq
      %v921 = vshrl.u32 %v920, 7
      %v922 = vsub.s32 %v919, %v921
      %v923 = vrot.slane %v915, %v922
      %925 = vset.pattern.permute.xlu0 0
      %926 = vperm.xlu0 %925, %v348
      %v927 = vpop.permute.xlu0 %926
      %v930 = vunpack.c.l.s4 839922192
      %v931 = vunpack.c.0.s8 %v930
      %v932 = vlaneseq
      %v933 = vshrl.u32 %v932, 7
      %v934 = vsub.s32 %v931, %v933
      %v935 = vrot.slane %v927, %v934
      %937 = vset.pattern.permute.xlu0 0
      %938 = vperm.xlu0 %937, %v349
      %v939 = vpop.permute.xlu0 %938
      %v942 = vunpack.c.l.s4 839922192
      %v943 = vunpack.c.0.s8 %v942
      %v944 = vlaneseq
      %v945 = vshrl.u32 %v944, 7
      %v946 = vsub.s32 %v943, %v945
      %v947 = vrot.slane %v939, %v946
      %949 = vset.pattern.permute.xlu0 0
      %950 = vperm.xlu0 %949, %v350
      %v951 = vpop.permute.xlu0 %950
      %v954 = vunpack.c.l.s4 839922192
      %v955 = vunpack.c.0.s8 %v954
      %v956 = vlaneseq
      %v957 = vshrl.u32 %v956, 7
      %v958 = vsub.s32 %v955, %v957
      %v959 = vrot.slane %v951, %v958
      %961 = vset.pattern.permute.xlu0 0
      %962 = vperm.xlu0 %961, %v351
      %v963 = vpop.permute.xlu0 %962
      %v966 = vunpack.c.l.s4 839922192
      %v967 = vunpack.c.0.s8 %v966
      %v968 = vlaneseq
      %v969 = vshrl.u32 %v968, 7
      %v970 = vsub.s32 %v967, %v969
      %v971 = vrot.slane %v963, %v970
      %973 = vset.pattern.permute.xlu0 0
      %974 = vperm.xlu0 %973, %v352
      %v975 = vpop.permute.xlu0 %974
      %v978 = vunpack.c.l.s4 839922192
      %v979 = vunpack.c.0.s8 %v978
      %v980 = vlaneseq
      %v981 = vshrl.u32 %v980, 7
      %v982 = vsub.s32 %v979, %v981
      %v983 = vrot.slane %v975, %v982
      %985 = vset.pattern.permute.xlu0 0
      %986 = vperm.xlu0 %985, %v353
      %v987 = vpop.permute.xlu0 %986
      %v990 = vunpack.c.l.s4 839922192
      %v991 = vunpack.c.0.s8 %v990
      %v992 = vlaneseq
      %v993 = vshrl.u32 %v992, 7
      %v994 = vsub.s32 %v991, %v993
      %v995 = vrot.slane %v987, %v994
      %997 = vset.pattern.permute.xlu0 0
      %998 = vperm.xlu0 %997, %v354
      %v999 = vpop.permute.xlu0 %998
      %v1002 = vunpack.c.l.s4 839922192
      %v1003 = vunpack.c.0.s8 %v1002
      %v1004 = vlaneseq
      %v1005 = vshrl.u32 %v1004, 7
      %v1006 = vsub.s32 %v1003, %v1005
      %v1007 = vrot.slane %v999, %v1006
      %1009 = vset.pattern.permute.xlu0 0
      %1010 = vperm.xlu0 %1009, %v355
      %v1011 = vpop.permute.xlu0 %1010
      %v1014 = vunpack.c.l.s4 839922192
      %v1015 = vunpack.c.0.s8 %v1014
      %v1016 = vlaneseq
      %v1017 = vshrl.u32 %v1016, 7
      %v1018 = vsub.s32 %v1015, %v1017
      %v1019 = vrot.slane %v1011, %v1018
      %1021 = vset.pattern.permute.xlu0 0
      %1022 = vperm.xlu0 %1021, %v356
      %v1023 = vpop.permute.xlu0 %1022
      %v1026 = vunpack.c.l.s4 839922192
      %v1027 = vunpack.c.0.s8 %v1026
      %v1028 = vlaneseq
      %v1029 = vshrl.u32 %v1028, 7
      %v1030 = vsub.s32 %v1027, %v1029
      %v1031 = vrot.slane %v1023, %v1030
      %1033 = vset.pattern.permute.xlu0 0
      %1034 = vperm.xlu0 %1033, %v357
      %v1035 = vpop.permute.xlu0 %1034
      %v1038 = vunpack.c.l.s4 839922192
      %v1039 = vunpack.c.0.s8 %v1038
      %v1040 = vlaneseq
      %v1041 = vshrl.u32 %v1040, 7
      %v1042 = vsub.s32 %v1039, %v1041
      %v1043 = vrot.slane %v1035, %v1042
      %1045 = vset.pattern.permute.xlu0 0
      %1046 = vperm.xlu0 %1045, %v358
      %v1047 = vpop.permute.xlu0 %1046
      %v1050 = vunpack.c.l.s4 839922192
      %v1051 = vunpack.c.0.s8 %v1050
      %v1052 = vlaneseq
      %v1053 = vshrl.u32 %v1052, 7
      %v1054 = vsub.s32 %v1051, %v1053
      %v1055 = vrot.slane %v1047, %v1054
      %1057 = vset.pattern.permute.xlu0 0
      %1058 = vperm.xlu0 %1057, %v359
      %v1059 = vpop.permute.xlu0 %1058
      %v1062 = vunpack.c.l.s4 839922192
      %v1063 = vunpack.c.0.s8 %v1062
      %v1064 = vlaneseq
      %v1065 = vshrl.u32 %v1064, 7
      %v1066 = vsub.s32 %v1063, %v1065
      %v1067 = vrot.slane %v1059, %v1066
      %1069 = vset.pattern.permute.xlu0 0
      %1070 = vperm.xlu0 %1069, %v360
      %v1071 = vpop.permute.xlu0 %1070
      %v1074 = vunpack.c.l.s4 839922192
      %v1075 = vunpack.c.0.s8 %v1074
      %v1076 = vlaneseq
      %v1077 = vshrl.u32 %v1076, 7
      %v1078 = vsub.s32 %v1075, %v1077
      %v1079 = vrot.slane %v1071, %v1078
      %1081 = vset.pattern.permute.xlu0 0
      %1082 = vperm.xlu0 %1081, %v361
      %v1083 = vpop.permute.xlu0 %1082
      %v1086 = vunpack.c.l.s4 839922192
      %v1087 = vunpack.c.0.s8 %v1086
      %v1088 = vlaneseq
      %v1089 = vshrl.u32 %v1088, 7
      %v1090 = vsub.s32 %v1087, %v1089
      %v1091 = vrot.slane %v1083, %v1090
      %1093 = vset.pattern.permute.xlu0 0
      %1094 = vperm.xlu0 %1093, %v362
      %v1095 = vpop.permute.xlu0 %1094
      %v1098 = vunpack.c.l.s4 839922192
      %v1099 = vunpack.c.0.s8 %v1098
      %v1100 = vlaneseq
      %v1101 = vshrl.u32 %v1100, 7
      %v1102 = vsub.s32 %v1099, %v1101
      %v1103 = vrot.slane %v1095, %v1102
      %1105 = vset.pattern.permute.xlu0 0
      %1106 = vperm.xlu0 %1105, %v363
      %v1107 = vpop.permute.xlu0 %1106
      %v1110 = vunpack.c.l.s4 839922192
      %v1111 = vunpack.c.0.s8 %v1110
      %v1112 = vlaneseq
      %v1113 = vshrl.u32 %v1112, 7
      %v1114 = vsub.s32 %v1111, %v1113
      %v1115 = vrot.slane %v1107, %v1114
      %1117 = vset.pattern.permute.xlu0 0
      %1118 = vperm.xlu0 %1117, %v364
      %v1119 = vpop.permute.xlu0 %1118
      %v1122 = vunpack.c.l.s4 839922192
      %v1123 = vunpack.c.0.s8 %v1122
      %v1124 = vlaneseq
      %v1125 = vshrl.u32 %v1124, 7
      %v1126 = vsub.s32 %v1123, %v1125
      %v1127 = vrot.slane %v1119, %v1126
      %1129 = vset.pattern.permute.xlu0 0
      %1130 = vperm.xlu0 %1129, %v365
      %v1131 = vpop.permute.xlu0 %1130
      %v1134 = vunpack.c.l.s4 839922192
      %v1135 = vunpack.c.0.s8 %v1134
      %v1136 = vlaneseq
      %v1137 = vshrl.u32 %v1136, 7
      %v1138 = vsub.s32 %v1135, %v1137
      %v1139 = vrot.slane %v1131, %v1138
      %1141 = vset.pattern.permute.xlu0 0
      %1142 = vperm.xlu0 %1141, %v366
      %v1143 = vpop.permute.xlu0 %1142
      %v1146 = vunpack.c.l.s4 839922192
      %v1147 = vunpack.c.0.s8 %v1146
      %v1148 = vlaneseq
      %v1149 = vshrl.u32 %v1148, 7
      %v1150 = vsub.s32 %v1147, %v1149
      %v1151 = vrot.slane %v1143, %v1150
      %1153 = vset.pattern.permute.xlu0 0
      %1154 = vperm.xlu0 %1153, %v367
      %v1155 = vpop.permute.xlu0 %1154
      %v1158 = vunpack.c.l.s4 839922192
      %v1159 = vunpack.c.0.s8 %v1158
      %v1160 = vlaneseq
      %v1161 = vshrl.u32 %v1160, 7
      %v1162 = vsub.s32 %v1159, %v1161
      %v1163 = vrot.slane %v1155, %v1162
      %1165 = vset.pattern.permute.xlu0 0
      %1166 = vperm.xlu0 %1165, %v368
      %v1167 = vpop.permute.xlu0 %1166
      %v1170 = vunpack.c.l.s4 839922192
      %v1171 = vunpack.c.0.s8 %v1170
      %v1172 = vlaneseq
      %v1173 = vshrl.u32 %v1172, 7
      %v1174 = vsub.s32 %v1171, %v1173
      %v1175 = vrot.slane %v1167, %v1174
      %1177 = vset.pattern.permute.xlu0 0
      %1178 = vperm.xlu0 %1177, %v369
      %v1179 = vpop.permute.xlu0 %1178
      %v1182 = vunpack.c.l.s4 839922192
      %v1183 = vunpack.c.0.s8 %v1182
      %v1184 = vlaneseq
      %v1185 = vshrl.u32 %v1184, 7
      %v1186 = vsub.s32 %v1183, %v1185
      %v1187 = vrot.slane %v1179, %v1186
      %1189 = vset.pattern.permute.xlu0 0
      %1190 = vperm.xlu0 %1189, %v370
      %v1191 = vpop.permute.xlu0 %1190
      %v1194 = vunpack.c.l.s4 839922192
      %v1195 = vunpack.c.0.s8 %v1194
      %v1196 = vlaneseq
      %v1197 = vshrl.u32 %v1196, 7
      %v1198 = vsub.s32 %v1195, %v1197
      %v1199 = vrot.slane %v1191, %v1198
      %1201 = vset.pattern.permute.xlu0 0
      %1202 = vperm.xlu0 %1201, %v371
      %v1203 = vpop.permute.xlu0 %1202
      %v1206 = vunpack.c.l.s4 839922192
      %v1207 = vunpack.c.0.s8 %v1206
      %v1208 = vlaneseq
      %v1209 = vshrl.u32 %v1208, 7
      %v1210 = vsub.s32 %v1207, %v1209
      %v1211 = vrot.slane %v1203, %v1210
      %1213 = vset.pattern.permute.xlu0 0
      %1214 = vperm.xlu0 %1213, %v372
      %v1215 = vpop.permute.xlu0 %1214
      %v1218 = vunpack.c.l.s4 839922192
      %v1219 = vunpack.c.0.s8 %v1218
      %v1220 = vlaneseq
      %v1221 = vshrl.u32 %v1220, 7
      %v1222 = vsub.s32 %v1219, %v1221
      %v1223 = vrot.slane %v1215, %v1222
      %1225 = vset.pattern.permute.xlu0 0
      %1226 = vperm.xlu0 %1225, %v373
      %v1227 = vpop.permute.xlu0 %1226
      %v1230 = vunpack.c.l.s4 839922192
      %v1231 = vunpack.c.0.s8 %v1230
      %v1232 = vlaneseq
      %v1233 = vshrl.u32 %v1232, 7
      %v1234 = vsub.s32 %v1231, %v1233
      %v1235 = vrot.slane %v1227, %v1234
      %1237 = vset.pattern.permute.xlu0 0
      %1238 = vperm.xlu0 %1237, %v374
      %v1239 = vpop.permute.xlu0 %1238
      %v1242 = vunpack.c.l.s4 839922192
      %v1243 = vunpack.c.0.s8 %v1242
      %v1244 = vlaneseq
      %v1245 = vshrl.u32 %v1244, 7
      %v1246 = vsub.s32 %v1243, %v1245
      %v1247 = vrot.slane %v1239, %v1246
      %1249 = vset.pattern.permute.xlu0 0
      %1250 = vperm.xlu0 %1249, %v375
      %v1251 = vpop.permute.xlu0 %1250
      %v1254 = vunpack.c.l.s4 839922192
      %v1255 = vunpack.c.0.s8 %v1254
      %v1256 = vlaneseq
      %v1257 = vshrl.u32 %v1256, 7
      %v1258 = vsub.s32 %v1255, %v1257
      %v1259 = vrot.slane %v1251, %v1258
      %1261 = vset.pattern.permute.xlu0 0
      %1262 = vperm.xlu0 %1261, %v376
      %v1263 = vpop.permute.xlu0 %1262
      %v1266 = vunpack.c.l.s4 839922192
      %v1267 = vunpack.c.0.s8 %v1266
      %v1268 = vlaneseq
      %v1269 = vshrl.u32 %v1268, 7
      %v1270 = vsub.s32 %v1267, %v1269
      %v1271 = vrot.slane %v1263, %v1270
      %1273 = vset.pattern.permute.xlu0 0
      %1274 = vperm.xlu0 %1273, %v377
      %v1275 = vpop.permute.xlu0 %1274
      %v1278 = vunpack.c.l.s4 839922192
      %v1279 = vunpack.c.0.s8 %v1278
      %v1280 = vlaneseq
      %v1281 = vshrl.u32 %v1280, 7
      %v1282 = vsub.s32 %v1279, %v1281
      %v1283 = vrot.slane %v1275, %v1282
      %1285 = vset.pattern.permute.xlu0 0
      %1286 = vperm.xlu0 %1285, %v378
      %v1287 = vpop.permute.xlu0 %1286
      %v1290 = vunpack.c.l.s4 839922192
      %v1291 = vunpack.c.0.s8 %v1290
      %v1292 = vlaneseq
      %v1293 = vshrl.u32 %v1292, 7
      %v1294 = vsub.s32 %v1291, %v1293
      %v1295 = vrot.slane %v1287, %v1294
      %1297 = vset.pattern.permute.xlu0 0
      %1298 = vperm.xlu0 %1297, %v379
      %v1299 = vpop.permute.xlu0 %1298
      %v1302 = vunpack.c.l.s4 839922192
      %v1303 = vunpack.c.0.s8 %v1302
      %v1304 = vlaneseq
      %v1305 = vshrl.u32 %v1304, 7
      %v1306 = vsub.s32 %v1303, %v1305
      %v1307 = vrot.slane %v1299, %v1306
      %1309 = vset.pattern.permute.xlu0 0
      %1310 = vperm.xlu0 %1309, %v380
      %v1311 = vpop.permute.xlu0 %1310
      %v1314 = vunpack.c.l.s4 839922192
      %v1315 = vunpack.c.0.s8 %v1314
      %v1316 = vlaneseq
      %v1317 = vshrl.u32 %v1316, 7
      %v1318 = vsub.s32 %v1315, %v1317
      %v1319 = vrot.slane %v1311, %v1318
      %1321 = vset.pattern.permute.xlu0 0
      %1322 = vperm.xlu0 %1321, %v381
      %v1323 = vpop.permute.xlu0 %1322
      %v1326 = vunpack.c.l.s4 839922192
      %v1327 = vunpack.c.0.s8 %v1326
      %v1328 = vlaneseq
      %v1329 = vshrl.u32 %v1328, 7
      %v1330 = vsub.s32 %v1327, %v1329
      %v1331 = vrot.slane %v1323, %v1330
      %1333 = vset.pattern.permute.xlu0 0
      %1334 = vperm.xlu0 %1333, %v382
      %v1335 = vpop.permute.xlu0 %1334
      %v1338 = vunpack.c.l.s4 839922192
      %v1339 = vunpack.c.0.s8 %v1338
      %v1340 = vlaneseq
      %v1341 = vshrl.u32 %v1340, 7
      %v1342 = vsub.s32 %v1339, %v1341
      %v1343 = vrot.slane %v1335, %v1342
      %1345 = vset.pattern.permute.xlu0 0
      %1346 = vperm.xlu0 %1345, %v383
      %v1347 = vpop.permute.xlu0 %1346
      %v1350 = vunpack.c.l.s4 839922192
      %v1351 = vunpack.c.0.s8 %v1350
      %v1352 = vlaneseq
      %v1353 = vshrl.u32 %v1352, 7
      %v1354 = vsub.s32 %v1351, %v1353
      %v1355 = vrot.slane %v1347, %v1354
      %1357 = vset.pattern.permute.xlu0 0
      %1358 = vperm.xlu0 %1357, %v384
      %v1359 = vpop.permute.xlu0 %1358
      %v1362 = vunpack.c.l.s4 839922192
      %v1363 = vunpack.c.0.s8 %v1362
      %v1364 = vlaneseq
      %v1365 = vshrl.u32 %v1364, 7
      %v1366 = vsub.s32 %v1363, %v1365
      %v1367 = vrot.slane %v1359, %v1366
      %1369 = vset.pattern.permute.xlu0 0
      %1370 = vperm.xlu0 %1369, %v385
      %v1371 = vpop.permute.xlu0 %1370
      %v1374 = vunpack.c.l.s4 839922192
      %v1375 = vunpack.c.0.s8 %v1374
      %v1376 = vlaneseq
      %v1377 = vshrl.u32 %v1376, 7
      %v1378 = vsub.s32 %v1375, %v1377
      %v1379 = vrot.slane %v1371, %v1378
      %1381 = vset.pattern.permute.xlu0 0
      %1382 = vperm.xlu0 %1381, %v386
      %v1383 = vpop.permute.xlu0 %1382
      %v1386 = vunpack.c.l.s4 839922192
      %v1387 = vunpack.c.0.s8 %v1386
      %v1388 = vlaneseq
      %v1389 = vshrl.u32 %v1388, 7
      %v1390 = vsub.s32 %v1387, %v1389
      %v1391 = vrot.slane %v1383, %v1390
      %1393 = vset.pattern.permute.xlu0 0
      %1394 = vperm.xlu0 %1393, %v387
      %v1395 = vpop.permute.xlu0 %1394
      %v1398 = vunpack.c.l.s4 839922192
      %v1399 = vunpack.c.0.s8 %v1398
      %v1400 = vlaneseq
      %v1401 = vshrl.u32 %v1400, 7
      %v1402 = vsub.s32 %v1399, %v1401
      %v1403 = vrot.slane %v1395, %v1402
      %1405 = vset.pattern.permute.xlu0 0
      %1406 = vperm.xlu0 %1405, %v388
      %v1407 = vpop.permute.xlu0 %1406
      %v1410 = vunpack.c.l.s4 839922192
      %v1411 = vunpack.c.0.s8 %v1410
      %v1412 = vlaneseq
      %v1413 = vshrl.u32 %v1412, 7
      %v1414 = vsub.s32 %v1411, %v1413
      %v1415 = vrot.slane %v1407, %v1414
      %1417 = vset.pattern.permute.xlu0 0
      %1418 = vperm.xlu0 %1417, %v389
      %v1419 = vpop.permute.xlu0 %1418
      %v1422 = vunpack.c.l.s4 839922192
      %v1423 = vunpack.c.0.s8 %v1422
      %v1424 = vlaneseq
      %v1425 = vshrl.u32 %v1424, 7
      %v1426 = vsub.s32 %v1423, %v1425
      %v1427 = vrot.slane %v1419, %v1426
      %1429 = vset.pattern.permute.xlu0 0
      %1430 = vperm.xlu0 %1429, %v390
      %v1431 = vpop.permute.xlu0 %1430
      %v1434 = vunpack.c.l.s4 839922192
      %v1435 = vunpack.c.0.s8 %v1434
      %v1436 = vlaneseq
      %v1437 = vshrl.u32 %v1436, 7
      %v1438 = vsub.s32 %v1435, %v1437
      %v1439 = vrot.slane %v1431, %v1438
      %1441 = vset.pattern.permute.xlu0 0
      %1442 = vperm.xlu0 %1441, %v391
      %v1443 = vpop.permute.xlu0 %1442
      %v1446 = vunpack.c.l.s4 839922192
      %v1447 = vunpack.c.0.s8 %v1446
      %v1448 = vlaneseq
      %v1449 = vshrl.u32 %v1448, 7
      %v1450 = vsub.s32 %v1447, %v1449
      %v1451 = vrot.slane %v1443, %v1450
      %1453 = vset.pattern.permute.xlu0 0
      %1454 = vperm.xlu0 %1453, %v392
      %v1455 = vpop.permute.xlu0 %1454
      %v1458 = vunpack.c.l.s4 839922192
      %v1459 = vunpack.c.0.s8 %v1458
      %v1460 = vlaneseq
      %v1461 = vshrl.u32 %v1460, 7
      %v1462 = vsub.s32 %v1459, %v1461
      %v1463 = vrot.slane %v1455, %v1462
      %1465 = vset.pattern.permute.xlu0 0
      %1466 = vperm.xlu0 %1465, %v393
      %v1467 = vpop.permute.xlu0 %1466
      %v1470 = vunpack.c.l.s4 839922192
      %v1471 = vunpack.c.0.s8 %v1470
      %v1472 = vlaneseq
      %v1473 = vshrl.u32 %v1472, 7
      %v1474 = vsub.s32 %v1471, %v1473
      %v1475 = vrot.slane %v1467, %v1474
      %1477 = vset.pattern.permute.xlu0 0
      %1478 = vperm.xlu0 %1477, %v394
      %v1479 = vpop.permute.xlu0 %1478
      %v1482 = vunpack.c.l.s4 839922192
      %v1483 = vunpack.c.0.s8 %v1482
      %v1484 = vlaneseq
      %v1485 = vshrl.u32 %v1484, 7
      %v1486 = vsub.s32 %v1483, %v1485
      %v1487 = vrot.slane %v1479, %v1486
      %1489 = vset.pattern.permute.xlu0 0
      %1490 = vperm.xlu0 %1489, %v395
      %v1491 = vpop.permute.xlu0 %1490
      %v1494 = vunpack.c.l.s4 839922192
      %v1495 = vunpack.c.0.s8 %v1494
      %v1496 = vlaneseq
      %v1497 = vshrl.u32 %v1496, 7
      %v1498 = vsub.s32 %v1495, %v1497
      %v1499 = vrot.slane %v1491, %v1498
      %1501 = vset.pattern.permute.xlu0 0
      %1502 = vperm.xlu0 %1501, %v396
      %v1503 = vpop.permute.xlu0 %1502
      %v1506 = vunpack.c.l.s4 839922192
      %v1507 = vunpack.c.0.s8 %v1506
      %v1508 = vlaneseq
      %v1509 = vshrl.u32 %v1508, 7
      %v1510 = vsub.s32 %v1507, %v1509
      %v1511 = vrot.slane %v1503, %v1510
      %1513 = vset.pattern.permute.xlu0 0
      %1514 = vperm.xlu0 %1513, %v397
      %v1515 = vpop.permute.xlu0 %1514
      %v1518 = vunpack.c.l.s4 839922192
      %v1519 = vunpack.c.0.s8 %v1518
      %v1520 = vlaneseq
      %v1521 = vshrl.u32 %v1520, 7
      %v1522 = vsub.s32 %v1519, %v1521
      %v1523 = vrot.slane %v1515, %v1522
      %1525 = vset.pattern.permute.xlu0 0
      %1526 = vperm.xlu0 %1525, %v398
      %v1527 = vpop.permute.xlu0 %1526
      %v1530 = vunpack.c.l.s4 839922192
      %v1531 = vunpack.c.0.s8 %v1530
      %v1532 = vlaneseq
      %v1533 = vshrl.u32 %v1532, 7
      %v1534 = vsub.s32 %v1531, %v1533
      %v1535 = vrot.slane %v1527, %v1534
      %1537 = vset.pattern.permute.xlu0 0
      %1538 = vperm.xlu0 %1537, %v399
      %v1539 = vpop.permute.xlu0 %1538
      %v1542 = vunpack.c.l.s4 839922192
      %v1543 = vunpack.c.0.s8 %v1542
      %v1544 = vlaneseq
      %v1545 = vshrl.u32 %v1544, 7
      %v1546 = vsub.s32 %v1543, %v1545
      %v1547 = vrot.slane %v1539, %v1546
      %1549 = vset.pattern.permute.xlu0 0
      %1550 = vperm.xlu0 %1549, %v400
      %v1551 = vpop.permute.xlu0 %1550
      %v1554 = vunpack.c.l.s4 839922192
      %v1555 = vunpack.c.0.s8 %v1554
      %v1556 = vlaneseq
      %v1557 = vshrl.u32 %v1556, 7
      %v1558 = vsub.s32 %v1555, %v1557
      %v1559 = vrot.slane %v1551, %v1558
      %1561 = vset.pattern.permute.xlu0 0
      %1562 = vperm.xlu0 %1561, %v401
      %v1563 = vpop.permute.xlu0 %1562
      %v1566 = vunpack.c.l.s4 839922192
      %v1567 = vunpack.c.0.s8 %v1566
      %v1568 = vlaneseq
      %v1569 = vshrl.u32 %v1568, 7
      %v1570 = vsub.s32 %v1567, %v1569
      %v1571 = vrot.slane %v1563, %v1570
      %1573 = vset.pattern.permute.xlu0 0
      %1574 = vperm.xlu0 %1573, %v402
      %v1575 = vpop.permute.xlu0 %1574
      %v1578 = vunpack.c.l.s4 839922192
      %v1579 = vunpack.c.0.s8 %v1578
      %v1580 = vlaneseq
      %v1581 = vshrl.u32 %v1580, 7
      %v1582 = vsub.s32 %v1579, %v1581
      %v1583 = vrot.slane %v1575, %v1582
      %1585 = vset.pattern.permute.xlu0 0
      %1586 = vperm.xlu0 %1585, %v403
      %v1587 = vpop.permute.xlu0 %1586
      %v1590 = vunpack.c.l.s4 839922192
      %v1591 = vunpack.c.0.s8 %v1590
      %v1592 = vlaneseq
      %v1593 = vshrl.u32 %v1592, 7
      %v1594 = vsub.s32 %v1591, %v1593
      %v1595 = vrot.slane %v1587, %v1594
      %1597 = vset.pattern.permute.xlu0 0
      %1598 = vperm.xlu0 %1597, %v404
      %v1599 = vpop.permute.xlu0 %1598
      %v1602 = vunpack.c.l.s4 839922192
      %v1603 = vunpack.c.0.s8 %v1602
      %v1604 = vlaneseq
      %v1605 = vshrl.u32 %v1604, 7
      %v1606 = vsub.s32 %v1603, %v1605
      %v1607 = vrot.slane %v1599, %v1606
      %1609 = vset.pattern.permute.xlu0 0
      %1610 = vperm.xlu0 %1609, %v405
      %v1611 = vpop.permute.xlu0 %1610
      %v1614 = vunpack.c.l.s4 839922192
      %v1615 = vunpack.c.0.s8 %v1614
      %v1616 = vlaneseq
      %v1617 = vshrl.u32 %v1616, 7
      %v1618 = vsub.s32 %v1615, %v1617
      %v1619 = vrot.slane %v1611, %v1618
      %1621 = vset.pattern.permute.xlu0 0
      %1622 = vperm.xlu0 %1621, %v406
      %v1623 = vpop.permute.xlu0 %1622
      %v1626 = vunpack.c.l.s4 839922192
      %v1627 = vunpack.c.0.s8 %v1626
      %v1628 = vlaneseq
      %v1629 = vshrl.u32 %v1628, 7
      %v1630 = vsub.s32 %v1627, %v1629
      %v1631 = vrot.slane %v1623, %v1630
      %1633 = vset.pattern.permute.xlu0 0
      %1634 = vperm.xlu0 %1633, %v407
      %v1635 = vpop.permute.xlu0 %1634
      %v1638 = vunpack.c.l.s4 839922192
      %v1639 = vunpack.c.0.s8 %v1638
      %v1640 = vlaneseq
      %v1641 = vshrl.u32 %v1640, 7
      %v1642 = vsub.s32 %v1639, %v1641
      %v1643 = vrot.slane %v1635, %v1642
      %1645 = vset.pattern.permute.xlu0 0
      %1646 = vperm.xlu0 %1645, %v408
      %v1647 = vpop.permute.xlu0 %1646
      %v1650 = vunpack.c.l.s4 839922192
      %v1651 = vunpack.c.0.s8 %v1650
      %v1652 = vlaneseq
      %v1653 = vshrl.u32 %v1652, 7
      %v1654 = vsub.s32 %v1651, %v1653
      %v1655 = vrot.slane %v1647, %v1654
      %1657 = vset.pattern.permute.xlu0 0
      %1658 = vperm.xlu0 %1657, %v409
      %v1659 = vpop.permute.xlu0 %1658
      %v1662 = vunpack.c.l.s4 839922192
      %v1663 = vunpack.c.0.s8 %v1662
      %v1664 = vlaneseq
      %v1665 = vshrl.u32 %v1664, 7
      %v1666 = vsub.s32 %v1663, %v1665
      %v1667 = vrot.slane %v1659, %v1666
      %1669 = vset.pattern.permute.xlu0 0
      %1670 = vperm.xlu0 %1669, %v410
      %v1671 = vpop.permute.xlu0 %1670
      %v1674 = vunpack.c.l.s4 839922192
      %v1675 = vunpack.c.0.s8 %v1674
      %v1676 = vlaneseq
      %v1677 = vshrl.u32 %v1676, 7
      %v1678 = vsub.s32 %v1675, %v1677
      %v1679 = vrot.slane %v1671, %v1678
      %1681 = vset.pattern.permute.xlu0 0
      %1682 = vperm.xlu0 %1681, %v411
      %v1683 = vpop.permute.xlu0 %1682
      %v1686 = vunpack.c.l.s4 839922192
      %v1687 = vunpack.c.0.s8 %v1686
      %v1688 = vlaneseq
      %v1689 = vshrl.u32 %v1688, 7
      %v1690 = vsub.s32 %v1687, %v1689
      %v1691 = vrot.slane %v1683, %v1690
      %1693 = vset.pattern.permute.xlu0 0
      %1694 = vperm.xlu0 %1693, %v412
      %v1695 = vpop.permute.xlu0 %1694
      %v1698 = vunpack.c.l.s4 839922192
      %v1699 = vunpack.c.0.s8 %v1698
      %v1700 = vlaneseq
      %v1701 = vshrl.u32 %v1700, 7
      %v1702 = vsub.s32 %v1699, %v1701
      %v1703 = vrot.slane %v1695, %v1702
      %1705 = vset.pattern.permute.xlu0 0
      %1706 = vperm.xlu0 %1705, %v413
      %v1707 = vpop.permute.xlu0 %1706
      %v1710 = vunpack.c.l.s4 839922192
      %v1711 = vunpack.c.0.s8 %v1710
      %v1712 = vlaneseq
      %v1713 = vshrl.u32 %v1712, 7
      %v1714 = vsub.s32 %v1711, %v1713
      %v1715 = vrot.slane %v1707, %v1714
      %1717 = vset.pattern.permute.xlu0 0
      %1718 = vperm.xlu0 %1717, %v414
      %v1719 = vpop.permute.xlu0 %1718
      %v1722 = vunpack.c.l.s4 839922192
      %v1723 = vunpack.c.0.s8 %v1722
      %v1724 = vlaneseq
      %v1725 = vshrl.u32 %v1724, 7
      %v1726 = vsub.s32 %v1723, %v1725
      %v1727 = vrot.slane %v1719, %v1726
      %1729 = vset.pattern.permute.xlu0 0
      %1730 = vperm.xlu0 %1729, %v415
      %v1731 = vpop.permute.xlu0 %1730
      %v1734 = vunpack.c.l.s4 839922192
      %v1735 = vunpack.c.0.s8 %v1734
      %v1736 = vlaneseq
      %v1737 = vshrl.u32 %v1736, 7
      %v1738 = vsub.s32 %v1735, %v1737
      %v1739 = vrot.slane %v1731, %v1738
      %1741 = vset.pattern.permute.xlu0 0
      %1742 = vperm.xlu0 %1741, %v416
      %v1743 = vpop.permute.xlu0 %1742
      %v1746 = vunpack.c.l.s4 839922192
      %v1747 = vunpack.c.0.s8 %v1746
      %v1748 = vlaneseq
      %v1749 = vshrl.u32 %v1748, 7
      %v1750 = vsub.s32 %v1747, %v1749
      %v1751 = vrot.slane %v1743, %v1750
      %1753 = vset.pattern.permute.xlu0 0
      %1754 = vperm.xlu0 %1753, %v417
      %v1755 = vpop.permute.xlu0 %1754
      %v1758 = vunpack.c.l.s4 839922192
      %v1759 = vunpack.c.0.s8 %v1758
      %v1760 = vlaneseq
      %v1761 = vshrl.u32 %v1760, 7
      %v1762 = vsub.s32 %v1759, %v1761
      %v1763 = vrot.slane %v1755, %v1762
      %1765 = vset.pattern.permute.xlu0 0
      %1766 = vperm.xlu0 %1765, %v418
      %v1767 = vpop.permute.xlu0 %1766
      %v1770 = vunpack.c.l.s4 839922192
      %v1771 = vunpack.c.0.s8 %v1770
      %v1772 = vlaneseq
      %v1773 = vshrl.u32 %v1772, 7
      %v1774 = vsub.s32 %v1771, %v1773
      %v1775 = vrot.slane %v1767, %v1774
      %1777 = vset.pattern.permute.xlu0 0
      %1778 = vperm.xlu0 %1777, %v419
      %v1779 = vpop.permute.xlu0 %1778
      %v1782 = vunpack.c.l.s4 839922192
      %v1783 = vunpack.c.0.s8 %v1782
      %v1784 = vlaneseq
      %v1785 = vshrl.u32 %v1784, 7
      %v1786 = vsub.s32 %v1783, %v1785
      %v1787 = vrot.slane %v1779, %v1786
      %1789 = vset.pattern.permute.xlu0 0
      %1790 = vperm.xlu0 %1789, %v420
      %v1791 = vpop.permute.xlu0 %1790
      %v1794 = vunpack.c.l.s4 839922192
      %v1795 = vunpack.c.0.s8 %v1794
      %v1796 = vlaneseq
      %v1797 = vshrl.u32 %v1796, 7
      %v1798 = vsub.s32 %v1795, %v1797
      %v1799 = vrot.slane %v1791, %v1798
      %1801 = vset.pattern.permute.xlu0 0
      %1802 = vperm.xlu0 %1801, %v421
      %v1803 = vpop.permute.xlu0 %1802
      %v1806 = vunpack.c.l.s4 839922192
      %v1807 = vunpack.c.0.s8 %v1806
      %v1808 = vlaneseq
      %v1809 = vshrl.u32 %v1808, 7
      %v1810 = vsub.s32 %v1807, %v1809
      %v1811 = vrot.slane %v1803, %v1810
      %1813 = vset.pattern.permute.xlu0 0
      %1814 = vperm.xlu0 %1813, %v422
      %v1815 = vpop.permute.xlu0 %1814
      %v1818 = vunpack.c.l.s4 839922192
      %v1819 = vunpack.c.0.s8 %v1818
      %v1820 = vlaneseq
      %v1821 = vshrl.u32 %v1820, 7
      %v1822 = vsub.s32 %v1819, %v1821
      %v1823 = vrot.slane %v1815, %v1822
      %1825 = vset.pattern.permute.xlu0 0
      %1826 = vperm.xlu0 %1825, %v423
      %v1827 = vpop.permute.xlu0 %1826
      %v1830 = vunpack.c.l.s4 839922192
      %v1831 = vunpack.c.0.s8 %v1830
      %v1832 = vlaneseq
      %v1833 = vshrl.u32 %v1832, 7
      %v1834 = vsub.s32 %v1831, %v1833
      %v1835 = vrot.slane %v1827, %v1834
      %1837 = vset.pattern.permute.xlu0 0
      %1838 = vperm.xlu0 %1837, %v424
      %v1839 = vpop.permute.xlu0 %1838
      %v1842 = vunpack.c.l.s4 839922192
      %v1843 = vunpack.c.0.s8 %v1842
      %v1844 = vlaneseq
      %v1845 = vshrl.u32 %v1844, 7
      %v1846 = vsub.s32 %v1843, %v1845
      %v1847 = vrot.slane %v1839, %v1846
      %1849 = vset.pattern.permute.xlu0 0
      %1850 = vperm.xlu0 %1849, %v425
      %v1851 = vpop.permute.xlu0 %1850
      %v1854 = vunpack.c.l.s4 839922192
      %v1855 = vunpack.c.0.s8 %v1854
      %v1856 = vlaneseq
      %v1857 = vshrl.u32 %v1856, 7
      %v1858 = vsub.s32 %v1855, %v1857
      %v1859 = vrot.slane %v1851, %v1858
      %1861 = vset.pattern.permute.xlu0 0
      %1862 = vperm.xlu0 %1861, %v426
      %v1863 = vpop.permute.xlu0 %1862
      %v1866 = vunpack.c.l.s4 839922192
      %v1867 = vunpack.c.0.s8 %v1866
      %v1868 = vlaneseq
      %v1869 = vshrl.u32 %v1868, 7
      %v1870 = vsub.s32 %v1867, %v1869
      %v1871 = vrot.slane %v1863, %v1870
      %1873 = vset.pattern.permute.xlu0 0
      %1874 = vperm.xlu0 %1873, %v427
      %v1875 = vpop.permute.xlu0 %1874
      %v1878 = vunpack.c.l.s4 839922192
      %v1879 = vunpack.c.0.s8 %v1878
      %v1880 = vlaneseq
      %v1881 = vshrl.u32 %v1880, 7
      %v1882 = vsub.s32 %v1879, %v1881
      %v1883 = vrot.slane %v1875, %v1882
      %1885 = vset.pattern.permute.xlu0 0
      %1886 = vperm.xlu0 %1885, %v428
      %v1887 = vpop.permute.xlu0 %1886
      %v1890 = vunpack.c.l.s4 839922192
      %v1891 = vunpack.c.0.s8 %v1890
      %v1892 = vlaneseq
      %v1893 = vshrl.u32 %v1892, 7
      %v1894 = vsub.s32 %v1891, %v1893
      %v1895 = vrot.slane %v1887, %v1894
      %1897 = vset.pattern.permute.xlu0 0
      %1898 = vperm.xlu0 %1897, %v429
      %v1899 = vpop.permute.xlu0 %1898
      %v1902 = vunpack.c.l.s4 839922192
      %v1903 = vunpack.c.0.s8 %v1902
      %v1904 = vlaneseq
      %v1905 = vshrl.u32 %v1904, 7
      %v1906 = vsub.s32 %v1903, %v1905
      %v1907 = vrot.slane %v1899, %v1906
      %1909 = vset.pattern.permute.xlu0 0
      %1910 = vperm.xlu0 %1909, %v430
      %v1911 = vpop.permute.xlu0 %1910
      %v1914 = vunpack.c.l.s4 839922192
      %v1915 = vunpack.c.0.s8 %v1914
      %v1916 = vlaneseq
      %v1917 = vshrl.u32 %v1916, 7
      %v1918 = vsub.s32 %v1915, %v1917
      %v1919 = vrot.slane %v1911, %v1918
      %1921 = vset.pattern.permute.xlu0 0
      %1922 = vperm.xlu0 %1921, %v431
      %v1923 = vpop.permute.xlu0 %1922
      %v1926 = vunpack.c.l.s4 839922192
      %v1927 = vunpack.c.0.s8 %v1926
      %v1928 = vlaneseq
      %v1929 = vshrl.u32 %v1928, 7
      %v1930 = vsub.s32 %v1927, %v1929
      %v1931 = vrot.slane %v1923, %v1930
      %1933 = vset.pattern.permute.xlu0 0
      %1934 = vperm.xlu0 %1933, %v432
      %v1935 = vpop.permute.xlu0 %1934
      %v1938 = vunpack.c.l.s4 839922192
      %v1939 = vunpack.c.0.s8 %v1938
      %v1940 = vlaneseq
      %v1941 = vshrl.u32 %v1940, 7
      %v1942 = vsub.s32 %v1939, %v1941
      %v1943 = vrot.slane %v1935, %v1942
      %1945 = vset.pattern.permute.xlu0 0
      %1946 = vperm.xlu0 %1945, %v433
      %v1947 = vpop.permute.xlu0 %1946
      %v1950 = vunpack.c.l.s4 839922192
      %v1951 = vunpack.c.0.s8 %v1950
      %v1952 = vlaneseq
      %v1953 = vshrl.u32 %v1952, 7
      %v1954 = vsub.s32 %v1951, %v1953
      %v1955 = vrot.slane %v1947, %v1954
      %1957 = vset.pattern.permute.xlu0 0
      %1958 = vperm.xlu0 %1957, %v434
      %v1959 = vpop.permute.xlu0 %1958
      %v1962 = vunpack.c.l.s4 839922192
      %v1963 = vunpack.c.0.s8 %v1962
      %v1964 = vlaneseq
      %v1965 = vshrl.u32 %v1964, 7
      %v1966 = vsub.s32 %v1963, %v1965
      %v1967 = vrot.slane %v1959, %v1966
      %1969 = vset.pattern.permute.xlu0 0
      %1970 = vperm.xlu0 %1969, %v435
      %v1971 = vpop.permute.xlu0 %1970
      %v1974 = vunpack.c.l.s4 839922192
      %v1975 = vunpack.c.0.s8 %v1974
      %v1976 = vlaneseq
      %v1977 = vshrl.u32 %v1976, 7
      %v1978 = vsub.s32 %v1975, %v1977
      %v1979 = vrot.slane %v1971, %v1978
      %1981 = vset.pattern.permute.xlu0 0
      %1982 = vperm.xlu0 %1981, %v436
      %v1983 = vpop.permute.xlu0 %1982
      %v1986 = vunpack.c.l.s4 839922192
      %v1987 = vunpack.c.0.s8 %v1986
      %v1988 = vlaneseq
      %v1989 = vshrl.u32 %v1988, 7
      %v1990 = vsub.s32 %v1987, %v1989
      %v1991 = vrot.slane %v1983, %v1990
      %1993 = vset.pattern.permute.xlu0 0
      %1994 = vperm.xlu0 %1993, %v437
      %v1995 = vpop.permute.xlu0 %1994
      %v1998 = vunpack.c.l.s4 839922192
      %v1999 = vunpack.c.0.s8 %v1998
      %v2000 = vlaneseq
      %v2001 = vshrl.u32 %v2000, 7
      %v2002 = vsub.s32 %v1999, %v2001
      %v2003 = vrot.slane %v1995, %v2002
      %2005 = vset.pattern.permute.xlu0 0
      %2006 = vperm.xlu0 %2005, %v438
      %v2007 = vpop.permute.xlu0 %2006
      %v2010 = vunpack.c.l.s4 839922192
      %v2011 = vunpack.c.0.s8 %v2010
      %v2012 = vlaneseq
      %v2013 = vshrl.u32 %v2012, 7
      %v2014 = vsub.s32 %v2011, %v2013
      %v2015 = vrot.slane %v2007, %v2014
      %2017 = vset.pattern.permute.xlu0 0
      %2018 = vperm.xlu0 %2017, %v439
      %v2019 = vpop.permute.xlu0 %2018
      %v2022 = vunpack.c.l.s4 839922192
      %v2023 = vunpack.c.0.s8 %v2022
      %v2024 = vlaneseq
      %v2025 = vshrl.u32 %v2024, 7
      %v2026 = vsub.s32 %v2023, %v2025
      %v2027 = vrot.slane %v2019, %v2026
      %2029 = vset.pattern.permute.xlu0 0
      %2030 = vperm.xlu0 %2029, %v440
      %v2031 = vpop.permute.xlu0 %2030
      %v2034 = vunpack.c.l.s4 839922192
      %v2035 = vunpack.c.0.s8 %v2034
      %v2036 = vlaneseq
      %v2037 = vshrl.u32 %v2036, 7
      %v2038 = vsub.s32 %v2035, %v2037
      %v2039 = vrot.slane %v2031, %v2038
      %2041 = vset.pattern.permute.xlu0 0
      %2042 = vperm.xlu0 %2041, %v441
      %v2043 = vpop.permute.xlu0 %2042
      %v2046 = vunpack.c.l.s4 839922192
      %v2047 = vunpack.c.0.s8 %v2046
      %v2048 = vlaneseq
      %v2049 = vshrl.u32 %v2048, 7
      %v2050 = vsub.s32 %v2047, %v2049
      %v2051 = vrot.slane %v2043, %v2050
      %2053 = vset.pattern.permute.xlu0 0
      %2054 = vperm.xlu0 %2053, %v442
      %v2055 = vpop.permute.xlu0 %2054
      %v2058 = vunpack.c.l.s4 839922192
      %v2059 = vunpack.c.0.s8 %v2058
      %v2060 = vlaneseq
      %v2061 = vshrl.u32 %v2060, 7
      %v2062 = vsub.s32 %v2059, %v2061
      %v2063 = vrot.slane %v2055, %v2062
      %2065 = vset.pattern.permute.xlu0 0
      %2066 = vperm.xlu0 %2065, %v443
      %v2067 = vpop.permute.xlu0 %2066
      %v2070 = vunpack.c.l.s4 839922192
      %v2071 = vunpack.c.0.s8 %v2070
      %v2072 = vlaneseq
      %v2073 = vshrl.u32 %v2072, 7
      %v2074 = vsub.s32 %v2071, %v2073
      %v2075 = vrot.slane %v2067, %v2074
      %v2076 = vadd.bf16 %v171, %v455
      %v2077 = vadd.bf16 %v172, %v467
      %v2078 = vadd.bf16 %v173, %v479
      %v2079 = vadd.bf16 %v174, %v491
      %v2080 = vadd.bf16 %v175, %v503
      %v2081 = vadd.bf16 %v176, %v515
      %v2082 = vadd.bf16 %v177, %v527
      %v2083 = vadd.bf16 %v178, %v539
      %v2084 = vadd.bf16 %v179, %v551
      %v2085 = vadd.bf16 %v180, %v563
      %v2086 = vadd.bf16 %v181, %v575
      %v2087 = vadd.bf16 %v182, %v587
      %v2088 = vadd.bf16 %v183, %v599
      %v2089 = vadd.bf16 %v184, %v611
      %v2090 = vadd.bf16 %v185, %v623
      %v2091 = vadd.bf16 %v186, %v635
      %v2092 = vadd.bf16 %v187, %v647
      %v2093 = vadd.bf16 %v188, %v659
      %v2094 = vadd.bf16 %v189, %v671
      %v2095 = vadd.bf16 %v190, %v683
      %v2096 = vadd.bf16 %v191, %v695
      %v2097 = vadd.bf16 %v192, %v707
      %v2098 = vadd.bf16 %v193, %v719
      %v2099 = vadd.bf16 %v194, %v731
      %v2100 = vadd.bf16 %v195, %v743
      %v2101 = vadd.bf16 %v196, %v755
      %v2102 = vadd.bf16 %v197, %v767
      %v2103 = vadd.bf16 %v198, %v779
      %v2104 = vadd.bf16 %v199, %v791
      %v2105 = vadd.bf16 %v200, %v803
      %v2106 = vadd.bf16 %v201, %v815
      %v2107 = vadd.bf16 %v202, %v827
      %v2108 = vadd.bf16 %v203, %v839
      %v2109 = vadd.bf16 %v204, %v851
      %v2110 = vadd.bf16 %v205, %v863
      %v2111 = vadd.bf16 %v206, %v875
      %v2112 = vadd.bf16 %v207, %v887
      %v2113 = vadd.bf16 %v208, %v899
      %v2114 = vadd.bf16 %v209, %v911
      %v2115 = vadd.bf16 %v210, %v923
      %v2116 = vadd.bf16 %v211, %v935
      %v2117 = vadd.bf16 %v212, %v947
      %v2118 = vadd.bf16 %v213, %v959
      %v2119 = vadd.bf16 %v214, %v971
      %v2120 = vadd.bf16 %v215, %v983
      %v2121 = vadd.bf16 %v216, %v995
      %v2122 = vadd.bf16 %v217, %v1007
      %v2123 = vadd.bf16 %v218, %v1019
      %v2124 = vadd.bf16 %v219, %v1031
      %v2125 = vadd.bf16 %v220, %v1043
      %v2126 = vadd.bf16 %v221, %v1055
      %v2127 = vadd.bf16 %v222, %v1067
      %v2128 = vadd.bf16 %v223, %v1079
      %v2129 = vadd.bf16 %v224, %v1091
      %v2130 = vadd.bf16 %v225, %v1103
      %v2131 = vadd.bf16 %v226, %v1115
      %v2132 = vadd.bf16 %v227, %v1127
      %v2133 = vadd.bf16 %v228, %v1139
      %v2134 = vadd.bf16 %v229, %v1151
      %v2135 = vadd.bf16 %v230, %v1163
      %v2136 = vadd.bf16 %v231, %v1175
      %v2137 = vadd.bf16 %v232, %v1187
      %v2138 = vadd.bf16 %v233, %v1199
      %v2139 = vadd.bf16 %v234, %v1211
      %v2140 = vadd.bf16 %v235, %v1223
      %v2141 = vadd.bf16 %v236, %v1235
      %v2142 = vadd.bf16 %v237, %v1247
      %v2143 = vadd.bf16 %v238, %v1259
      %v2144 = vadd.bf16 %v239, %v1271
      %v2145 = vadd.bf16 %v240, %v1283
      %v2146 = vadd.bf16 %v241, %v1295
      %v2147 = vadd.bf16 %v242, %v1307
      %v2148 = vadd.bf16 %v243, %v1319
      %v2149 = vadd.bf16 %v244, %v1331
      %v2150 = vadd.bf16 %v245, %v1343
      %v2151 = vadd.bf16 %v246, %v1355
      %v2152 = vadd.bf16 %v247, %v1367
      %v2153 = vadd.bf16 %v248, %v1379
      %v2154 = vadd.bf16 %v249, %v1391
      %v2155 = vadd.bf16 %v250, %v1403
      %v2156 = vadd.bf16 %v251, %v1415
      %v2157 = vadd.bf16 %v252, %v1427
      %v2158 = vadd.bf16 %v253, %v1439
      %v2159 = vadd.bf16 %v254, %v1451
      %v2160 = vadd.bf16 %v255, %v1463
      %v2161 = vadd.bf16 %v256, %v1475
      %v2162 = vadd.bf16 %v257, %v1487
      %v2163 = vadd.bf16 %v258, %v1499
      %v2164 = vadd.bf16 %v259, %v1511
      %v2165 = vadd.bf16 %v260, %v1523
      %v2166 = vadd.bf16 %v261, %v1535
      %v2167 = vadd.bf16 %v262, %v1547
      %v2168 = vadd.bf16 %v263, %v1559
      %v2169 = vadd.bf16 %v264, %v1571
      %v2170 = vadd.bf16 %v265, %v1583
      %v2171 = vadd.bf16 %v266, %v1595
      %v2172 = vadd.bf16 %v267, %v1607
      %v2173 = vadd.bf16 %v268, %v1619
      %v2174 = vadd.bf16 %v269, %v1631
      %v2175 = vadd.bf16 %v270, %v1643
      %v2176 = vadd.bf16 %v271, %v1655
      %v2177 = vadd.bf16 %v272, %v1667
      %v2178 = vadd.bf16 %v273, %v1679
      %v2179 = vadd.bf16 %v274, %v1691
      %v2180 = vadd.bf16 %v275, %v1703
      %v2181 = vadd.bf16 %v276, %v1715
      %v2182 = vadd.bf16 %v277, %v1727
      %v2183 = vadd.bf16 %v278, %v1739
      %v2184 = vadd.bf16 %v279, %v1751
      %v2185 = vadd.bf16 %v280, %v1763
      %v2186 = vadd.bf16 %v281, %v1775
      %v2187 = vadd.bf16 %v282, %v1787
      %v2188 = vadd.bf16 %v283, %v1799
      %v2189 = vadd.bf16 %v284, %v1811
      %v2190 = vadd.bf16 %v285, %v1823
      %v2191 = vadd.bf16 %v286, %v1835
      %v2192 = vadd.bf16 %v287, %v1847
      %v2193 = vadd.bf16 %v288, %v1859
      %v2194 = vadd.bf16 %v289, %v1871
      %v2195 = vadd.bf16 %v290, %v1883
      %v2196 = vadd.bf16 %v291, %v1895
      %v2197 = vadd.bf16 %v292, %v1907
      %v2198 = vadd.bf16 %v293, %v1919
      %v2199 = vadd.bf16 %v294, %v1931
      %v2200 = vadd.bf16 %v295, %v1943
      %v2201 = vadd.bf16 %v296, %v1955
      %v2202 = vadd.bf16 %v297, %v1967
      %v2203 = vadd.bf16 %v298, %v1979
      %v2204 = vadd.bf16 %v299, %v1991
      %v2205 = vadd.bf16 %v300, %v2003
      %v2206 = vadd.bf16 %v301, %v2015
      %v2207 = vadd.bf16 %v302, %v2027
      %v2208 = vadd.bf16 %v303, %v2039
      %v2209 = vadd.bf16 %v304, %v2051
      %v2210 = vadd.bf16 %v305, %v2063
      %v2211 = vadd.bf16 %v306, %v2075
      %v2212 = vld [vmem:[%s2] sm:$0xf]
      %v2213 = vld [vmem:[%s2 + $0x4] sm:$0xf]
      %v2214 = vld [vmem:[%s2 + $0x8] sm:$0xf]
      %v2215 = vld [vmem:[%s2 + $0xc] sm:$0xf]
      %v2216 = vld [vmem:[%s2 + $0x10] sm:$0xf]
      %v2217 = vld [vmem:[%s2 + $0x14] sm:$0xf]
      %v2218 = vld [vmem:[%s2 + $0x18] sm:$0xf]
      %v2219 = vld [vmem:[%s2 + $0x1c] sm:$0xf]
      %v2220 = vld [vmem:[%s2 + $0x20] sm:$0xf]
      %v2221 = vld [vmem:[%s2 + $0x24] sm:$0xf]
      %v2222 = vld [vmem:[%s2 + $0x28] sm:$0xf]
      %v2223 = vld [vmem:[%s2 + $0x2c] sm:$0xf]
      %v2224 = vld [vmem:[%s2 + $0x30] sm:$0xf]
      %v2225 = vld [vmem:[%s2 + $0x34] sm:$0xf]
      %v2226 = vld [vmem:[%s2 + $0x38] sm:$0xf]
      %v2227 = vld [vmem:[%s2 + $0x3c] sm:$0xf]
      %v2228 = vld [vmem:[%s2 + $0x40] sm:$0xf]
      %v2229 = vld [vmem:[%s2 + $0x44] sm:$0xf]
      %v2230 = vld [vmem:[%s2 + $0x48] sm:$0xf]
      %v2231 = vld [vmem:[%s2 + $0x4c] sm:$0xf]
      %v2232 = vld [vmem:[%s2 + $0x50] sm:$0xf]
      %v2233 = vld [vmem:[%s2 + $0x54] sm:$0xf]
      %v2234 = vld [vmem:[%s2 + $0x58] sm:$0xf]
      %v2235 = vld [vmem:[%s2 + $0x5c] sm:$0xf]
      %v2236 = vld [vmem:[%s2 + $0x60] sm:$0xf]
      %v2237 = vld [vmem:[%s2 + $0x64] sm:$0xf]
      %v2238 = vld [vmem:[%s2 + $0x68] sm:$0xf]
      %v2239 = vld [vmem:[%s2 + $0x6c] sm:$0xf]
      %v2240 = vld [vmem:[%s2 + $0x70] sm:$0xf]
      %v2241 = vld [vmem:[%s2 + $0x74] sm:$0xf]
      %v2242 = vld [vmem:[%s2 + $0x78] sm:$0xf]
      %v2243 = vld [vmem:[%s2 + $0x7c] sm:$0xf]
      %v2244 = vld [vmem:[%s2 + $0x80] sm:$0xf]
      %v2245 = vld [vmem:[%s2 + $0x84] sm:$0xf]
      %v2246 = vld [vmem:[%s2 + $0x88] sm:$0xf]
      %v2247 = vld [vmem:[%s2 + $0x8c] sm:$0xf]
      %v2248 = vld [vmem:[%s2 + $0x90] sm:$0xf]
      %v2249 = vld [vmem:[%s2 + $0x94] sm:$0xf]
      %v2250 = vld [vmem:[%s2 + $0x98] sm:$0xf]
      %v2251 = vld [vmem:[%s2 + $0x9c] sm:$0xf]
      %v2252 = vld [vmem:[%s2 + $0xa0] sm:$0xf]
      %v2253 = vld [vmem:[%s2 + $0xa4] sm:$0xf]
      %v2254 = vld [vmem:[%s2 + $0xa8] sm:$0xf]
      %v2255 = vld [vmem:[%s2 + $0xac] sm:$0xf]
      %v2256 = vld [vmem:[%s2 + $0xb0] sm:$0xf]
      %v2257 = vld [vmem:[%s2 + $0xb4] sm:$0xf]
      %v2258 = vld [vmem:[%s2 + $0xb8] sm:$0xf]
      %v2259 = vld [vmem:[%s2 + $0xbc] sm:$0xf]
      %v2260 = vld [vmem:[%s2 + $0xc0] sm:$0xf]
      %v2261 = vld [vmem:[%s2 + $0xc4] sm:$0xf]
      %v2262 = vld [vmem:[%s2 + $0xc8] sm:$0xf]
      %v2263 = vld [vmem:[%s2 + $0xcc] sm:$0xf]
      %v2264 = vld [vmem:[%s2 + $0xd0] sm:$0xf]
      %v2265 = vld [vmem:[%s2 + $0xd4] sm:$0xf]
      %v2266 = vld [vmem:[%s2 + $0xd8] sm:$0xf]
      %v2267 = vld [vmem:[%s2 + $0xdc] sm:$0xf]
      %v2268 = vld [vmem:[%s2 + $0xe0] sm:$0xf]
      %v2269 = vld [vmem:[%s2 + $0xe4] sm:$0xf]
      %v2270 = vld [vmem:[%s2 + $0xe8] sm:$0xf]
      %v2271 = vld [vmem:[%s2 + $0xec] sm:$0xf]
      %v2272 = vld [vmem:[%s2 + $0xf0] sm:$0xf]
      %v2273 = vld [vmem:[%s2 + $0xf4] sm:$0xf]
      %v2274 = vld [vmem:[%s2 + $0xf8] sm:$0xf]
      %v2275 = vld [vmem:[%s2 + $0xfc] sm:$0xf]
      %v2276 = vld [vmem:[%s2 + $0x100] sm:$0xf]
      %v2277 = vld [vmem:[%s2 + $0x104] sm:$0xf]
      %v2278 = vld [vmem:[%s2 + $0x108] sm:$0xf]
      %v2279 = vld [vmem:[%s2 + $0x10c] sm:$0xf]
      %v2280 = vld [vmem:[%s2 + $0x110] sm:$0xf]
      %v2281 = vld [vmem:[%s2 + $0x114] sm:$0xf]
      %v2282 = vld [vmem:[%s2 + $0x118] sm:$0xf]
      %v2283 = vld [vmem:[%s2 + $0x11c] sm:$0xf]
      %v2284 = vld [vmem:[%s2 + $0x120] sm:$0xf]
      %v2285 = vld [vmem:[%s2 + $0x124] sm:$0xf]
      %v2286 = vld [vmem:[%s2 + $0x128] sm:$0xf]
      %v2287 = vld [vmem:[%s2 + $0x12c] sm:$0xf]
      %v2288 = vld [vmem:[%s2 + $0x130] sm:$0xf]
      %v2289 = vld [vmem:[%s2 + $0x134] sm:$0xf]
      %v2290 = vld [vmem:[%s2 + $0x138] sm:$0xf]
      %v2291 = vld [vmem:[%s2 + $0x13c] sm:$0xf]
      %v2292 = vld [vmem:[%s2 + $0x140] sm:$0xf]
      %v2293 = vld [vmem:[%s2 + $0x144] sm:$0xf]
      %v2294 = vld [vmem:[%s2 + $0x148] sm:$0xf]
      %v2295 = vld [vmem:[%s2 + $0x14c] sm:$0xf]
      %v2296 = vld [vmem:[%s2 + $0x150] sm:$0xf]
      %v2297 = vld [vmem:[%s2 + $0x154] sm:$0xf]
      %v2298 = vld [vmem:[%s2 + $0x158] sm:$0xf]
      %v2299 = vld [vmem:[%s2 + $0x15c] sm:$0xf]
      %v2300 = vld [vmem:[%s2 + $0x160] sm:$0xf]
      %v2301 = vld [vmem:[%s2 + $0x164] sm:$0xf]
      %v2302 = vld [vmem:[%s2 + $0x168] sm:$0xf]
      %v2303 = vld [vmem:[%s2 + $0x16c] sm:$0xf]
      %v2304 = vld [vmem:[%s2 + $0x170] sm:$0xf]
      %v2305 = vld [vmem:[%s2 + $0x174] sm:$0xf]
      %v2306 = vld [vmem:[%s2 + $0x178] sm:$0xf]
      %v2307 = vld [vmem:[%s2 + $0x17c] sm:$0xf]
      %v2308 = vld [vmem:[%s2 + $0x180] sm:$0xf]
      %v2309 = vld [vmem:[%s2 + $0x184] sm:$0xf]
      %v2310 = vld [vmem:[%s2 + $0x188] sm:$0xf]
      %v2311 = vld [vmem:[%s2 + $0x18c] sm:$0xf]
      %v2312 = vld [vmem:[%s2 + $0x190] sm:$0xf]
      %v2313 = vld [vmem:[%s2 + $0x194] sm:$0xf]
      %v2314 = vld [vmem:[%s2 + $0x198] sm:$0xf]
      %v2315 = vld [vmem:[%s2 + $0x19c] sm:$0xf]
      %v2316 = vld [vmem:[%s2 + $0x1a0] sm:$0xf]
      %v2317 = vld [vmem:[%s2 + $0x1a4] sm:$0xf]
      %v2318 = vld [vmem:[%s2 + $0x1a8] sm:$0xf]
      %v2319 = vld [vmem:[%s2 + $0x1ac] sm:$0xf]
      %v2320 = vld [vmem:[%s2 + $0x1b0] sm:$0xf]
      %v2321 = vld [vmem:[%s2 + $0x1b4] sm:$0xf]
      %v2322 = vld [vmem:[%s2 + $0x1b8] sm:$0xf]
      %v2323 = vld [vmem:[%s2 + $0x1bc] sm:$0xf]
      %v2324 = vld [vmem:[%s2 + $0x1c0] sm:$0xf]
      %v2325 = vld [vmem:[%s2 + $0x1c4] sm:$0xf]
      %v2326 = vld [vmem:[%s2 + $0x1c8] sm:$0xf]
      %v2327 = vld [vmem:[%s2 + $0x1cc] sm:$0xf]
      %v2328 = vld [vmem:[%s2 + $0x1d0] sm:$0xf]
      %v2329 = vld [vmem:[%s2 + $0x1d4] sm:$0xf]
      %v2330 = vld [vmem:[%s2 + $0x1d8] sm:$0xf]
      %v2331 = vld [vmem:[%s2 + $0x1dc] sm:$0xf]
      %v2332 = vld [vmem:[%s2 + $0x1e0] sm:$0xf]
      %v2333 = vld [vmem:[%s2 + $0x1e4] sm:$0xf]
      %v2334 = vld [vmem:[%s2 + $0x1e8] sm:$0xf]
      %v2335 = vld [vmem:[%s2 + $0x1ec] sm:$0xf]
      %v2336 = vld [vmem:[%s2 + $0x1f0] sm:$0xf]
      %v2337 = vld [vmem:[%s2 + $0x1f4] sm:$0xf]
      %v2338 = vld [vmem:[%s2 + $0x1f8] sm:$0xf]
      %v2339 = vld [vmem:[%s2 + $0x1fc] sm:$0xf]
      %v2340 = vld [vmem:[%s2 + $0x200] sm:$0xf]
      %v2341 = vld [vmem:[%s2 + $0x204] sm:$0xf]
      %v2342 = vld [vmem:[%s2 + $0x208] sm:$0xf]
      %v2343 = vld [vmem:[%s2 + $0x20c] sm:$0xf]
      %v2344 = vld [vmem:[%s2 + $0x210] sm:$0xf]
      %v2345 = vld [vmem:[%s2 + $0x214] sm:$0xf]
      %v2346 = vld [vmem:[%s2 + $0x218] sm:$0xf]
      %v2347 = vld [vmem:[%s2 + $0x21c] sm:$0xf]
      %v2348 = vld [vmem:[%s2 + $0x220] sm:$0x1]
      %2350 = vset.pattern.permute.xlu0 0
      %2351 = vperm.xlu0 %2350, %v2212
      %v2352 = vpop.permute.xlu0 %2351
      %v2355 = vunpack.c.l.s4 839922192
      %v2356 = vunpack.c.0.s8 %v2355
      %v2357 = vlaneseq
      %v2358 = vshrl.u32 %v2357, 7
      %v2359 = vsub.s32 %v2356, %v2358
      %v2360 = vrot.slane %v2352, %v2359
      %2362 = vset.pattern.permute.xlu0 0
      %2363 = vperm.xlu0 %2362, %v2213
      %v2364 = vpop.permute.xlu0 %2363
      %v2367 = vunpack.c.l.s4 839922192
      %v2368 = vunpack.c.0.s8 %v2367
      %v2369 = vlaneseq
      %v2370 = vshrl.u32 %v2369, 7
      %v2371 = vsub.s32 %v2368, %v2370
      %v2372 = vrot.slane %v2364, %v2371
      %2374 = vset.pattern.permute.xlu0 0
      %2375 = vperm.xlu0 %2374, %v2214
      %v2376 = vpop.permute.xlu0 %2375
      %v2379 = vunpack.c.l.s4 839922192
      %v2380 = vunpack.c.0.s8 %v2379
      %v2381 = vlaneseq
      %v2382 = vshrl.u32 %v2381, 7
      %v2383 = vsub.s32 %v2380, %v2382
      %v2384 = vrot.slane %v2376, %v2383
      %2386 = vset.pattern.permute.xlu0 0
      %2387 = vperm.xlu0 %2386, %v2215
      %v2388 = vpop.permute.xlu0 %2387
      %v2391 = vunpack.c.l.s4 839922192
      %v2392 = vunpack.c.0.s8 %v2391
      %v2393 = vlaneseq
      %v2394 = vshrl.u32 %v2393, 7
      %v2395 = vsub.s32 %v2392, %v2394
      %v2396 = vrot.slane %v2388, %v2395
      %2398 = vset.pattern.permute.xlu0 0
      %2399 = vperm.xlu0 %2398, %v2216
      %v2400 = vpop.permute.xlu0 %2399
      %v2403 = vunpack.c.l.s4 839922192
      %v2404 = vunpack.c.0.s8 %v2403
      %v2405 = vlaneseq
      %v2406 = vshrl.u32 %v2405, 7
      %v2407 = vsub.s32 %v2404, %v2406
      %v2408 = vrot.slane %v2400, %v2407
      %2410 = vset.pattern.permute.xlu0 0
      %2411 = vperm.xlu0 %2410, %v2217
      %v2412 = vpop.permute.xlu0 %2411
      %v2415 = vunpack.c.l.s4 839922192
      %v2416 = vunpack.c.0.s8 %v2415
      %v2417 = vlaneseq
      %v2418 = vshrl.u32 %v2417, 7
      %v2419 = vsub.s32 %v2416, %v2418
      %v2420 = vrot.slane %v2412, %v2419
      %2422 = vset.pattern.permute.xlu0 0
      %2423 = vperm.xlu0 %2422, %v2218
      %v2424 = vpop.permute.xlu0 %2423
      %v2427 = vunpack.c.l.s4 839922192
      %v2428 = vunpack.c.0.s8 %v2427
      %v2429 = vlaneseq
      %v2430 = vshrl.u32 %v2429, 7
      %v2431 = vsub.s32 %v2428, %v2430
      %v2432 = vrot.slane %v2424, %v2431
      %2434 = vset.pattern.permute.xlu0 0
      %2435 = vperm.xlu0 %2434, %v2219
      %v2436 = vpop.permute.xlu0 %2435
      %v2439 = vunpack.c.l.s4 839922192
      %v2440 = vunpack.c.0.s8 %v2439
      %v2441 = vlaneseq
      %v2442 = vshrl.u32 %v2441, 7
      %v2443 = vsub.s32 %v2440, %v2442
      %v2444 = vrot.slane %v2436, %v2443
      %2446 = vset.pattern.permute.xlu0 0
      %2447 = vperm.xlu0 %2446, %v2220
      %v2448 = vpop.permute.xlu0 %2447
      %v2451 = vunpack.c.l.s4 839922192
      %v2452 = vunpack.c.0.s8 %v2451
      %v2453 = vlaneseq
      %v2454 = vshrl.u32 %v2453, 7
      %v2455 = vsub.s32 %v2452, %v2454
      %v2456 = vrot.slane %v2448, %v2455
      %2458 = vset.pattern.permute.xlu0 0
      %2459 = vperm.xlu0 %2458, %v2221
      %v2460 = vpop.permute.xlu0 %2459
      %v2463 = vunpack.c.l.s4 839922192
      %v2464 = vunpack.c.0.s8 %v2463
      %v2465 = vlaneseq
      %v2466 = vshrl.u32 %v2465, 7
      %v2467 = vsub.s32 %v2464, %v2466
      %v2468 = vrot.slane %v2460, %v2467
      %2470 = vset.pattern.permute.xlu0 0
      %2471 = vperm.xlu0 %2470, %v2222
      %v2472 = vpop.permute.xlu0 %2471
      %v2475 = vunpack.c.l.s4 839922192
      %v2476 = vunpack.c.0.s8 %v2475
      %v2477 = vlaneseq
      %v2478 = vshrl.u32 %v2477, 7
      %v2479 = vsub.s32 %v2476, %v2478
      %v2480 = vrot.slane %v2472, %v2479
      %2482 = vset.pattern.permute.xlu0 0
      %2483 = vperm.xlu0 %2482, %v2223
      %v2484 = vpop.permute.xlu0 %2483
      %v2487 = vunpack.c.l.s4 839922192
      %v2488 = vunpack.c.0.s8 %v2487
      %v2489 = vlaneseq
      %v2490 = vshrl.u32 %v2489, 7
      %v2491 = vsub.s32 %v2488, %v2490
      %v2492 = vrot.slane %v2484, %v2491
      %2494 = vset.pattern.permute.xlu0 0
      %2495 = vperm.xlu0 %2494, %v2224
      %v2496 = vpop.permute.xlu0 %2495
      %v2499 = vunpack.c.l.s4 839922192
      %v2500 = vunpack.c.0.s8 %v2499
      %v2501 = vlaneseq
      %v2502 = vshrl.u32 %v2501, 7
      %v2503 = vsub.s32 %v2500, %v2502
      %v2504 = vrot.slane %v2496, %v2503
      %2506 = vset.pattern.permute.xlu0 0
      %2507 = vperm.xlu0 %2506, %v2225
      %v2508 = vpop.permute.xlu0 %2507
      %v2511 = vunpack.c.l.s4 839922192
      %v2512 = vunpack.c.0.s8 %v2511
      %v2513 = vlaneseq
      %v2514 = vshrl.u32 %v2513, 7
      %v2515 = vsub.s32 %v2512, %v2514
      %v2516 = vrot.slane %v2508, %v2515
      %2518 = vset.pattern.permute.xlu0 0
      %2519 = vperm.xlu0 %2518, %v2226
      %v2520 = vpop.permute.xlu0 %2519
      %v2523 = vunpack.c.l.s4 839922192
      %v2524 = vunpack.c.0.s8 %v2523
      %v2525 = vlaneseq
      %v2526 = vshrl.u32 %v2525, 7
      %v2527 = vsub.s32 %v2524, %v2526
      %v2528 = vrot.slane %v2520, %v2527
      %2530 = vset.pattern.permute.xlu0 0
      %2531 = vperm.xlu0 %2530, %v2227
      %v2532 = vpop.permute.xlu0 %2531
      %v2535 = vunpack.c.l.s4 839922192
      %v2536 = vunpack.c.0.s8 %v2535
      %v2537 = vlaneseq
      %v2538 = vshrl.u32 %v2537, 7
      %v2539 = vsub.s32 %v2536, %v2538
      %v2540 = vrot.slane %v2532, %v2539
      %2542 = vset.pattern.permute.xlu0 0
      %2543 = vperm.xlu0 %2542, %v2228
      %v2544 = vpop.permute.xlu0 %2543
      %v2547 = vunpack.c.l.s4 839922192
      %v2548 = vunpack.c.0.s8 %v2547
      %v2549 = vlaneseq
      %v2550 = vshrl.u32 %v2549, 7
      %v2551 = vsub.s32 %v2548, %v2550
      %v2552 = vrot.slane %v2544, %v2551
      %2554 = vset.pattern.permute.xlu0 0
      %2555 = vperm.xlu0 %2554, %v2229
      %v2556 = vpop.permute.xlu0 %2555
      %v2559 = vunpack.c.l.s4 839922192
      %v2560 = vunpack.c.0.s8 %v2559
      %v2561 = vlaneseq
      %v2562 = vshrl.u32 %v2561, 7
      %v2563 = vsub.s32 %v2560, %v2562
      %v2564 = vrot.slane %v2556, %v2563
      %2566 = vset.pattern.permute.xlu0 0
      %2567 = vperm.xlu0 %2566, %v2230
      %v2568 = vpop.permute.xlu0 %2567
      %v2571 = vunpack.c.l.s4 839922192
      %v2572 = vunpack.c.0.s8 %v2571
      %v2573 = vlaneseq
      %v2574 = vshrl.u32 %v2573, 7
      %v2575 = vsub.s32 %v2572, %v2574
      %v2576 = vrot.slane %v2568, %v2575
      %2578 = vset.pattern.permute.xlu0 0
      %2579 = vperm.xlu0 %2578, %v2231
      %v2580 = vpop.permute.xlu0 %2579
      %v2583 = vunpack.c.l.s4 839922192
      %v2584 = vunpack.c.0.s8 %v2583
      %v2585 = vlaneseq
      %v2586 = vshrl.u32 %v2585, 7
      %v2587 = vsub.s32 %v2584, %v2586
      %v2588 = vrot.slane %v2580, %v2587
      %2590 = vset.pattern.permute.xlu0 0
      %2591 = vperm.xlu0 %2590, %v2232
      %v2592 = vpop.permute.xlu0 %2591
      %v2595 = vunpack.c.l.s4 839922192
      %v2596 = vunpack.c.0.s8 %v2595
      %v2597 = vlaneseq
      %v2598 = vshrl.u32 %v2597, 7
      %v2599 = vsub.s32 %v2596, %v2598
      %v2600 = vrot.slane %v2592, %v2599
      %2602 = vset.pattern.permute.xlu0 0
      %2603 = vperm.xlu0 %2602, %v2233
      %v2604 = vpop.permute.xlu0 %2603
      %v2607 = vunpack.c.l.s4 839922192
      %v2608 = vunpack.c.0.s8 %v2607
      %v2609 = vlaneseq
      %v2610 = vshrl.u32 %v2609, 7
      %v2611 = vsub.s32 %v2608, %v2610
      %v2612 = vrot.slane %v2604, %v2611
      %2614 = vset.pattern.permute.xlu0 0
      %2615 = vperm.xlu0 %2614, %v2234
      %v2616 = vpop.permute.xlu0 %2615
      %v2619 = vunpack.c.l.s4 839922192
      %v2620 = vunpack.c.0.s8 %v2619
      %v2621 = vlaneseq
      %v2622 = vshrl.u32 %v2621, 7
      %v2623 = vsub.s32 %v2620, %v2622
      %v2624 = vrot.slane %v2616, %v2623
      %2626 = vset.pattern.permute.xlu0 0
      %2627 = vperm.xlu0 %2626, %v2235
      %v2628 = vpop.permute.xlu0 %2627
      %v2631 = vunpack.c.l.s4 839922192
      %v2632 = vunpack.c.0.s8 %v2631
      %v2633 = vlaneseq
      %v2634 = vshrl.u32 %v2633, 7
      %v2635 = vsub.s32 %v2632, %v2634
      %v2636 = vrot.slane %v2628, %v2635
      %2638 = vset.pattern.permute.xlu0 0
      %2639 = vperm.xlu0 %2638, %v2236
      %v2640 = vpop.permute.xlu0 %2639
      %v2643 = vunpack.c.l.s4 839922192
      %v2644 = vunpack.c.0.s8 %v2643
      %v2645 = vlaneseq
      %v2646 = vshrl.u32 %v2645, 7
      %v2647 = vsub.s32 %v2644, %v2646
      %v2648 = vrot.slane %v2640, %v2647
      %2650 = vset.pattern.permute.xlu0 0
      %2651 = vperm.xlu0 %2650, %v2237
      %v2652 = vpop.permute.xlu0 %2651
      %v2655 = vunpack.c.l.s4 839922192
      %v2656 = vunpack.c.0.s8 %v2655
      %v2657 = vlaneseq
      %v2658 = vshrl.u32 %v2657, 7
      %v2659 = vsub.s32 %v2656, %v2658
      %v2660 = vrot.slane %v2652, %v2659
      %2662 = vset.pattern.permute.xlu0 0
      %2663 = vperm.xlu0 %2662, %v2238
      %v2664 = vpop.permute.xlu0 %2663
      %v2667 = vunpack.c.l.s4 839922192
      %v2668 = vunpack.c.0.s8 %v2667
      %v2669 = vlaneseq
      %v2670 = vshrl.u32 %v2669, 7
      %v2671 = vsub.s32 %v2668, %v2670
      %v2672 = vrot.slane %v2664, %v2671
      %2674 = vset.pattern.permute.xlu0 0
      %2675 = vperm.xlu0 %2674, %v2239
      %v2676 = vpop.permute.xlu0 %2675
      %v2679 = vunpack.c.l.s4 839922192
      %v2680 = vunpack.c.0.s8 %v2679
      %v2681 = vlaneseq
      %v2682 = vshrl.u32 %v2681, 7
      %v2683 = vsub.s32 %v2680, %v2682
      %v2684 = vrot.slane %v2676, %v2683
      %2686 = vset.pattern.permute.xlu0 0
      %2687 = vperm.xlu0 %2686, %v2240
      %v2688 = vpop.permute.xlu0 %2687
      %v2691 = vunpack.c.l.s4 839922192
      %v2692 = vunpack.c.0.s8 %v2691
      %v2693 = vlaneseq
      %v2694 = vshrl.u32 %v2693, 7
      %v2695 = vsub.s32 %v2692, %v2694
      %v2696 = vrot.slane %v2688, %v2695
      %2698 = vset.pattern.permute.xlu0 0
      %2699 = vperm.xlu0 %2698, %v2241
      %v2700 = vpop.permute.xlu0 %2699
      %v2703 = vunpack.c.l.s4 839922192
      %v2704 = vunpack.c.0.s8 %v2703
      %v2705 = vlaneseq
      %v2706 = vshrl.u32 %v2705, 7
      %v2707 = vsub.s32 %v2704, %v2706
      %v2708 = vrot.slane %v2700, %v2707
      %2710 = vset.pattern.permute.xlu0 0
      %2711 = vperm.xlu0 %2710, %v2242
      %v2712 = vpop.permute.xlu0 %2711
      %v2715 = vunpack.c.l.s4 839922192
      %v2716 = vunpack.c.0.s8 %v2715
      %v2717 = vlaneseq
      %v2718 = vshrl.u32 %v2717, 7
      %v2719 = vsub.s32 %v2716, %v2718
      %v2720 = vrot.slane %v2712, %v2719
      %2722 = vset.pattern.permute.xlu0 0
      %2723 = vperm.xlu0 %2722, %v2243
      %v2724 = vpop.permute.xlu0 %2723
      %v2727 = vunpack.c.l.s4 839922192
      %v2728 = vunpack.c.0.s8 %v2727
      %v2729 = vlaneseq
      %v2730 = vshrl.u32 %v2729, 7
      %v2731 = vsub.s32 %v2728, %v2730
      %v2732 = vrot.slane %v2724, %v2731
      %2734 = vset.pattern.permute.xlu0 0
      %2735 = vperm.xlu0 %2734, %v2244
      %v2736 = vpop.permute.xlu0 %2735
      %v2739 = vunpack.c.l.s4 839922192
      %v2740 = vunpack.c.0.s8 %v2739
      %v2741 = vlaneseq
      %v2742 = vshrl.u32 %v2741, 7
      %v2743 = vsub.s32 %v2740, %v2742
      %v2744 = vrot.slane %v2736, %v2743
      %2746 = vset.pattern.permute.xlu0 0
      %2747 = vperm.xlu0 %2746, %v2245
      %v2748 = vpop.permute.xlu0 %2747
      %v2751 = vunpack.c.l.s4 839922192
      %v2752 = vunpack.c.0.s8 %v2751
      %v2753 = vlaneseq
      %v2754 = vshrl.u32 %v2753, 7
      %v2755 = vsub.s32 %v2752, %v2754
      %v2756 = vrot.slane %v2748, %v2755
      %2758 = vset.pattern.permute.xlu0 0
      %2759 = vperm.xlu0 %2758, %v2246
      %v2760 = vpop.permute.xlu0 %2759
      %v2763 = vunpack.c.l.s4 839922192
      %v2764 = vunpack.c.0.s8 %v2763
      %v2765 = vlaneseq
      %v2766 = vshrl.u32 %v2765, 7
      %v2767 = vsub.s32 %v2764, %v2766
      %v2768 = vrot.slane %v2760, %v2767
      %2770 = vset.pattern.permute.xlu0 0
      %2771 = vperm.xlu0 %2770, %v2247
      %v2772 = vpop.permute.xlu0 %2771
      %v2775 = vunpack.c.l.s4 839922192
      %v2776 = vunpack.c.0.s8 %v2775
      %v2777 = vlaneseq
      %v2778 = vshrl.u32 %v2777, 7
      %v2779 = vsub.s32 %v2776, %v2778
      %v2780 = vrot.slane %v2772, %v2779
      %2782 = vset.pattern.permute.xlu0 0
      %2783 = vperm.xlu0 %2782, %v2248
      %v2784 = vpop.permute.xlu0 %2783
      %v2787 = vunpack.c.l.s4 839922192
      %v2788 = vunpack.c.0.s8 %v2787
      %v2789 = vlaneseq
      %v2790 = vshrl.u32 %v2789, 7
      %v2791 = vsub.s32 %v2788, %v2790
      %v2792 = vrot.slane %v2784, %v2791
      %2794 = vset.pattern.permute.xlu0 0
      %2795 = vperm.xlu0 %2794, %v2249
      %v2796 = vpop.permute.xlu0 %2795
      %v2799 = vunpack.c.l.s4 839922192
      %v2800 = vunpack.c.0.s8 %v2799
      %v2801 = vlaneseq
      %v2802 = vshrl.u32 %v2801, 7
      %v2803 = vsub.s32 %v2800, %v2802
      %v2804 = vrot.slane %v2796, %v2803
      %2806 = vset.pattern.permute.xlu0 0
      %2807 = vperm.xlu0 %2806, %v2250
      %v2808 = vpop.permute.xlu0 %2807
      %v2811 = vunpack.c.l.s4 839922192
      %v2812 = vunpack.c.0.s8 %v2811
      %v2813 = vlaneseq
      %v2814 = vshrl.u32 %v2813, 7
      %v2815 = vsub.s32 %v2812, %v2814
      %v2816 = vrot.slane %v2808, %v2815
      %2818 = vset.pattern.permute.xlu0 0
      %2819 = vperm.xlu0 %2818, %v2251
      %v2820 = vpop.permute.xlu0 %2819
      %v2823 = vunpack.c.l.s4 839922192
      %v2824 = vunpack.c.0.s8 %v2823
      %v2825 = vlaneseq
      %v2826 = vshrl.u32 %v2825, 7
      %v2827 = vsub.s32 %v2824, %v2826
      %v2828 = vrot.slane %v2820, %v2827
      %2830 = vset.pattern.permute.xlu0 0
      %2831 = vperm.xlu0 %2830, %v2252
      %v2832 = vpop.permute.xlu0 %2831
      %v2835 = vunpack.c.l.s4 839922192
      %v2836 = vunpack.c.0.s8 %v2835
      %v2837 = vlaneseq
      %v2838 = vshrl.u32 %v2837, 7
      %v2839 = vsub.s32 %v2836, %v2838
      %v2840 = vrot.slane %v2832, %v2839
      %2842 = vset.pattern.permute.xlu0 0
      %2843 = vperm.xlu0 %2842, %v2253
      %v2844 = vpop.permute.xlu0 %2843
      %v2847 = vunpack.c.l.s4 839922192
      %v2848 = vunpack.c.0.s8 %v2847
      %v2849 = vlaneseq
      %v2850 = vshrl.u32 %v2849, 7
      %v2851 = vsub.s32 %v2848, %v2850
      %v2852 = vrot.slane %v2844, %v2851
      %2854 = vset.pattern.permute.xlu0 0
      %2855 = vperm.xlu0 %2854, %v2254
      %v2856 = vpop.permute.xlu0 %2855
      %v2859 = vunpack.c.l.s4 839922192
      %v2860 = vunpack.c.0.s8 %v2859
      %v2861 = vlaneseq
      %v2862 = vshrl.u32 %v2861, 7
      %v2863 = vsub.s32 %v2860, %v2862
      %v2864 = vrot.slane %v2856, %v2863
      %2866 = vset.pattern.permute.xlu0 0
      %2867 = vperm.xlu0 %2866, %v2255
      %v2868 = vpop.permute.xlu0 %2867
      %v2871 = vunpack.c.l.s4 839922192
      %v2872 = vunpack.c.0.s8 %v2871
      %v2873 = vlaneseq
      %v2874 = vshrl.u32 %v2873, 7
      %v2875 = vsub.s32 %v2872, %v2874
      %v2876 = vrot.slane %v2868, %v2875
      %2878 = vset.pattern.permute.xlu0 0
      %2879 = vperm.xlu0 %2878, %v2256
      %v2880 = vpop.permute.xlu0 %2879
      %v2883 = vunpack.c.l.s4 839922192
      %v2884 = vunpack.c.0.s8 %v2883
      %v2885 = vlaneseq
      %v2886 = vshrl.u32 %v2885, 7
      %v2887 = vsub.s32 %v2884, %v2886
      %v2888 = vrot.slane %v2880, %v2887
      %2890 = vset.pattern.permute.xlu0 0
      %2891 = vperm.xlu0 %2890, %v2257
      %v2892 = vpop.permute.xlu0 %2891
      %v2895 = vunpack.c.l.s4 839922192
      %v2896 = vunpack.c.0.s8 %v2895
      %v2897 = vlaneseq
      %v2898 = vshrl.u32 %v2897, 7
      %v2899 = vsub.s32 %v2896, %v2898
      %v2900 = vrot.slane %v2892, %v2899
      %2902 = vset.pattern.permute.xlu0 0
      %2903 = vperm.xlu0 %2902, %v2258
      %v2904 = vpop.permute.xlu0 %2903
      %v2907 = vunpack.c.l.s4 839922192
      %v2908 = vunpack.c.0.s8 %v2907
      %v2909 = vlaneseq
      %v2910 = vshrl.u32 %v2909, 7
      %v2911 = vsub.s32 %v2908, %v2910
      %v2912 = vrot.slane %v2904, %v2911
      %2914 = vset.pattern.permute.xlu0 0
      %2915 = vperm.xlu0 %2914, %v2259
      %v2916 = vpop.permute.xlu0 %2915
      %v2919 = vunpack.c.l.s4 839922192
      %v2920 = vunpack.c.0.s8 %v2919
      %v2921 = vlaneseq
      %v2922 = vshrl.u32 %v2921, 7
      %v2923 = vsub.s32 %v2920, %v2922
      %v2924 = vrot.slane %v2916, %v2923
      %2926 = vset.pattern.permute.xlu0 0
      %2927 = vperm.xlu0 %2926, %v2260
      %v2928 = vpop.permute.xlu0 %2927
      %v2931 = vunpack.c.l.s4 839922192
      %v2932 = vunpack.c.0.s8 %v2931
      %v2933 = vlaneseq
      %v2934 = vshrl.u32 %v2933, 7
      %v2935 = vsub.s32 %v2932, %v2934
      %v2936 = vrot.slane %v2928, %v2935
      %2938 = vset.pattern.permute.xlu0 0
      %2939 = vperm.xlu0 %2938, %v2261
      %v2940 = vpop.permute.xlu0 %2939
      %v2943 = vunpack.c.l.s4 839922192
      %v2944 = vunpack.c.0.s8 %v2943
      %v2945 = vlaneseq
      %v2946 = vshrl.u32 %v2945, 7
      %v2947 = vsub.s32 %v2944, %v2946
      %v2948 = vrot.slane %v2940, %v2947
      %2950 = vset.pattern.permute.xlu0 0
      %2951 = vperm.xlu0 %2950, %v2262
      %v2952 = vpop.permute.xlu0 %2951
      %v2955 = vunpack.c.l.s4 839922192
      %v2956 = vunpack.c.0.s8 %v2955
      %v2957 = vlaneseq
      %v2958 = vshrl.u32 %v2957, 7
      %v2959 = vsub.s32 %v2956, %v2958
      %v2960 = vrot.slane %v2952, %v2959
      %2962 = vset.pattern.permute.xlu0 0
      %2963 = vperm.xlu0 %2962, %v2263
      %v2964 = vpop.permute.xlu0 %2963
      %v2967 = vunpack.c.l.s4 839922192
      %v2968 = vunpack.c.0.s8 %v2967
      %v2969 = vlaneseq
      %v2970 = vshrl.u32 %v2969, 7
      %v2971 = vsub.s32 %v2968, %v2970
      %v2972 = vrot.slane %v2964, %v2971
      %2974 = vset.pattern.permute.xlu0 0
      %2975 = vperm.xlu0 %2974, %v2264
      %v2976 = vpop.permute.xlu0 %2975
      %v2979 = vunpack.c.l.s4 839922192
      %v2980 = vunpack.c.0.s8 %v2979
      %v2981 = vlaneseq
      %v2982 = vshrl.u32 %v2981, 7
      %v2983 = vsub.s32 %v2980, %v2982
      %v2984 = vrot.slane %v2976, %v2983
      %2986 = vset.pattern.permute.xlu0 0
      %2987 = vperm.xlu0 %2986, %v2265
      %v2988 = vpop.permute.xlu0 %2987
      %v2991 = vunpack.c.l.s4 839922192
      %v2992 = vunpack.c.0.s8 %v2991
      %v2993 = vlaneseq
      %v2994 = vshrl.u32 %v2993, 7
      %v2995 = vsub.s32 %v2992, %v2994
      %v2996 = vrot.slane %v2988, %v2995
      %2998 = vset.pattern.permute.xlu0 0
      %2999 = vperm.xlu0 %2998, %v2266
      %v3000 = vpop.permute.xlu0 %2999
      %v3003 = vunpack.c.l.s4 839922192
      %v3004 = vunpack.c.0.s8 %v3003
      %v3005 = vlaneseq
      %v3006 = vshrl.u32 %v3005, 7
      %v3007 = vsub.s32 %v3004, %v3006
      %v3008 = vrot.slane %v3000, %v3007
      %3010 = vset.pattern.permute.xlu0 0
      %3011 = vperm.xlu0 %3010, %v2267
      %v3012 = vpop.permute.xlu0 %3011
      %v3015 = vunpack.c.l.s4 839922192
      %v3016 = vunpack.c.0.s8 %v3015
      %v3017 = vlaneseq
      %v3018 = vshrl.u32 %v3017, 7
      %v3019 = vsub.s32 %v3016, %v3018
      %v3020 = vrot.slane %v3012, %v3019
      %3022 = vset.pattern.permute.xlu0 0
      %3023 = vperm.xlu0 %3022, %v2268
      %v3024 = vpop.permute.xlu0 %3023
      %v3027 = vunpack.c.l.s4 839922192
      %v3028 = vunpack.c.0.s8 %v3027
      %v3029 = vlaneseq
      %v3030 = vshrl.u32 %v3029, 7
      %v3031 = vsub.s32 %v3028, %v3030
      %v3032 = vrot.slane %v3024, %v3031
      %3034 = vset.pattern.permute.xlu0 0
      %3035 = vperm.xlu0 %3034, %v2269
      %v3036 = vpop.permute.xlu0 %3035
      %v3039 = vunpack.c.l.s4 839922192
      %v3040 = vunpack.c.0.s8 %v3039
      %v3041 = vlaneseq
      %v3042 = vshrl.u32 %v3041, 7
      %v3043 = vsub.s32 %v3040, %v3042
      %v3044 = vrot.slane %v3036, %v3043
      %3046 = vset.pattern.permute.xlu0 0
      %3047 = vperm.xlu0 %3046, %v2270
      %v3048 = vpop.permute.xlu0 %3047
      %v3051 = vunpack.c.l.s4 839922192
      %v3052 = vunpack.c.0.s8 %v3051
      %v3053 = vlaneseq
      %v3054 = vshrl.u32 %v3053, 7
      %v3055 = vsub.s32 %v3052, %v3054
      %v3056 = vrot.slane %v3048, %v3055
      %3058 = vset.pattern.permute.xlu0 0
      %3059 = vperm.xlu0 %3058, %v2271
      %v3060 = vpop.permute.xlu0 %3059
      %v3063 = vunpack.c.l.s4 839922192
      %v3064 = vunpack.c.0.s8 %v3063
      %v3065 = vlaneseq
      %v3066 = vshrl.u32 %v3065, 7
      %v3067 = vsub.s32 %v3064, %v3066
      %v3068 = vrot.slane %v3060, %v3067
      %3070 = vset.pattern.permute.xlu0 0
      %3071 = vperm.xlu0 %3070, %v2272
      %v3072 = vpop.permute.xlu0 %3071
      %v3075 = vunpack.c.l.s4 839922192
      %v3076 = vunpack.c.0.s8 %v3075
      %v3077 = vlaneseq
      %v3078 = vshrl.u32 %v3077, 7
      %v3079 = vsub.s32 %v3076, %v3078
      %v3080 = vrot.slane %v3072, %v3079
      %3082 = vset.pattern.permute.xlu0 0
      %3083 = vperm.xlu0 %3082, %v2273
      %v3084 = vpop.permute.xlu0 %3083
      %v3087 = vunpack.c.l.s4 839922192
      %v3088 = vunpack.c.0.s8 %v3087
      %v3089 = vlaneseq
      %v3090 = vshrl.u32 %v3089, 7
      %v3091 = vsub.s32 %v3088, %v3090
      %v3092 = vrot.slane %v3084, %v3091
      %3094 = vset.pattern.permute.xlu0 0
      %3095 = vperm.xlu0 %3094, %v2274
      %v3096 = vpop.permute.xlu0 %3095
      %v3099 = vunpack.c.l.s4 839922192
      %v3100 = vunpack.c.0.s8 %v3099
      %v3101 = vlaneseq
      %v3102 = vshrl.u32 %v3101, 7
      %v3103 = vsub.s32 %v3100, %v3102
      %v3104 = vrot.slane %v3096, %v3103
      %3106 = vset.pattern.permute.xlu0 0
      %3107 = vperm.xlu0 %3106, %v2275
      %v3108 = vpop.permute.xlu0 %3107
      %v3111 = vunpack.c.l.s4 839922192
      %v3112 = vunpack.c.0.s8 %v3111
      %v3113 = vlaneseq
      %v3114 = vshrl.u32 %v3113, 7
      %v3115 = vsub.s32 %v3112, %v3114
      %v3116 = vrot.slane %v3108, %v3115
      %3118 = vset.pattern.permute.xlu0 0
      %3119 = vperm.xlu0 %3118, %v2276
      %v3120 = vpop.permute.xlu0 %3119
      %v3123 = vunpack.c.l.s4 839922192
      %v3124 = vunpack.c.0.s8 %v3123
      %v3125 = vlaneseq
      %v3126 = vshrl.u32 %v3125, 7
      %v3127 = vsub.s32 %v3124, %v3126
      %v3128 = vrot.slane %v3120, %v3127
      %3130 = vset.pattern.permute.xlu0 0
      %3131 = vperm.xlu0 %3130, %v2277
      %v3132 = vpop.permute.xlu0 %3131
      %v3135 = vunpack.c.l.s4 839922192
      %v3136 = vunpack.c.0.s8 %v3135
      %v3137 = vlaneseq
      %v3138 = vshrl.u32 %v3137, 7
      %v3139 = vsub.s32 %v3136, %v3138
      %v3140 = vrot.slane %v3132, %v3139
      %3142 = vset.pattern.permute.xlu0 0
      %3143 = vperm.xlu0 %3142, %v2278
      %v3144 = vpop.permute.xlu0 %3143
      %v3147 = vunpack.c.l.s4 839922192
      %v3148 = vunpack.c.0.s8 %v3147
      %v3149 = vlaneseq
      %v3150 = vshrl.u32 %v3149, 7
      %v3151 = vsub.s32 %v3148, %v3150
      %v3152 = vrot.slane %v3144, %v3151
      %3154 = vset.pattern.permute.xlu0 0
      %3155 = vperm.xlu0 %3154, %v2279
      %v3156 = vpop.permute.xlu0 %3155
      %v3159 = vunpack.c.l.s4 839922192
      %v3160 = vunpack.c.0.s8 %v3159
      %v3161 = vlaneseq
      %v3162 = vshrl.u32 %v3161, 7
      %v3163 = vsub.s32 %v3160, %v3162
      %v3164 = vrot.slane %v3156, %v3163
      %3166 = vset.pattern.permute.xlu0 0
      %3167 = vperm.xlu0 %3166, %v2280
      %v3168 = vpop.permute.xlu0 %3167
      %v3171 = vunpack.c.l.s4 839922192
      %v3172 = vunpack.c.0.s8 %v3171
      %v3173 = vlaneseq
      %v3174 = vshrl.u32 %v3173, 7
      %v3175 = vsub.s32 %v3172, %v3174
      %v3176 = vrot.slane %v3168, %v3175
      %3178 = vset.pattern.permute.xlu0 0
      %3179 = vperm.xlu0 %3178, %v2281
      %v3180 = vpop.permute.xlu0 %3179
      %v3183 = vunpack.c.l.s4 839922192
      %v3184 = vunpack.c.0.s8 %v3183
      %v3185 = vlaneseq
      %v3186 = vshrl.u32 %v3185, 7
      %v3187 = vsub.s32 %v3184, %v3186
      %v3188 = vrot.slane %v3180, %v3187
      %3190 = vset.pattern.permute.xlu0 0
      %3191 = vperm.xlu0 %3190, %v2282
      %v3192 = vpop.permute.xlu0 %3191
      %v3195 = vunpack.c.l.s4 839922192
      %v3196 = vunpack.c.0.s8 %v3195
      %v3197 = vlaneseq
      %v3198 = vshrl.u32 %v3197, 7
      %v3199 = vsub.s32 %v3196, %v3198
      %v3200 = vrot.slane %v3192, %v3199
      %3202 = vset.pattern.permute.xlu0 0
      %3203 = vperm.xlu0 %3202, %v2283
      %v3204 = vpop.permute.xlu0 %3203
      %v3207 = vunpack.c.l.s4 839922192
      %v3208 = vunpack.c.0.s8 %v3207
      %v3209 = vlaneseq
      %v3210 = vshrl.u32 %v3209, 7
      %v3211 = vsub.s32 %v3208, %v3210
      %v3212 = vrot.slane %v3204, %v3211
      %3214 = vset.pattern.permute.xlu0 0
      %3215 = vperm.xlu0 %3214, %v2284
      %v3216 = vpop.permute.xlu0 %3215
      %v3219 = vunpack.c.l.s4 839922192
      %v3220 = vunpack.c.0.s8 %v3219
      %v3221 = vlaneseq
      %v3222 = vshrl.u32 %v3221, 7
      %v3223 = vsub.s32 %v3220, %v3222
      %v3224 = vrot.slane %v3216, %v3223
      %3226 = vset.pattern.permute.xlu0 0
      %3227 = vperm.xlu0 %3226, %v2285
      %v3228 = vpop.permute.xlu0 %3227
      %v3231 = vunpack.c.l.s4 839922192
      %v3232 = vunpack.c.0.s8 %v3231
      %v3233 = vlaneseq
      %v3234 = vshrl.u32 %v3233, 7
      %v3235 = vsub.s32 %v3232, %v3234
      %v3236 = vrot.slane %v3228, %v3235
      %3238 = vset.pattern.permute.xlu0 0
      %3239 = vperm.xlu0 %3238, %v2286
      %v3240 = vpop.permute.xlu0 %3239
      %v3243 = vunpack.c.l.s4 839922192
      %v3244 = vunpack.c.0.s8 %v3243
      %v3245 = vlaneseq
      %v3246 = vshrl.u32 %v3245, 7
      %v3247 = vsub.s32 %v3244, %v3246
      %v3248 = vrot.slane %v3240, %v3247
      %3250 = vset.pattern.permute.xlu0 0
      %3251 = vperm.xlu0 %3250, %v2287
      %v3252 = vpop.permute.xlu0 %3251
      %v3255 = vunpack.c.l.s4 839922192
      %v3256 = vunpack.c.0.s8 %v3255
      %v3257 = vlaneseq
      %v3258 = vshrl.u32 %v3257, 7
      %v3259 = vsub.s32 %v3256, %v3258
      %v3260 = vrot.slane %v3252, %v3259
      %3262 = vset.pattern.permute.xlu0 0
      %3263 = vperm.xlu0 %3262, %v2288
      %v3264 = vpop.permute.xlu0 %3263
      %v3267 = vunpack.c.l.s4 839922192
      %v3268 = vunpack.c.0.s8 %v3267
      %v3269 = vlaneseq
      %v3270 = vshrl.u32 %v3269, 7
      %v3271 = vsub.s32 %v3268, %v3270
      %v3272 = vrot.slane %v3264, %v3271
      %3274 = vset.pattern.permute.xlu0 0
      %3275 = vperm.xlu0 %3274, %v2289
      %v3276 = vpop.permute.xlu0 %3275
      %v3279 = vunpack.c.l.s4 839922192
      %v3280 = vunpack.c.0.s8 %v3279
      %v3281 = vlaneseq
      %v3282 = vshrl.u32 %v3281, 7
      %v3283 = vsub.s32 %v3280, %v3282
      %v3284 = vrot.slane %v3276, %v3283
      %3286 = vset.pattern.permute.xlu0 0
      %3287 = vperm.xlu0 %3286, %v2290
      %v3288 = vpop.permute.xlu0 %3287
      %v3291 = vunpack.c.l.s4 839922192
      %v3292 = vunpack.c.0.s8 %v3291
      %v3293 = vlaneseq
      %v3294 = vshrl.u32 %v3293, 7
      %v3295 = vsub.s32 %v3292, %v3294
      %v3296 = vrot.slane %v3288, %v3295
      %3298 = vset.pattern.permute.xlu0 0
      %3299 = vperm.xlu0 %3298, %v2291
      %v3300 = vpop.permute.xlu0 %3299
      %v3303 = vunpack.c.l.s4 839922192
      %v3304 = vunpack.c.0.s8 %v3303
      %v3305 = vlaneseq
      %v3306 = vshrl.u32 %v3305, 7
      %v3307 = vsub.s32 %v3304, %v3306
      %v3308 = vrot.slane %v3300, %v3307
      %3310 = vset.pattern.permute.xlu0 0
      %3311 = vperm.xlu0 %3310, %v2292
      %v3312 = vpop.permute.xlu0 %3311
      %v3315 = vunpack.c.l.s4 839922192
      %v3316 = vunpack.c.0.s8 %v3315
      %v3317 = vlaneseq
      %v3318 = vshrl.u32 %v3317, 7
      %v3319 = vsub.s32 %v3316, %v3318
      %v3320 = vrot.slane %v3312, %v3319
      %3322 = vset.pattern.permute.xlu0 0
      %3323 = vperm.xlu0 %3322, %v2293
      %v3324 = vpop.permute.xlu0 %3323
      %v3327 = vunpack.c.l.s4 839922192
      %v3328 = vunpack.c.0.s8 %v3327
      %v3329 = vlaneseq
      %v3330 = vshrl.u32 %v3329, 7
      %v3331 = vsub.s32 %v3328, %v3330
      %v3332 = vrot.slane %v3324, %v3331
      %3334 = vset.pattern.permute.xlu0 0
      %3335 = vperm.xlu0 %3334, %v2294
      %v3336 = vpop.permute.xlu0 %3335
      %v3339 = vunpack.c.l.s4 839922192
      %v3340 = vunpack.c.0.s8 %v3339
      %v3341 = vlaneseq
      %v3342 = vshrl.u32 %v3341, 7
      %v3343 = vsub.s32 %v3340, %v3342
      %v3344 = vrot.slane %v3336, %v3343
      %3346 = vset.pattern.permute.xlu0 0
      %3347 = vperm.xlu0 %3346, %v2295
      %v3348 = vpop.permute.xlu0 %3347
      %v3351 = vunpack.c.l.s4 839922192
      %v3352 = vunpack.c.0.s8 %v3351
      %v3353 = vlaneseq
      %v3354 = vshrl.u32 %v3353, 7
      %v3355 = vsub.s32 %v3352, %v3354
      %v3356 = vrot.slane %v3348, %v3355
      %3358 = vset.pattern.permute.xlu0 0
      %3359 = vperm.xlu0 %3358, %v2296
      %v3360 = vpop.permute.xlu0 %3359
      %v3363 = vunpack.c.l.s4 839922192
      %v3364 = vunpack.c.0.s8 %v3363
      %v3365 = vlaneseq
      %v3366 = vshrl.u32 %v3365, 7
      %v3367 = vsub.s32 %v3364, %v3366
      %v3368 = vrot.slane %v3360, %v3367
      %3370 = vset.pattern.permute.xlu0 0
      %3371 = vperm.xlu0 %3370, %v2297
      %v3372 = vpop.permute.xlu0 %3371
      %v3375 = vunpack.c.l.s4 839922192
      %v3376 = vunpack.c.0.s8 %v3375
      %v3377 = vlaneseq
      %v3378 = vshrl.u32 %v3377, 7
      %v3379 = vsub.s32 %v3376, %v3378
      %v3380 = vrot.slane %v3372, %v3379
      %3382 = vset.pattern.permute.xlu0 0
      %3383 = vperm.xlu0 %3382, %v2298
      %v3384 = vpop.permute.xlu0 %3383
      %v3387 = vunpack.c.l.s4 839922192
      %v3388 = vunpack.c.0.s8 %v3387
      %v3389 = vlaneseq
      %v3390 = vshrl.u32 %v3389, 7
      %v3391 = vsub.s32 %v3388, %v3390
      %v3392 = vrot.slane %v3384, %v3391
      %3394 = vset.pattern.permute.xlu0 0
      %3395 = vperm.xlu0 %3394, %v2299
      %v3396 = vpop.permute.xlu0 %3395
      %v3399 = vunpack.c.l.s4 839922192
      %v3400 = vunpack.c.0.s8 %v3399
      %v3401 = vlaneseq
      %v3402 = vshrl.u32 %v3401, 7
      %v3403 = vsub.s32 %v3400, %v3402
      %v3404 = vrot.slane %v3396, %v3403
      %3406 = vset.pattern.permute.xlu0 0
      %3407 = vperm.xlu0 %3406, %v2300
      %v3408 = vpop.permute.xlu0 %3407
      %v3411 = vunpack.c.l.s4 839922192
      %v3412 = vunpack.c.0.s8 %v3411
      %v3413 = vlaneseq
      %v3414 = vshrl.u32 %v3413, 7
      %v3415 = vsub.s32 %v3412, %v3414
      %v3416 = vrot.slane %v3408, %v3415
      %3418 = vset.pattern.permute.xlu0 0
      %3419 = vperm.xlu0 %3418, %v2301
      %v3420 = vpop.permute.xlu0 %3419
      %v3423 = vunpack.c.l.s4 839922192
      %v3424 = vunpack.c.0.s8 %v3423
      %v3425 = vlaneseq
      %v3426 = vshrl.u32 %v3425, 7
      %v3427 = vsub.s32 %v3424, %v3426
      %v3428 = vrot.slane %v3420, %v3427
      %3430 = vset.pattern.permute.xlu0 0
      %3431 = vperm.xlu0 %3430, %v2302
      %v3432 = vpop.permute.xlu0 %3431
      %v3435 = vunpack.c.l.s4 839922192
      %v3436 = vunpack.c.0.s8 %v3435
      %v3437 = vlaneseq
      %v3438 = vshrl.u32 %v3437, 7
      %v3439 = vsub.s32 %v3436, %v3438
      %v3440 = vrot.slane %v3432, %v3439
      %3442 = vset.pattern.permute.xlu0 0
      %3443 = vperm.xlu0 %3442, %v2303
      %v3444 = vpop.permute.xlu0 %3443
      %v3447 = vunpack.c.l.s4 839922192
      %v3448 = vunpack.c.0.s8 %v3447
      %v3449 = vlaneseq
      %v3450 = vshrl.u32 %v3449, 7
      %v3451 = vsub.s32 %v3448, %v3450
      %v3452 = vrot.slane %v3444, %v3451
      %3454 = vset.pattern.permute.xlu0 0
      %3455 = vperm.xlu0 %3454, %v2304
      %v3456 = vpop.permute.xlu0 %3455
      %v3459 = vunpack.c.l.s4 839922192
      %v3460 = vunpack.c.0.s8 %v3459
      %v3461 = vlaneseq
      %v3462 = vshrl.u32 %v3461, 7
      %v3463 = vsub.s32 %v3460, %v3462
      %v3464 = vrot.slane %v3456, %v3463
      %3466 = vset.pattern.permute.xlu0 0
      %3467 = vperm.xlu0 %3466, %v2305
      %v3468 = vpop.permute.xlu0 %3467
      %v3471 = vunpack.c.l.s4 839922192
      %v3472 = vunpack.c.0.s8 %v3471
      %v3473 = vlaneseq
      %v3474 = vshrl.u32 %v3473, 7
      %v3475 = vsub.s32 %v3472, %v3474
      %v3476 = vrot.slane %v3468, %v3475
      %3478 = vset.pattern.permute.xlu0 0
      %3479 = vperm.xlu0 %3478, %v2306
      %v3480 = vpop.permute.xlu0 %3479
      %v3483 = vunpack.c.l.s4 839922192
      %v3484 = vunpack.c.0.s8 %v3483
      %v3485 = vlaneseq
      %v3486 = vshrl.u32 %v3485, 7
      %v3487 = vsub.s32 %v3484, %v3486
      %v3488 = vrot.slane %v3480, %v3487
      %3490 = vset.pattern.permute.xlu0 0
      %3491 = vperm.xlu0 %3490, %v2307
      %v3492 = vpop.permute.xlu0 %3491
      %v3495 = vunpack.c.l.s4 839922192
      %v3496 = vunpack.c.0.s8 %v3495
      %v3497 = vlaneseq
      %v3498 = vshrl.u32 %v3497, 7
      %v3499 = vsub.s32 %v3496, %v3498
      %v3500 = vrot.slane %v3492, %v3499
      %3502 = vset.pattern.permute.xlu0 0
      %3503 = vperm.xlu0 %3502, %v2308
      %v3504 = vpop.permute.xlu0 %3503
      %v3507 = vunpack.c.l.s4 839922192
      %v3508 = vunpack.c.0.s8 %v3507
      %v3509 = vlaneseq
      %v3510 = vshrl.u32 %v3509, 7
      %v3511 = vsub.s32 %v3508, %v3510
      %v3512 = vrot.slane %v3504, %v3511
      %3514 = vset.pattern.permute.xlu0 0
      %3515 = vperm.xlu0 %3514, %v2309
      %v3516 = vpop.permute.xlu0 %3515
      %v3519 = vunpack.c.l.s4 839922192
      %v3520 = vunpack.c.0.s8 %v3519
      %v3521 = vlaneseq
      %v3522 = vshrl.u32 %v3521, 7
      %v3523 = vsub.s32 %v3520, %v3522
      %v3524 = vrot.slane %v3516, %v3523
      %3526 = vset.pattern.permute.xlu0 0
      %3527 = vperm.xlu0 %3526, %v2310
      %v3528 = vpop.permute.xlu0 %3527
      %v3531 = vunpack.c.l.s4 839922192
      %v3532 = vunpack.c.0.s8 %v3531
      %v3533 = vlaneseq
      %v3534 = vshrl.u32 %v3533, 7
      %v3535 = vsub.s32 %v3532, %v3534
      %v3536 = vrot.slane %v3528, %v3535
      %3538 = vset.pattern.permute.xlu0 0
      %3539 = vperm.xlu0 %3538, %v2311
      %v3540 = vpop.permute.xlu0 %3539
      %v3543 = vunpack.c.l.s4 839922192
      %v3544 = vunpack.c.0.s8 %v3543
      %v3545 = vlaneseq
      %v3546 = vshrl.u32 %v3545, 7
      %v3547 = vsub.s32 %v3544, %v3546
      %v3548 = vrot.slane %v3540, %v3547
      %3550 = vset.pattern.permute.xlu0 0
      %3551 = vperm.xlu0 %3550, %v2312
      %v3552 = vpop.permute.xlu0 %3551
      %v3555 = vunpack.c.l.s4 839922192
      %v3556 = vunpack.c.0.s8 %v3555
      %v3557 = vlaneseq
      %v3558 = vshrl.u32 %v3557, 7
      %v3559 = vsub.s32 %v3556, %v3558
      %v3560 = vrot.slane %v3552, %v3559
      %3562 = vset.pattern.permute.xlu0 0
      %3563 = vperm.xlu0 %3562, %v2313
      %v3564 = vpop.permute.xlu0 %3563
      %v3567 = vunpack.c.l.s4 839922192
      %v3568 = vunpack.c.0.s8 %v3567
      %v3569 = vlaneseq
      %v3570 = vshrl.u32 %v3569, 7
      %v3571 = vsub.s32 %v3568, %v3570
      %v3572 = vrot.slane %v3564, %v3571
      %3574 = vset.pattern.permute.xlu0 0
      %3575 = vperm.xlu0 %3574, %v2314
      %v3576 = vpop.permute.xlu0 %3575
      %v3579 = vunpack.c.l.s4 839922192
      %v3580 = vunpack.c.0.s8 %v3579
      %v3581 = vlaneseq
      %v3582 = vshrl.u32 %v3581, 7
      %v3583 = vsub.s32 %v3580, %v3582
      %v3584 = vrot.slane %v3576, %v3583
      %3586 = vset.pattern.permute.xlu0 0
      %3587 = vperm.xlu0 %3586, %v2315
      %v3588 = vpop.permute.xlu0 %3587
      %v3591 = vunpack.c.l.s4 839922192
      %v3592 = vunpack.c.0.s8 %v3591
      %v3593 = vlaneseq
      %v3594 = vshrl.u32 %v3593, 7
      %v3595 = vsub.s32 %v3592, %v3594
      %v3596 = vrot.slane %v3588, %v3595
      %3598 = vset.pattern.permute.xlu0 0
      %3599 = vperm.xlu0 %3598, %v2316
      %v3600 = vpop.permute.xlu0 %3599
      %v3603 = vunpack.c.l.s4 839922192
      %v3604 = vunpack.c.0.s8 %v3603
      %v3605 = vlaneseq
      %v3606 = vshrl.u32 %v3605, 7
      %v3607 = vsub.s32 %v3604, %v3606
      %v3608 = vrot.slane %v3600, %v3607
      %3610 = vset.pattern.permute.xlu0 0
      %3611 = vperm.xlu0 %3610, %v2317
      %v3612 = vpop.permute.xlu0 %3611
      %v3615 = vunpack.c.l.s4 839922192
      %v3616 = vunpack.c.0.s8 %v3615
      %v3617 = vlaneseq
      %v3618 = vshrl.u32 %v3617, 7
      %v3619 = vsub.s32 %v3616, %v3618
      %v3620 = vrot.slane %v3612, %v3619
      %3622 = vset.pattern.permute.xlu0 0
      %3623 = vperm.xlu0 %3622, %v2318
      %v3624 = vpop.permute.xlu0 %3623
      %v3627 = vunpack.c.l.s4 839922192
      %v3628 = vunpack.c.0.s8 %v3627
      %v3629 = vlaneseq
      %v3630 = vshrl.u32 %v3629, 7
      %v3631 = vsub.s32 %v3628, %v3630
      %v3632 = vrot.slane %v3624, %v3631
      %3634 = vset.pattern.permute.xlu0 0
      %3635 = vperm.xlu0 %3634, %v2319
      %v3636 = vpop.permute.xlu0 %3635
      %v3639 = vunpack.c.l.s4 839922192
      %v3640 = vunpack.c.0.s8 %v3639
      %v3641 = vlaneseq
      %v3642 = vshrl.u32 %v3641, 7
      %v3643 = vsub.s32 %v3640, %v3642
      %v3644 = vrot.slane %v3636, %v3643
      %3646 = vset.pattern.permute.xlu0 0
      %3647 = vperm.xlu0 %3646, %v2320
      %v3648 = vpop.permute.xlu0 %3647
      %v3651 = vunpack.c.l.s4 839922192
      %v3652 = vunpack.c.0.s8 %v3651
      %v3653 = vlaneseq
      %v3654 = vshrl.u32 %v3653, 7
      %v3655 = vsub.s32 %v3652, %v3654
      %v3656 = vrot.slane %v3648, %v3655
      %3658 = vset.pattern.permute.xlu0 0
      %3659 = vperm.xlu0 %3658, %v2321
      %v3660 = vpop.permute.xlu0 %3659
      %v3663 = vunpack.c.l.s4 839922192
      %v3664 = vunpack.c.0.s8 %v3663
      %v3665 = vlaneseq
      %v3666 = vshrl.u32 %v3665, 7
      %v3667 = vsub.s32 %v3664, %v3666
      %v3668 = vrot.slane %v3660, %v3667
      %3670 = vset.pattern.permute.xlu0 0
      %3671 = vperm.xlu0 %3670, %v2322
      %v3672 = vpop.permute.xlu0 %3671
      %v3675 = vunpack.c.l.s4 839922192
      %v3676 = vunpack.c.0.s8 %v3675
      %v3677 = vlaneseq
      %v3678 = vshrl.u32 %v3677, 7
      %v3679 = vsub.s32 %v3676, %v3678
      %v3680 = vrot.slane %v3672, %v3679
      %3682 = vset.pattern.permute.xlu0 0
      %3683 = vperm.xlu0 %3682, %v2323
      %v3684 = vpop.permute.xlu0 %3683
      %v3687 = vunpack.c.l.s4 839922192
      %v3688 = vunpack.c.0.s8 %v3687
      %v3689 = vlaneseq
      %v3690 = vshrl.u32 %v3689, 7
      %v3691 = vsub.s32 %v3688, %v3690
      %v3692 = vrot.slane %v3684, %v3691
      %3694 = vset.pattern.permute.xlu0 0
      %3695 = vperm.xlu0 %3694, %v2324
      %v3696 = vpop.permute.xlu0 %3695
      %v3699 = vunpack.c.l.s4 839922192
      %v3700 = vunpack.c.0.s8 %v3699
      %v3701 = vlaneseq
      %v3702 = vshrl.u32 %v3701, 7
      %v3703 = vsub.s32 %v3700, %v3702
      %v3704 = vrot.slane %v3696, %v3703
      %3706 = vset.pattern.permute.xlu0 0
      %3707 = vperm.xlu0 %3706, %v2325
      %v3708 = vpop.permute.xlu0 %3707
      %v3711 = vunpack.c.l.s4 839922192
      %v3712 = vunpack.c.0.s8 %v3711
      %v3713 = vlaneseq
      %v3714 = vshrl.u32 %v3713, 7
      %v3715 = vsub.s32 %v3712, %v3714
      %v3716 = vrot.slane %v3708, %v3715
      %3718 = vset.pattern.permute.xlu0 0
      %3719 = vperm.xlu0 %3718, %v2326
      %v3720 = vpop.permute.xlu0 %3719
      %v3723 = vunpack.c.l.s4 839922192
      %v3724 = vunpack.c.0.s8 %v3723
      %v3725 = vlaneseq
      %v3726 = vshrl.u32 %v3725, 7
      %v3727 = vsub.s32 %v3724, %v3726
      %v3728 = vrot.slane %v3720, %v3727
      %3730 = vset.pattern.permute.xlu0 0
      %3731 = vperm.xlu0 %3730, %v2327
      %v3732 = vpop.permute.xlu0 %3731
      %v3735 = vunpack.c.l.s4 839922192
      %v3736 = vunpack.c.0.s8 %v3735
      %v3737 = vlaneseq
      %v3738 = vshrl.u32 %v3737, 7
      %v3739 = vsub.s32 %v3736, %v3738
      %v3740 = vrot.slane %v3732, %v3739
      %3742 = vset.pattern.permute.xlu0 0
      %3743 = vperm.xlu0 %3742, %v2328
      %v3744 = vpop.permute.xlu0 %3743
      %v3747 = vunpack.c.l.s4 839922192
      %v3748 = vunpack.c.0.s8 %v3747
      %v3749 = vlaneseq
      %v3750 = vshrl.u32 %v3749, 7
      %v3751 = vsub.s32 %v3748, %v3750
      %v3752 = vrot.slane %v3744, %v3751
      %3754 = vset.pattern.permute.xlu0 0
      %3755 = vperm.xlu0 %3754, %v2329
      %v3756 = vpop.permute.xlu0 %3755
      %v3759 = vunpack.c.l.s4 839922192
      %v3760 = vunpack.c.0.s8 %v3759
      %v3761 = vlaneseq
      %v3762 = vshrl.u32 %v3761, 7
      %v3763 = vsub.s32 %v3760, %v3762
      %v3764 = vrot.slane %v3756, %v3763
      %3766 = vset.pattern.permute.xlu0 0
      %3767 = vperm.xlu0 %3766, %v2330
      %v3768 = vpop.permute.xlu0 %3767
      %v3771 = vunpack.c.l.s4 839922192
      %v3772 = vunpack.c.0.s8 %v3771
      %v3773 = vlaneseq
      %v3774 = vshrl.u32 %v3773, 7
      %v3775 = vsub.s32 %v3772, %v3774
      %v3776 = vrot.slane %v3768, %v3775
      %3778 = vset.pattern.permute.xlu0 0
      %3779 = vperm.xlu0 %3778, %v2331
      %v3780 = vpop.permute.xlu0 %3779
      %v3783 = vunpack.c.l.s4 839922192
      %v3784 = vunpack.c.0.s8 %v3783
      %v3785 = vlaneseq
      %v3786 = vshrl.u32 %v3785, 7
      %v3787 = vsub.s32 %v3784, %v3786
      %v3788 = vrot.slane %v3780, %v3787
      %3790 = vset.pattern.permute.xlu0 0
      %3791 = vperm.xlu0 %3790, %v2332
      %v3792 = vpop.permute.xlu0 %3791
      %v3795 = vunpack.c.l.s4 839922192
      %v3796 = vunpack.c.0.s8 %v3795
      %v3797 = vlaneseq
      %v3798 = vshrl.u32 %v3797, 7
      %v3799 = vsub.s32 %v3796, %v3798
      %v3800 = vrot.slane %v3792, %v3799
      %3802 = vset.pattern.permute.xlu0 0
      %3803 = vperm.xlu0 %3802, %v2333
      %v3804 = vpop.permute.xlu0 %3803
      %v3807 = vunpack.c.l.s4 839922192
      %v3808 = vunpack.c.0.s8 %v3807
      %v3809 = vlaneseq
      %v3810 = vshrl.u32 %v3809, 7
      %v3811 = vsub.s32 %v3808, %v3810
      %v3812 = vrot.slane %v3804, %v3811
      %3814 = vset.pattern.permute.xlu0 0
      %3815 = vperm.xlu0 %3814, %v2334
      %v3816 = vpop.permute.xlu0 %3815
      %v3819 = vunpack.c.l.s4 839922192
      %v3820 = vunpack.c.0.s8 %v3819
      %v3821 = vlaneseq
      %v3822 = vshrl.u32 %v3821, 7
      %v3823 = vsub.s32 %v3820, %v3822
      %v3824 = vrot.slane %v3816, %v3823
      %3826 = vset.pattern.permute.xlu0 0
      %3827 = vperm.xlu0 %3826, %v2335
      %v3828 = vpop.permute.xlu0 %3827
      %v3831 = vunpack.c.l.s4 839922192
      %v3832 = vunpack.c.0.s8 %v3831
      %v3833 = vlaneseq
      %v3834 = vshrl.u32 %v3833, 7
      %v3835 = vsub.s32 %v3832, %v3834
      %v3836 = vrot.slane %v3828, %v3835
      %3838 = vset.pattern.permute.xlu0 0
      %3839 = vperm.xlu0 %3838, %v2336
      %v3840 = vpop.permute.xlu0 %3839
      %v3843 = vunpack.c.l.s4 839922192
      %v3844 = vunpack.c.0.s8 %v3843
      %v3845 = vlaneseq
      %v3846 = vshrl.u32 %v3845, 7
      %v3847 = vsub.s32 %v3844, %v3846
      %v3848 = vrot.slane %v3840, %v3847
      %3850 = vset.pattern.permute.xlu0 0
      %3851 = vperm.xlu0 %3850, %v2337
      %v3852 = vpop.permute.xlu0 %3851
      %v3855 = vunpack.c.l.s4 839922192
      %v3856 = vunpack.c.0.s8 %v3855
      %v3857 = vlaneseq
      %v3858 = vshrl.u32 %v3857, 7
      %v3859 = vsub.s32 %v3856, %v3858
      %v3860 = vrot.slane %v3852, %v3859
      %3862 = vset.pattern.permute.xlu0 0
      %3863 = vperm.xlu0 %3862, %v2338
      %v3864 = vpop.permute.xlu0 %3863
      %v3867 = vunpack.c.l.s4 839922192
      %v3868 = vunpack.c.0.s8 %v3867
      %v3869 = vlaneseq
      %v3870 = vshrl.u32 %v3869, 7
      %v3871 = vsub.s32 %v3868, %v3870
      %v3872 = vrot.slane %v3864, %v3871
      %3874 = vset.pattern.permute.xlu0 0
      %3875 = vperm.xlu0 %3874, %v2339
      %v3876 = vpop.permute.xlu0 %3875
      %v3879 = vunpack.c.l.s4 839922192
      %v3880 = vunpack.c.0.s8 %v3879
      %v3881 = vlaneseq
      %v3882 = vshrl.u32 %v3881, 7
      %v3883 = vsub.s32 %v3880, %v3882
      %v3884 = vrot.slane %v3876, %v3883
      %3886 = vset.pattern.permute.xlu0 0
      %3887 = vperm.xlu0 %3886, %v2340
      %v3888 = vpop.permute.xlu0 %3887
      %v3891 = vunpack.c.l.s4 839922192
      %v3892 = vunpack.c.0.s8 %v3891
      %v3893 = vlaneseq
      %v3894 = vshrl.u32 %v3893, 7
      %v3895 = vsub.s32 %v3892, %v3894
      %v3896 = vrot.slane %v3888, %v3895
      %3898 = vset.pattern.permute.xlu0 0
      %3899 = vperm.xlu0 %3898, %v2341
      %v3900 = vpop.permute.xlu0 %3899
      %v3903 = vunpack.c.l.s4 839922192
      %v3904 = vunpack.c.0.s8 %v3903
      %v3905 = vlaneseq
      %v3906 = vshrl.u32 %v3905, 7
      %v3907 = vsub.s32 %v3904, %v3906
      %v3908 = vrot.slane %v3900, %v3907
      %3910 = vset.pattern.permute.xlu0 0
      %3911 = vperm.xlu0 %3910, %v2342
      %v3912 = vpop.permute.xlu0 %3911
      %v3915 = vunpack.c.l.s4 839922192
      %v3916 = vunpack.c.0.s8 %v3915
      %v3917 = vlaneseq
      %v3918 = vshrl.u32 %v3917, 7
      %v3919 = vsub.s32 %v3916, %v3918
      %v3920 = vrot.slane %v3912, %v3919
      %3922 = vset.pattern.permute.xlu0 0
      %3923 = vperm.xlu0 %3922, %v2343
      %v3924 = vpop.permute.xlu0 %3923
      %v3927 = vunpack.c.l.s4 839922192
      %v3928 = vunpack.c.0.s8 %v3927
      %v3929 = vlaneseq
      %v3930 = vshrl.u32 %v3929, 7
      %v3931 = vsub.s32 %v3928, %v3930
      %v3932 = vrot.slane %v3924, %v3931
      %3934 = vset.pattern.permute.xlu0 0
      %3935 = vperm.xlu0 %3934, %v2344
      %v3936 = vpop.permute.xlu0 %3935
      %v3939 = vunpack.c.l.s4 839922192
      %v3940 = vunpack.c.0.s8 %v3939
      %v3941 = vlaneseq
      %v3942 = vshrl.u32 %v3941, 7
      %v3943 = vsub.s32 %v3940, %v3942
      %v3944 = vrot.slane %v3936, %v3943
      %3946 = vset.pattern.permute.xlu0 0
      %3947 = vperm.xlu0 %3946, %v2345
      %v3948 = vpop.permute.xlu0 %3947
      %v3951 = vunpack.c.l.s4 839922192
      %v3952 = vunpack.c.0.s8 %v3951
      %v3953 = vlaneseq
      %v3954 = vshrl.u32 %v3953, 7
      %v3955 = vsub.s32 %v3952, %v3954
      %v3956 = vrot.slane %v3948, %v3955
      %3958 = vset.pattern.permute.xlu0 0
      %3959 = vperm.xlu0 %3958, %v2346
      %v3960 = vpop.permute.xlu0 %3959
      %v3963 = vunpack.c.l.s4 839922192
      %v3964 = vunpack.c.0.s8 %v3963
      %v3965 = vlaneseq
      %v3966 = vshrl.u32 %v3965, 7
      %v3967 = vsub.s32 %v3964, %v3966
      %v3968 = vrot.slane %v3960, %v3967
      %3970 = vset.pattern.permute.xlu0 0
      %3971 = vperm.xlu0 %3970, %v2347
      %v3972 = vpop.permute.xlu0 %3971
      %v3975 = vunpack.c.l.s4 839922192
      %v3976 = vunpack.c.0.s8 %v3975
      %v3977 = vlaneseq
      %v3978 = vshrl.u32 %v3977, 7
      %v3979 = vsub.s32 %v3976, %v3978
      %v3980 = vrot.slane %v3972, %v3979
      %3982 = vset.pattern.permute.xlu0 0
      %3983 = vperm.xlu0 %3982, %v2348
      %v3984 = vpop.permute.xlu0 %3983
      %v3987 = vunpack.c.l.s4 839922192
      %v3988 = vunpack.c.0.s8 %v3987
      %v3989 = vlaneseq
      %v3990 = vshrl.u32 %v3989, 7
      %v3991 = vsub.s32 %v3988, %v3990
      %v3992 = vrot.slane %v3984, %v3991
      %v3993 = vadd.bf16 %v171, %v2360
      %v3994 = vadd.bf16 %v172, %v2372
      %v3995 = vadd.bf16 %v173, %v2384
      %v3996 = vadd.bf16 %v174, %v2396
      %v3997 = vadd.bf16 %v175, %v2408
      %v3998 = vadd.bf16 %v176, %v2420
      %v3999 = vadd.bf16 %v177, %v2432
      %v4000 = vadd.bf16 %v178, %v2444
      %v4001 = vadd.bf16 %v179, %v2456
      %v4002 = vadd.bf16 %v180, %v2468
      %v4003 = vadd.bf16 %v181, %v2480
      %v4004 = vadd.bf16 %v182, %v2492
      %v4005 = vadd.bf16 %v183, %v2504
      %v4006 = vadd.bf16 %v184, %v2516
      %v4007 = vadd.bf16 %v185, %v2528
      %v4008 = vadd.bf16 %v186, %v2540
      %v4009 = vadd.bf16 %v187, %v2552
      %v4010 = vadd.bf16 %v188, %v2564
      %v4011 = vadd.bf16 %v189, %v2576
      %v4012 = vadd.bf16 %v190, %v2588
      %v4013 = vadd.bf16 %v191, %v2600
      %v4014 = vadd.bf16 %v192, %v2612
      %v4015 = vadd.bf16 %v193, %v2624
      %v4016 = vadd.bf16 %v194, %v2636
      %v4017 = vadd.bf16 %v195, %v2648
      %v4018 = vadd.bf16 %v196, %v2660
      %v4019 = vadd.bf16 %v197, %v2672
      %v4020 = vadd.bf16 %v198, %v2684
      %v4021 = vadd.bf16 %v199, %v2696
      %v4022 = vadd.bf16 %v200, %v2708
      %v4023 = vadd.bf16 %v201, %v2720
      %v4024 = vadd.bf16 %v202, %v2732
      %v4025 = vadd.bf16 %v203, %v2744
      %v4026 = vadd.bf16 %v204, %v2756
      %v4027 = vadd.bf16 %v205, %v2768
      %v4028 = vadd.bf16 %v206, %v2780
      %v4029 = vadd.bf16 %v207, %v2792
      %v4030 = vadd.bf16 %v208, %v2804
      %v4031 = vadd.bf16 %v209, %v2816
      %v4032 = vadd.bf16 %v210, %v2828
      %v4033 = vadd.bf16 %v211, %v2840
      %v4034 = vadd.bf16 %v212, %v2852
      %v4035 = vadd.bf16 %v213, %v2864
      %v4036 = vadd.bf16 %v214, %v2876
      %v4037 = vadd.bf16 %v215, %v2888
      %v4038 = vadd.bf16 %v216, %v2900
      %v4039 = vadd.bf16 %v217, %v2912
      %v4040 = vadd.bf16 %v218, %v2924
      %v4041 = vadd.bf16 %v219, %v2936
      %v4042 = vadd.bf16 %v220, %v2948
      %v4043 = vadd.bf16 %v221, %v2960
      %v4044 = vadd.bf16 %v222, %v2972
      %v4045 = vadd.bf16 %v223, %v2984
      %v4046 = vadd.bf16 %v224, %v2996
      %v4047 = vadd.bf16 %v225, %v3008
      %v4048 = vadd.bf16 %v226, %v3020
      %v4049 = vadd.bf16 %v227, %v3032
      %v4050 = vadd.bf16 %v228, %v3044
      %v4051 = vadd.bf16 %v229, %v3056
      %v4052 = vadd.bf16 %v230, %v3068
      %v4053 = vadd.bf16 %v231, %v3080
      %v4054 = vadd.bf16 %v232, %v3092
      %v4055 = vadd.bf16 %v233, %v3104
      %v4056 = vadd.bf16 %v234, %v3116
      %v4057 = vadd.bf16 %v235, %v3128
      %v4058 = vadd.bf16 %v236, %v3140
      %v4059 = vadd.bf16 %v237, %v3152
      %v4060 = vadd.bf16 %v238, %v3164
      %v4061 = vadd.bf16 %v239, %v3176
      %v4062 = vadd.bf16 %v240, %v3188
      %v4063 = vadd.bf16 %v241, %v3200
      %v4064 = vadd.bf16 %v242, %v3212
      %v4065 = vadd.bf16 %v243, %v3224
      %v4066 = vadd.bf16 %v244, %v3236
      %v4067 = vadd.bf16 %v245, %v3248
      %v4068 = vadd.bf16 %v246, %v3260
      %v4069 = vadd.bf16 %v247, %v3272
      %v4070 = vadd.bf16 %v248, %v3284
      %v4071 = vadd.bf16 %v249, %v3296
      %v4072 = vadd.bf16 %v250, %v3308
      %v4073 = vadd.bf16 %v251, %v3320
      %v4074 = vadd.bf16 %v252, %v3332
      %v4075 = vadd.bf16 %v253, %v3344
      %v4076 = vadd.bf16 %v254, %v3356
      %v4077 = vadd.bf16 %v255, %v3368
      %v4078 = vadd.bf16 %v256, %v3380
      %v4079 = vadd.bf16 %v257, %v3392
      %v4080 = vadd.bf16 %v258, %v3404
      %v4081 = vadd.bf16 %v259, %v3416
      %v4082 = vadd.bf16 %v260, %v3428
      %v4083 = vadd.bf16 %v261, %v3440
      %v4084 = vadd.bf16 %v262, %v3452
      %v4085 = vadd.bf16 %v263, %v3464
      %v4086 = vadd.bf16 %v264, %v3476
      %v4087 = vadd.bf16 %v265, %v3488
      %v4088 = vadd.bf16 %v266, %v3500
      %v4089 = vadd.bf16 %v267, %v3512
      %v4090 = vadd.bf16 %v268, %v3524
      %v4091 = vadd.bf16 %v269, %v3536
      %v4092 = vadd.bf16 %v270, %v3548
      %v4093 = vadd.bf16 %v271, %v3560
      %v4094 = vadd.bf16 %v272, %v3572
      %v4095 = vadd.bf16 %v273, %v3584
      %v4096 = vadd.bf16 %v274, %v3596
      %v4097 = vadd.bf16 %v275, %v3608
      %v4098 = vadd.bf16 %v276, %v3620
      %v4099 = vadd.bf16 %v277, %v3632
      %v4100 = vadd.bf16 %v278, %v3644
      %v4101 = vadd.bf16 %v279, %v3656
      %v4102 = vadd.bf16 %v280, %v3668
      %v4103 = vadd.bf16 %v281, %v3680
      %v4104 = vadd.bf16 %v282, %v3692
      %v4105 = vadd.bf16 %v283, %v3704
      %v4106 = vadd.bf16 %v284, %v3716
      %v4107 = vadd.bf16 %v285, %v3728
      %v4108 = vadd.bf16 %v286, %v3740
      %v4109 = vadd.bf16 %v287, %v3752
      %v4110 = vadd.bf16 %v288, %v3764
      %v4111 = vadd.bf16 %v289, %v3776
      %v4112 = vadd.bf16 %v290, %v3788
      %v4113 = vadd.bf16 %v291, %v3800
      %v4114 = vadd.bf16 %v292, %v3812
      %v4115 = vadd.bf16 %v293, %v3824
      %v4116 = vadd.bf16 %v294, %v3836
      %v4117 = vadd.bf16 %v295, %v3848
      %v4118 = vadd.bf16 %v296, %v3860
      %v4119 = vadd.bf16 %v297, %v3872
      %v4120 = vadd.bf16 %v298, %v3884
      %v4121 = vadd.bf16 %v299, %v3896
      %v4122 = vadd.bf16 %v300, %v3908
      %v4123 = vadd.bf16 %v301, %v3920
      %v4124 = vadd.bf16 %v302, %v3932
      %v4125 = vadd.bf16 %v303, %v3944
      %v4126 = vadd.bf16 %v304, %v3956
      %v4127 = vadd.bf16 %v305, %v3968
      %v4128 = vadd.bf16 %v306, %v3980
      %v4129 = vadd.bf16 %v307, %v3992
      %vm4130 = vsmask.f32 3328
      %vm4131 = vsmask.f32 7440
      %vm4132 = vmor %vm4130, %vm4131
      %v4134 = vshrl.u32 %v171, 16
      %v4136 = vrot.slane %v4134, 4
      %v4137 = vshll.u32 %v171, 16
      %v4139 = vrot.slane %v4137, 5
      %v4140 = vor.u32 %v4136, %v4139
      %v4141 = vrot.slane %v4140, 4
      %v4143 = vshll.u32 %v172, 16
      %v4145 = vrot.slane %v4143, 5
      %v4146 = vsel %vm4132, %v4141, %v4145
      %v4147 = vshrl.u32 %v172, 16
      %v4149 = vrot.slane %v4147, 4
      %v4150 = vor.u32 %v4149, %v4145
      %v4151 = vrot.slane %v4150, 4
      %v4153 = vshll.u32 %v173, 16
      %v4155 = vrot.slane %v4153, 5
      %v4156 = vsel %vm4132, %v4151, %v4155
      %v4157 = vshrl.u32 %v173, 16
      %v4159 = vrot.slane %v4157, 4
      %v4160 = vor.u32 %v4159, %v4155
      %v4161 = vrot.slane %v4160, 4
      %v4163 = vshll.u32 %v174, 16
      %v4165 = vrot.slane %v4163, 5
      %v4166 = vsel %vm4132, %v4161, %v4165
      %v4167 = vshrl.u32 %v174, 16
      %v4169 = vrot.slane %v4167, 4
      %v4170 = vor.u32 %v4169, %v4165
      %v4171 = vrot.slane %v4170, 4
      %v4173 = vshll.u32 %v175, 16
      %v4175 = vrot.slane %v4173, 5
      %v4176 = vsel %vm4132, %v4171, %v4175
      %v4177 = vshrl.u32 %v175, 16
      %v4179 = vrot.slane %v4177, 4
      %v4180 = vor.u32 %v4179, %v4175
      %v4181 = vrot.slane %v4180, 4
      %v4183 = vshll.u32 %v176, 16
      %v4185 = vrot.slane %v4183, 5
      %v4186 = vsel %vm4132, %v4181, %v4185
      %v4187 = vshrl.u32 %v176, 16
      %v4189 = vrot.slane %v4187, 4
      %v4190 = vor.u32 %v4189, %v4185
      %v4191 = vrot.slane %v4190, 4
      %v4193 = vshll.u32 %v177, 16
      %v4195 = vrot.slane %v4193, 5
      %v4196 = vsel %vm4132, %v4191, %v4195
      %v4197 = vshrl.u32 %v177, 16
      %v4199 = vrot.slane %v4197, 4
      %v4200 = vor.u32 %v4199, %v4195
      %v4201 = vrot.slane %v4200, 4
      %v4203 = vshll.u32 %v178, 16
      %v4205 = vrot.slane %v4203, 5
      %v4206 = vsel %vm4132, %v4201, %v4205
      %v4207 = vshrl.u32 %v178, 16
      %v4209 = vrot.slane %v4207, 4
      %v4210 = vor.u32 %v4209, %v4205
      %v4211 = vrot.slane %v4210, 4
      %v4213 = vshll.u32 %v179, 16
      %v4215 = vrot.slane %v4213, 5
      %v4216 = vsel %vm4132, %v4211, %v4215
      %v4217 = vshrl.u32 %v179, 16
      %v4219 = vrot.slane %v4217, 4
      %v4220 = vor.u32 %v4219, %v4215
      %v4221 = vrot.slane %v4220, 4
      %v4223 = vshll.u32 %v180, 16
      %v4225 = vrot.slane %v4223, 5
      %v4226 = vsel %vm4132, %v4221, %v4225
      %v4227 = vshrl.u32 %v180, 16
      %v4229 = vrot.slane %v4227, 4
      %v4230 = vor.u32 %v4229, %v4225
      %v4231 = vrot.slane %v4230, 4
      %v4233 = vshll.u32 %v181, 16
      %v4235 = vrot.slane %v4233, 5
      %v4236 = vsel %vm4132, %v4231, %v4235
      %v4237 = vshrl.u32 %v181, 16
      %v4239 = vrot.slane %v4237, 4
      %v4240 = vor.u32 %v4239, %v4235
      %v4241 = vrot.slane %v4240, 4
      %v4243 = vshll.u32 %v182, 16
      %v4245 = vrot.slane %v4243, 5
      %v4246 = vsel %vm4132, %v4241, %v4245
      %v4247 = vshrl.u32 %v182, 16
      %v4249 = vrot.slane %v4247, 4
      %v4250 = vor.u32 %v4249, %v4245
      %v4251 = vrot.slane %v4250, 4
      %v4253 = vshll.u32 %v183, 16
      %v4255 = vrot.slane %v4253, 5
      %v4256 = vsel %vm4132, %v4251, %v4255
      %v4257 = vshrl.u32 %v183, 16
      %v4259 = vrot.slane %v4257, 4
      %v4260 = vor.u32 %v4259, %v4255
      %v4261 = vrot.slane %v4260, 4
      %v4263 = vshll.u32 %v184, 16
      %v4265 = vrot.slane %v4263, 5
      %v4266 = vsel %vm4132, %v4261, %v4265
      %v4267 = vshrl.u32 %v184, 16
      %v4269 = vrot.slane %v4267, 4
      %v4270 = vor.u32 %v4269, %v4265
      %v4271 = vrot.slane %v4270, 4
      %v4273 = vshll.u32 %v185, 16
      %v4275 = vrot.slane %v4273, 5
      %v4276 = vsel %vm4132, %v4271, %v4275
      %v4277 = vshrl.u32 %v185, 16
      %v4279 = vrot.slane %v4277, 4
      %v4280 = vor.u32 %v4279, %v4275
      %v4281 = vrot.slane %v4280, 4
      %v4283 = vshll.u32 %v186, 16
      %v4285 = vrot.slane %v4283, 5
      %v4286 = vsel %vm4132, %v4281, %v4285
      %v4287 = vshrl.u32 %v186, 16
      %v4289 = vrot.slane %v4287, 4
      %v4290 = vor.u32 %v4289, %v4285
      %v4291 = vrot.slane %v4290, 4
      %v4293 = vshll.u32 %v187, 16
      %v4295 = vrot.slane %v4293, 5
      %v4296 = vsel %vm4132, %v4291, %v4295
      %v4297 = vshrl.u32 %v187, 16
      %v4299 = vrot.slane %v4297, 4
      %v4300 = vor.u32 %v4299, %v4295
      %v4301 = vrot.slane %v4300, 4
      %v4303 = vshll.u32 %v188, 16
      %v4305 = vrot.slane %v4303, 5
      %v4306 = vsel %vm4132, %v4301, %v4305
      %v4307 = vshrl.u32 %v188, 16
      %v4309 = vrot.slane %v4307, 4
      %v4310 = vor.u32 %v4309, %v4305
      %v4311 = vrot.slane %v4310, 4
      %v4313 = vshll.u32 %v189, 16
      %v4315 = vrot.slane %v4313, 5
      %v4316 = vsel %vm4132, %v4311, %v4315
      %v4317 = vshrl.u32 %v189, 16
      %v4319 = vrot.slane %v4317, 4
      %v4320 = vor.u32 %v4319, %v4315
      %v4321 = vrot.slane %v4320, 4
      %v4323 = vshll.u32 %v190, 16
      %v4325 = vrot.slane %v4323, 5
      %v4326 = vsel %vm4132, %v4321, %v4325
      %v4327 = vshrl.u32 %v190, 16
      %v4329 = vrot.slane %v4327, 4
      %v4330 = vor.u32 %v4329, %v4325
      %v4331 = vrot.slane %v4330, 4
      %v4333 = vshll.u32 %v191, 16
      %v4335 = vrot.slane %v4333, 5
      %v4336 = vsel %vm4132, %v4331, %v4335
      %v4337 = vshrl.u32 %v191, 16
      %v4339 = vrot.slane %v4337, 4
      %v4340 = vor.u32 %v4339, %v4335
      %v4341 = vrot.slane %v4340, 4
      %v4343 = vshll.u32 %v192, 16
      %v4345 = vrot.slane %v4343, 5
      %v4346 = vsel %vm4132, %v4341, %v4345
      %v4347 = vshrl.u32 %v192, 16
      %v4349 = vrot.slane %v4347, 4
      %v4350 = vor.u32 %v4349, %v4345
      %v4351 = vrot.slane %v4350, 4
      %v4353 = vshll.u32 %v193, 16
      %v4355 = vrot.slane %v4353, 5
      %v4356 = vsel %vm4132, %v4351, %v4355
      %v4357 = vshrl.u32 %v193, 16
      %v4359 = vrot.slane %v4357, 4
      %v4360 = vor.u32 %v4359, %v4355
      %v4361 = vrot.slane %v4360, 4
      %v4363 = vshll.u32 %v194, 16
      %v4365 = vrot.slane %v4363, 5
      %v4366 = vsel %vm4132, %v4361, %v4365
      %v4367 = vshrl.u32 %v194, 16
      %v4369 = vrot.slane %v4367, 4
      %v4370 = vor.u32 %v4369, %v4365
      %v4371 = vrot.slane %v4370, 4
      %v4373 = vshll.u32 %v195, 16
      %v4375 = vrot.slane %v4373, 5
      %v4376 = vsel %vm4132, %v4371, %v4375
      %v4377 = vshrl.u32 %v195, 16
      %v4379 = vrot.slane %v4377, 4
      %v4380 = vor.u32 %v4379, %v4375
      %v4381 = vrot.slane %v4380, 4
      %v4383 = vshll.u32 %v196, 16
      %v4385 = vrot.slane %v4383, 5
      %v4386 = vsel %vm4132, %v4381, %v4385
      %v4387 = vshrl.u32 %v196, 16
      %v4389 = vrot.slane %v4387, 4
      %v4390 = vor.u32 %v4389, %v4385
      %v4391 = vrot.slane %v4390, 4
      %v4393 = vshll.u32 %v197, 16
      %v4395 = vrot.slane %v4393, 5
      %v4396 = vsel %vm4132, %v4391, %v4395
      %v4397 = vshrl.u32 %v197, 16
      %v4399 = vrot.slane %v4397, 4
      %v4400 = vor.u32 %v4399, %v4395
      %v4401 = vrot.slane %v4400, 4
      %v4403 = vshll.u32 %v198, 16
      %v4405 = vrot.slane %v4403, 5
      %v4406 = vsel %vm4132, %v4401, %v4405
      %v4407 = vshrl.u32 %v198, 16
      %v4409 = vrot.slane %v4407, 4
      %v4410 = vor.u32 %v4409, %v4405
      %v4411 = vrot.slane %v4410, 4
      %v4413 = vshll.u32 %v199, 16
      %v4415 = vrot.slane %v4413, 5
      %v4416 = vsel %vm4132, %v4411, %v4415
      %v4417 = vshrl.u32 %v199, 16
      %v4419 = vrot.slane %v4417, 4
      %v4420 = vor.u32 %v4419, %v4415
      %v4421 = vrot.slane %v4420, 4
      %v4423 = vshll.u32 %v200, 16
      %v4425 = vrot.slane %v4423, 5
      %v4426 = vsel %vm4132, %v4421, %v4425
      %v4427 = vshrl.u32 %v200, 16
      %v4429 = vrot.slane %v4427, 4
      %v4430 = vor.u32 %v4429, %v4425
      %v4431 = vrot.slane %v4430, 4
      %v4433 = vshll.u32 %v201, 16
      %v4435 = vrot.slane %v4433, 5
      %v4436 = vsel %vm4132, %v4431, %v4435
      %v4437 = vshrl.u32 %v201, 16
      %v4439 = vrot.slane %v4437, 4
      %v4440 = vor.u32 %v4439, %v4435
      %v4441 = vrot.slane %v4440, 4
      %v4443 = vshll.u32 %v202, 16
      %v4445 = vrot.slane %v4443, 5
      %v4446 = vsel %vm4132, %v4441, %v4445
      %v4447 = vshrl.u32 %v202, 16
      %v4449 = vrot.slane %v4447, 4
      %v4450 = vor.u32 %v4449, %v4445
      %v4451 = vrot.slane %v4450, 4
      %v4453 = vshll.u32 %v203, 16
      %v4455 = vrot.slane %v4453, 5
      %v4456 = vsel %vm4132, %v4451, %v4455
      %v4457 = vshrl.u32 %v203, 16
      %v4459 = vrot.slane %v4457, 4
      %v4460 = vor.u32 %v4459, %v4455
      %v4461 = vrot.slane %v4460, 4
      %v4463 = vshll.u32 %v204, 16
      %v4465 = vrot.slane %v4463, 5
      %v4466 = vsel %vm4132, %v4461, %v4465
      %v4467 = vshrl.u32 %v204, 16
      %v4469 = vrot.slane %v4467, 4
      %v4470 = vor.u32 %v4469, %v4465
      %v4471 = vrot.slane %v4470, 4
      %v4473 = vshll.u32 %v205, 16
      %v4475 = vrot.slane %v4473, 5
      %v4476 = vsel %vm4132, %v4471, %v4475
      %v4477 = vshrl.u32 %v205, 16
      %v4479 = vrot.slane %v4477, 4
      %v4480 = vor.u32 %v4479, %v4475
      %v4481 = vrot.slane %v4480, 4
      %v4483 = vshll.u32 %v206, 16
      %v4485 = vrot.slane %v4483, 5
      %v4486 = vsel %vm4132, %v4481, %v4485
      %v4487 = vshrl.u32 %v206, 16
      %v4489 = vrot.slane %v4487, 4
      %v4490 = vor.u32 %v4489, %v4485
      %v4491 = vrot.slane %v4490, 4
      %v4493 = vshll.u32 %v207, 16
      %v4495 = vrot.slane %v4493, 5
      %v4496 = vsel %vm4132, %v4491, %v4495
      %v4497 = vshrl.u32 %v207, 16
      %v4499 = vrot.slane %v4497, 4
      %v4500 = vor.u32 %v4499, %v4495
      %v4501 = vrot.slane %v4500, 4
      %v4503 = vshll.u32 %v208, 16
      %v4505 = vrot.slane %v4503, 5
      %v4506 = vsel %vm4132, %v4501, %v4505
      %v4507 = vshrl.u32 %v208, 16
      %v4509 = vrot.slane %v4507, 4
      %v4510 = vor.u32 %v4509, %v4505
      %v4511 = vrot.slane %v4510, 4
      %v4513 = vshll.u32 %v209, 16
      %v4515 = vrot.slane %v4513, 5
      %v4516 = vsel %vm4132, %v4511, %v4515
      %v4517 = vshrl.u32 %v209, 16
      %v4519 = vrot.slane %v4517, 4
      %v4520 = vor.u32 %v4519, %v4515
      %v4521 = vrot.slane %v4520, 4
      %v4523 = vshll.u32 %v210, 16
      %v4525 = vrot.slane %v4523, 5
      %v4526 = vsel %vm4132, %v4521, %v4525
      %v4527 = vshrl.u32 %v210, 16
      %v4529 = vrot.slane %v4527, 4
      %v4530 = vor.u32 %v4529, %v4525
      %v4531 = vrot.slane %v4530, 4
      %v4533 = vshll.u32 %v211, 16
      %v4535 = vrot.slane %v4533, 5
      %v4536 = vsel %vm4132, %v4531, %v4535
      %v4537 = vshrl.u32 %v211, 16
      %v4539 = vrot.slane %v4537, 4
      %v4540 = vor.u32 %v4539, %v4535
      %v4541 = vrot.slane %v4540, 4
      %v4543 = vshll.u32 %v212, 16
      %v4545 = vrot.slane %v4543, 5
      %v4546 = vsel %vm4132, %v4541, %v4545
      %v4547 = vshrl.u32 %v212, 16
      %v4549 = vrot.slane %v4547, 4
      %v4550 = vor.u32 %v4549, %v4545
      %v4551 = vrot.slane %v4550, 4
      %v4553 = vshll.u32 %v213, 16
      %v4555 = vrot.slane %v4553, 5
      %v4556 = vsel %vm4132, %v4551, %v4555
      %v4557 = vshrl.u32 %v213, 16
      %v4559 = vrot.slane %v4557, 4
      %v4560 = vor.u32 %v4559, %v4555
      %v4561 = vrot.slane %v4560, 4
      %v4563 = vshll.u32 %v214, 16
      %v4565 = vrot.slane %v4563, 5
      %v4566 = vsel %vm4132, %v4561, %v4565
      %v4567 = vshrl.u32 %v214, 16
      %v4569 = vrot.slane %v4567, 4
      %v4570 = vor.u32 %v4569, %v4565
      %v4571 = vrot.slane %v4570, 4
      %v4573 = vshll.u32 %v215, 16
      %v4575 = vrot.slane %v4573, 5
      %v4576 = vsel %vm4132, %v4571, %v4575
      %v4577 = vshrl.u32 %v215, 16
      %v4579 = vrot.slane %v4577, 4
      %v4580 = vor.u32 %v4579, %v4575
      %v4581 = vrot.slane %v4580, 4
      %v4583 = vshll.u32 %v216, 16
      %v4585 = vrot.slane %v4583, 5
      %v4586 = vsel %vm4132, %v4581, %v4585
      %v4587 = vshrl.u32 %v216, 16
      %v4589 = vrot.slane %v4587, 4
      %v4590 = vor.u32 %v4589, %v4585
      %v4591 = vrot.slane %v4590, 4
      %v4593 = vshll.u32 %v217, 16
      %v4595 = vrot.slane %v4593, 5
      %v4596 = vsel %vm4132, %v4591, %v4595
      %v4597 = vshrl.u32 %v217, 16
      %v4599 = vrot.slane %v4597, 4
      %v4600 = vor.u32 %v4599, %v4595
      %v4601 = vrot.slane %v4600, 4
      %v4603 = vshll.u32 %v218, 16
      %v4605 = vrot.slane %v4603, 5
      %v4606 = vsel %vm4132, %v4601, %v4605
      %v4607 = vshrl.u32 %v218, 16
      %v4609 = vrot.slane %v4607, 4
      %v4610 = vor.u32 %v4609, %v4605
      %v4611 = vrot.slane %v4610, 4
      %v4613 = vshll.u32 %v219, 16
      %v4615 = vrot.slane %v4613, 5
      %v4616 = vsel %vm4132, %v4611, %v4615
      %v4617 = vshrl.u32 %v219, 16
      %v4619 = vrot.slane %v4617, 4
      %v4620 = vor.u32 %v4619, %v4615
      %v4621 = vrot.slane %v4620, 4
      %v4623 = vshll.u32 %v220, 16
      %v4625 = vrot.slane %v4623, 5
      %v4626 = vsel %vm4132, %v4621, %v4625
      %v4627 = vshrl.u32 %v220, 16
      %v4629 = vrot.slane %v4627, 4
      %v4630 = vor.u32 %v4629, %v4625
      %v4631 = vrot.slane %v4630, 4
      %v4633 = vshll.u32 %v221, 16
      %v4635 = vrot.slane %v4633, 5
      %v4636 = vsel %vm4132, %v4631, %v4635
      %v4637 = vshrl.u32 %v221, 16
      %v4639 = vrot.slane %v4637, 4
      %v4640 = vor.u32 %v4639, %v4635
      %v4641 = vrot.slane %v4640, 4
      %v4643 = vshll.u32 %v222, 16
      %v4645 = vrot.slane %v4643, 5
      %v4646 = vsel %vm4132, %v4641, %v4645
      %v4647 = vshrl.u32 %v222, 16
      %v4649 = vrot.slane %v4647, 4
      %v4650 = vor.u32 %v4649, %v4645
      %v4651 = vrot.slane %v4650, 4
      %v4653 = vshll.u32 %v223, 16
      %v4655 = vrot.slane %v4653, 5
      %v4656 = vsel %vm4132, %v4651, %v4655
      %v4657 = vshrl.u32 %v223, 16
      %v4659 = vrot.slane %v4657, 4
      %v4660 = vor.u32 %v4659, %v4655
      %v4661 = vrot.slane %v4660, 4
      %v4663 = vshll.u32 %v224, 16
      %v4665 = vrot.slane %v4663, 5
      %v4666 = vsel %vm4132, %v4661, %v4665
      %v4667 = vshrl.u32 %v224, 16
      %v4669 = vrot.slane %v4667, 4
      %v4670 = vor.u32 %v4669, %v4665
      %v4671 = vrot.slane %v4670, 4
      %v4673 = vshll.u32 %v225, 16
      %v4675 = vrot.slane %v4673, 5
      %v4676 = vsel %vm4132, %v4671, %v4675
      %v4677 = vshrl.u32 %v225, 16
      %v4679 = vrot.slane %v4677, 4
      %v4680 = vor.u32 %v4679, %v4675
      %v4681 = vrot.slane %v4680, 4
      %v4683 = vshll.u32 %v226, 16
      %v4685 = vrot.slane %v4683, 5
      %v4686 = vsel %vm4132, %v4681, %v4685
      %v4687 = vshrl.u32 %v226, 16
      %v4689 = vrot.slane %v4687, 4
      %v4690 = vor.u32 %v4689, %v4685
      %v4691 = vrot.slane %v4690, 4
      %v4693 = vshll.u32 %v227, 16
      %v4695 = vrot.slane %v4693, 5
      %v4696 = vsel %vm4132, %v4691, %v4695
      %v4697 = vshrl.u32 %v227, 16
      %v4699 = vrot.slane %v4697, 4
      %v4700 = vor.u32 %v4699, %v4695
      %v4701 = vrot.slane %v4700, 4
      %v4703 = vshll.u32 %v228, 16
      %v4705 = vrot.slane %v4703, 5
      %v4706 = vsel %vm4132, %v4701, %v4705
      %v4707 = vshrl.u32 %v228, 16
      %v4709 = vrot.slane %v4707, 4
      %v4710 = vor.u32 %v4709, %v4705
      %v4711 = vrot.slane %v4710, 4
      %v4713 = vshll.u32 %v229, 16
      %v4715 = vrot.slane %v4713, 5
      %v4716 = vsel %vm4132, %v4711, %v4715
      %v4717 = vshrl.u32 %v229, 16
      %v4719 = vrot.slane %v4717, 4
      %v4720 = vor.u32 %v4719, %v4715
      %v4721 = vrot.slane %v4720, 4
      %v4723 = vshll.u32 %v230, 16
      %v4725 = vrot.slane %v4723, 5
      %v4726 = vsel %vm4132, %v4721, %v4725
      %v4727 = vshrl.u32 %v230, 16
      %v4729 = vrot.slane %v4727, 4
      %v4730 = vor.u32 %v4729, %v4725
      %v4731 = vrot.slane %v4730, 4
      %v4733 = vshll.u32 %v231, 16
      %v4735 = vrot.slane %v4733, 5
      %v4736 = vsel %vm4132, %v4731, %v4735
      %v4737 = vshrl.u32 %v231, 16
      %v4739 = vrot.slane %v4737, 4
      %v4740 = vor.u32 %v4739, %v4735
      %v4741 = vrot.slane %v4740, 4
      %v4743 = vshll.u32 %v232, 16
      %v4745 = vrot.slane %v4743, 5
      %v4746 = vsel %vm4132, %v4741, %v4745
      %v4747 = vshrl.u32 %v232, 16
      %v4749 = vrot.slane %v4747, 4
      %v4750 = vor.u32 %v4749, %v4745
      %v4751 = vrot.slane %v4750, 4
      %v4753 = vshll.u32 %v233, 16
      %v4755 = vrot.slane %v4753, 5
      %v4756 = vsel %vm4132, %v4751, %v4755
      %v4757 = vshrl.u32 %v233, 16
      %v4759 = vrot.slane %v4757, 4
      %v4760 = vor.u32 %v4759, %v4755
      %v4761 = vrot.slane %v4760, 4
      %v4763 = vshll.u32 %v234, 16
      %v4765 = vrot.slane %v4763, 5
      %v4766 = vsel %vm4132, %v4761, %v4765
      %v4767 = vshrl.u32 %v234, 16
      %v4769 = vrot.slane %v4767, 4
      %v4770 = vor.u32 %v4769, %v4765
      %v4771 = vrot.slane %v4770, 4
      %v4773 = vshll.u32 %v235, 16
      %v4775 = vrot.slane %v4773, 5
      %v4776 = vsel %vm4132, %v4771, %v4775
      %v4777 = vshrl.u32 %v235, 16
      %v4779 = vrot.slane %v4777, 4
      %v4780 = vor.u32 %v4779, %v4775
      %v4781 = vrot.slane %v4780, 4
      %v4783 = vshll.u32 %v236, 16
      %v4785 = vrot.slane %v4783, 5
      %v4786 = vsel %vm4132, %v4781, %v4785
      %v4787 = vshrl.u32 %v236, 16
      %v4789 = vrot.slane %v4787, 4
      %v4790 = vor.u32 %v4789, %v4785
      %v4791 = vrot.slane %v4790, 4
      %v4793 = vshll.u32 %v237, 16
      %v4795 = vrot.slane %v4793, 5
      %v4796 = vsel %vm4132, %v4791, %v4795
      %v4797 = vshrl.u32 %v237, 16
      %v4799 = vrot.slane %v4797, 4
      %v4800 = vor.u32 %v4799, %v4795
      %v4801 = vrot.slane %v4800, 4
      %v4803 = vshll.u32 %v238, 16
      %v4805 = vrot.slane %v4803, 5
      %v4806 = vsel %vm4132, %v4801, %v4805
      %v4807 = vshrl.u32 %v238, 16
      %v4809 = vrot.slane %v4807, 4
      %v4810 = vor.u32 %v4809, %v4805
      %v4811 = vrot.slane %v4810, 4
      %v4813 = vshll.u32 %v239, 16
      %v4815 = vrot.slane %v4813, 5
      %v4816 = vsel %vm4132, %v4811, %v4815
      %v4817 = vshrl.u32 %v239, 16
      %v4819 = vrot.slane %v4817, 4
      %v4820 = vor.u32 %v4819, %v4815
      %v4821 = vrot.slane %v4820, 4
      %v4823 = vshll.u32 %v240, 16
      %v4825 = vrot.slane %v4823, 5
      %v4826 = vsel %vm4132, %v4821, %v4825
      %v4827 = vshrl.u32 %v240, 16
      %v4829 = vrot.slane %v4827, 4
      %v4830 = vor.u32 %v4829, %v4825
      %v4831 = vrot.slane %v4830, 4
      %v4833 = vshll.u32 %v241, 16
      %v4835 = vrot.slane %v4833, 5
      %v4836 = vsel %vm4132, %v4831, %v4835
      %v4837 = vshrl.u32 %v241, 16
      %v4839 = vrot.slane %v4837, 4
      %v4840 = vor.u32 %v4839, %v4835
      %v4841 = vrot.slane %v4840, 4
      %v4843 = vshll.u32 %v242, 16
      %v4845 = vrot.slane %v4843, 5
      %v4846 = vsel %vm4132, %v4841, %v4845
      %v4847 = vshrl.u32 %v242, 16
      %v4849 = vrot.slane %v4847, 4
      %v4850 = vor.u32 %v4849, %v4845
      %v4851 = vrot.slane %v4850, 4
      %v4853 = vshll.u32 %v243, 16
      %v4855 = vrot.slane %v4853, 5
      %v4856 = vsel %vm4132, %v4851, %v4855
      %v4857 = vshrl.u32 %v243, 16
      %v4859 = vrot.slane %v4857, 4
      %v4860 = vor.u32 %v4859, %v4855
      %v4861 = vrot.slane %v4860, 4
      %v4863 = vshll.u32 %v244, 16
      %v4865 = vrot.slane %v4863, 5
      %v4866 = vsel %vm4132, %v4861, %v4865
      %v4867 = vshrl.u32 %v244, 16
      %v4869 = vrot.slane %v4867, 4
      %v4870 = vor.u32 %v4869, %v4865
      %v4871 = vrot.slane %v4870, 4
      %v4873 = vshll.u32 %v245, 16
      %v4875 = vrot.slane %v4873, 5
      %v4876 = vsel %vm4132, %v4871, %v4875
      %v4877 = vshrl.u32 %v245, 16
      %v4879 = vrot.slane %v4877, 4
      %v4880 = vor.u32 %v4879, %v4875
      %v4881 = vrot.slane %v4880, 4
      %v4883 = vshll.u32 %v246, 16
      %v4885 = vrot.slane %v4883, 5
      %v4886 = vsel %vm4132, %v4881, %v4885
      %v4887 = vshrl.u32 %v246, 16
      %v4889 = vrot.slane %v4887, 4
      %v4890 = vor.u32 %v4889, %v4885
      %v4891 = vrot.slane %v4890, 4
      %v4893 = vshll.u32 %v247, 16
      %v4895 = vrot.slane %v4893, 5
      %v4896 = vsel %vm4132, %v4891, %v4895
      %v4897 = vshrl.u32 %v247, 16
      %v4899 = vrot.slane %v4897, 4
      %v4900 = vor.u32 %v4899, %v4895
      %v4901 = vrot.slane %v4900, 4
      %v4903 = vshll.u32 %v248, 16
      %v4905 = vrot.slane %v4903, 5
      %v4906 = vsel %vm4132, %v4901, %v4905
      %v4907 = vshrl.u32 %v248, 16
      %v4909 = vrot.slane %v4907, 4
      %v4910 = vor.u32 %v4909, %v4905
      %v4911 = vrot.slane %v4910, 4
      %v4913 = vshll.u32 %v249, 16
      %v4915 = vrot.slane %v4913, 5
      %v4916 = vsel %vm4132, %v4911, %v4915
      %v4917 = vshrl.u32 %v249, 16
      %v4919 = vrot.slane %v4917, 4
      %v4920 = vor.u32 %v4919, %v4915
      %v4921 = vrot.slane %v4920, 4
      %v4923 = vshll.u32 %v250, 16
      %v4925 = vrot.slane %v4923, 5
      %v4926 = vsel %vm4132, %v4921, %v4925
      %v4927 = vshrl.u32 %v250, 16
      %v4929 = vrot.slane %v4927, 4
      %v4930 = vor.u32 %v4929, %v4925
      %v4931 = vrot.slane %v4930, 4
      %v4933 = vshll.u32 %v251, 16
      %v4935 = vrot.slane %v4933, 5
      %v4936 = vsel %vm4132, %v4931, %v4935
      %v4937 = vshrl.u32 %v251, 16
      %v4939 = vrot.slane %v4937, 4
      %v4940 = vor.u32 %v4939, %v4935
      %v4941 = vrot.slane %v4940, 4
      %v4943 = vshll.u32 %v252, 16
      %v4945 = vrot.slane %v4943, 5
      %v4946 = vsel %vm4132, %v4941, %v4945
      %v4947 = vshrl.u32 %v252, 16
      %v4949 = vrot.slane %v4947, 4
      %v4950 = vor.u32 %v4949, %v4945
      %v4951 = vrot.slane %v4950, 4
      %v4953 = vshll.u32 %v253, 16
      %v4955 = vrot.slane %v4953, 5
      %v4956 = vsel %vm4132, %v4951, %v4955
      %v4957 = vshrl.u32 %v253, 16
      %v4959 = vrot.slane %v4957, 4
      %v4960 = vor.u32 %v4959, %v4955
      %v4961 = vrot.slane %v4960, 4
      %v4963 = vshll.u32 %v254, 16
      %v4965 = vrot.slane %v4963, 5
      %v4966 = vsel %vm4132, %v4961, %v4965
      %v4967 = vshrl.u32 %v254, 16
      %v4969 = vrot.slane %v4967, 4
      %v4970 = vor.u32 %v4969, %v4965
      %v4971 = vrot.slane %v4970, 4
      %v4973 = vshll.u32 %v255, 16
      %v4975 = vrot.slane %v4973, 5
      %v4976 = vsel %vm4132, %v4971, %v4975
      %v4977 = vshrl.u32 %v255, 16
      %v4979 = vrot.slane %v4977, 4
      %v4980 = vor.u32 %v4979, %v4975
      %v4981 = vrot.slane %v4980, 4
      %v4983 = vshll.u32 %v256, 16
      %v4985 = vrot.slane %v4983, 5
      %v4986 = vsel %vm4132, %v4981, %v4985
      %v4987 = vshrl.u32 %v256, 16
      %v4989 = vrot.slane %v4987, 4
      %v4990 = vor.u32 %v4989, %v4985
      %v4991 = vrot.slane %v4990, 4
      %v4993 = vshll.u32 %v257, 16
      %v4995 = vrot.slane %v4993, 5
      %v4996 = vsel %vm4132, %v4991, %v4995
      %v4997 = vshrl.u32 %v257, 16
      %v4999 = vrot.slane %v4997, 4
      %v5000 = vor.u32 %v4999, %v4995
      %v5001 = vrot.slane %v5000, 4
      %v5003 = vshll.u32 %v258, 16
      %v5005 = vrot.slane %v5003, 5
      %v5006 = vsel %vm4132, %v5001, %v5005
      %v5007 = vshrl.u32 %v258, 16
      %v5009 = vrot.slane %v5007, 4
      %v5010 = vor.u32 %v5009, %v5005
      %v5011 = vrot.slane %v5010, 4
      %v5013 = vshll.u32 %v259, 16
      %v5015 = vrot.slane %v5013, 5
      %v5016 = vsel %vm4132, %v5011, %v5015
      %v5017 = vshrl.u32 %v259, 16
      %v5019 = vrot.slane %v5017, 4
      %v5020 = vor.u32 %v5019, %v5015
      %v5021 = vrot.slane %v5020, 4
      %v5023 = vshll.u32 %v260, 16
      %v5025 = vrot.slane %v5023, 5
      %v5026 = vsel %vm4132, %v5021, %v5025
      %v5027 = vshrl.u32 %v260, 16
      %v5029 = vrot.slane %v5027, 4
      %v5030 = vor.u32 %v5029, %v5025
      %v5031 = vrot.slane %v5030, 4
      %v5033 = vshll.u32 %v261, 16
      %v5035 = vrot.slane %v5033, 5
      %v5036 = vsel %vm4132, %v5031, %v5035
      %v5037 = vshrl.u32 %v261, 16
      %v5039 = vrot.slane %v5037, 4
      %v5040 = vor.u32 %v5039, %v5035
      %v5041 = vrot.slane %v5040, 4
      %v5043 = vshll.u32 %v262, 16
      %v5045 = vrot.slane %v5043, 5
      %v5046 = vsel %vm4132, %v5041, %v5045
      %v5047 = vshrl.u32 %v262, 16
      %v5049 = vrot.slane %v5047, 4
      %v5050 = vor.u32 %v5049, %v5045
      %v5051 = vrot.slane %v5050, 4
      %v5053 = vshll.u32 %v263, 16
      %v5055 = vrot.slane %v5053, 5
      %v5056 = vsel %vm4132, %v5051, %v5055
      %v5057 = vshrl.u32 %v263, 16
      %v5059 = vrot.slane %v5057, 4
      %v5060 = vor.u32 %v5059, %v5055
      %v5061 = vrot.slane %v5060, 4
      %v5063 = vshll.u32 %v264, 16
      %v5065 = vrot.slane %v5063, 5
      %v5066 = vsel %vm4132, %v5061, %v5065
      %v5067 = vshrl.u32 %v264, 16
      %v5069 = vrot.slane %v5067, 4
      %v5070 = vor.u32 %v5069, %v5065
      %v5071 = vrot.slane %v5070, 4
      %v5073 = vshll.u32 %v265, 16
      %v5075 = vrot.slane %v5073, 5
      %v5076 = vsel %vm4132, %v5071, %v5075
      %v5077 = vshrl.u32 %v265, 16
      %v5079 = vrot.slane %v5077, 4
      %v5080 = vor.u32 %v5079, %v5075
      %v5081 = vrot.slane %v5080, 4
      %v5083 = vshll.u32 %v266, 16
      %v5085 = vrot.slane %v5083, 5
      %v5086 = vsel %vm4132, %v5081, %v5085
      %v5087 = vshrl.u32 %v266, 16
      %v5089 = vrot.slane %v5087, 4
      %v5090 = vor.u32 %v5089, %v5085
      %v5091 = vrot.slane %v5090, 4
      %v5093 = vshll.u32 %v267, 16
      %v5095 = vrot.slane %v5093, 5
      %v5096 = vsel %vm4132, %v5091, %v5095
      %v5097 = vshrl.u32 %v267, 16
      %v5099 = vrot.slane %v5097, 4
      %v5100 = vor.u32 %v5099, %v5095
      %v5101 = vrot.slane %v5100, 4
      %v5103 = vshll.u32 %v268, 16
      %v5105 = vrot.slane %v5103, 5
      %v5106 = vsel %vm4132, %v5101, %v5105
      %v5107 = vshrl.u32 %v268, 16
      %v5109 = vrot.slane %v5107, 4
      %v5110 = vor.u32 %v5109, %v5105
      %v5111 = vrot.slane %v5110, 4
      %v5113 = vshll.u32 %v269, 16
      %v5115 = vrot.slane %v5113, 5
      %v5116 = vsel %vm4132, %v5111, %v5115
      %v5117 = vshrl.u32 %v269, 16
      %v5119 = vrot.slane %v5117, 4
      %v5120 = vor.u32 %v5119, %v5115
      %v5121 = vrot.slane %v5120, 4
      %v5123 = vshll.u32 %v270, 16
      %v5125 = vrot.slane %v5123, 5
      %v5126 = vsel %vm4132, %v5121, %v5125
      %v5127 = vshrl.u32 %v270, 16
      %v5129 = vrot.slane %v5127, 4
      %v5130 = vor.u32 %v5129, %v5125
      %v5131 = vrot.slane %v5130, 4
      %v5133 = vshll.u32 %v271, 16
      %v5135 = vrot.slane %v5133, 5
      %v5136 = vsel %vm4132, %v5131, %v5135
      %v5137 = vshrl.u32 %v271, 16
      %v5139 = vrot.slane %v5137, 4
      %v5140 = vor.u32 %v5139, %v5135
      %v5141 = vrot.slane %v5140, 4
      %v5143 = vshll.u32 %v272, 16
      %v5145 = vrot.slane %v5143, 5
      %v5146 = vsel %vm4132, %v5141, %v5145
      %v5147 = vshrl.u32 %v272, 16
      %v5149 = vrot.slane %v5147, 4
      %v5150 = vor.u32 %v5149, %v5145
      %v5151 = vrot.slane %v5150, 4
      %v5153 = vshll.u32 %v273, 16
      %v5155 = vrot.slane %v5153, 5
      %v5156 = vsel %vm4132, %v5151, %v5155
      %v5157 = vshrl.u32 %v273, 16
      %v5159 = vrot.slane %v5157, 4
      %v5160 = vor.u32 %v5159, %v5155
      %v5161 = vrot.slane %v5160, 4
      %v5163 = vshll.u32 %v274, 16
      %v5165 = vrot.slane %v5163, 5
      %v5166 = vsel %vm4132, %v5161, %v5165
      %v5167 = vshrl.u32 %v274, 16
      %v5169 = vrot.slane %v5167, 4
      %v5170 = vor.u32 %v5169, %v5165
      %v5171 = vrot.slane %v5170, 4
      %v5173 = vshll.u32 %v275, 16
      %v5175 = vrot.slane %v5173, 5
      %v5176 = vsel %vm4132, %v5171, %v5175
      %v5177 = vshrl.u32 %v275, 16
      %v5179 = vrot.slane %v5177, 4
      %v5180 = vor.u32 %v5179, %v5175
      %v5181 = vrot.slane %v5180, 4
      %v5183 = vshll.u32 %v276, 16
      %v5185 = vrot.slane %v5183, 5
      %v5186 = vsel %vm4132, %v5181, %v5185
      %v5187 = vshrl.u32 %v276, 16
      %v5189 = vrot.slane %v5187, 4
      %v5190 = vor.u32 %v5189, %v5185
      %v5191 = vrot.slane %v5190, 4
      %v5193 = vshll.u32 %v277, 16
      %v5195 = vrot.slane %v5193, 5
      %v5196 = vsel %vm4132, %v5191, %v5195
      %v5197 = vshrl.u32 %v277, 16
      %v5199 = vrot.slane %v5197, 4
      %v5200 = vor.u32 %v5199, %v5195
      %v5201 = vrot.slane %v5200, 4
      %v5203 = vshll.u32 %v278, 16
      %v5205 = vrot.slane %v5203, 5
      %v5206 = vsel %vm4132, %v5201, %v5205
      %v5207 = vshrl.u32 %v278, 16
      %v5209 = vrot.slane %v5207, 4
      %v5210 = vor.u32 %v5209, %v5205
      %v5211 = vrot.slane %v5210, 4
      %v5213 = vshll.u32 %v279, 16
      %v5215 = vrot.slane %v5213, 5
      %v5216 = vsel %vm4132, %v5211, %v5215
      %v5217 = vshrl.u32 %v279, 16
      %v5219 = vrot.slane %v5217, 4
      %v5220 = vor.u32 %v5219, %v5215
      %v5221 = vrot.slane %v5220, 4
      %v5223 = vshll.u32 %v280, 16
      %v5225 = vrot.slane %v5223, 5
      %v5226 = vsel %vm4132, %v5221, %v5225
      %v5227 = vshrl.u32 %v280, 16
      %v5229 = vrot.slane %v5227, 4
      %v5230 = vor.u32 %v5229, %v5225
      %v5231 = vrot.slane %v5230, 4
      %v5233 = vshll.u32 %v281, 16
      %v5235 = vrot.slane %v5233, 5
      %v5236 = vsel %vm4132, %v5231, %v5235
      %v5237 = vshrl.u32 %v281, 16
      %v5239 = vrot.slane %v5237, 4
      %v5240 = vor.u32 %v5239, %v5235
      %v5241 = vrot.slane %v5240, 4
      %v5243 = vshll.u32 %v282, 16
      %v5245 = vrot.slane %v5243, 5
      %v5246 = vsel %vm4132, %v5241, %v5245
      %v5247 = vshrl.u32 %v282, 16
      %v5249 = vrot.slane %v5247, 4
      %v5250 = vor.u32 %v5249, %v5245
      %v5251 = vrot.slane %v5250, 4
      %v5253 = vshll.u32 %v283, 16
      %v5255 = vrot.slane %v5253, 5
      %v5256 = vsel %vm4132, %v5251, %v5255
      %v5257 = vshrl.u32 %v283, 16
      %v5259 = vrot.slane %v5257, 4
      %v5260 = vor.u32 %v5259, %v5255
      %v5261 = vrot.slane %v5260, 4
      %v5263 = vshll.u32 %v284, 16
      %v5265 = vrot.slane %v5263, 5
      %v5266 = vsel %vm4132, %v5261, %v5265
      %v5267 = vshrl.u32 %v284, 16
      %v5269 = vrot.slane %v5267, 4
      %v5270 = vor.u32 %v5269, %v5265
      %v5271 = vrot.slane %v5270, 4
      %v5273 = vshll.u32 %v285, 16
      %v5275 = vrot.slane %v5273, 5
      %v5276 = vsel %vm4132, %v5271, %v5275
      %v5277 = vshrl.u32 %v285, 16
      %v5279 = vrot.slane %v5277, 4
      %v5280 = vor.u32 %v5279, %v5275
      %v5281 = vrot.slane %v5280, 4
      %v5283 = vshll.u32 %v286, 16
      %v5285 = vrot.slane %v5283, 5
      %v5286 = vsel %vm4132, %v5281, %v5285
      %v5287 = vshrl.u32 %v286, 16
      %v5289 = vrot.slane %v5287, 4
      %v5290 = vor.u32 %v5289, %v5285
      %v5291 = vrot.slane %v5290, 4
      %v5293 = vshll.u32 %v287, 16
      %v5295 = vrot.slane %v5293, 5
      %v5296 = vsel %vm4132, %v5291, %v5295
      %v5297 = vshrl.u32 %v287, 16
      %v5299 = vrot.slane %v5297, 4
      %v5300 = vor.u32 %v5299, %v5295
      %v5301 = vrot.slane %v5300, 4
      %v5303 = vshll.u32 %v288, 16
      %v5305 = vrot.slane %v5303, 5
      %v5306 = vsel %vm4132, %v5301, %v5305
      %v5307 = vshrl.u32 %v288, 16
      %v5309 = vrot.slane %v5307, 4
      %v5310 = vor.u32 %v5309, %v5305
      %v5311 = vrot.slane %v5310, 4
      %v5313 = vshll.u32 %v289, 16
      %v5315 = vrot.slane %v5313, 5
      %v5316 = vsel %vm4132, %v5311, %v5315
      %v5317 = vshrl.u32 %v289, 16
      %v5319 = vrot.slane %v5317, 4
      %v5320 = vor.u32 %v5319, %v5315
      %v5321 = vrot.slane %v5320, 4
      %v5323 = vshll.u32 %v290, 16
      %v5325 = vrot.slane %v5323, 5
      %v5326 = vsel %vm4132, %v5321, %v5325
      %v5327 = vshrl.u32 %v290, 16
      %v5329 = vrot.slane %v5327, 4
      %v5330 = vor.u32 %v5329, %v5325
      %v5331 = vrot.slane %v5330, 4
      %v5333 = vshll.u32 %v291, 16
      %v5335 = vrot.slane %v5333, 5
      %v5336 = vsel %vm4132, %v5331, %v5335
      %v5337 = vshrl.u32 %v291, 16
      %v5339 = vrot.slane %v5337, 4
      %v5340 = vor.u32 %v5339, %v5335
      %v5341 = vrot.slane %v5340, 4
      %v5343 = vshll.u32 %v292, 16
      %v5345 = vrot.slane %v5343, 5
      %v5346 = vsel %vm4132, %v5341, %v5345
      %v5347 = vshrl.u32 %v292, 16
      %v5349 = vrot.slane %v5347, 4
      %v5350 = vor.u32 %v5349, %v5345
      %v5351 = vrot.slane %v5350, 4
      %v5353 = vshll.u32 %v293, 16
      %v5355 = vrot.slane %v5353, 5
      %v5356 = vsel %vm4132, %v5351, %v5355
      %v5357 = vshrl.u32 %v293, 16
      %v5359 = vrot.slane %v5357, 4
      %v5360 = vor.u32 %v5359, %v5355
      %v5361 = vrot.slane %v5360, 4
      %v5363 = vshll.u32 %v294, 16
      %v5365 = vrot.slane %v5363, 5
      %v5366 = vsel %vm4132, %v5361, %v5365
      %v5367 = vshrl.u32 %v294, 16
      %v5369 = vrot.slane %v5367, 4
      %v5370 = vor.u32 %v5369, %v5365
      %v5371 = vrot.slane %v5370, 4
      %v5373 = vshll.u32 %v295, 16
      %v5375 = vrot.slane %v5373, 5
      %v5376 = vsel %vm4132, %v5371, %v5375
      %v5377 = vshrl.u32 %v295, 16
      %v5379 = vrot.slane %v5377, 4
      %v5380 = vor.u32 %v5379, %v5375
      %v5381 = vrot.slane %v5380, 4
      %v5383 = vshll.u32 %v296, 16
      %v5385 = vrot.slane %v5383, 5
      %v5386 = vsel %vm4132, %v5381, %v5385
      %v5387 = vshrl.u32 %v296, 16
      %v5389 = vrot.slane %v5387, 4
      %v5390 = vor.u32 %v5389, %v5385
      %v5391 = vrot.slane %v5390, 4
      %v5393 = vshll.u32 %v297, 16
      %v5395 = vrot.slane %v5393, 5
      %v5396 = vsel %vm4132, %v5391, %v5395
      %v5397 = vshrl.u32 %v297, 16
      %v5399 = vrot.slane %v5397, 4
      %v5400 = vor.u32 %v5399, %v5395
      %v5401 = vrot.slane %v5400, 4
      %v5403 = vshll.u32 %v298, 16
      %v5405 = vrot.slane %v5403, 5
      %v5406 = vsel %vm4132, %v5401, %v5405
      %v5407 = vshrl.u32 %v298, 16
      %v5409 = vrot.slane %v5407, 4
      %v5410 = vor.u32 %v5409, %v5405
      %v5411 = vrot.slane %v5410, 4
      %v5413 = vshll.u32 %v299, 16
      %v5415 = vrot.slane %v5413, 5
      %v5416 = vsel %vm4132, %v5411, %v5415
      %v5545 = vmax.bf16 %v2076, %v4146
      %v5546 = vmax.bf16 %v2077, %v4156
      %v5547 = vmax.bf16 %v2078, %v4166
      %v5548 = vmax.bf16 %v2079, %v4176
      %v5549 = vmax.bf16 %v2080, %v4186
      %v5550 = vmax.bf16 %v2081, %v4196
      %v5551 = vmax.bf16 %v2082, %v4206
      %v5552 = vmax.bf16 %v2083, %v4216
      %v5553 = vmax.bf16 %v2084, %v4226
      %v5554 = vmax.bf16 %v2085, %v4236
      %v5555 = vmax.bf16 %v2086, %v4246
      %v5556 = vmax.bf16 %v2087, %v4256
      %v5557 = vmax.bf16 %v2088, %v4266
      %v5558 = vmax.bf16 %v2089, %v4276
      %v5559 = vmax.bf16 %v2090, %v4286
      %v5560 = vmax.bf16 %v2091, %v4296
      %v5561 = vmax.bf16 %v2092, %v4306
      %v5562 = vmax.bf16 %v2093, %v4316
      %v5563 = vmax.bf16 %v2094, %v4326
      %v5564 = vmax.bf16 %v2095, %v4336
      %v5565 = vmax.bf16 %v2096, %v4346
      %v5566 = vmax.bf16 %v2097, %v4356
      %v5567 = vmax.bf16 %v2098, %v4366
      %v5568 = vmax.bf16 %v2099, %v4376
      %v5569 = vmax.bf16 %v2100, %v4386
      %v5570 = vmax.bf16 %v2101, %v4396
      %v5571 = vmax.bf16 %v2102, %v4406
      %v5572 = vmax.bf16 %v2103, %v4416
      %v5573 = vmax.bf16 %v2104, %v4426
      %v5574 = vmax.bf16 %v2105, %v4436
      %v5575 = vmax.bf16 %v2106, %v4446
      %v5576 = vmax.bf16 %v2107, %v4456
      %v5577 = vmax.bf16 %v2108, %v4466
      %v5578 = vmax.bf16 %v2109, %v4476
      %v5579 = vmax.bf16 %v2110, %v4486
      %v5580 = vmax.bf16 %v2111, %v4496
      %v5581 = vmax.bf16 %v2112, %v4506
      %v5582 = vmax.bf16 %v2113, %v4516
      %v5583 = vmax.bf16 %v2114, %v4526
      %v5584 = vmax.bf16 %v2115, %v4536
      %v5585 = vmax.bf16 %v2116, %v4546
      %v5586 = vmax.bf16 %v2117, %v4556
      %v5587 = vmax.bf16 %v2118, %v4566
      %v5588 = vmax.bf16 %v2119, %v4576
      %v5589 = vmax.bf16 %v2120, %v4586
      %v5590 = vmax.bf16 %v2121, %v4596
      %v5591 = vmax.bf16 %v2122, %v4606
      %v5592 = vmax.bf16 %v2123, %v4616
      %v5593 = vmax.bf16 %v2124, %v4626
      %v5594 = vmax.bf16 %v2125, %v4636
      %v5595 = vmax.bf16 %v2126, %v4646
      %v5596 = vmax.bf16 %v2127, %v4656
      %v5597 = vmax.bf16 %v2128, %v4666
      %v5598 = vmax.bf16 %v2129, %v4676
      %v5599 = vmax.bf16 %v2130, %v4686
      %v5600 = vmax.bf16 %v2131, %v4696
      %v5601 = vmax.bf16 %v2132, %v4706
      %v5602 = vmax.bf16 %v2133, %v4716
      %v5603 = vmax.bf16 %v2134, %v4726
      %v5604 = vmax.bf16 %v2135, %v4736
      %v5605 = vmax.bf16 %v2136, %v4746
      %v5606 = vmax.bf16 %v2137, %v4756
      %v5607 = vmax.bf16 %v2138, %v4766
      %v5608 = vmax.bf16 %v2139, %v4776
      %v5609 = vmax.bf16 %v2140, %v4786
      %v5610 = vmax.bf16 %v2141, %v4796
      %v5611 = vmax.bf16 %v2142, %v4806
      %v5612 = vmax.bf16 %v2143, %v4816
      %v5613 = vmax.bf16 %v2144, %v4826
      %v5614 = vmax.bf16 %v2145, %v4836
      %v5615 = vmax.bf16 %v2146, %v4846
      %v5616 = vmax.bf16 %v2147, %v4856
      %v5617 = vmax.bf16 %v2148, %v4866
      %v5618 = vmax.bf16 %v2149, %v4876
      %v5619 = vmax.bf16 %v2150, %v4886
      %v5620 = vmax.bf16 %v2151, %v4896
      %v5621 = vmax.bf16 %v2152, %v4906
      %v5622 = vmax.bf16 %v2153, %v4916
      %v5623 = vmax.bf16 %v2154, %v4926
      %v5624 = vmax.bf16 %v2155, %v4936
      %v5625 = vmax.bf16 %v2156, %v4946
      %v5626 = vmax.bf16 %v2157, %v4956
      %v5627 = vmax.bf16 %v2158, %v4966
      %v5628 = vmax.bf16 %v2159, %v4976
      %v5629 = vmax.bf16 %v2160, %v4986
      %v5630 = vmax.bf16 %v2161, %v4996
      %v5631 = vmax.bf16 %v2162, %v5006
      %v5632 = vmax.bf16 %v2163, %v5016
      %v5633 = vmax.bf16 %v2164, %v5026
      %v5634 = vmax.bf16 %v2165, %v5036
      %v5635 = vmax.bf16 %v2166, %v5046
      %v5636 = vmax.bf16 %v2167, %v5056
      %v5637 = vmax.bf16 %v2168, %v5066
      %v5638 = vmax.bf16 %v2169, %v5076
      %v5639 = vmax.bf16 %v2170, %v5086
      %v5640 = vmax.bf16 %v2171, %v5096
      %v5641 = vmax.bf16 %v2172, %v5106
      %v5642 = vmax.bf16 %v2173, %v5116
      %v5643 = vmax.bf16 %v2174, %v5126
      %v5644 = vmax.bf16 %v2175, %v5136
      %v5645 = vmax.bf16 %v2176, %v5146
      %v5646 = vmax.bf16 %v2177, %v5156
      %v5647 = vmax.bf16 %v2178, %v5166
      %v5648 = vmax.bf16 %v2179, %v5176
      %v5649 = vmax.bf16 %v2180, %v5186
      %v5650 = vmax.bf16 %v2181, %v5196
      %v5651 = vmax.bf16 %v2182, %v5206
      %v5652 = vmax.bf16 %v2183, %v5216
      %v5653 = vmax.bf16 %v2184, %v5226
      %v5654 = vmax.bf16 %v2185, %v5236
      %v5655 = vmax.bf16 %v2186, %v5246
      %v5656 = vmax.bf16 %v2187, %v5256
      %v5657 = vmax.bf16 %v2188, %v5266
      %v5658 = vmax.bf16 %v2189, %v5276
      %v5659 = vmax.bf16 %v2190, %v5286
      %v5660 = vmax.bf16 %v2191, %v5296
      %v5661 = vmax.bf16 %v2192, %v5306
      %v5662 = vmax.bf16 %v2193, %v5316
      %v5663 = vmax.bf16 %v2194, %v5326
      %v5664 = vmax.bf16 %v2195, %v5336
      %v5665 = vmax.bf16 %v2196, %v5346
      %v5666 = vmax.bf16 %v2197, %v5356
      %v5667 = vmax.bf16 %v2198, %v5366
      %v5668 = vmax.bf16 %v2199, %v5376
      %v5669 = vmax.bf16 %v2200, %v5386
      %v5670 = vmax.bf16 %v2201, %v5396
      %v5671 = vmax.bf16 %v2202, %v5406
      %v5672 = vmax.bf16 %v2203, %v5416
      %vm5802 = vcmask 1042432
      %vm5803 = vcmask 1046532
      %vm5804 = vmor %vm5802, %vm5803
      %v5805 = vrot.slane %v3993, 5
      %v5806 = vrot.slane %v5805, 4
      %v5807 = vrot.slane %v3994, 5
      %v5808 = vsel %vm5804, %v5806, %v5807
      %v5809 = vrot.slane %v5807, 4
      %v5810 = vrot.slane %v3995, 5
      %v5811 = vsel %vm5804, %v5809, %v5810
      %v5812 = vrot.slane %v5810, 4
      %v5813 = vrot.slane %v3996, 5
      %v5814 = vsel %vm5804, %v5812, %v5813
      %v5815 = vrot.slane %v5813, 4
      %v5816 = vrot.slane %v3997, 5
      %v5817 = vsel %vm5804, %v5815, %v5816
      %v5818 = vrot.slane %v5816, 4
      %v5819 = vrot.slane %v3998, 5
      %v5820 = vsel %vm5804, %v5818, %v5819
      %v5821 = vrot.slane %v5819, 4
      %v5822 = vrot.slane %v3999, 5
      %v5823 = vsel %vm5804, %v5821, %v5822
      %v5824 = vrot.slane %v5822, 4
      %v5825 = vrot.slane %v4000, 5
      %v5826 = vsel %vm5804, %v5824, %v5825
      %v5827 = vrot.slane %v5825, 4
      %v5828 = vrot.slane %v4001, 5
      %v5829 = vsel %vm5804, %v5827, %v5828
      %v5830 = vrot.slane %v5828, 4
      %v5831 = vrot.slane %v4002, 5
      %v5832 = vsel %vm5804, %v5830, %v5831
      %v5833 = vrot.slane %v5831, 4
      %v5834 = vrot.slane %v4003, 5
      %v5835 = vsel %vm5804, %v5833, %v5834
      %v5836 = vrot.slane %v5834, 4
      %v5837 = vrot.slane %v4004, 5
      %v5838 = vsel %vm5804, %v5836, %v5837
      %v5839 = vrot.slane %v5837, 4
      %v5840 = vrot.slane %v4005, 5
      %v5841 = vsel %vm5804, %v5839, %v5840
      %v5842 = vrot.slane %v5840, 4
      %v5843 = vrot.slane %v4006, 5
      %v5844 = vsel %vm5804, %v5842, %v5843
      %v5845 = vrot.slane %v5843, 4
      %v5846 = vrot.slane %v4007, 5
      %v5847 = vsel %vm5804, %v5845, %v5846
      %v5848 = vrot.slane %v5846, 4
      %v5849 = vrot.slane %v4008, 5
      %v5850 = vsel %vm5804, %v5848, %v5849
      %v5851 = vrot.slane %v5849, 4
      %v5852 = vrot.slane %v4009, 5
      %v5853 = vsel %vm5804, %v5851, %v5852
      %v5854 = vrot.slane %v5852, 4
      %v5855 = vrot.slane %v4010, 5
      %v5856 = vsel %vm5804, %v5854, %v5855
      %v5857 = vrot.slane %v5855, 4
      %v5858 = vrot.slane %v4011, 5
      %v5859 = vsel %vm5804, %v5857, %v5858
      %v5860 = vrot.slane %v5858, 4
      %v5861 = vrot.slane %v4012, 5
      %v5862 = vsel %vm5804, %v5860, %v5861
      %v5863 = vrot.slane %v5861, 4
      %v5864 = vrot.slane %v4013, 5
      %v5865 = vsel %vm5804, %v5863, %v5864
      %v5866 = vrot.slane %v5864, 4
      %v5867 = vrot.slane %v4014, 5
      %v5868 = vsel %vm5804, %v5866, %v5867
      %v5869 = vrot.slane %v5867, 4
      %v5870 = vrot.slane %v4015, 5
      %v5871 = vsel %vm5804, %v5869, %v5870
      %v5872 = vrot.slane %v5870, 4
      %v5873 = vrot.slane %v4016, 5
      %v5874 = vsel %vm5804, %v5872, %v5873
      %v5875 = vrot.slane %v5873, 4
      %v5876 = vrot.slane %v4017, 5
      %v5877 = vsel %vm5804, %v5875, %v5876
      %v5878 = vrot.slane %v5876, 4
      %v5879 = vrot.slane %v4018, 5
      %v5880 = vsel %vm5804, %v5878, %v5879
      %v5881 = vrot.slane %v5879, 4
      %v5882 = vrot.slane %v4019, 5
      %v5883 = vsel %vm5804, %v5881, %v5882
      %v5884 = vrot.slane %v5882, 4
      %v5885 = vrot.slane %v4020, 5
      %v5886 = vsel %vm5804, %v5884, %v5885
      %v5887 = vrot.slane %v5885, 4
      %v5888 = vrot.slane %v4021, 5
      %v5889 = vsel %vm5804, %v5887, %v5888
      %v5890 = vrot.slane %v5888, 4
      %v5891 = vrot.slane %v4022, 5
      %v5892 = vsel %vm5804, %v5890, %v5891
      %v5893 = vrot.slane %v5891, 4
      %v5894 = vrot.slane %v4023, 5
      %v5895 = vsel %vm5804, %v5893, %v5894
      %v5896 = vrot.slane %v5894, 4
      %v5897 = vrot.slane %v4024, 5
      %v5898 = vsel %vm5804, %v5896, %v5897
      %v5899 = vrot.slane %v5897, 4
      %v5900 = vrot.slane %v4025, 5
      %v5901 = vsel %vm5804, %v5899, %v5900
      %v5902 = vrot.slane %v5900, 4
      %v5903 = vrot.slane %v4026, 5
      %v5904 = vsel %vm5804, %v5902, %v5903
      %v5905 = vrot.slane %v5903, 4
      %v5906 = vrot.slane %v4027, 5
      %v5907 = vsel %vm5804, %v5905, %v5906
      %v5908 = vrot.slane %v5906, 4
      %v5909 = vrot.slane %v4028, 5
      %v5910 = vsel %vm5804, %v5908, %v5909
      %v5911 = vrot.slane %v5909, 4
      %v5912 = vrot.slane %v4029, 5
      %v5913 = vsel %vm5804, %v5911, %v5912
      %v5914 = vrot.slane %v5912, 4
      %v5915 = vrot.slane %v4030, 5
      %v5916 = vsel %vm5804, %v5914, %v5915
      %v5917 = vrot.slane %v5915, 4
      %v5918 = vrot.slane %v4031, 5
      %v5919 = vsel %vm5804, %v5917, %v5918
      %v5920 = vrot.slane %v5918, 4
      %v5921 = vrot.slane %v4032, 5
      %v5922 = vsel %vm5804, %v5920, %v5921
      %v5923 = vrot.slane %v5921, 4
      %v5924 = vrot.slane %v4033, 5
      %v5925 = vsel %vm5804, %v5923, %v5924
      %v5926 = vrot.slane %v5924, 4
      %v5927 = vrot.slane %v4034, 5
      %v5928 = vsel %vm5804, %v5926, %v5927
      %v5929 = vrot.slane %v5927, 4
      %v5930 = vrot.slane %v4035, 5
      %v5931 = vsel %vm5804, %v5929, %v5930
      %v5932 = vrot.slane %v5930, 4
      %v5933 = vrot.slane %v4036, 5
      %v5934 = vsel %vm5804, %v5932, %v5933
      %v5935 = vrot.slane %v5933, 4
      %v5936 = vrot.slane %v4037, 5
      %v5937 = vsel %vm5804, %v5935, %v5936
      %v5938 = vrot.slane %v5936, 4
      %v5939 = vrot.slane %v4038, 5
      %v5940 = vsel %vm5804, %v5938, %v5939
      %v5941 = vrot.slane %v5939, 4
      %v5942 = vrot.slane %v4039, 5
      %v5943 = vsel %vm5804, %v5941, %v5942
      %v5944 = vrot.slane %v5942, 4
      %v5945 = vrot.slane %v4040, 5
      %v5946 = vsel %vm5804, %v5944, %v5945
      %v5947 = vrot.slane %v5945, 4
      %v5948 = vrot.slane %v4041, 5
      %v5949 = vsel %vm5804, %v5947, %v5948
      %v5950 = vrot.slane %v5948, 4
      %v5951 = vrot.slane %v4042, 5
      %v5952 = vsel %vm5804, %v5950, %v5951
      %v5953 = vrot.slane %v5951, 4
      %v5954 = vrot.slane %v4043, 5
      %v5955 = vsel %vm5804, %v5953, %v5954
      %v5956 = vrot.slane %v5954, 4
      %v5957 = vrot.slane %v4044, 5
      %v5958 = vsel %vm5804, %v5956, %v5957
      %v5959 = vrot.slane %v5957, 4
      %v5960 = vrot.slane %v4045, 5
      %v5961 = vsel %vm5804, %v5959, %v5960
      %v5962 = vrot.slane %v5960, 4
      %v5963 = vrot.slane %v4046, 5
      %v5964 = vsel %vm5804, %v5962, %v5963
      %v5965 = vrot.slane %v5963, 4
      %v5966 = vrot.slane %v4047, 5
      %v5967 = vsel %vm5804, %v5965, %v5966
      %v5968 = vrot.slane %v5966, 4
      %v5969 = vrot.slane %v4048, 5
      %v5970 = vsel %vm5804, %v5968, %v5969
      %v5971 = vrot.slane %v5969, 4
      %v5972 = vrot.slane %v4049, 5
      %v5973 = vsel %vm5804, %v5971, %v5972
      %v5974 = vrot.slane %v5972, 4
      %v5975 = vrot.slane %v4050, 5
      %v5976 = vsel %vm5804, %v5974, %v5975
      %v5977 = vrot.slane %v5975, 4
      %v5978 = vrot.slane %v4051, 5
      %v5979 = vsel %vm5804, %v5977, %v5978
      %v5980 = vrot.slane %v5978, 4
      %v5981 = vrot.slane %v4052, 5
      %v5982 = vsel %vm5804, %v5980, %v5981
      %v5983 = vrot.slane %v5981, 4
      %v5984 = vrot.slane %v4053, 5
      %v5985 = vsel %vm5804, %v5983, %v5984
      %v5986 = vrot.slane %v5984, 4
      %v5987 = vrot.slane %v4054, 5
      %v5988 = vsel %vm5804, %v5986, %v5987
      %v5989 = vrot.slane %v5987, 4
      %v5990 = vrot.slane %v4055, 5
      %v5991 = vsel %vm5804, %v5989, %v5990
      %v5992 = vrot.slane %v5990, 4
      %v5993 = vrot.slane %v4056, 5
      %v5994 = vsel %vm5804, %v5992, %v5993
      %v5995 = vrot.slane %v5993, 4
      %v5996 = vrot.slane %v4057, 5
      %v5997 = vsel %vm5804, %v5995, %v5996
      %v5998 = vrot.slane %v5996, 4
      %v5999 = vrot.slane %v4058, 5
      %v6000 = vsel %vm5804, %v5998, %v5999
      %v6001 = vrot.slane %v5999, 4
      %v6002 = vrot.slane %v4059, 5
      %v6003 = vsel %vm5804, %v6001, %v6002
      %v6004 = vrot.slane %v6002, 4
      %v6005 = vrot.slane %v4060, 5
      %v6006 = vsel %vm5804, %v6004, %v6005
      %v6007 = vrot.slane %v6005, 4
      %v6008 = vrot.slane %v4061, 5
      %v6009 = vsel %vm5804, %v6007, %v6008
      %v6010 = vrot.slane %v6008, 4
      %v6011 = vrot.slane %v4062, 5
      %v6012 = vsel %vm5804, %v6010, %v6011
      %v6013 = vrot.slane %v6011, 4
      %v6014 = vrot.slane %v4063, 5
      %v6015 = vsel %vm5804, %v6013, %v6014
      %v6016 = vrot.slane %v6014, 4
      %v6017 = vrot.slane %v4064, 5
      %v6018 = vsel %vm5804, %v6016, %v6017
      %v6019 = vrot.slane %v6017, 4
      %v6020 = vrot.slane %v4065, 5
      %v6021 = vsel %vm5804, %v6019, %v6020
      %v6022 = vrot.slane %v6020, 4
      %v6023 = vrot.slane %v4066, 5
      %v6024 = vsel %vm5804, %v6022, %v6023
      %v6025 = vrot.slane %v6023, 4
      %v6026 = vrot.slane %v4067, 5
      %v6027 = vsel %vm5804, %v6025, %v6026
      %v6028 = vrot.slane %v6026, 4
      %v6029 = vrot.slane %v4068, 5
      %v6030 = vsel %vm5804, %v6028, %v6029
      %v6031 = vrot.slane %v6029, 4
      %v6032 = vrot.slane %v4069, 5
      %v6033 = vsel %vm5804, %v6031, %v6032
      %v6034 = vrot.slane %v6032, 4
      %v6035 = vrot.slane %v4070, 5
      %v6036 = vsel %vm5804, %v6034, %v6035
      %v6037 = vrot.slane %v6035, 4
      %v6038 = vrot.slane %v4071, 5
      %v6039 = vsel %vm5804, %v6037, %v6038
      %v6040 = vrot.slane %v6038, 4
      %v6041 = vrot.slane %v4072, 5
      %v6042 = vsel %vm5804, %v6040, %v6041
      %v6043 = vrot.slane %v6041, 4
      %v6044 = vrot.slane %v4073, 5
      %v6045 = vsel %vm5804, %v6043, %v6044
      %v6046 = vrot.slane %v6044, 4
      %v6047 = vrot.slane %v4074, 5
      %v6048 = vsel %vm5804, %v6046, %v6047
      %v6049 = vrot.slane %v6047, 4
      %v6050 = vrot.slane %v4075, 5
      %v6051 = vsel %vm5804, %v6049, %v6050
      %v6052 = vrot.slane %v6050, 4
      %v6053 = vrot.slane %v4076, 5
      %v6054 = vsel %vm5804, %v6052, %v6053
      %v6055 = vrot.slane %v6053, 4
      %v6056 = vrot.slane %v4077, 5
      %v6057 = vsel %vm5804, %v6055, %v6056
      %v6058 = vrot.slane %v6056, 4
      %v6059 = vrot.slane %v4078, 5
      %v6060 = vsel %vm5804, %v6058, %v6059
      %v6061 = vrot.slane %v6059, 4
      %v6062 = vrot.slane %v4079, 5
      %v6063 = vsel %vm5804, %v6061, %v6062
      %v6064 = vrot.slane %v6062, 4
      %v6065 = vrot.slane %v4080, 5
      %v6066 = vsel %vm5804, %v6064, %v6065
      %v6067 = vrot.slane %v6065, 4
      %v6068 = vrot.slane %v4081, 5
      %v6069 = vsel %vm5804, %v6067, %v6068
      %v6070 = vrot.slane %v6068, 4
      %v6071 = vrot.slane %v4082, 5
      %v6072 = vsel %vm5804, %v6070, %v6071
      %v6073 = vrot.slane %v6071, 4
      %v6074 = vrot.slane %v4083, 5
      %v6075 = vsel %vm5804, %v6073, %v6074
      %v6076 = vrot.slane %v6074, 4
      %v6077 = vrot.slane %v4084, 5
      %v6078 = vsel %vm5804, %v6076, %v6077
      %v6079 = vrot.slane %v6077, 4
      %v6080 = vrot.slane %v4085, 5
      %v6081 = vsel %vm5804, %v6079, %v6080
      %v6082 = vrot.slane %v6080, 4
      %v6083 = vrot.slane %v4086, 5
      %v6084 = vsel %vm5804, %v6082, %v6083
      %v6085 = vrot.slane %v6083, 4
      %v6086 = vrot.slane %v4087, 5
      %v6087 = vsel %vm5804, %v6085, %v6086
      %v6088 = vrot.slane %v6086, 4
      %v6089 = vrot.slane %v4088, 5
      %v6090 = vsel %vm5804, %v6088, %v6089
      %v6091 = vrot.slane %v6089, 4
      %v6092 = vrot.slane %v4089, 5
      %v6093 = vsel %vm5804, %v6091, %v6092
      %v6094 = vrot.slane %v6092, 4
      %v6095 = vrot.slane %v4090, 5
      %v6096 = vsel %vm5804, %v6094, %v6095
      %v6097 = vrot.slane %v6095, 4
      %v6098 = vrot.slane %v4091, 5
      %v6099 = vsel %vm5804, %v6097, %v6098
      %v6100 = vrot.slane %v6098, 4
      %v6101 = vrot.slane %v4092, 5
      %v6102 = vsel %vm5804, %v6100, %v6101
      %v6103 = vrot.slane %v6101, 4
      %v6104 = vrot.slane %v4093, 5
      %v6105 = vsel %vm5804, %v6103, %v6104
      %v6106 = vrot.slane %v6104, 4
      %v6107 = vrot.slane %v4094, 5
      %v6108 = vsel %vm5804, %v6106, %v6107
      %v6109 = vrot.slane %v6107, 4
      %v6110 = vrot.slane %v4095, 5
      %v6111 = vsel %vm5804, %v6109, %v6110
      %v6112 = vrot.slane %v6110, 4
      %v6113 = vrot.slane %v4096, 5
      %v6114 = vsel %vm5804, %v6112, %v6113
      %v6115 = vrot.slane %v6113, 4
      %v6116 = vrot.slane %v4097, 5
      %v6117 = vsel %vm5804, %v6115, %v6116
      %v6118 = vrot.slane %v6116, 4
      %v6119 = vrot.slane %v4098, 5
      %v6120 = vsel %vm5804, %v6118, %v6119
      %v6121 = vrot.slane %v6119, 4
      %v6122 = vrot.slane %v4099, 5
      %v6123 = vsel %vm5804, %v6121, %v6122
      %v6124 = vrot.slane %v6122, 4
      %v6125 = vrot.slane %v4100, 5
      %v6126 = vsel %vm5804, %v6124, %v6125
      %v6127 = vrot.slane %v6125, 4
      %v6128 = vrot.slane %v4101, 5
      %v6129 = vsel %vm5804, %v6127, %v6128
      %v6130 = vrot.slane %v6128, 4
      %v6131 = vrot.slane %v4102, 5
      %v6132 = vsel %vm5804, %v6130, %v6131
      %v6133 = vrot.slane %v6131, 4
      %v6134 = vrot.slane %v4103, 5
      %v6135 = vsel %vm5804, %v6133, %v6134
      %v6136 = vrot.slane %v6134, 4
      %v6137 = vrot.slane %v4104, 5
      %v6138 = vsel %vm5804, %v6136, %v6137
      %v6139 = vrot.slane %v6137, 4
      %v6140 = vrot.slane %v4105, 5
      %v6141 = vsel %vm5804, %v6139, %v6140
      %v6142 = vrot.slane %v6140, 4
      %v6143 = vrot.slane %v4106, 5
      %v6144 = vsel %vm5804, %v6142, %v6143
      %v6145 = vrot.slane %v6143, 4
      %v6146 = vrot.slane %v4107, 5
      %v6147 = vsel %vm5804, %v6145, %v6146
      %v6148 = vrot.slane %v6146, 4
      %v6149 = vrot.slane %v4108, 5
      %v6150 = vsel %vm5804, %v6148, %v6149
      %v6151 = vrot.slane %v6149, 4
      %v6152 = vrot.slane %v4109, 5
      %v6153 = vsel %vm5804, %v6151, %v6152
      %v6154 = vrot.slane %v6152, 4
      %v6155 = vrot.slane %v4110, 5
      %v6156 = vsel %vm5804, %v6154, %v6155
      %v6157 = vrot.slane %v6155, 4
      %v6158 = vrot.slane %v4111, 5
      %v6159 = vsel %vm5804, %v6157, %v6158
      %v6160 = vrot.slane %v6158, 4
      %v6161 = vrot.slane %v4112, 5
      %v6162 = vsel %vm5804, %v6160, %v6161
      %v6163 = vrot.slane %v6161, 4
      %v6164 = vrot.slane %v4113, 5
      %v6165 = vsel %vm5804, %v6163, %v6164
      %v6166 = vrot.slane %v6164, 4
      %v6167 = vrot.slane %v4114, 5
      %v6168 = vsel %vm5804, %v6166, %v6167
      %v6169 = vrot.slane %v6167, 4
      %v6170 = vrot.slane %v4115, 5
      %v6171 = vsel %vm5804, %v6169, %v6170
      %v6172 = vrot.slane %v6170, 4
      %v6173 = vrot.slane %v4116, 5
      %v6174 = vsel %vm5804, %v6172, %v6173
      %v6175 = vrot.slane %v6173, 4
      %v6176 = vrot.slane %v4117, 5
      %v6177 = vsel %vm5804, %v6175, %v6176
      %v6178 = vrot.slane %v6176, 4
      %v6179 = vrot.slane %v4118, 5
      %v6180 = vsel %vm5804, %v6178, %v6179
      %v6181 = vrot.slane %v6179, 4
      %v6182 = vrot.slane %v4119, 5
      %v6183 = vsel %vm5804, %v6181, %v6182
      %v6184 = vrot.slane %v6182, 4
      %v6185 = vrot.slane %v4120, 5
      %v6186 = vsel %vm5804, %v6184, %v6185
      %v6187 = vrot.slane %v6185, 4
      %v6188 = vrot.slane %v4121, 5
      %v6189 = vsel %vm5804, %v6187, %v6188
      %v6318 = vmax.bf16 %v5545, %v5808
      %v6319 = vmax.bf16 %v5546, %v5811
      %v6320 = vmax.bf16 %v5547, %v5814
      %v6321 = vmax.bf16 %v5548, %v5817
      %v6322 = vmax.bf16 %v5549, %v5820
      %v6323 = vmax.bf16 %v5550, %v5823
      %v6324 = vmax.bf16 %v5551, %v5826
      %v6325 = vmax.bf16 %v5552, %v5829
      %v6326 = vmax.bf16 %v5553, %v5832
      %v6327 = vmax.bf16 %v5554, %v5835
      %v6328 = vmax.bf16 %v5555, %v5838
      %v6329 = vmax.bf16 %v5556, %v5841
      %v6330 = vmax.bf16 %v5557, %v5844
      %v6331 = vmax.bf16 %v5558, %v5847
      %v6332 = vmax.bf16 %v5559, %v5850
      %v6333 = vmax.bf16 %v5560, %v5853
      %v6334 = vmax.bf16 %v5561, %v5856
      %v6335 = vmax.bf16 %v5562, %v5859
      %v6336 = vmax.bf16 %v5563, %v5862
      %v6337 = vmax.bf16 %v5564, %v5865
      %v6338 = vmax.bf16 %v5565, %v5868
      %v6339 = vmax.bf16 %v5566, %v5871
      %v6340 = vmax.bf16 %v5567, %v5874
      %v6341 = vmax.bf16 %v5568, %v5877
      %v6342 = vmax.bf16 %v5569, %v5880
      %v6343 = vmax.bf16 %v5570, %v5883
      %v6344 = vmax.bf16 %v5571, %v5886
      %v6345 = vmax.bf16 %v5572, %v5889
      %v6346 = vmax.bf16 %v5573, %v5892
      %v6347 = vmax.bf16 %v5574, %v5895
      %v6348 = vmax.bf16 %v5575, %v5898
      %v6349 = vmax.bf16 %v5576, %v5901
      %v6350 = vmax.bf16 %v5577, %v5904
      %v6351 = vmax.bf16 %v5578, %v5907
      %v6352 = vmax.bf16 %v5579, %v5910
      %v6353 = vmax.bf16 %v5580, %v5913
      %v6354 = vmax.bf16 %v5581, %v5916
      %v6355 = vmax.bf16 %v5582, %v5919
      %v6356 = vmax.bf16 %v5583, %v5922
      %v6357 = vmax.bf16 %v5584, %v5925
      %v6358 = vmax.bf16 %v5585, %v5928
      %v6359 = vmax.bf16 %v5586, %v5931
      %v6360 = vmax.bf16 %v5587, %v5934
      %v6361 = vmax.bf16 %v5588, %v5937
      %v6362 = vmax.bf16 %v5589, %v5940
      %v6363 = vmax.bf16 %v5590, %v5943
      %v6364 = vmax.bf16 %v5591, %v5946
      %v6365 = vmax.bf16 %v5592, %v5949
      %v6366 = vmax.bf16 %v5593, %v5952
      %v6367 = vmax.bf16 %v5594, %v5955
      %v6368 = vmax.bf16 %v5595, %v5958
      %v6369 = vmax.bf16 %v5596, %v5961
      %v6370 = vmax.bf16 %v5597, %v5964
      %v6371 = vmax.bf16 %v5598, %v5967
      %v6372 = vmax.bf16 %v5599, %v5970
      %v6373 = vmax.bf16 %v5600, %v5973
      %v6374 = vmax.bf16 %v5601, %v5976
      %v6375 = vmax.bf16 %v5602, %v5979
      %v6376 = vmax.bf16 %v5603, %v5982
      %v6377 = vmax.bf16 %v5604, %v5985
      %v6378 = vmax.bf16 %v5605, %v5988
      %v6379 = vmax.bf16 %v5606, %v5991
      %v6380 = vmax.bf16 %v5607, %v5994
      %v6381 = vmax.bf16 %v5608, %v5997
      %v6382 = vmax.bf16 %v5609, %v6000
      %v6383 = vmax.bf16 %v5610, %v6003
      %v6384 = vmax.bf16 %v5611, %v6006
      %v6385 = vmax.bf16 %v5612, %v6009
      %v6386 = vmax.bf16 %v5613, %v6012
      %v6387 = vmax.bf16 %v5614, %v6015
      %v6388 = vmax.bf16 %v5615, %v6018
      %v6389 = vmax.bf16 %v5616, %v6021
      %v6390 = vmax.bf16 %v5617, %v6024
      %v6391 = vmax.bf16 %v5618, %v6027
      %v6392 = vmax.bf16 %v5619, %v6030
      %v6393 = vmax.bf16 %v5620, %v6033
      %v6394 = vmax.bf16 %v5621, %v6036
      %v6395 = vmax.bf16 %v5622, %v6039
      %v6396 = vmax.bf16 %v5623, %v6042
      %v6397 = vmax.bf16 %v5624, %v6045
      %v6398 = vmax.bf16 %v5625, %v6048
      %v6399 = vmax.bf16 %v5626, %v6051
      %v6400 = vmax.bf16 %v5627, %v6054
      %v6401 = vmax.bf16 %v5628, %v6057
      %v6402 = vmax.bf16 %v5629, %v6060
      %v6403 = vmax.bf16 %v5630, %v6063
      %v6404 = vmax.bf16 %v5631, %v6066
      %v6405 = vmax.bf16 %v5632, %v6069
      %v6406 = vmax.bf16 %v5633, %v6072
      %v6407 = vmax.bf16 %v5634, %v6075
      %v6408 = vmax.bf16 %v5635, %v6078
      %v6409 = vmax.bf16 %v5636, %v6081
      %v6410 = vmax.bf16 %v5637, %v6084
      %v6411 = vmax.bf16 %v5638, %v6087
      %v6412 = vmax.bf16 %v5639, %v6090
      %v6413 = vmax.bf16 %v5640, %v6093
      %v6414 = vmax.bf16 %v5641, %v6096
      %v6415 = vmax.bf16 %v5642, %v6099
      %v6416 = vmax.bf16 %v5643, %v6102
      %v6417 = vmax.bf16 %v5644, %v6105
      %v6418 = vmax.bf16 %v5645, %v6108
      %v6419 = vmax.bf16 %v5646, %v6111
      %v6420 = vmax.bf16 %v5647, %v6114
      %v6421 = vmax.bf16 %v5648, %v6117
      %v6422 = vmax.bf16 %v5649, %v6120
      %v6423 = vmax.bf16 %v5650, %v6123
      %v6424 = vmax.bf16 %v5651, %v6126
      %v6425 = vmax.bf16 %v5652, %v6129
      %v6426 = vmax.bf16 %v5653, %v6132
      %v6427 = vmax.bf16 %v5654, %v6135
      %v6428 = vmax.bf16 %v5655, %v6138
      %v6429 = vmax.bf16 %v5656, %v6141
      %v6430 = vmax.bf16 %v5657, %v6144
      %v6431 = vmax.bf16 %v5658, %v6147
      %v6432 = vmax.bf16 %v5659, %v6150
      %v6433 = vmax.bf16 %v5660, %v6153
      %v6434 = vmax.bf16 %v5661, %v6156
      %v6435 = vmax.bf16 %v5662, %v6159
      %v6436 = vmax.bf16 %v5663, %v6162
      %v6437 = vmax.bf16 %v5664, %v6165
      %v6438 = vmax.bf16 %v5665, %v6168
      %v6439 = vmax.bf16 %v5666, %v6171
      %v6440 = vmax.bf16 %v5667, %v6174
      %v6441 = vmax.bf16 %v5668, %v6177
      %v6442 = vmax.bf16 %v5669, %v6180
      %v6443 = vmax.bf16 %v5670, %v6183
      %v6444 = vmax.bf16 %v5671, %v6186
      %v6445 = vmax.bf16 %v5672, %v6189
      %v6446 = vmax.bf16 %v6318, %v2080
      %v6447 = vmax.bf16 %v6319, %v2081
      %v6448 = vmax.bf16 %v6320, %v2082
      %v6449 = vmax.bf16 %v6321, %v2083
      %v6450 = vmax.bf16 %v6322, %v2084
      %v6451 = vmax.bf16 %v6323, %v2085
      %v6452 = vmax.bf16 %v6324, %v2086
      %v6453 = vmax.bf16 %v6325, %v2087
      %v6454 = vmax.bf16 %v6326, %v2088
      %v6455 = vmax.bf16 %v6327, %v2089
      %v6456 = vmax.bf16 %v6328, %v2090
      %v6457 = vmax.bf16 %v6329, %v2091
      %v6458 = vmax.bf16 %v6330, %v2092
      %v6459 = vmax.bf16 %v6331, %v2093
      %v6460 = vmax.bf16 %v6332, %v2094
      %v6461 = vmax.bf16 %v6333, %v2095
      %v6462 = vmax.bf16 %v6334, %v2096
      %v6463 = vmax.bf16 %v6335, %v2097
      %v6464 = vmax.bf16 %v6336, %v2098
      %v6465 = vmax.bf16 %v6337, %v2099
      %v6466 = vmax.bf16 %v6338, %v2100
      %v6467 = vmax.bf16 %v6339, %v2101
      %v6468 = vmax.bf16 %v6340, %v2102
      %v6469 = vmax.bf16 %v6341, %v2103
      %v6470 = vmax.bf16 %v6342, %v2104
      %v6471 = vmax.bf16 %v6343, %v2105
      %v6472 = vmax.bf16 %v6344, %v2106
      %v6473 = vmax.bf16 %v6345, %v2107
      %v6474 = vmax.bf16 %v6346, %v2108
      %v6475 = vmax.bf16 %v6347, %v2109
      %v6476 = vmax.bf16 %v6348, %v2110
      %v6477 = vmax.bf16 %v6349, %v2111
      %v6478 = vmax.bf16 %v6350, %v2112
      %v6479 = vmax.bf16 %v6351, %v2113
      %v6480 = vmax.bf16 %v6352, %v2114
      %v6481 = vmax.bf16 %v6353, %v2115
      %v6482 = vmax.bf16 %v6354, %v2116
      %v6483 = vmax.bf16 %v6355, %v2117
      %v6484 = vmax.bf16 %v6356, %v2118
      %v6485 = vmax.bf16 %v6357, %v2119
      %v6486 = vmax.bf16 %v6358, %v2120
      %v6487 = vmax.bf16 %v6359, %v2121
      %v6488 = vmax.bf16 %v6360, %v2122
      %v6489 = vmax.bf16 %v6361, %v2123
      %v6490 = vmax.bf16 %v6362, %v2124
      %v6491 = vmax.bf16 %v6363, %v2125
      %v6492 = vmax.bf16 %v6364, %v2126
      %v6493 = vmax.bf16 %v6365, %v2127
      %v6494 = vmax.bf16 %v6366, %v2128
      %v6495 = vmax.bf16 %v6367, %v2129
      %v6496 = vmax.bf16 %v6368, %v2130
      %v6497 = vmax.bf16 %v6369, %v2131
      %v6498 = vmax.bf16 %v6370, %v2132
      %v6499 = vmax.bf16 %v6371, %v2133
      %v6500 = vmax.bf16 %v6372, %v2134
      %v6501 = vmax.bf16 %v6373, %v2135
      %v6502 = vmax.bf16 %v6374, %v2136
      %v6503 = vmax.bf16 %v6375, %v2137
      %v6504 = vmax.bf16 %v6376, %v2138
      %v6505 = vmax.bf16 %v6377, %v2139
      %v6506 = vmax.bf16 %v6378, %v2140
      %v6507 = vmax.bf16 %v6379, %v2141
      %v6508 = vmax.bf16 %v6380, %v2142
      %v6509 = vmax.bf16 %v6381, %v2143
      %v6510 = vmax.bf16 %v6382, %v2144
      %v6511 = vmax.bf16 %v6383, %v2145
      %v6512 = vmax.bf16 %v6384, %v2146
      %v6513 = vmax.bf16 %v6385, %v2147
      %v6514 = vmax.bf16 %v6386, %v2148
      %v6515 = vmax.bf16 %v6387, %v2149
      %v6516 = vmax.bf16 %v6388, %v2150
      %v6517 = vmax.bf16 %v6389, %v2151
      %v6518 = vmax.bf16 %v6390, %v2152
      %v6519 = vmax.bf16 %v6391, %v2153
      %v6520 = vmax.bf16 %v6392, %v2154
      %v6521 = vmax.bf16 %v6393, %v2155
      %v6522 = vmax.bf16 %v6394, %v2156
      %v6523 = vmax.bf16 %v6395, %v2157
      %v6524 = vmax.bf16 %v6396, %v2158
      %v6525 = vmax.bf16 %v6397, %v2159
      %v6526 = vmax.bf16 %v6398, %v2160
      %v6527 = vmax.bf16 %v6399, %v2161
      %v6528 = vmax.bf16 %v6400, %v2162
      %v6529 = vmax.bf16 %v6401, %v2163
      %v6530 = vmax.bf16 %v6402, %v2164
      %v6531 = vmax.bf16 %v6403, %v2165
      %v6532 = vmax.bf16 %v6404, %v2166
      %v6533 = vmax.bf16 %v6405, %v2167
      %v6534 = vmax.bf16 %v6406, %v2168
      %v6535 = vmax.bf16 %v6407, %v2169
      %v6536 = vmax.bf16 %v6408, %v2170
      %v6537 = vmax.bf16 %v6409, %v2171
      %v6538 = vmax.bf16 %v6410, %v2172
      %v6539 = vmax.bf16 %v6411, %v2173
      %v6540 = vmax.bf16 %v6412, %v2174
      %v6541 = vmax.bf16 %v6413, %v2175
      %v6542 = vmax.bf16 %v6414, %v2176
      %v6543 = vmax.bf16 %v6415, %v2177
      %v6544 = vmax.bf16 %v6416, %v2178
      %v6545 = vmax.bf16 %v6417, %v2179
      %v6546 = vmax.bf16 %v6418, %v2180
      %v6547 = vmax.bf16 %v6419, %v2181
      %v6548 = vmax.bf16 %v6420, %v2182
      %v6549 = vmax.bf16 %v6421, %v2183
      %v6550 = vmax.bf16 %v6422, %v2184
      %v6551 = vmax.bf16 %v6423, %v2185
      %v6552 = vmax.bf16 %v6424, %v2186
      %v6553 = vmax.bf16 %v6425, %v2187
      %v6554 = vmax.bf16 %v6426, %v2188
      %v6555 = vmax.bf16 %v6427, %v2189
      %v6556 = vmax.bf16 %v6428, %v2190
      %v6557 = vmax.bf16 %v6429, %v2191
      %v6558 = vmax.bf16 %v6430, %v2192
      %v6559 = vmax.bf16 %v6431, %v2193
      %v6560 = vmax.bf16 %v6432, %v2194
      %v6561 = vmax.bf16 %v6433, %v2195
      %v6562 = vmax.bf16 %v6434, %v2196
      %v6563 = vmax.bf16 %v6435, %v2197
      %v6564 = vmax.bf16 %v6436, %v2198
      %v6565 = vmax.bf16 %v6437, %v2199
      %v6566 = vmax.bf16 %v6438, %v2200
      %v6567 = vmax.bf16 %v6439, %v2201
      %v6568 = vmax.bf16 %v6440, %v2202
      %v6569 = vmax.bf16 %v6441, %v2203
      %v6570 = vmax.bf16 %v6442, %v2204
      %v6571 = vmax.bf16 %v6443, %v2205
      %v6572 = vmax.bf16 %v6444, %v2206
      %v6573 = vmax.bf16 %v6445, %v2207
      %v6574 = vshrl.u32 %v299, 16
      %v6576 = vrot.slane %v6574, 4
      %v6577 = vor.u32 %v6576, %v5415
      %v6578 = vrot.slane %v6577, 4
      %v6580 = vshll.u32 %v300, 16
      %v6582 = vrot.slane %v6580, 5
      %v6583 = vsel %vm4132, %v6578, %v6582
      %v6584 = vshrl.u32 %v300, 16
      %v6586 = vrot.slane %v6584, 4
      %v6587 = vor.u32 %v6586, %v6582
      %v6588 = vrot.slane %v6587, 4
      %v6590 = vshll.u32 %v301, 16
      %v6592 = vrot.slane %v6590, 5
      %v6593 = vsel %vm4132, %v6588, %v6592
      %v6594 = vshrl.u32 %v301, 16
      %v6596 = vrot.slane %v6594, 4
      %v6597 = vor.u32 %v6596, %v6592
      %v6598 = vrot.slane %v6597, 4
      %v6600 = vshll.u32 %v302, 16
      %v6602 = vrot.slane %v6600, 5
      %v6603 = vsel %vm4132, %v6598, %v6602
      %v6604 = vshrl.u32 %v302, 16
      %v6606 = vrot.slane %v6604, 4
      %v6607 = vor.u32 %v6606, %v6602
      %v6608 = vrot.slane %v6607, 4
      %v6610 = vshll.u32 %v303, 16
      %v6612 = vrot.slane %v6610, 5
      %v6613 = vsel %vm4132, %v6608, %v6612
      %v6618 = vmax.bf16 %v6446, %v4186
      %v6619 = vmax.bf16 %v6447, %v4196
      %v6620 = vmax.bf16 %v6448, %v4206
      %v6621 = vmax.bf16 %v6449, %v4216
      %v6622 = vmax.bf16 %v6450, %v4226
      %v6623 = vmax.bf16 %v6451, %v4236
      %v6624 = vmax.bf16 %v6452, %v4246
      %v6625 = vmax.bf16 %v6453, %v4256
      %v6626 = vmax.bf16 %v6454, %v4266
      %v6627 = vmax.bf16 %v6455, %v4276
      %v6628 = vmax.bf16 %v6456, %v4286
      %v6629 = vmax.bf16 %v6457, %v4296
      %v6630 = vmax.bf16 %v6458, %v4306
      %v6631 = vmax.bf16 %v6459, %v4316
      %v6632 = vmax.bf16 %v6460, %v4326
      %v6633 = vmax.bf16 %v6461, %v4336
      %v6634 = vmax.bf16 %v6462, %v4346
      %v6635 = vmax.bf16 %v6463, %v4356
      %v6636 = vmax.bf16 %v6464, %v4366
      %v6637 = vmax.bf16 %v6465, %v4376
      %v6638 = vmax.bf16 %v6466, %v4386
      %v6639 = vmax.bf16 %v6467, %v4396
      %v6640 = vmax.bf16 %v6468, %v4406
      %v6641 = vmax.bf16 %v6469, %v4416
      %v6642 = vmax.bf16 %v6470, %v4426
      %v6643 = vmax.bf16 %v6471, %v4436
      %v6644 = vmax.bf16 %v6472, %v4446
      %v6645 = vmax.bf16 %v6473, %v4456
      %v6646 = vmax.bf16 %v6474, %v4466
      %v6647 = vmax.bf16 %v6475, %v4476
      %v6648 = vmax.bf16 %v6476, %v4486
      %v6649 = vmax.bf16 %v6477, %v4496
      %v6650 = vmax.bf16 %v6478, %v4506
      %v6651 = vmax.bf16 %v6479, %v4516
      %v6652 = vmax.bf16 %v6480, %v4526
      %v6653 = vmax.bf16 %v6481, %v4536
      %v6654 = vmax.bf16 %v6482, %v4546
      %v6655 = vmax.bf16 %v6483, %v4556
      %v6656 = vmax.bf16 %v6484, %v4566
      %v6657 = vmax.bf16 %v6485, %v4576
      %v6658 = vmax.bf16 %v6486, %v4586
      %v6659 = vmax.bf16 %v6487, %v4596
      %v6660 = vmax.bf16 %v6488, %v4606
      %v6661 = vmax.bf16 %v6489, %v4616
      %v6662 = vmax.bf16 %v6490, %v4626
      %v6663 = vmax.bf16 %v6491, %v4636
      %v6664 = vmax.bf16 %v6492, %v4646
      %v6665 = vmax.bf16 %v6493, %v4656
      %v6666 = vmax.bf16 %v6494, %v4666
      %v6667 = vmax.bf16 %v6495, %v4676
      %v6668 = vmax.bf16 %v6496, %v4686
      %v6669 = vmax.bf16 %v6497, %v4696
      %v6670 = vmax.bf16 %v6498, %v4706
      %v6671 = vmax.bf16 %v6499, %v4716
      %v6672 = vmax.bf16 %v6500, %v4726
      %v6673 = vmax.bf16 %v6501, %v4736
      %v6674 = vmax.bf16 %v6502, %v4746
      %v6675 = vmax.bf16 %v6503, %v4756
      %v6676 = vmax.bf16 %v6504, %v4766
      %v6677 = vmax.bf16 %v6505, %v4776
      %v6678 = vmax.bf16 %v6506, %v4786
      %v6679 = vmax.bf16 %v6507, %v4796
      %v6680 = vmax.bf16 %v6508, %v4806
      %v6681 = vmax.bf16 %v6509, %v4816
      %v6682 = vmax.bf16 %v6510, %v4826
      %v6683 = vmax.bf16 %v6511, %v4836
      %v6684 = vmax.bf16 %v6512, %v4846
      %v6685 = vmax.bf16 %v6513, %v4856
      %v6686 = vmax.bf16 %v6514, %v4866
      %v6687 = vmax.bf16 %v6515, %v4876
      %v6688 = vmax.bf16 %v6516, %v4886
      %v6689 = vmax.bf16 %v6517, %v4896
      %v6690 = vmax.bf16 %v6518, %v4906
      %v6691 = vmax.bf16 %v6519, %v4916
      %v6692 = vmax.bf16 %v6520, %v4926
      %v6693 = vmax.bf16 %v6521, %v4936
      %v6694 = vmax.bf16 %v6522, %v4946
      %v6695 = vmax.bf16 %v6523, %v4956
      %v6696 = vmax.bf16 %v6524, %v4966
      %v6697 = vmax.bf16 %v6525, %v4976
      %v6698 = vmax.bf16 %v6526, %v4986
      %v6699 = vmax.bf16 %v6527, %v4996
      %v6700 = vmax.bf16 %v6528, %v5006
      %v6701 = vmax.bf16 %v6529, %v5016
      %v6702 = vmax.bf16 %v6530, %v5026
      %v6703 = vmax.bf16 %v6531, %v5036
      %v6704 = vmax.bf16 %v6532, %v5046
      %v6705 = vmax.bf16 %v6533, %v5056
      %v6706 = vmax.bf16 %v6534, %v5066
      %v6707 = vmax.bf16 %v6535, %v5076
      %v6708 = vmax.bf16 %v6536, %v5086
      %v6709 = vmax.bf16 %v6537, %v5096
      %v6710 = vmax.bf16 %v6538, %v5106
      %v6711 = vmax.bf16 %v6539, %v5116
      %v6712 = vmax.bf16 %v6540, %v5126
      %v6713 = vmax.bf16 %v6541, %v5136
      %v6714 = vmax.bf16 %v6542, %v5146
      %v6715 = vmax.bf16 %v6543, %v5156
      %v6716 = vmax.bf16 %v6544, %v5166
      %v6717 = vmax.bf16 %v6545, %v5176
      %v6718 = vmax.bf16 %v6546, %v5186
      %v6719 = vmax.bf16 %v6547, %v5196
      %v6720 = vmax.bf16 %v6548, %v5206
      %v6721 = vmax.bf16 %v6549, %v5216
      %v6722 = vmax.bf16 %v6550, %v5226
      %v6723 = vmax.bf16 %v6551, %v5236
      %v6724 = vmax.bf16 %v6552, %v5246
      %v6725 = vmax.bf16 %v6553, %v5256
      %v6726 = vmax.bf16 %v6554, %v5266
      %v6727 = vmax.bf16 %v6555, %v5276
      %v6728 = vmax.bf16 %v6556, %v5286
      %v6729 = vmax.bf16 %v6557, %v5296
      %v6730 = vmax.bf16 %v6558, %v5306
      %v6731 = vmax.bf16 %v6559, %v5316
      %v6732 = vmax.bf16 %v6560, %v5326
      %v6733 = vmax.bf16 %v6561, %v5336
      %v6734 = vmax.bf16 %v6562, %v5346
      %v6735 = vmax.bf16 %v6563, %v5356
      %v6736 = vmax.bf16 %v6564, %v5366
      %v6737 = vmax.bf16 %v6565, %v5376
      %v6738 = vmax.bf16 %v6566, %v5386
      %v6739 = vmax.bf16 %v6567, %v5396
      %v6740 = vmax.bf16 %v6568, %v5406
      %v6741 = vmax.bf16 %v6569, %v5416
      %v6742 = vmax.bf16 %v6570, %v6583
      %v6743 = vmax.bf16 %v6571, %v6593
      %v6744 = vmax.bf16 %v6572, %v6603
      %v6745 = vmax.bf16 %v6573, %v6613
      %v6750 = vrot.slane %v6188, 4
      %v6751 = vrot.slane %v4122, 5
      %v6752 = vsel %vm5804, %v6750, %v6751
      %v6753 = vrot.slane %v6751, 4
      %v6754 = vrot.slane %v4123, 5
      %v6755 = vsel %vm5804, %v6753, %v6754
      %v6756 = vrot.slane %v6754, 4
      %v6757 = vrot.slane %v4124, 5
      %v6758 = vsel %vm5804, %v6756, %v6757
      %v6759 = vrot.slane %v6757, 4
      %v6760 = vrot.slane %v4125, 5
      %v6761 = vsel %vm5804, %v6759, %v6760
      %v6766 = vmax.bf16 %v6618, %v5820
      %v6767 = vmax.bf16 %v6619, %v5823
      %v6768 = vmax.bf16 %v6620, %v5826
      %v6769 = vmax.bf16 %v6621, %v5829
      %v6770 = vmax.bf16 %v6622, %v5832
      %v6771 = vmax.bf16 %v6623, %v5835
      %v6772 = vmax.bf16 %v6624, %v5838
      %v6773 = vmax.bf16 %v6625, %v5841
      %v6774 = vmax.bf16 %v6626, %v5844
      %v6775 = vmax.bf16 %v6627, %v5847
      %v6776 = vmax.bf16 %v6628, %v5850
      %v6777 = vmax.bf16 %v6629, %v5853
      %v6778 = vmax.bf16 %v6630, %v5856
      %v6779 = vmax.bf16 %v6631, %v5859
      %v6780 = vmax.bf16 %v6632, %v5862
      %v6781 = vmax.bf16 %v6633, %v5865
      %v6782 = vmax.bf16 %v6634, %v5868
      %v6783 = vmax.bf16 %v6635, %v5871
      %v6784 = vmax.bf16 %v6636, %v5874
      %v6785 = vmax.bf16 %v6637, %v5877
      %v6786 = vmax.bf16 %v6638, %v5880
      %v6787 = vmax.bf16 %v6639, %v5883
      %v6788 = vmax.bf16 %v6640, %v5886
      %v6789 = vmax.bf16 %v6641, %v5889
      %v6790 = vmax.bf16 %v6642, %v5892
      %v6791 = vmax.bf16 %v6643, %v5895
      %v6792 = vmax.bf16 %v6644, %v5898
      %v6793 = vmax.bf16 %v6645, %v5901
      %v6794 = vmax.bf16 %v6646, %v5904
      %v6795 = vmax.bf16 %v6647, %v5907
      %v6796 = vmax.bf16 %v6648, %v5910
      %v6797 = vmax.bf16 %v6649, %v5913
      %v6798 = vmax.bf16 %v6650, %v5916
      %v6799 = vmax.bf16 %v6651, %v5919
      %v6800 = vmax.bf16 %v6652, %v5922
      %v6801 = vmax.bf16 %v6653, %v5925
      %v6802 = vmax.bf16 %v6654, %v5928
      %v6803 = vmax.bf16 %v6655, %v5931
      %v6804 = vmax.bf16 %v6656, %v5934
      %v6805 = vmax.bf16 %v6657, %v5937
      %v6806 = vmax.bf16 %v6658, %v5940
      %v6807 = vmax.bf16 %v6659, %v5943
      %v6808 = vmax.bf16 %v6660, %v5946
      %v6809 = vmax.bf16 %v6661, %v5949
      %v6810 = vmax.bf16 %v6662, %v5952
      %v6811 = vmax.bf16 %v6663, %v5955
      %v6812 = vmax.bf16 %v6664, %v5958
      %v6813 = vmax.bf16 %v6665, %v5961
      %v6814 = vmax.bf16 %v6666, %v5964
      %v6815 = vmax.bf16 %v6667, %v5967
      %v6816 = vmax.bf16 %v6668, %v5970
      %v6817 = vmax.bf16 %v6669, %v5973
      %v6818 = vmax.bf16 %v6670, %v5976
      %v6819 = vmax.bf16 %v6671, %v5979
      %v6820 = vmax.bf16 %v6672, %v5982
      %v6821 = vmax.bf16 %v6673, %v5985
      %v6822 = vmax.bf16 %v6674, %v5988
      %v6823 = vmax.bf16 %v6675, %v5991
      %v6824 = vmax.bf16 %v6676, %v5994
      %v6825 = vmax.bf16 %v6677, %v5997
      %v6826 = vmax.bf16 %v6678, %v6000
      %v6827 = vmax.bf16 %v6679, %v6003
      %v6828 = vmax.bf16 %v6680, %v6006
      %v6829 = vmax.bf16 %v6681, %v6009
      %v6830 = vmax.bf16 %v6682, %v6012
      %v6831 = vmax.bf16 %v6683, %v6015
      %v6832 = vmax.bf16 %v6684, %v6018
      %v6833 = vmax.bf16 %v6685, %v6021
      %v6834 = vmax.bf16 %v6686, %v6024
      %v6835 = vmax.bf16 %v6687, %v6027
      %v6836 = vmax.bf16 %v6688, %v6030
      %v6837 = vmax.bf16 %v6689, %v6033
      %v6838 = vmax.bf16 %v6690, %v6036
      %v6839 = vmax.bf16 %v6691, %v6039
      %v6840 = vmax.bf16 %v6692, %v6042
      %v6841 = vmax.bf16 %v6693, %v6045
      %v6842 = vmax.bf16 %v6694, %v6048
      %v6843 = vmax.bf16 %v6695, %v6051
      %v6844 = vmax.bf16 %v6696, %v6054
      %v6845 = vmax.bf16 %v6697, %v6057
      %v6846 = vmax.bf16 %v6698, %v6060
      %v6847 = vmax.bf16 %v6699, %v6063
      %v6848 = vmax.bf16 %v6700, %v6066
      %v6849 = vmax.bf16 %v6701, %v6069
      %v6850 = vmax.bf16 %v6702, %v6072
      %v6851 = vmax.bf16 %v6703, %v6075
      %v6852 = vmax.bf16 %v6704, %v6078
      %v6853 = vmax.bf16 %v6705, %v6081
      %v6854 = vmax.bf16 %v6706, %v6084
      %v6855 = vmax.bf16 %v6707, %v6087
      %v6856 = vmax.bf16 %v6708, %v6090
      %v6857 = vmax.bf16 %v6709, %v6093
      %v6858 = vmax.bf16 %v6710, %v6096
      %v6859 = vmax.bf16 %v6711, %v6099
      %v6860 = vmax.bf16 %v6712, %v6102
      %v6861 = vmax.bf16 %v6713, %v6105
      %v6862 = vmax.bf16 %v6714, %v6108
      %v6863 = vmax.bf16 %v6715, %v6111
      %v6864 = vmax.bf16 %v6716, %v6114
      %v6865 = vmax.bf16 %v6717, %v6117
      %v6866 = vmax.bf16 %v6718, %v6120
      %v6867 = vmax.bf16 %v6719, %v6123
      %v6868 = vmax.bf16 %v6720, %v6126
      %v6869 = vmax.bf16 %v6721, %v6129
      %v6870 = vmax.bf16 %v6722, %v6132
      %v6871 = vmax.bf16 %v6723, %v6135
      %v6872 = vmax.bf16 %v6724, %v6138
      %v6873 = vmax.bf16 %v6725, %v6141
      %v6874 = vmax.bf16 %v6726, %v6144
      %v6875 = vmax.bf16 %v6727, %v6147
      %v6876 = vmax.bf16 %v6728, %v6150
      %v6877 = vmax.bf16 %v6729, %v6153
      %v6878 = vmax.bf16 %v6730, %v6156
      %v6879 = vmax.bf16 %v6731, %v6159
      %v6880 = vmax.bf16 %v6732, %v6162
      %v6881 = vmax.bf16 %v6733, %v6165
      %v6882 = vmax.bf16 %v6734, %v6168
      %v6883 = vmax.bf16 %v6735, %v6171
      %v6884 = vmax.bf16 %v6736, %v6174
      %v6885 = vmax.bf16 %v6737, %v6177
      %v6886 = vmax.bf16 %v6738, %v6180
      %v6887 = vmax.bf16 %v6739, %v6183
      %v6888 = vmax.bf16 %v6740, %v6186
      %v6889 = vmax.bf16 %v6741, %v6189
      %v6890 = vmax.bf16 %v6742, %v6752
      %v6891 = vmax.bf16 %v6743, %v6755
      %v6892 = vmax.bf16 %v6744, %v6758
      %v6893 = vmax.bf16 %v6745, %v6761
      %v6894 = vmax.bf16 %v6766, %v2084
      %v6895 = vmax.bf16 %v6767, %v2085
      %v6896 = vmax.bf16 %v6768, %v2086
      %v6897 = vmax.bf16 %v6769, %v2087
      %v6898 = vmax.bf16 %v6770, %v2088
      %v6899 = vmax.bf16 %v6771, %v2089
      %v6900 = vmax.bf16 %v6772, %v2090
      %v6901 = vmax.bf16 %v6773, %v2091
      %v6902 = vmax.bf16 %v6774, %v2092
      %v6903 = vmax.bf16 %v6775, %v2093
      %v6904 = vmax.bf16 %v6776, %v2094
      %v6905 = vmax.bf16 %v6777, %v2095
      %v6906 = vmax.bf16 %v6778, %v2096
      %v6907 = vmax.bf16 %v6779, %v2097
      %v6908 = vmax.bf16 %v6780, %v2098
      %v6909 = vmax.bf16 %v6781, %v2099
      %v6910 = vmax.bf16 %v6782, %v2100
      %v6911 = vmax.bf16 %v6783, %v2101
      %v6912 = vmax.bf16 %v6784, %v2102
      %v6913 = vmax.bf16 %v6785, %v2103
      %v6914 = vmax.bf16 %v6786, %v2104
      %v6915 = vmax.bf16 %v6787, %v2105
      %v6916 = vmax.bf16 %v6788, %v2106
      %v6917 = vmax.bf16 %v6789, %v2107
      %v6918 = vmax.bf16 %v6790, %v2108
      %v6919 = vmax.bf16 %v6791, %v2109
      %v6920 = vmax.bf16 %v6792, %v2110
      %v6921 = vmax.bf16 %v6793, %v2111
      %v6922 = vmax.bf16 %v6794, %v2112
      %v6923 = vmax.bf16 %v6795, %v2113
      %v6924 = vmax.bf16 %v6796, %v2114
      %v6925 = vmax.bf16 %v6797, %v2115
      %v6926 = vmax.bf16 %v6798, %v2116
      %v6927 = vmax.bf16 %v6799, %v2117
      %v6928 = vmax.bf16 %v6800, %v2118
      %v6929 = vmax.bf16 %v6801, %v2119
      %v6930 = vmax.bf16 %v6802, %v2120
      %v6931 = vmax.bf16 %v6803, %v2121
      %v6932 = vmax.bf16 %v6804, %v2122
      %v6933 = vmax.bf16 %v6805, %v2123
      %v6934 = vmax.bf16 %v6806, %v2124
      %v6935 = vmax.bf16 %v6807, %v2125
      %v6936 = vmax.bf16 %v6808, %v2126
      %v6937 = vmax.bf16 %v6809, %v2127
      %v6938 = vmax.bf16 %v6810, %v2128
      %v6939 = vmax.bf16 %v6811, %v2129
      %v6940 = vmax.bf16 %v6812, %v2130
      %v6941 = vmax.bf16 %v6813, %v2131
      %v6942 = vmax.bf16 %v6814, %v2132
      %v6943 = vmax.bf16 %v6815, %v2133
      %v6944 = vmax.bf16 %v6816, %v2134
      %v6945 = vmax.bf16 %v6817, %v2135
      %v6946 = vmax.bf16 %v6818, %v2136
      %v6947 = vmax.bf16 %v6819, %v2137
      %v6948 = vmax.bf16 %v6820, %v2138
      %v6949 = vmax.bf16 %v6821, %v2139
      %v6950 = vmax.bf16 %v6822, %v2140
      %v6951 = vmax.bf16 %v6823, %v2141
      %v6952 = vmax.bf16 %v6824, %v2142
      %v6953 = vmax.bf16 %v6825, %v2143
      %v6954 = vmax.bf16 %v6826, %v2144
      %v6955 = vmax.bf16 %v6827, %v2145
      %v6956 = vmax.bf16 %v6828, %v2146
      %v6957 = vmax.bf16 %v6829, %v2147
      %v6958 = vmax.bf16 %v6830, %v2148
      %v6959 = vmax.bf16 %v6831, %v2149
      %v6960 = vmax.bf16 %v6832, %v2150
      %v6961 = vmax.bf16 %v6833, %v2151
      %v6962 = vmax.bf16 %v6834, %v2152
      %v6963 = vmax.bf16 %v6835, %v2153
      %v6964 = vmax.bf16 %v6836, %v2154
      %v6965 = vmax.bf16 %v6837, %v2155
      %v6966 = vmax.bf16 %v6838, %v2156
      %v6967 = vmax.bf16 %v6839, %v2157
      %v6968 = vmax.bf16 %v6840, %v2158
      %v6969 = vmax.bf16 %v6841, %v2159
      %v6970 = vmax.bf16 %v6842, %v2160
      %v6971 = vmax.bf16 %v6843, %v2161
      %v6972 = vmax.bf16 %v6844, %v2162
      %v6973 = vmax.bf16 %v6845, %v2163
      %v6974 = vmax.bf16 %v6846, %v2164
      %v6975 = vmax.bf16 %v6847, %v2165
      %v6976 = vmax.bf16 %v6848, %v2166
      %v6977 = vmax.bf16 %v6849, %v2167
      %v6978 = vmax.bf16 %v6850, %v2168
      %v6979 = vmax.bf16 %v6851, %v2169
      %v6980 = vmax.bf16 %v6852, %v2170
      %v6981 = vmax.bf16 %v6853, %v2171
      %v6982 = vmax.bf16 %v6854, %v2172
      %v6983 = vmax.bf16 %v6855, %v2173
      %v6984 = vmax.bf16 %v6856, %v2174
      %v6985 = vmax.bf16 %v6857, %v2175
      %v6986 = vmax.bf16 %v6858, %v2176
      %v6987 = vmax.bf16 %v6859, %v2177
      %v6988 = vmax.bf16 %v6860, %v2178
      %v6989 = vmax.bf16 %v6861, %v2179
      %v6990 = vmax.bf16 %v6862, %v2180
      %v6991 = vmax.bf16 %v6863, %v2181
      %v6992 = vmax.bf16 %v6864, %v2182
      %v6993 = vmax.bf16 %v6865, %v2183
      %v6994 = vmax.bf16 %v6866, %v2184
      %v6995 = vmax.bf16 %v6867, %v2185
      %v6996 = vmax.bf16 %v6868, %v2186
      %v6997 = vmax.bf16 %v6869, %v2187
      %v6998 = vmax.bf16 %v6870, %v2188
      %v6999 = vmax.bf16 %v6871, %v2189
      %v7000 = vmax.bf16 %v6872, %v2190
      %v7001 = vmax.bf16 %v6873, %v2191
      %v7002 = vmax.bf16 %v6874, %v2192
      %v7003 = vmax.bf16 %v6875, %v2193
      %v7004 = vmax.bf16 %v6876, %v2194
      %v7005 = vmax.bf16 %v6877, %v2195
      %v7006 = vmax.bf16 %v6878, %v2196
      %v7007 = vmax.bf16 %v6879, %v2197
      %v7008 = vmax.bf16 %v6880, %v2198
      %v7009 = vmax.bf16 %v6881, %v2199
      %v7010 = vmax.bf16 %v6882, %v2200
      %v7011 = vmax.bf16 %v6883, %v2201
      %v7012 = vmax.bf16 %v6884, %v2202
      %v7013 = vmax.bf16 %v6885, %v2203
      %v7014 = vmax.bf16 %v6886, %v2204
      %v7015 = vmax.bf16 %v6887, %v2205
      %v7016 = vmax.bf16 %v6888, %v2206
      %v7017 = vmax.bf16 %v6889, %v2207
      %v7018 = vmax.bf16 %v6890, %v2208
      %v7019 = vmax.bf16 %v6891, %v2209
      %v7020 = vmax.bf16 %v6892, %v2210
      %v7021 = vmax.bf16 %v6893, %v2211
      %v7022 = vshrl.u32 %v303, 16
      %v7024 = vrot.slane %v7022, 4
      %v7025 = vor.u32 %v7024, %v6612
      %v7026 = vrot.slane %v7025, 4
      %v7028 = vshll.u32 %v304, 16
      %v7030 = vrot.slane %v7028, 5
      %v7031 = vsel %vm4132, %v7026, %v7030
      %v7032 = vshrl.u32 %v304, 16
      %v7034 = vrot.slane %v7032, 4
      %v7035 = vor.u32 %v7034, %v7030
      %v7036 = vrot.slane %v7035, 4
      %v7038 = vshll.u32 %v305, 16
      %v7040 = vrot.slane %v7038, 5
      %v7041 = vsel %vm4132, %v7036, %v7040
      %v7042 = vshrl.u32 %v305, 16
      %v7044 = vrot.slane %v7042, 4
      %v7045 = vor.u32 %v7044, %v7040
      %v7046 = vrot.slane %v7045, 4
      %v7048 = vshll.u32 %v306, 16
      %v7050 = vrot.slane %v7048, 5
      %v7051 = vsel %vm4132, %v7046, %v7050
      %v7052 = vshrl.u32 %v306, 16
      %v7054 = vrot.slane %v7052, 4
      %v7055 = vor.u32 %v7054, %v7050
      %v7056 = vrot.slane %v7055, 4
      %v7058 = vshll.u32 %v307, 16
      %v7060 = vrot.slane %v7058, 5
      %v7061 = vsel %vm4132, %v7056, %v7060
      %v7066 = vmax.bf16 %v6894, %v4226
      %v7067 = vmax.bf16 %v6895, %v4236
      %v7068 = vmax.bf16 %v6896, %v4246
      %v7069 = vmax.bf16 %v6897, %v4256
      %v7070 = vmax.bf16 %v6898, %v4266
      %v7071 = vmax.bf16 %v6899, %v4276
      %v7072 = vmax.bf16 %v6900, %v4286
      %v7073 = vmax.bf16 %v6901, %v4296
      %v7074 = vmax.bf16 %v6902, %v4306
      %v7075 = vmax.bf16 %v6903, %v4316
      %v7076 = vmax.bf16 %v6904, %v4326
      %v7077 = vmax.bf16 %v6905, %v4336
      %v7078 = vmax.bf16 %v6906, %v4346
      %v7079 = vmax.bf16 %v6907, %v4356
      %v7080 = vmax.bf16 %v6908, %v4366
      %v7081 = vmax.bf16 %v6909, %v4376
      %v7082 = vmax.bf16 %v6910, %v4386
      %v7083 = vmax.bf16 %v6911, %v4396
      %v7084 = vmax.bf16 %v6912, %v4406
      %v7085 = vmax.bf16 %v6913, %v4416
      %v7086 = vmax.bf16 %v6914, %v4426
      %v7087 = vmax.bf16 %v6915, %v4436
      %v7088 = vmax.bf16 %v6916, %v4446
      %v7089 = vmax.bf16 %v6917, %v4456
      %v7090 = vmax.bf16 %v6918, %v4466
      %v7091 = vmax.bf16 %v6919, %v4476
      %v7092 = vmax.bf16 %v6920, %v4486
      %v7093 = vmax.bf16 %v6921, %v4496
      %v7094 = vmax.bf16 %v6922, %v4506
      %v7095 = vmax.bf16 %v6923, %v4516
      %v7096 = vmax.bf16 %v6924, %v4526
      %v7097 = vmax.bf16 %v6925, %v4536
      %v7098 = vmax.bf16 %v6926, %v4546
      %v7099 = vmax.bf16 %v6927, %v4556
      %v7100 = vmax.bf16 %v6928, %v4566
      %v7101 = vmax.bf16 %v6929, %v4576
      %v7102 = vmax.bf16 %v6930, %v4586
      %v7103 = vmax.bf16 %v6931, %v4596
      %v7104 = vmax.bf16 %v6932, %v4606
      %v7105 = vmax.bf16 %v6933, %v4616
      %v7106 = vmax.bf16 %v6934, %v4626
      %v7107 = vmax.bf16 %v6935, %v4636
      %v7108 = vmax.bf16 %v6936, %v4646
      %v7109 = vmax.bf16 %v6937, %v4656
      %v7110 = vmax.bf16 %v6938, %v4666
      %v7111 = vmax.bf16 %v6939, %v4676
      %v7112 = vmax.bf16 %v6940, %v4686
      %v7113 = vmax.bf16 %v6941, %v4696
      %v7114 = vmax.bf16 %v6942, %v4706
      %v7115 = vmax.bf16 %v6943, %v4716
      %v7116 = vmax.bf16 %v6944, %v4726
      %v7117 = vmax.bf16 %v6945, %v4736
      %v7118 = vmax.bf16 %v6946, %v4746
      %v7119 = vmax.bf16 %v6947, %v4756
      %v7120 = vmax.bf16 %v6948, %v4766
      %v7121 = vmax.bf16 %v6949, %v4776
      %v7122 = vmax.bf16 %v6950, %v4786
      %v7123 = vmax.bf16 %v6951, %v4796
      %v7124 = vmax.bf16 %v6952, %v4806
      %v7125 = vmax.bf16 %v6953, %v4816
      %v7126 = vmax.bf16 %v6954, %v4826
      %v7127 = vmax.bf16 %v6955, %v4836
      %v7128 = vmax.bf16 %v6956, %v4846
      %v7129 = vmax.bf16 %v6957, %v4856
      %v7130 = vmax.bf16 %v6958, %v4866
      %v7131 = vmax.bf16 %v6959, %v4876
      %v7132 = vmax.bf16 %v6960, %v4886
      %v7133 = vmax.bf16 %v6961, %v4896
      %v7134 = vmax.bf16 %v6962, %v4906
      %v7135 = vmax.bf16 %v6963, %v4916
      %v7136 = vmax.bf16 %v6964, %v4926
      %v7137 = vmax.bf16 %v6965, %v4936
      %v7138 = vmax.bf16 %v6966, %v4946
      %v7139 = vmax.bf16 %v6967, %v4956
      %v7140 = vmax.bf16 %v6968, %v4966
      %v7141 = vmax.bf16 %v6969, %v4976
      %v7142 = vmax.bf16 %v6970, %v4986
      %v7143 = vmax.bf16 %v6971, %v4996
      %v7144 = vmax.bf16 %v6972, %v5006
      %v7145 = vmax.bf16 %v6973, %v5016
      %v7146 = vmax.bf16 %v6974, %v5026
      %v7147 = vmax.bf16 %v6975, %v5036
      %v7148 = vmax.bf16 %v6976, %v5046
      %v7149 = vmax.bf16 %v6977, %v5056
      %v7150 = vmax.bf16 %v6978, %v5066
      %v7151 = vmax.bf16 %v6979, %v5076
      %v7152 = vmax.bf16 %v6980, %v5086
      %v7153 = vmax.bf16 %v6981, %v5096
      %v7154 = vmax.bf16 %v6982, %v5106
      %v7155 = vmax.bf16 %v6983, %v5116
      %v7156 = vmax.bf16 %v6984, %v5126
      %v7157 = vmax.bf16 %v6985, %v5136
      %v7158 = vmax.bf16 %v6986, %v5146
      %v7159 = vmax.bf16 %v6987, %v5156
      %v7160 = vmax.bf16 %v6988, %v5166
      %v7161 = vmax.bf16 %v6989, %v5176
      %v7162 = vmax.bf16 %v6990, %v5186
      %v7163 = vmax.bf16 %v6991, %v5196
      %v7164 = vmax.bf16 %v6992, %v5206
      %v7165 = vmax.bf16 %v6993, %v5216
      %v7166 = vmax.bf16 %v6994, %v5226
      %v7167 = vmax.bf16 %v6995, %v5236
      %v7168 = vmax.bf16 %v6996, %v5246
      %v7169 = vmax.bf16 %v6997, %v5256
      %v7170 = vmax.bf16 %v6998, %v5266
      %v7171 = vmax.bf16 %v6999, %v5276
      %v7172 = vmax.bf16 %v7000, %v5286
      %v7173 = vmax.bf16 %v7001, %v5296
      %v7174 = vmax.bf16 %v7002, %v5306
      %v7175 = vmax.bf16 %v7003, %v5316
      %v7176 = vmax.bf16 %v7004, %v5326
      %v7177 = vmax.bf16 %v7005, %v5336
      %v7178 = vmax.bf16 %v7006, %v5346
      %v7179 = vmax.bf16 %v7007, %v5356
      %v7180 = vmax.bf16 %v7008, %v5366
      %v7181 = vmax.bf16 %v7009, %v5376
      %v7182 = vmax.bf16 %v7010, %v5386
      %v7183 = vmax.bf16 %v7011, %v5396
      %v7184 = vmax.bf16 %v7012, %v5406
      %v7185 = vmax.bf16 %v7013, %v5416
      %v7186 = vmax.bf16 %v7014, %v6583
      %v7187 = vmax.bf16 %v7015, %v6593
      %v7188 = vmax.bf16 %v7016, %v6603
      %v7189 = vmax.bf16 %v7017, %v6613
      %v7190 = vmax.bf16 %v7018, %v7031
      %v7191 = vmax.bf16 %v7019, %v7041
      %v7192 = vmax.bf16 %v7020, %v7051
      %v7193 = vmax.bf16 %v7021, %v7061
      %v7198 = vrot.slane %v6760, 4
      %v7199 = vrot.slane %v4126, 5
      %v7200 = vsel %vm5804, %v7198, %v7199
      %v7201 = vrot.slane %v7199, 4
      %v7202 = vrot.slane %v4127, 5
      %v7203 = vsel %vm5804, %v7201, %v7202
      %v7204 = vrot.slane %v7202, 4
      %v7205 = vrot.slane %v4128, 5
      %v7206 = vsel %vm5804, %v7204, %v7205
      %v7207 = vrot.slane %v7205, 4
      %v7208 = vrot.slane %v4129, 5
      %v7209 = vsel %vm5804, %v7207, %v7208
      %v7214 = vmax.bf16 %v7066, %v5832
      %v7215 = vmax.bf16 %v7067, %v5835
      %v7216 = vmax.bf16 %v7068, %v5838
      %v7217 = vmax.bf16 %v7069, %v5841
      %v7218 = vmax.bf16 %v7070, %v5844
      %v7219 = vmax.bf16 %v7071, %v5847
      %v7220 = vmax.bf16 %v7072, %v5850
      %v7221 = vmax.bf16 %v7073, %v5853
      %v7222 = vmax.bf16 %v7074, %v5856
      %v7223 = vmax.bf16 %v7075, %v5859
      %v7224 = vmax.bf16 %v7076, %v5862
      %v7225 = vmax.bf16 %v7077, %v5865
      %v7226 = vmax.bf16 %v7078, %v5868
      %v7227 = vmax.bf16 %v7079, %v5871
      %v7228 = vmax.bf16 %v7080, %v5874
      %v7229 = vmax.bf16 %v7081, %v5877
      %v7230 = vmax.bf16 %v7082, %v5880
      %v7231 = vmax.bf16 %v7083, %v5883
      %v7232 = vmax.bf16 %v7084, %v5886
      %v7233 = vmax.bf16 %v7085, %v5889
      %v7234 = vmax.bf16 %v7086, %v5892
      %v7235 = vmax.bf16 %v7087, %v5895
      %v7236 = vmax.bf16 %v7088, %v5898
      %v7237 = vmax.bf16 %v7089, %v5901
      %v7238 = vmax.bf16 %v7090, %v5904
      %v7239 = vmax.bf16 %v7091, %v5907
      %v7240 = vmax.bf16 %v7092, %v5910
      %v7241 = vmax.bf16 %v7093, %v5913
      %v7242 = vmax.bf16 %v7094, %v5916
      %v7243 = vmax.bf16 %v7095, %v5919
      %v7244 = vmax.bf16 %v7096, %v5922
      %v7245 = vmax.bf16 %v7097, %v5925
      %v7246 = vmax.bf16 %v7098, %v5928
      %v7247 = vmax.bf16 %v7099, %v5931
      %v7248 = vmax.bf16 %v7100, %v5934
      %v7249 = vmax.bf16 %v7101, %v5937
      %v7250 = vmax.bf16 %v7102, %v5940
      %v7251 = vmax.bf16 %v7103, %v5943
      %v7252 = vmax.bf16 %v7104, %v5946
      %v7253 = vmax.bf16 %v7105, %v5949
      %v7254 = vmax.bf16 %v7106, %v5952
      %v7255 = vmax.bf16 %v7107, %v5955
      %v7256 = vmax.bf16 %v7108, %v5958
      %v7257 = vmax.bf16 %v7109, %v5961
      %v7258 = vmax.bf16 %v7110, %v5964
      %v7259 = vmax.bf16 %v7111, %v5967
      %v7260 = vmax.bf16 %v7112, %v5970
      %v7261 = vmax.bf16 %v7113, %v5973
      %v7262 = vmax.bf16 %v7114, %v5976
      %v7263 = vmax.bf16 %v7115, %v5979
      %v7264 = vmax.bf16 %v7116, %v5982
      %v7265 = vmax.bf16 %v7117, %v5985
      %v7266 = vmax.bf16 %v7118, %v5988
      %v7267 = vmax.bf16 %v7119, %v5991
      %v7268 = vmax.bf16 %v7120, %v5994
      %v7269 = vmax.bf16 %v7121, %v5997
      %v7270 = vmax.bf16 %v7122, %v6000
      %v7271 = vmax.bf16 %v7123, %v6003
      %v7272 = vmax.bf16 %v7124, %v6006
      %v7273 = vmax.bf16 %v7125, %v6009
      %v7274 = vmax.bf16 %v7126, %v6012
      %v7275 = vmax.bf16 %v7127, %v6015
      %v7276 = vmax.bf16 %v7128, %v6018
      %v7277 = vmax.bf16 %v7129, %v6021
      %v7278 = vmax.bf16 %v7130, %v6024
      %v7279 = vmax.bf16 %v7131, %v6027
      %v7280 = vmax.bf16 %v7132, %v6030
      %v7281 = vmax.bf16 %v7133, %v6033
      %v7282 = vmax.bf16 %v7134, %v6036
      %v7283 = vmax.bf16 %v7135, %v6039
      %v7284 = vmax.bf16 %v7136, %v6042
      %v7285 = vmax.bf16 %v7137, %v6045
      %v7286 = vmax.bf16 %v7138, %v6048
      %v7287 = vmax.bf16 %v7139, %v6051
      %v7288 = vmax.bf16 %v7140, %v6054
      %v7289 = vmax.bf16 %v7141, %v6057
      %v7290 = vmax.bf16 %v7142, %v6060
      %v7291 = vmax.bf16 %v7143, %v6063
      %v7292 = vmax.bf16 %v7144, %v6066
      %v7293 = vmax.bf16 %v7145, %v6069
      %v7294 = vmax.bf16 %v7146, %v6072
      %v7295 = vmax.bf16 %v7147, %v6075
      %v7296 = vmax.bf16 %v7148, %v6078
      %v7297 = vmax.bf16 %v7149, %v6081
      %v7298 = vmax.bf16 %v7150, %v6084
      %v7299 = vmax.bf16 %v7151, %v6087
      %v7300 = vmax.bf16 %v7152, %v6090
      %v7301 = vmax.bf16 %v7153, %v6093
      %v7302 = vmax.bf16 %v7154, %v6096
      %v7303 = vmax.bf16 %v7155, %v6099
      %v7304 = vmax.bf16 %v7156, %v6102
      %v7305 = vmax.bf16 %v7157, %v6105
      %v7306 = vmax.bf16 %v7158, %v6108
      %v7307 = vmax.bf16 %v7159, %v6111
      %v7308 = vmax.bf16 %v7160, %v6114
      %v7309 = vmax.bf16 %v7161, %v6117
      %v7310 = vmax.bf16 %v7162, %v6120
      %v7311 = vmax.bf16 %v7163, %v6123
      %v7312 = vmax.bf16 %v7164, %v6126
      %v7313 = vmax.bf16 %v7165, %v6129
      %v7314 = vmax.bf16 %v7166, %v6132
      %v7315 = vmax.bf16 %v7167, %v6135
      %v7316 = vmax.bf16 %v7168, %v6138
      %v7317 = vmax.bf16 %v7169, %v6141
      %v7318 = vmax.bf16 %v7170, %v6144
      %v7319 = vmax.bf16 %v7171, %v6147
      %v7320 = vmax.bf16 %v7172, %v6150
      %v7321 = vmax.bf16 %v7173, %v6153
      %v7322 = vmax.bf16 %v7174, %v6156
      %v7323 = vmax.bf16 %v7175, %v6159
      %v7324 = vmax.bf16 %v7176, %v6162
      %v7325 = vmax.bf16 %v7177, %v6165
      %v7326 = vmax.bf16 %v7178, %v6168
      %v7327 = vmax.bf16 %v7179, %v6171
      %v7328 = vmax.bf16 %v7180, %v6174
      %v7329 = vmax.bf16 %v7181, %v6177
      %v7330 = vmax.bf16 %v7182, %v6180
      %v7331 = vmax.bf16 %v7183, %v6183
      %v7332 = vmax.bf16 %v7184, %v6186
      %v7333 = vmax.bf16 %v7185, %v6189
      %v7334 = vmax.bf16 %v7186, %v6752
      %v7335 = vmax.bf16 %v7187, %v6755
      %v7336 = vmax.bf16 %v7188, %v6758
      %v7337 = vmax.bf16 %v7189, %v6761
      %v7338 = vmax.bf16 %v7190, %v7200
      %v7339 = vmax.bf16 %v7191, %v7203
      %v7340 = vmax.bf16 %v7192, %v7206
      %v7341 = vmax.bf16 %v7193, %v7209
      %7342 = vst [vmem:[%s170] sm:$0xf] %v7214
      %7343 = vst [vmem:[%s170 + $0x4] sm:$0xf] %v7215
      %7344 = vst [vmem:[%s170 + $0x8] sm:$0xf] %v7216
      %7345 = vst [vmem:[%s170 + $0xc] sm:$0xf] %v7217
      %7346 = vst [vmem:[%s170 + $0x10] sm:$0xf] %v7218
      %7347 = vst [vmem:[%s170 + $0x14] sm:$0xf] %v7219
      %7348 = vst [vmem:[%s170 + $0x18] sm:$0xf] %v7220
      %7349 = vst [vmem:[%s170 + $0x1c] sm:$0xf] %v7221
      %7350 = vst [vmem:[%s170 + $0x20] sm:$0xf] %v7222
      %7351 = vst [vmem:[%s170 + $0x24] sm:$0xf] %v7223
      %7352 = vst [vmem:[%s170 + $0x28] sm:$0xf] %v7224
      %7353 = vst [vmem:[%s170 + $0x2c] sm:$0xf] %v7225
      %7354 = vst [vmem:[%s170 + $0x30] sm:$0xf] %v7226
      %7355 = vst [vmem:[%s170 + $0x34] sm:$0xf] %v7227
      %7356 = vst [vmem:[%s170 + $0x38] sm:$0xf] %v7228
      %7357 = vst [vmem:[%s170 + $0x3c] sm:$0xf] %v7229
      %7358 = vst [vmem:[%s170 + $0x40] sm:$0xf] %v7230
      %7359 = vst [vmem:[%s170 + $0x44] sm:$0xf] %v7231
      %7360 = vst [vmem:[%s170 + $0x48] sm:$0xf] %v7232
      %7361 = vst [vmem:[%s170 + $0x4c] sm:$0xf] %v7233
      %7362 = vst [vmem:[%s170 + $0x50] sm:$0xf] %v7234
      %7363 = vst [vmem:[%s170 + $0x54] sm:$0xf] %v7235
      %7364 = vst [vmem:[%s170 + $0x58] sm:$0xf] %v7236
      %7365 = vst [vmem:[%s170 + $0x5c] sm:$0xf] %v7237
      %7366 = vst [vmem:[%s170 + $0x60] sm:$0xf] %v7238
      %7367 = vst [vmem:[%s170 + $0x64] sm:$0xf] %v7239
      %7368 = vst [vmem:[%s170 + $0x68] sm:$0xf] %v7240
      %7369 = vst [vmem:[%s170 + $0x6c] sm:$0xf] %v7241
      %7370 = vst [vmem:[%s170 + $0x70] sm:$0xf] %v7242
      %7371 = vst [vmem:[%s170 + $0x74] sm:$0xf] %v7243
      %7372 = vst [vmem:[%s170 + $0x78] sm:$0xf] %v7244
      %7373 = vst [vmem:[%s170 + $0x7c] sm:$0xf] %v7245
      %7374 = vst [vmem:[%s170 + $0x80] sm:$0xf] %v7246
      %7375 = vst [vmem:[%s170 + $0x84] sm:$0xf] %v7247
      %7376 = vst [vmem:[%s170 + $0x88] sm:$0xf] %v7248
      %7377 = vst [vmem:[%s170 + $0x8c] sm:$0xf] %v7249
      %7378 = vst [vmem:[%s170 + $0x90] sm:$0xf] %v7250
      %7379 = vst [vmem:[%s170 + $0x94] sm:$0xf] %v7251
      %7380 = vst [vmem:[%s170 + $0x98] sm:$0xf] %v7252
      %7381 = vst [vmem:[%s170 + $0x9c] sm:$0xf] %v7253
      %7382 = vst [vmem:[%s170 + $0xa0] sm:$0xf] %v7254
      %7383 = vst [vmem:[%s170 + $0xa4] sm:$0xf] %v7255
      %7384 = vst [vmem:[%s170 + $0xa8] sm:$0xf] %v7256
      %7385 = vst [vmem:[%s170 + $0xac] sm:$0xf] %v7257
      %7386 = vst [vmem:[%s170 + $0xb0] sm:$0xf] %v7258
      %7387 = vst [vmem:[%s170 + $0xb4] sm:$0xf] %v7259
      %7388 = vst [vmem:[%s170 + $0xb8] sm:$0xf] %v7260
      %7389 = vst [vmem:[%s170 + $0xbc] sm:$0xf] %v7261
      %7390 = vst [vmem:[%s170 + $0xc0] sm:$0xf] %v7262
      %7391 = vst [vmem:[%s170 + $0xc4] sm:$0xf] %v7263
      %7392 = vst [vmem:[%s170 + $0xc8] sm:$0xf] %v7264
      %7393 = vst [vmem:[%s170 + $0xcc] sm:$0xf] %v7265
      %7394 = vst [vmem:[%s170 + $0xd0] sm:$0xf] %v7266
      %7395 = vst [vmem:[%s170 + $0xd4] sm:$0xf] %v7267
      %7396 = vst [vmem:[%s170 + $0xd8] sm:$0xf] %v7268
      %7397 = vst [vmem:[%s170 + $0xdc] sm:$0xf] %v7269
      %7398 = vst [vmem:[%s170 + $0xe0] sm:$0xf] %v7270
      %7399 = vst [vmem:[%s170 + $0xe4] sm:$0xf] %v7271
      %7400 = vst [vmem:[%s170 + $0xe8] sm:$0xf] %v7272
      %7401 = vst [vmem:[%s170 + $0xec] sm:$0xf] %v7273
      %7402 = vst [vmem:[%s170 + $0xf0] sm:$0xf] %v7274
      %7403 = vst [vmem:[%s170 + $0xf4] sm:$0xf] %v7275
      %7404 = vst [vmem:[%s170 + $0xf8] sm:$0xf] %v7276
      %7405 = vst [vmem:[%s170 + $0xfc] sm:$0xf] %v7277
      %7406 = vst [vmem:[%s170 + $0x100] sm:$0xf] %v7278
      %7407 = vst [vmem:[%s170 + $0x104] sm:$0xf] %v7279
      %7408 = vst [vmem:[%s170 + $0x108] sm:$0xf] %v7280
      %7409 = vst [vmem:[%s170 + $0x10c] sm:$0xf] %v7281
      %7410 = vst [vmem:[%s170 + $0x110] sm:$0xf] %v7282
      %7411 = vst [vmem:[%s170 + $0x114] sm:$0xf] %v7283
      %7412 = vst [vmem:[%s170 + $0x118] sm:$0xf] %v7284
      %7413 = vst [vmem:[%s170 + $0x11c] sm:$0xf] %v7285
      %7414 = vst [vmem:[%s170 + $0x120] sm:$0xf] %v7286
      %7415 = vst [vmem:[%s170 + $0x124] sm:$0xf] %v7287
      %7416 = vst [vmem:[%s170 + $0x128] sm:$0xf] %v7288
      %7417 = vst [vmem:[%s170 + $0x12c] sm:$0xf] %v7289
      %7418 = vst [vmem:[%s170 + $0x130] sm:$0xf] %v7290
      %7419 = vst [vmem:[%s170 + $0x134] sm:$0xf] %v7291
      %7420 = vst [vmem:[%s170 + $0x138] sm:$0xf] %v7292
      %7421 = vst [vmem:[%s170 + $0x13c] sm:$0xf] %v7293
      %7422 = vst [vmem:[%s170 + $0x140] sm:$0xf] %v7294
      %7423 = vst [vmem:[%s170 + $0x144] sm:$0xf] %v7295
      %7424 = vst [vmem:[%s170 + $0x148] sm:$0xf] %v7296
      %7425 = vst [vmem:[%s170 + $0x14c] sm:$0xf] %v7297
      %7426 = vst [vmem:[%s170 + $0x150] sm:$0xf] %v7298
      %7427 = vst [vmem:[%s170 + $0x154] sm:$0xf] %v7299
      %7428 = vst [vmem:[%s170 + $0x158] sm:$0xf] %v7300
      %7429 = vst [vmem:[%s170 + $0x15c] sm:$0xf] %v7301
      %7430 = vst [vmem:[%s170 + $0x160] sm:$0xf] %v7302
      %7431 = vst [vmem:[%s170 + $0x164] sm:$0xf] %v7303
      %7432 = vst [vmem:[%s170 + $0x168] sm:$0xf] %v7304
      %7433 = vst [vmem:[%s170 + $0x16c] sm:$0xf] %v7305
      %7434 = vst [vmem:[%s170 + $0x170] sm:$0xf] %v7306
      %7435 = vst [vmem:[%s170 + $0x174] sm:$0xf] %v7307
      %7436 = vst [vmem:[%s170 + $0x178] sm:$0xf] %v7308
      %7437 = vst [vmem:[%s170 + $0x17c] sm:$0xf] %v7309
      %7438 = vst [vmem:[%s170 + $0x180] sm:$0xf] %v7310
      %7439 = vst [vmem:[%s170 + $0x184] sm:$0xf] %v7311
      %7440 = vst [vmem:[%s170 + $0x188] sm:$0xf] %v7312
      %7441 = vst [vmem:[%s170 + $0x18c] sm:$0xf] %v7313
      %7442 = vst [vmem:[%s170 + $0x190] sm:$0xf] %v7314
      %7443 = vst [vmem:[%s170 + $0x194] sm:$0xf] %v7315
      %7444 = vst [vmem:[%s170 + $0x198] sm:$0xf] %v7316
      %7445 = vst [vmem:[%s170 + $0x19c] sm:$0xf] %v7317
      %7446 = vst [vmem:[%s170 + $0x1a0] sm:$0xf] %v7318
      %7447 = vst [vmem:[%s170 + $0x1a4] sm:$0xf] %v7319
      %7448 = vst [vmem:[%s170 + $0x1a8] sm:$0xf] %v7320
      %7449 = vst [vmem:[%s170 + $0x1ac] sm:$0xf] %v7321
      %7450 = vst [vmem:[%s170 + $0x1b0] sm:$0xf] %v7322
      %7451 = vst [vmem:[%s170 + $0x1b4] sm:$0xf] %v7323
      %7452 = vst [vmem:[%s170 + $0x1b8] sm:$0xf] %v7324
      %7453 = vst [vmem:[%s170 + $0x1bc] sm:$0xf] %v7325
      %7454 = vst [vmem:[%s170 + $0x1c0] sm:$0xf] %v7326
      %7455 = vst [vmem:[%s170 + $0x1c4] sm:$0xf] %v7327
      %7456 = vst [vmem:[%s170 + $0x1c8] sm:$0xf] %v7328
      %7457 = vst [vmem:[%s170 + $0x1cc] sm:$0xf] %v7329
      %7458 = vst [vmem:[%s170 + $0x1d0] sm:$0xf] %v7330
      %7459 = vst [vmem:[%s170 + $0x1d4] sm:$0xf] %v7331
      %7460 = vst [vmem:[%s170 + $0x1d8] sm:$0xf] %v7332
      %7461 = vst [vmem:[%s170 + $0x1dc] sm:$0xf] %v7333
      %7462 = vst [vmem:[%s170 + $0x1e0] sm:$0xf] %v7334
      %7463 = vst [vmem:[%s170 + $0x1e4] sm:$0xf] %v7335
      %7464 = vst [vmem:[%s170 + $0x1e8] sm:$0xf] %v7336
      %7465 = vst [vmem:[%s170 + $0x1ec] sm:$0xf] %v7337
      %7466 = vst [vmem:[%s170 + $0x1f0] sm:$0xf] %v7338
      %7467 = vst [vmem:[%s170 + $0x1f4] sm:$0xf] %v7339
      %7468 = vst [vmem:[%s170 + $0x1f8] sm:$0xf] %v7340
      %7469 = vst [vmem:[%s170 + $0x1fc] sm:$0xf] %v7341
      %p7470 = scmp.lt.s32.totalorder %s14, 1
      %s7471 = scalar_select %p7470, %s14, 1
      %s7472 = smul.addr %s7471, 128
      %s7473 = smul.addr %s7472, 4
      %s7474 = scalar_lea.vmem %s3, %s7473
      // Predicated region
      $region33: #{_stem_forward.3} parent=31 // pred_check
        %p7475 = pneg %p100
      $region34: #{_stem_forward.3} parent=31 // pred_check_branch
        %7477 = sbr.rel (%p7475) target = $region36
      $region35: #{_stem_forward.3} parent=31 // pred_region
        _
      $region36: #{_stem_forward.3} parent=31 // pred_fallthru
        _
    $region32: #{_stem_forward.3} parent=5 // pred_fallthru
      _
    %p7478 = scmp.le.s32.totalorder 2, %s9
    // Predicated region
    $region37: #{_stem_forward.3} parent=5 // pred_check
      %p7479 = pneg %p7478
    $region38: #{_stem_forward.3} parent=5 // pred_check_branch
      %7481 = sbr.rel (%p7479) target = $region40
    $region39: #{_stem_forward.3} parent=5 // pred_region
      %s7482 = ssub.s32 %s9, 2
      // Predicated region
      $region41: #{_stem_forward.3} parent=39 // pred_check
        %p7483 = pneg %p106
      $region42: #{_stem_forward.3} parent=39 // pred_check_branch
        %7485 = sbr.rel (%p7483) target = $region44
      $region43: #{_stem_forward.3} parent=39 // pred_region
        %p7486 = scmp.lt.s32.totalorder %s15, 1
        %s7487 = scalar_select %p7486, %s15, 1
        %s7488 = smul.addr %s7487, 128
        %s7489 = smul.addr %s7488, 4
        %s7490 = scalar_lea.vmem %s3, %s7489
      $region44: #{_stem_forward.3} parent=39 // pred_fallthru
        _
    $region40: #{_stem_forward.3} parent=5 // pred_fallthru
      _
  $region6: #{_stem_forward.3} parent=0 // loop_footer
    %s13 = sadd.s32 1, %s9
  $region7: #{_stem_forward.3} parent=0 // loop_footer_branch
    %8 = sbr.rel target = $region3
  $region8: #{_stem_forward.3} parent=0 // loop_exit
    _

</llo_original>
